<compile_context>
chip_gen: v6e
topology: v6e:2x2x1
jax: 0.10.0
libtpu: 0.0.40
codegen_flags: <defaults>
</compile_context>

<pallas_src>
import jax
import jax.numpy as jnp
from jax.experimental import pallas as pl
from jax.experimental.pallas import tpu as pltpu

TAU = 1.5          # tau_thr in the PyTorch module
V_TH = 1.0         # spikingjelly LIF default threshold
V_RESET = 0.0      # spikingjelly LIF default hard-reset value
BN_EPS = 1e-5
ACT_DTYPE = jnp.bfloat16   # inter-stage activation storage (halves HBM traffic)
# NOTE: bf16 activations can flip borderline spikes vs an f32 reference; set
# ACT_DTYPE = jnp.float32 if bit-level agreement with PyTorch is required.


def _round_up(x, m):
    return ((x + m - 1) // m) * m


# --------------------------------------------------------------------------
# 3x3 conv (stride 1, pad 1, no bias) fused with inference-mode BatchNorm.
# BN scale is pre-folded into the (bf16) weights; the kernel adds only the
# f32 shift.  Zero padding + im2col happen in VMEM; one MXU dot with
# K = 9*Cin and M = Nb*H*W (several images batched per grid step).
# --------------------------------------------------------------------------
def _conv_bn_kernel(x_ref, w_ref, shift_ref, o_ref):
    Nb, H, W, Cin = x_ref.shape
    Cout = w_ref.shape[1]

    x = x_ref[...].astype(jnp.bfloat16)                # (Nb, H, W, Cin)
    w = w_ref[...]                                     # (9*Cin, Cout) bf16
    shift = shift_ref[...]                             # (1, Cout) f32

    # zero-pad spatially in VMEM (bf16 -> half the footprint of the old f32 path)
    zr = jnp.zeros((Nb, 1, W, Cin), x.dtype)
    xp = jnp.concatenate([zr, x, zr], axis=1)          # (Nb, H+2, W, Cin)
    zc = jnp.zeros((Nb, H + 2, 1, Cin), x.dtype)
    xp = jnp.concatenate([zc, xp, zc], axis=2)         # (Nb, H+2, W+2, Cin)

    # im2col: one lane-concat of the 9 taps, then a single collapse reshape.
    taps = [xp[:, ky:ky + H, kx:kx + W, :]
            for ky in range(3) for kx in range(3)]
    lhs = jnp.concatenate(taps, axis=-1)               # (Nb, H, W, 9*Cin) bf16

    if W % 8 == 0:
        # Lane/sublane-friendly collapse: one bf16 MXU dot, M = Nb*H*W.
        out = jnp.dot(lhs.reshape(Nb * H * W, 9 * Cin), w,
                      preferred_element_type=jnp.float32) + shift
        out = out.reshape(Nb, H, W, Cout)
    else:
        # Tiny-spatial tail (W < 8): per-(image,row) dots, no sublane-crossing
        # reshapes.  Data here is tiny; overhead is negligible.
        rows = []
        for n in range(Nb):
            for h in range(H):
                rows.append(jnp.dot(lhs[n, h], w,
                                    preferred_element_type=jnp.float32) + shift)
        out = jnp.stack(rows, axis=0).reshape(Nb, H, W, Cout)

    o_ref[...] = out.astype(o_ref.dtype)


def _pick_conv_batch(N, H, W, Cin, Cout,
                     budget_bytes=8 * 1024 * 1024, target_m=512):
    # Largest useful divisor of N: fill the MXU M dim (>= target_m rows) while
    # keeping the per-step VMEM footprint (real dtypes + lane/sublane padding)
    # under a budget that fits every chip's default scoped VMEM.
    lanes_in = _round_up(Cin, 128)
    lanes_k = _round_up(9 * Cin, 128)
    lanes_out = _round_up(Cout, 128)
    sub_w = _round_up(W, 8)
    per_img = (2 * H * sub_w * lanes_in * 2            # input block, x2 buffers (bf16)
               + 2 * H * sub_w * lanes_out * 4         # output block, x2 buffers (<=f32)
               + (H + 2) * _round_up(W + 2, 8) * lanes_in * 2   # padded copy (bf16)
               + H * sub_w * lanes_k * 2)              # im2col matrix (bf16)
    divisors = [d for d in range(1, N + 1)
                if N % d == 0 and d * per_img <= budget_bytes]
    if not divisors:
        return 1
    for d in divisors:
        if d * H * W >= target_m:
            return d
    return divisors[-1]


def conv3x3_bn(x, w9, shift, *, out_dtype):
    # x: (N, H, W, Cin) NHWC; w9: (9*Cin, Cout) bf16 (BN scale folded in);
    # shift: (Cout,) f32.
    N, H, W, Cin = x.shape
    K, Cout = w9.shape
    Nb = _pick_conv_batch(N, H, W, Cin, Cout)
    return pl.pallas_call(
        _conv_bn_kernel,
        out_shape=jax.ShapeDtypeStruct((N, H, W, Cout), out_dtype),
        grid=(N // Nb,),
        in_specs=[
            pl.BlockSpec((Nb, H, W, Cin), lambda n: (n, 0, 0, 0)),
            pl.BlockSpec((K, Cout), lambda n: (0, 0)),
            pl.BlockSpec((1, Cout), lambda n: (0, 0)),
        ],
        out_specs=pl.BlockSpec((Nb, H, W, Cout), lambda n: (n, 0, 0, 0)),
        compiler_params=pltpu.CompilerParams(
            dimension_semantics=("parallel",)),
    )(x, w9, shift.reshape(1, Cout))


# --------------------------------------------------------------------------
# Fused LIF (multi-step, hard reset) + MaxPool2d(3, stride=2, pad=1).
# Grid = (B, pooled-row tiles, T); T is the innermost sequential axis and the
# membrane potential is carried in a persistent f32 VMEM scratch (zeroed at
# t == 0).  Pooling borders use a clamped 1-row top halo: exact for spikes,
# since max over a window of non-negative values is unchanged by replacing the
# zero pad with a duplicated in-bounds row/column.
# --------------------------------------------------------------------------
def _lif_pool_kernel(xm_ref, xh_ref, o_ref, v_ref, p_ref):
    t = pl.program_id(2)
    two_tho = xm_ref.shape[2]          # 2 * tile_Ho
    tho = two_tho // 2
    W, C = xm_ref.shape[3], xm_ref.shape[4]
    Wo = o_ref.shape[3]
    inv_tau = 1.0 / TAU

    @pl.when(t == 0)
    def _():
        v_ref[...] = jnp.zeros_like(v_ref)

    # tile rows: [halo row (2*i*tho - 1, clamped), main rows 2*i*tho .. )
    x_t = jnp.concatenate(
        [xh_ref[0, 0].astype(jnp.float32),
         xm_ref[0, 0].astype(jnp.float32)], axis=0)     # (2*tho+1, W, C)

    # LIF: v += (x - v) / tau ; spike = v >= 1 ; hard reset to 0
    # (elementwise math kept in f32 -- v5e has no bf16 VPU)
    v = v_ref[...]
    v = v + (x_t - v) * inv_tau
    spike = v >= V_TH
    v_ref[...] = jnp.where(spike, V_RESET, v)
    s = spike.astype(jnp.float32)

    # Separable 3x3 / stride-2 / pad-1 max-pool of the spike map, in VMEM.
    # Column-neighbour max via shift-concats (no strided reads, no full store).
    zc = jnp.zeros((two_tho + 1, 1, C), jnp.float32)
    left = jnp.concatenate([zc, s[:, :W - 1, :]], axis=1)     # col j-1 (0-pad at j=0)
    right = jnp.concatenate([s[:, 1:, :], zc], axis=1)        # col j+1
    m = jnp.maximum(jnp.maximum(left, s), right)              # (2*tho+1, W, C)

    # Row pooling first (leading-dim regrouping only): rows {2j, 2j+1, 2j+2}.
    a = m[0:two_tho].reshape(tho, 2, W, C).max(axis=1)
    b = m[1:two_tho + 1].reshape(tho, 2, W, C)[:, 1]
    p_ref[...] = jnp.maximum(a, b)                            # (tho, W, C)

    # Stride-2 column down-select (pooled col k = m at col 2k).
    o_ref[0, 0] = p_ref[:, pl.ds(0, Wo, stride=2), :].astype(o_ref.dtype)


def _pick_row_tile(Ho, W, Wo, C, budget_bytes=8 * 1024 * 1024):
    # Largest divisor of Ho whose per-step working set (bf16 in/out blocks x2
    # buffers + f32 carry & pool scratch, with lane/sublane padding) fits a
    # budget safe under every chip's default scoped VMEM.
    lanes = _round_up(C, 128)
    sub_w = _round_up(W, 8)
    sub_wo = _round_up(Wo, 8)
    best = 1
    for tho in range(1, Ho + 1):
        if Ho % tho:
            continue
        in_bytes = 2 * (2 * tho + 1) * sub_w * lanes * 2      # main + halo, x2 buffers
        out_bytes = 2 * tho * sub_wo * lanes * 2              # output, x2 buffers
        scratch = ((2 * tho + 1) + tho) * sub_w * lanes * 4   # f32 v carry + pool buf
        if in_bytes + out_bytes + scratch <= budget_bytes:
            best = tho
    return best


def lif_maxpool(x):
    # x: (T, B, H, W, C) conv+bn output -> (T, B, H//2, W//2, C) pooled spikes
    T, B, H, W, C = x.shape
    Ho, Wo = H // 2, W // 2
    tho = _pick_row_tile(Ho, W, Wo, C)
    n_tiles = Ho // tho
    return pl.pallas_call(
        _lif_pool_kernel,
        out_shape=jax.ShapeDtypeStruct((T, B, Ho, Wo, C), ACT_DTYPE),
        grid=(B, n_tiles, T),
        in_specs=[
            # main rows of the tile: rows [2*i*tho, 2*(i+1)*tho)
            pl.BlockSpec((1, 1, 2 * tho, W, C),
                         lambda b, i, t: (t, b, i, 0, 0)),
            # one-row top halo: row 2*i*tho - 1, clamped to 0 (exact for spikes)
            pl.BlockSpec((1, 1, 1, W, C),
                         lambda b, i, t: (t, b,
                                          jnp.maximum(i * 2 * tho - 1, 0),
                                          0, 0)),
        ],
        out_specs=pl.BlockSpec((1, 1, tho, Wo, C),
                               lambda b, i, t: (t, b, i, 0, 0)),
        scratch_shapes=[
            pltpu.VMEM((2 * tho + 1, W, C), jnp.float32),   # membrane potential carry
            pltpu.VMEM((tho, W, C), jnp.float32),           # row-pooled buffer
        ],
        compiler_params=pltpu.CompilerParams(
            dimension_semantics=("parallel", "parallel", "arbitrary")),
    )(x, x)


# --------------------------------------------------------------------------
# Parameter construction (deterministic, synthetic).  BatchNorm is realized in
# inference mode; its scale is folded into the conv weights host-side and the
# folded weights are stored in bf16 (MXU-native).
# --------------------------------------------------------------------------
def init_params(key, in_channels, embed_dims):
    dims = [in_channels, embed_dims // 8, embed_dims // 4,
            embed_dims // 2, embed_dims, embed_dims]
    params = []
    for i in range(5):
        cin, cout = dims[i], dims[i + 1]
        key, kw, kg, kb, km, kv = jax.random.split(key, 6)
        w = 0.1 * jax.random.normal(kw, (3, 3, cin, cout), jnp.float32)
        gamma = 1.0 + 0.1 * jax.random.normal(kg, (cout,), jnp.float32)
        beta = 0.1 * jax.random.normal(kb, (cout,), jnp.float32)
        mean = 0.1 * jax.random.normal(km, (cout,), jnp.float32)
        var = jnp.abs(jax.random.normal(kv, (cout,), jnp.float32)) + 0.5
        scale = gamma * jax.lax.rsqrt(var + BN_EPS)
        shift = (beta - mean * scale).astype(jnp.float32)
        w_folded = (w * scale).reshape(9 * cin, cout).astype(jnp.bfloat16)
        params.append((w_folded, shift))
    return params


# --------------------------------------------------------------------------
# Full SpikingTokenizer forward
# --------------------------------------------------------------------------
def spiking_tokenizer(x, params):
    # x: (T, B, C, H, W) -- same convention as the PyTorch module
    T, B, C, H, W = x.shape
    y = jnp.transpose(x.reshape(T * B, C, H, W), (0, 2, 3, 1))  # -> NHWC
    y = y.astype(jnp.bfloat16)

    # stage 0: proj_conv + proj_bn
    y = conv3x3_bn(y, *params[0], out_dtype=ACT_DTYPE)

    h, w = H, W
    for i in range(1, 5):
        c = y.shape[-1]
        # proj{i}_lif + maxpool{i}, fused (T on a sequential grid axis)
        y = lif_maxpool(y.reshape(T, B, h, w, c))
        h, w = h // 2, w // 2
        y = y.reshape(T * B, h, w, c)
        # proj{i}_conv + proj{i}_bn
        last = (i == 4)
        y = conv3x3_bn(y, *params[i],
                       out_dtype=jnp.float32 if last else ACT_DTYPE)

    E = y.shape[-1]
    out = jnp.transpose(y.reshape(T, B, h, w, E), (0, 1, 4, 2, 3))
    return out, (None, None)


if __name__ == "__main__":
    key = jax.random.PRNGKey(0)
    # Small shapes consistent with the module: H, W must be multiples of 16.
    T, B, C, H, W, E = 2, 2, 2, 16, 16, 32
    kx, kp = jax.random.split(key)
    x = jax.random.normal(kx, (T, B, C, H, W), jnp.float32)
    params = init_params(kp, C, E)

    out, _ = jax.jit(spiking_tokenizer)(x, params)
    out = jax.block_until_ready(out)
    assert out.shape == (T, B, E, H // 16, W // 16), out.shape
    assert out.dtype == jnp.float32
    print("KERNEL_OK")
</pallas_src>

<mosaic_0001>
module attributes {stable_mosaic.version = 11 : i64} {
  func.func @_conv_bn_kernel(%arg0: i32, %arg1: memref<2x16x16x2xbf16, #tpu.memory_space<vmem>>, %arg2: memref<18x4xbf16, #tpu.memory_space<vmem>>, %arg3: memref<1x4xf32, #tpu.memory_space<vmem>>, %arg4: memref<2x16x16x4xbf16, #tpu.memory_space<vmem>>) attributes {dimension_semantics = [#tpu.dimension_semantics<parallel>], iteration_bounds = array<i64: 2>, scalar_prefetch = 0 : i64, scratch_operands = 0 : i64, tpu.core_type = #tpu.core_type<tc>, window_params = [{transform_indices = @transform_0, window_bounds = array<i64: 2, 16, 16, 2>}, {pipeline_mode = #tpu.pipeline_mode<synchronous>, transform_indices = @transform_1, window_bounds = array<i64: 18, 4>}, {pipeline_mode = #tpu.pipeline_mode<synchronous>, transform_indices = @transform_2, window_bounds = array<i64: 1, 4>}, {transform_indices = @transform_3, window_bounds = array<i64: 2, 16, 16, 4>}]} {
    %c0 = arith.constant 0 : index
    %c0_0 = arith.constant 0 : index
    %c0_1 = arith.constant 0 : index
    %c0_2 = arith.constant 0 : index
    %0 = vector.load %arg1[%c0, %c0_0, %c0_1, %c0_2] : memref<2x16x16x2xbf16, #tpu.memory_space<vmem>>, vector<2x16x16x2xbf16>
    %c0_3 = arith.constant 0 : index
    %c0_4 = arith.constant 0 : index
    %1 = vector.load %arg2[%c0_3, %c0_4] : memref<18x4xbf16, #tpu.memory_space<vmem>>, vector<18x4xbf16>
    %c0_5 = arith.constant 0 : index
    %c0_6 = arith.constant 0 : index
    %2 = vector.load %arg3[%c0_5, %c0_6] : memref<1x4xf32, #tpu.memory_space<vmem>>, vector<1x4xf32>
    %cst = arith.constant 0.000000e+00 : bf16
    %3 = vector.broadcast %cst : bf16 to vector<2x1x16x2xbf16>
    %4 = tpu.concatenate %3, %0, %3 in 1 : vector<2x1x16x2xbf16>, vector<2x16x16x2xbf16>, vector<2x1x16x2xbf16> -> vector<2x18x16x2xbf16>
    %cst_7 = arith.constant 0.000000e+00 : bf16
    %5 = vector.broadcast %cst_7 : bf16 to vector<2x18x1x2xbf16>
    %6 = tpu.concatenate %5, %4, %5 in 2 : vector<2x18x1x2xbf16>, vector<2x18x16x2xbf16>, vector<2x18x1x2xbf16> -> vector<2x18x18x2xbf16>
    %7 = vector.extract_strided_slice %6 {offsets = [0, 0, 0, 0], sizes = [2, 16, 16, 2], strides = [1, 1, 1, 1]} : vector<2x18x18x2xbf16> to vector<2x16x16x2xbf16>
    %8 = vector.extract_strided_slice %6 {offsets = [0, 0, 1, 0], sizes = [2, 16, 16, 2], strides = [1, 1, 1, 1]} : vector<2x18x18x2xbf16> to vector<2x16x16x2xbf16>
    %9 = vector.extract_strided_slice %6 {offsets = [0, 0, 2, 0], sizes = [2, 16, 16, 2], strides = [1, 1, 1, 1]} : vector<2x18x18x2xbf16> to vector<2x16x16x2xbf16>
    %10 = vector.extract_strided_slice %6 {offsets = [0, 1, 0, 0], sizes = [2, 16, 16, 2], strides = [1, 1, 1, 1]} : vector<2x18x18x2xbf16> to vector<2x16x16x2xbf16>
    %11 = vector.extract_strided_slice %6 {offsets = [0, 1, 1, 0], sizes = [2, 16, 16, 2], strides = [1, 1, 1, 1]} : vector<2x18x18x2xbf16> to vector<2x16x16x2xbf16>
    %12 = vector.extract_strided_slice %6 {offsets = [0, 1, 2, 0], sizes = [2, 16, 16, 2], strides = [1, 1, 1, 1]} : vector<2x18x18x2xbf16> to vector<2x16x16x2xbf16>
    %13 = vector.extract_strided_slice %6 {offsets = [0, 2, 0, 0], sizes = [2, 16, 16, 2], strides = [1, 1, 1, 1]} : vector<2x18x18x2xbf16> to vector<2x16x16x2xbf16>
    %14 = vector.extract_strided_slice %6 {offsets = [0, 2, 1, 0], sizes = [2, 16, 16, 2], strides = [1, 1, 1, 1]} : vector<2x18x18x2xbf16> to vector<2x16x16x2xbf16>
    %15 = vector.extract_strided_slice %6 {offsets = [0, 2, 2, 0], sizes = [2, 16, 16, 2], strides = [1, 1, 1, 1]} : vector<2x18x18x2xbf16> to vector<2x16x16x2xbf16>
    %16 = tpu.concatenate %7, %8, %9, %10, %11, %12, %13, %14, %15 in 3 : vector<2x16x16x2xbf16>, vector<2x16x16x2xbf16>, vector<2x16x16x2xbf16>, vector<2x16x16x2xbf16>, vector<2x16x16x2xbf16>, vector<2x16x16x2xbf16>, vector<2x16x16x2xbf16>, vector<2x16x16x2xbf16>, vector<2x16x16x2xbf16> -> vector<2x16x16x18xbf16>
    %17 = vector.shape_cast %16 : vector<2x16x16x18xbf16> to vector<512x18xbf16>
    %cst_8 = arith.constant dense<0.000000e+00> : vector<512x4xf32>
    %18 = tpu.matmul %17, %1, %cst_8 {dimension_numbers = #tpu.dot_dimension_numbers<[1], [0], [0], [1], [0, 0, 1, 1], [], []>} : vector<512x18xbf16>, vector<18x4xbf16>, vector<512x4xf32> -> vector<512x4xf32>
    %19 = vector.broadcast %2 : vector<1x4xf32> to vector<512x4xf32>
    %20 = arith.addf %18, %19 : vector<512x4xf32>
    %21 = vector.shape_cast %20 : vector<512x4xf32> to vector<2x16x16x4xf32>
    %22 = arith.truncf %21 : vector<2x16x16x4xf32> to vector<2x16x16x4xbf16>
    %c0_9 = arith.constant 0 : index
    %c0_10 = arith.constant 0 : index
    %c0_11 = arith.constant 0 : index
    %c0_12 = arith.constant 0 : index
    %23 = vector.load %arg4[%c0_9, %c0_10, %c0_11, %c0_12] : memref<2x16x16x4xbf16, #tpu.memory_space<vmem>>, vector<2x16x16x4xbf16>
    tpu.vector_store %arg4[%c0_9, %c0_10, %c0_11, %c0_12], %22 {strides = array<i32>} : memref<2x16x16x4xbf16, #tpu.memory_space<vmem>>, vector<2x16x16x4xbf16>,
    return
  }
  func.func @transform_0(%arg0: i32) -> (i32, i32, i32, i32) {
    %c0_i32 = arith.constant 0 : i32
    %c0_i32_0 = arith.constant 0 : i32
    %c0_i32_1 = arith.constant 0 : i32
    %c0_i32_2 = arith.constant 0 : i32
    return %arg0, %c0_i32, %c0_i32_0, %c0_i32_1 : i32, i32, i32, i32
  }
  func.func @transform_1(%arg0: i32) -> (i32, i32) {
    %c0_i32 = arith.constant 0 : i32
    %c0_i32_0 = arith.constant 0 : i32
    %c0_i32_1 = arith.constant 0 : i32
    return %c0_i32, %c0_i32_0 : i32, i32
  }
  func.func @transform_2(%arg0: i32) -> (i32, i32) {
    %c0_i32 = arith.constant 0 : i32
    %c0_i32_0 = arith.constant 0 : i32
    %c0_i32_1 = arith.constant 0 : i32
    return %c0_i32, %c0_i32_0 : i32, i32
  }
  func.func @transform_3(%arg0: i32) -> (i32, i32, i32, i32) {
    %c0_i32 = arith.constant 0 : i32
    %c0_i32_0 = arith.constant 0 : i32
    %c0_i32_1 = arith.constant 0 : i32
    %c0_i32_2 = arith.constant 0 : i32
    return %arg0, %c0_i32, %c0_i32_0, %c0_i32_1 : i32, i32, i32, i32
  }
}

module attributes {stable_mosaic.version = 11 : i64} {
  func.func @_conv_bn_kernel(%arg0: i32, %arg1: memref<4x8x8x4xbf16, #tpu.memory_space<vmem>>, %arg2: memref<36x8xbf16, #tpu.memory_space<vmem>>, %arg3: memref<1x8xf32, #tpu.memory_space<vmem>>, %arg4: memref<4x8x8x8xbf16, #tpu.memory_space<vmem>>) attributes {dimension_semantics = [#tpu.dimension_semantics<parallel>], iteration_bounds = array<i64: 1>, scalar_prefetch = 0 : i64, scratch_operands = 0 : i64, tpu.core_type = #tpu.core_type<tc>, window_params = [{transform_indices = @transform_0, window_bounds = array<i64: 4, 8, 8, 4>}, {pipeline_mode = #tpu.pipeline_mode<synchronous>, transform_indices = @transform_1, window_bounds = array<i64: 36, 8>}, {pipeline_mode = #tpu.pipeline_mode<synchronous>, transform_indices = @transform_2, window_bounds = array<i64: 1, 8>}, {transform_indices = @transform_3, window_bounds = array<i64: 4, 8, 8, 8>}]} {
    %c0 = arith.constant 0 : index
    %c0_0 = arith.constant 0 : index
    %c0_1 = arith.constant 0 : index
    %c0_2 = arith.constant 0 : index
    %0 = vector.load %arg1[%c0, %c0_0, %c0_1, %c0_2] : memref<4x8x8x4xbf16, #tpu.memory_space<vmem>>, vector<4x8x8x4xbf16>
    %c0_3 = arith.constant 0 : index
    %c0_4 = arith.constant 0 : index
    %1 = vector.load %arg2[%c0_3, %c0_4] : memref<36x8xbf16, #tpu.memory_space<vmem>>, vector<36x8xbf16>
    %c0_5 = arith.constant 0 : index
    %c0_6 = arith.constant 0 : index
    %2 = vector.load %arg3[%c0_5, %c0_6] : memref<1x8xf32, #tpu.memory_space<vmem>>, vector<1x8xf32>
    %cst = arith.constant 0.000000e+00 : bf16
    %3 = vector.broadcast %cst : bf16 to vector<4x1x8x4xbf16>
    %4 = tpu.concatenate %3, %0, %3 in 1 : vector<4x1x8x4xbf16>, vector<4x8x8x4xbf16>, vector<4x1x8x4xbf16> -> vector<4x10x8x4xbf16>
    %cst_7 = arith.constant 0.000000e+00 : bf16
    %5 = vector.broadcast %cst_7 : bf16 to vector<4x10x1x4xbf16>
    %6 = tpu.concatenate %5, %4, %5 in 2 : vector<4x10x1x4xbf16>, vector<4x10x8x4xbf16>, vector<4x10x1x4xbf16> -> vector<4x10x10x4xbf16>
    %7 = vector.extract_strided_slice %6 {offsets = [0, 0, 0, 0], sizes = [4, 8, 8, 4], strides = [1, 1, 1, 1]} : vector<4x10x10x4xbf16> to vector<4x8x8x4xbf16>
    %8 = vector.extract_strided_slice %6 {offsets = [0, 0, 1, 0], sizes = [4, 8, 8, 4], strides = [1, 1, 1, 1]} : vector<4x10x10x4xbf16> to vector<4x8x8x4xbf16>
    %9 = vector.extract_strided_slice %6 {offsets = [0, 0, 2, 0], sizes = [4, 8, 8, 4], strides = [1, 1, 1, 1]} : vector<4x10x10x4xbf16> to vector<4x8x8x4xbf16>
    %10 = vector.extract_strided_slice %6 {offsets = [0, 1, 0, 0], sizes = [4, 8, 8, 4], strides = [1, 1, 1, 1]} : vector<4x10x10x4xbf16> to vector<4x8x8x4xbf16>
    %11 = vector.extract_strided_slice %6 {offsets = [0, 1, 1, 0], sizes = [4, 8, 8, 4], strides = [1, 1, 1, 1]} : vector<4x10x10x4xbf16> to vector<4x8x8x4xbf16>
    %12 = vector.extract_strided_slice %6 {offsets = [0, 1, 2, 0], sizes = [4, 8, 8, 4], strides = [1, 1, 1, 1]} : vector<4x10x10x4xbf16> to vector<4x8x8x4xbf16>
    %13 = vector.extract_strided_slice %6 {offsets = [0, 2, 0, 0], sizes = [4, 8, 8, 4], strides = [1, 1, 1, 1]} : vector<4x10x10x4xbf16> to vector<4x8x8x4xbf16>
    %14 = vector.extract_strided_slice %6 {offsets = [0, 2, 1, 0], sizes = [4, 8, 8, 4], strides = [1, 1, 1, 1]} : vector<4x10x10x4xbf16> to vector<4x8x8x4xbf16>
    %15 = vector.extract_strided_slice %6 {offsets = [0, 2, 2, 0], sizes = [4, 8, 8, 4], strides = [1, 1, 1, 1]} : vector<4x10x10x4xbf16> to vector<4x8x8x4xbf16>
    %16 = tpu.concatenate %7, %8, %9, %10, %11, %12, %13, %14, %15 in 3 : vector<4x8x8x4xbf16>, vector<4x8x8x4xbf16>, vector<4x8x8x4xbf16>, vector<4x8x8x4xbf16>, vector<4x8x8x4xbf16>, vector<4x8x8x4xbf16>, vector<4x8x8x4xbf16>, vector<4x8x8x4xbf16>, vector<4x8x8x4xbf16> -> vector<4x8x8x36xbf16>
    %17 = vector.shape_cast %16 : vector<4x8x8x36xbf16> to vector<256x36xbf16>
    %cst_8 = arith.constant dense<0.000000e+00> : vector<256x8xf32>
    %18 = tpu.matmul %17, %1, %cst_8 {dimension_numbers = #tpu.dot_dimension_numbers<[1], [0], [0], [1], [0, 0, 1, 1], [], []>} : vector<256x36xbf16>, vector<36x8xbf16>, vector<256x8xf32> -> vector<256x8xf32>
    %19 = vector.broadcast %2 : vector<1x8xf32> to vector<256x8xf32>
    %20 = arith.addf %18, %19 : vector<256x8xf32>
    %21 = vector.shape_cast %20 : vector<256x8xf32> to vector<4x8x8x8xf32>
    %22 = arith.truncf %21 : vector<4x8x8x8xf32> to vector<4x8x8x8xbf16>
    %c0_9 = arith.constant 0 : index
    %c0_10 = arith.constant 0 : index
    %c0_11 = arith.constant 0 : index
    %c0_12 = arith.constant 0 : index
    %23 = vector.load %arg4[%c0_9, %c0_10, %c0_11, %c0_12] : memref<4x8x8x8xbf16, #tpu.memory_space<vmem>>, vector<4x8x8x8xbf16>
    tpu.vector_store %arg4[%c0_9, %c0_10, %c0_11, %c0_12], %22 {strides = array<i32>} : memref<4x8x8x8xbf16, #tpu.memory_space<vmem>>, vector<4x8x8x8xbf16>,
    return
  }
  func.func @transform_0(%arg0: i32) -> (i32, i32, i32, i32) {
    %c0_i32 = arith.constant 0 : i32
    %c0_i32_0 = arith.constant 0 : i32
    %c0_i32_1 = arith.constant 0 : i32
    %c0_i32_2 = arith.constant 0 : i32
    return %arg0, %c0_i32, %c0_i32_0, %c0_i32_1 : i32, i32, i32, i32
  }
  func.func @transform_1(%arg0: i32) -> (i32, i32) {
    %c0_i32 = arith.constant 0 : i32
    %c0_i32_0 = arith.constant 0 : i32
    %c0_i32_1 = arith.constant 0 : i32
    return %c0_i32, %c0_i32_0 : i32, i32
  }
  func.func @transform_2(%arg0: i32) -> (i32, i32) {
    %c0_i32 = arith.constant 0 : i32
    %c0_i32_0 = arith.constant 0 : i32
    %c0_i32_1 = arith.constant 0 : i32
    return %c0_i32, %c0_i32_0 : i32, i32
  }
  func.func @transform_3(%arg0: i32) -> (i32, i32, i32, i32) {
    %c0_i32 = arith.constant 0 : i32
    %c0_i32_0 = arith.constant 0 : i32
    %c0_i32_1 = arith.constant 0 : i32
    %c0_i32_2 = arith.constant 0 : i32
    return %arg0, %c0_i32, %c0_i32_0, %c0_i32_1 : i32, i32, i32, i32
  }
}

module attributes {stable_mosaic.version = 11 : i64} {
  func.func @_lif_pool_kernel(%arg0: i32, %arg1: i32, %arg2: i32, %arg3: memref<1x1x16x16x4xbf16, #tpu.memory_space<vmem>>, %arg4: memref<1x1x1x16x4xbf16, #tpu.memory_space<vmem>>, %arg5: memref<1x1x8x8x4xbf16, #tpu.memory_space<vmem>>, %arg6: memref<17x16x4xf32, #tpu.memory_space<vmem>>, %arg7: memref<8x16x4xf32, #tpu.memory_space<vmem>>) attributes {dimension_semantics = [#tpu.dimension_semantics<parallel>, #tpu.dimension_semantics<parallel>, #tpu.dimension_semantics<arbitrary>], iteration_bounds = array<i64: 2, 1, 2>, scalar_prefetch = 0 : i64, scratch_operands = 2 : i64, tpu.core_type = #tpu.core_type<tc>, window_params = [{transform_indices = @transform_0, window_bounds = array<i64: 1, 1, 16, 16, 4>}, {transform_indices = @transform_1, window_bounds = array<i64: 1, 1, 1, 16, 4>}, {transform_indices = @transform_2, window_bounds = array<i64: 1, 1, 8, 8, 4>}]} {
    %c0_i32 = arith.constant 0 : i32
    %0 = arith.cmpi eq, %arg2, %c0_i32 : i32
    %1 = arith.extui %0 : i1 to i32
    %c0_i32_0 = arith.constant 0 : i32
    %2 = arith.cmpi ne, %1, %c0_i32_0 : i32
    scf.if %2 {
      %cst_31 = arith.constant 0.000000e+00 : f32
      %43 = vector.broadcast %cst_31 : f32 to vector<17x16x4xf32>
      %c0_32 = arith.constant 0 : index
      %c0_33 = arith.constant 0 : index
      %c0_34 = arith.constant 0 : index
      %44 = vector.load %arg6[%c0_32, %c0_33, %c0_34] : memref<17x16x4xf32, #tpu.memory_space<vmem>>, vector<17x16x4xf32>
      tpu.vector_store %arg6[%c0_32, %c0_33, %c0_34], %43 {strides = array<i32>} : memref<17x16x4xf32, #tpu.memory_space<vmem>>, vector<17x16x4xf32>,
    } else {
    }
    %c0 = arith.constant 0 : index
    %c0_1 = arith.constant 0 : index
    %c0_2 = arith.constant 0 : index
    %c0_3 = arith.constant 0 : index
    %c0_4 = arith.constant 0 : index
    %3 = vector.load %arg4[%c0, %c0_1, %c0_2, %c0_3, %c0_4] : memref<1x1x1x16x4xbf16, #tpu.memory_space<vmem>>, vector<1x1x1x16x4xbf16>
    %4 = vector.shape_cast %3 : vector<1x1x1x16x4xbf16> to vector<1x16x4xbf16>
    %5 = arith.extf %4 : vector<1x16x4xbf16> to vector<1x16x4xf32>
    %c0_5 = arith.constant 0 : index
    %c0_6 = arith.constant 0 : index
    %c0_7 = arith.constant 0 : index
    %c0_8 = arith.constant 0 : index
    %c0_9 = arith.constant 0 : index
    %6 = vector.load %arg3[%c0_5, %c0_6, %c0_7, %c0_8, %c0_9] : memref<1x1x16x16x4xbf16, #tpu.memory_space<vmem>>, vector<1x1x16x16x4xbf16>
    %7 = vector.shape_cast %6 : vector<1x1x16x16x4xbf16> to vector<16x16x4xbf16>
    %8 = arith.extf %7 : vector<16x16x4xbf16> to vector<16x16x4xf32>
    %9 = tpu.concatenate %5, %8 in 0 : vector<1x16x4xf32>, vector<16x16x4xf32> -> vector<17x16x4xf32>
    %c0_10 = arith.constant 0 : index
    %c0_11 = arith.constant 0 : index
    %c0_12 = arith.constant 0 : index
    %10 = vector.load %arg6[%c0_10, %c0_11, %c0_12] : memref<17x16x4xf32, #tpu.memory_space<vmem>>, vector<17x16x4xf32>
    %11 = arith.subf %9, %10 : vector<17x16x4xf32>
    %cst = arith.constant 0.666666686 : f32
    %12 = vector.broadcast %cst : f32 to vector<17x16x4xf32>
    %13 = arith.mulf %11, %12 : vector<17x16x4xf32>
    %14 = arith.addf %10, %13 : vector<17x16x4xf32>
    %cst_13 = arith.constant 1.000000e+00 : f32
    %15 = vector.broadcast %cst_13 : f32 to vector<17x16x4xf32>
    %16 = arith.cmpf oge, %14, %15 : vector<17x16x4xf32>
    %cst_14 = arith.constant 0.000000e+00 : f32
    %17 = vector.broadcast %cst_14 : f32 to vector<17x16x4xf32>
    %18 = arith.select %16, %17, %14 : vector<17x16x4xi1>, vector<17x16x4xf32>
    %c0_15 = arith.constant 0 : index
    %c0_16 = arith.constant 0 : index
    %c0_17 = arith.constant 0 : index
    %19 = vector.load %arg6[%c0_15, %c0_16, %c0_17] : memref<17x16x4xf32, #tpu.memory_space<vmem>>, vector<17x16x4xf32>
    tpu.vector_store %arg6[%c0_15, %c0_16, %c0_17], %18 {strides = array<i32>} : memref<17x16x4xf32, #tpu.memory_space<vmem>>, vector<17x16x4xf32>,
    %20 = arith.extui %16 : vector<17x16x4xi1> to vector<17x16x4xi32>
    %21 = arith.sitofp %20 : vector<17x16x4xi32> to vector<17x16x4xf32>
    %cst_18 = arith.constant 0.000000e+00 : f32
    %22 = vector.broadcast %cst_18 : f32 to vector<17x1x4xf32>
    %23 = vector.extract_strided_slice %21 {offsets = [0, 0, 0], sizes = [17, 15, 4], strides = [1, 1, 1]} : vector<17x16x4xf32> to vector<17x15x4xf32>
    %24 = tpu.concatenate %22, %23 in 1 : vector<17x1x4xf32>, vector<17x15x4xf32> -> vector<17x16x4xf32>
    %25 = vector.extract_strided_slice %21 {offsets = [0, 1, 0], sizes = [17, 15, 4], strides = [1, 1, 1]} : vector<17x16x4xf32> to vector<17x15x4xf32>
    %26 = tpu.concatenate %25, %22 in 1 : vector<17x15x4xf32>, vector<17x1x4xf32> -> vector<17x16x4xf32>
    %27 = arith.maximumf %24, %21 : vector<17x16x4xf32>
    %28 = arith.maximumf %27, %26 : vector<17x16x4xf32>
    %29 = vector.extract_strided_slice %28 {offsets = [0, 0, 0], sizes = [16, 16, 4], strides = [1, 1, 1]} : vector<17x16x4xf32> to vector<16x16x4xf32>
    %30 = vector.shape_cast %29 : vector<16x16x4xf32> to vector<8x2x16x4xf32>
    %cst_19 = arith.constant dense<0xFF800000> : vector<8x16x4xf32>
    %31 = vector.multi_reduction <maximumf>, %30, %cst_19 [1] : vector<8x2x16x4xf32> to vector<8x16x4xf32>
    %32 = vector.extract_strided_slice %28 {offsets = [1, 0, 0], sizes = [16, 16, 4], strides = [1, 1, 1]} : vector<17x16x4xf32> to vector<16x16x4xf32>
    %33 = vector.shape_cast %32 : vector<16x16x4xf32> to vector<8x2x16x4xf32>
    %34 = vector.extract_strided_slice %33 {offsets = [0, 1, 0, 0], sizes = [8, 1, 16, 4], strides = [1, 1, 1, 1]} : vector<8x2x16x4xf32> to vector<8x1x16x4xf32>
    %35 = vector.shape_cast %34 : vector<8x1x16x4xf32> to vector<8x16x4xf32>
    %36 = arith.maximumf %31, %35 : vector<8x16x4xf32>
    %c0_20 = arith.constant 0 : index
    %c0_21 = arith.constant 0 : index
    %c0_22 = arith.constant 0 : index
    %37 = vector.load %arg7[%c0_20, %c0_21, %c0_22] : memref<8x16x4xf32, #tpu.memory_space<vmem>>, vector<8x16x4xf32>
    tpu.vector_store %arg7[%c0_20, %c0_21, %c0_22], %36 {strides = array<i32>} : memref<8x16x4xf32, #tpu.memory_space<vmem>>, vector<8x16x4xf32>,
    %c0_23 = arith.constant 0 : index
    %c0_24 = arith.constant 0 : index
    %c0_25 = arith.constant 0 : index
    %38 = tpu.strided_load %arg7[%c0_23, %c0_24, %c0_25] {strides = array<i32: 1, 2, 1>} : memref<8x16x4xf32, #tpu.memory_space<vmem>>, vector<8x8x4xf32>
    %39 = arith.truncf %38 : vector<8x8x4xf32> to vector<8x8x4xbf16>
    %c0_26 = arith.constant 0 : index
    %c0_27 = arith.constant 0 : index
    %c0_28 = arith.constant 0 : index
    %c0_29 = arith.constant 0 : index
    %c0_30 = arith.constant 0 : index
    %40 = vector.load %arg5[%c0_26, %c0_27, %c0_28, %c0_29, %c0_30] : memref<1x1x8x8x4xbf16, #tpu.memory_space<vmem>>, vector<1x1x8x8x4xbf16>
    %41 = vector.shape_cast %40 : vector<1x1x8x8x4xbf16> to vector<8x8x4xbf16>
    %42 = vector.shape_cast %39 : vector<8x8x4xbf16> to vector<1x1x8x8x4xbf16>
    tpu.vector_store %arg5[%c0_26, %c0_27, %c0_28, %c0_29, %c0_30], %42 {strides = array<i32>} : memref<1x1x8x8x4xbf16, #tpu.memory_space<vmem>>, vector<1x1x8x8x4xbf16>,
    return
  }
  func.func @transform_0(%arg0: i32, %arg1: i32, %arg2: i32) -> (i32, i32, i32, i32, i32) {
    %c0_i32 = arith.constant 0 : i32
    %c0_i32_0 = arith.constant 0 : i32
    %c0_i32_1 = arith.constant 0 : i32
    return %arg2, %arg0, %arg1, %c0_i32, %c0_i32_0 : i32, i32, i32, i32, i32
  }
  func.func @transform_1(%arg0: i32, %arg1: i32, %arg2: i32) -> (i32, i32, i32, i32, i32) {
    %c2_i32 = arith.constant 2 : i32
    %0 = arith.muli %arg1, %c2_i32 : i32
    %c8_i32 = arith.constant 8 : i32
    %1 = arith.muli %0, %c8_i32 : i32
    %c1_i32 = arith.constant 1 : i32
    %2 = arith.subi %1, %c1_i32 : i32
    %c0_i32 = arith.constant 0 : i32
    %3 = arith.maxsi %2, %c0_i32 : i32
    %c0_i32_0 = arith.constant 0 : i32
    %c0_i32_1 = arith.constant 0 : i32
    %c0_i32_2 = arith.constant 0 : i32
    return %arg2, %arg0, %3, %c0_i32_0, %c0_i32_1 : i32, i32, i32, i32, i32
  }
  func.func @transform_2(%arg0: i32, %arg1: i32, %arg2: i32) -> (i32, i32, i32, i32, i32) {
    %c0_i32 = arith.constant 0 : i32
    %c0_i32_0 = arith.constant 0 : i32
    %c0_i32_1 = arith.constant 0 : i32
    return %arg2, %arg0, %arg1, %c0_i32, %c0_i32_0 : i32, i32, i32, i32, i32
  }
}

module attributes {stable_mosaic.version = 11 : i64} {
  func.func @_lif_pool_kernel(%arg0: i32, %arg1: i32, %arg2: i32, %arg3: memref<1x1x8x8x8xbf16, #tpu.memory_space<vmem>>, %arg4: memref<1x1x1x8x8xbf16, #tpu.memory_space<vmem>>, %arg5: memref<1x1x4x4x8xbf16, #tpu.memory_space<vmem>>, %arg6: memref<9x8x8xf32, #tpu.memory_space<vmem>>, %arg7: memref<4x8x8xf32, #tpu.memory_space<vmem>>) attributes {dimension_semantics = [#tpu.dimension_semantics<parallel>, #tpu.dimension_semantics<parallel>, #tpu.dimension_semantics<arbitrary>], iteration_bounds = array<i64: 2, 1, 2>, scalar_prefetch = 0 : i64, scratch_operands = 2 : i64, tpu.core_type = #tpu.core_type<tc>, window_params = [{transform_indices = @transform_0, window_bounds = array<i64: 1, 1, 8, 8, 8>}, {transform_indices = @transform_1, window_bounds = array<i64: 1, 1, 1, 8, 8>}, {transform_indices = @transform_2, window_bounds = array<i64: 1, 1, 4, 4, 8>}]} {
    %c0_i32 = arith.constant 0 : i32
    %0 = arith.cmpi eq, %arg2, %c0_i32 : i32
    %1 = arith.extui %0 : i1 to i32
    %c0_i32_0 = arith.constant 0 : i32
    %2 = arith.cmpi ne, %1, %c0_i32_0 : i32
    scf.if %2 {
      %cst_31 = arith.constant 0.000000e+00 : f32
      %43 = vector.broadcast %cst_31 : f32 to vector<9x8x8xf32>
      %c0_32 = arith.constant 0 : index
      %c0_33 = arith.constant 0 : index
      %c0_34 = arith.constant 0 : index
      %44 = vector.load %arg6[%c0_32, %c0_33, %c0_34] : memref<9x8x8xf32, #tpu.memory_space<vmem>>, vector<9x8x8xf32>
      tpu.vector_store %arg6[%c0_32, %c0_33, %c0_34], %43 {strides = array<i32>} : memref<9x8x8xf32, #tpu.memory_space<vmem>>, vector<9x8x8xf32>,
    } else {
    }
    %c0 = arith.constant 0 : index
    %c0_1 = arith.constant 0 : index
    %c0_2 = arith.constant 0 : index
    %c0_3 = arith.constant 0 : index
    %c0_4 = arith.constant 0 : index
    %3 = vector.load %arg4[%c0, %c0_1, %c0_2, %c0_3, %c0_4] : memref<1x1x1x8x8xbf16, #tpu.memory_space<vmem>>, vector<1x1x1x8x8xbf16>
    %4 = vector.shape_cast %3 : vector<1x1x1x8x8xbf16> to vector<1x8x8xbf16>
    %5 = arith.extf %4 : vector<1x8x8xbf16> to vector<1x8x8xf32>
    %c0_5 = arith.constant 0 : index
    %c0_6 = arith.constant 0 : index
    %c0_7 = arith.constant 0 : index
    %c0_8 = arith.constant 0 : index
    %c0_9 = arith.constant 0 : index
    %6 = vector.load %arg3[%c0_5, %c0_6, %c0_7, %c0_8, %c0_9] : memref<1x1x8x8x8xbf16, #tpu.memory_space<vmem>>, vector<1x1x8x8x8xbf16>
    %7 = vector.shape_cast %6 : vector<1x1x8x8x8xbf16> to vector<8x8x8xbf16>
    %8 = arith.extf %7 : vector<8x8x8xbf16> to vector<8x8x8xf32>
    %9 = tpu.concatenate %5, %8 in 0 : vector<1x8x8xf32>, vector<8x8x8xf32> -> vector<9x8x8xf32>
    %c0_10 = arith.constant 0 : index
    %c0_11 = arith.constant 0 : index
    %c0_12 = arith.constant 0 : index
    %10 = vector.load %arg6[%c0_10, %c0_11, %c0_12] : memref<9x8x8xf32, #tpu.memory_space<vmem>>, vector<9x8x8xf32>
    %11 = arith.subf %9, %10 : vector<9x8x8xf32>
    %cst = arith.constant 0.666666686 : f32
    %12 = vector.broadcast %cst : f32 to vector<9x8x8xf32>
    %13 = arith.mulf %11, %12 : vector<9x8x8xf32>
    %14 = arith.addf %10, %13 : vector<9x8x8xf32>
    %cst_13 = arith.constant 1.000000e+00 : f32
    %15 = vector.broadcast %cst_13 : f32 to vector<9x8x8xf32>
    %16 = arith.cmpf oge, %14, %15 : vector<9x8x8xf32>
    %cst_14 = arith.constant 0.000000e+00 : f32
    %17 = vector.broadcast %cst_14 : f32 to vector<9x8x8xf32>
    %18 = arith.select %16, %17, %14 : vector<9x8x8xi1>, vector<9x8x8xf32>
    %c0_15 = arith.constant 0 : index
    %c0_16 = arith.constant 0 : index
    %c0_17 = arith.constant 0 : index
    %19 = vector.load %arg6[%c0_15, %c0_16, %c0_17] : memref<9x8x8xf32, #tpu.memory_space<vmem>>, vector<9x8x8xf32>
    tpu.vector_store %arg6[%c0_15, %c0_16, %c0_17], %18 {strides = array<i32>} : memref<9x8x8xf32, #tpu.memory_space<vmem>>, vector<9x8x8xf32>,
    %20 = arith.extui %16 : vector<9x8x8xi1> to vector<9x8x8xi32>
    %21 = arith.sitofp %20 : vector<9x8x8xi32> to vector<9x8x8xf32>
    %cst_18 = arith.constant 0.000000e+00 : f32
    %22 = vector.broadcast %cst_18 : f32 to vector<9x1x8xf32>
    %23 = vector.extract_strided_slice %21 {offsets = [0, 0, 0], sizes = [9, 7, 8], strides = [1, 1, 1]} : vector<9x8x8xf32> to vector<9x7x8xf32>
    %24 = tpu.concatenate %22, %23 in 1 : vector<9x1x8xf32>, vector<9x7x8xf32> -> vector<9x8x8xf32>
    %25 = vector.extract_strided_slice %21 {offsets = [0, 1, 0], sizes = [9, 7, 8], strides = [1, 1, 1]} : vector<9x8x8xf32> to vector<9x7x8xf32>
    %26 = tpu.concatenate %25, %22 in 1 : vector<9x7x8xf32>, vector<9x1x8xf32> -> vector<9x8x8xf32>
    %27 = arith.maximumf %24, %21 : vector<9x8x8xf32>
    %28 = arith.maximumf %27, %26 : vector<9x8x8xf32>
    %29 = vector.extract_strided_slice %28 {offsets = [0, 0, 0], sizes = [8, 8, 8], strides = [1, 1, 1]} : vector<9x8x8xf32> to vector<8x8x8xf32>
    %30 = vector.shape_cast %29 : vector<8x8x8xf32> to vector<4x2x8x8xf32>
    %cst_19 = arith.constant dense<0xFF800000> : vector<4x8x8xf32>
    %31 = vector.multi_reduction <maximumf>, %30, %cst_19 [1] : vector<4x2x8x8xf32> to vector<4x8x8xf32>
    %32 = vector.extract_strided_slice %28 {offsets = [1, 0, 0], sizes = [8, 8, 8], strides = [1, 1, 1]} : vector<9x8x8xf32> to vector<8x8x8xf32>
    %33 = vector.shape_cast %32 : vector<8x8x8xf32> to vector<4x2x8x8xf32>
    %34 = vector.extract_strided_slice %33 {offsets = [0, 1, 0, 0], sizes = [4, 1, 8, 8], strides = [1, 1, 1, 1]} : vector<4x2x8x8xf32> to vector<4x1x8x8xf32>
    %35 = vector.shape_cast %34 : vector<4x1x8x8xf32> to vector<4x8x8xf32>
    %36 = arith.maximumf %31, %35 : vector<4x8x8xf32>
    %c0_20 = arith.constant 0 : index
    %c0_21 = arith.constant 0 : index
    %c0_22 = arith.constant 0 : index
    %37 = vector.load %arg7[%c0_20, %c0_21, %c0_22] : memref<4x8x8xf32, #tpu.memory_space<vmem>>, vector<4x8x8xf32>
    tpu.vector_store %arg7[%c0_20, %c0_21, %c0_22], %36 {strides = array<i32>} : memref<4x8x8xf32, #tpu.memory_space<vmem>>, vector<4x8x8xf32>,
    %c0_23 = arith.constant 0 : index
    %c0_24 = arith.constant 0 : index
    %c0_25 = arith.constant 0 : index
    %38 = tpu.strided_load %arg7[%c0_23, %c0_24, %c0_25] {strides = array<i32: 1, 2, 1>} : memref<4x8x8xf32, #tpu.memory_space<vmem>>, vector<4x4x8xf32>
    %39 = arith.truncf %38 : vector<4x4x8xf32> to vector<4x4x8xbf16>
    %c0_26 = arith.constant 0 : index
    %c0_27 = arith.constant 0 : index
    %c0_28 = arith.constant 0 : index
    %c0_29 = arith.constant 0 : index
    %c0_30 = arith.constant 0 : index
    %40 = vector.load %arg5[%c0_26, %c0_27, %c0_28, %c0_29, %c0_30] : memref<1x1x4x4x8xbf16, #tpu.memory_space<vmem>>, vector<1x1x4x4x8xbf16>
    %41 = vector.shape_cast %40 : vector<1x1x4x4x8xbf16> to vector<4x4x8xbf16>
    %42 = vector.shape_cast %39 : vector<4x4x8xbf16> to vector<1x1x4x4x8xbf16>
    tpu.vector_store %arg5[%c0_26, %c0_27, %c0_28, %c0_29, %c0_30], %42 {strides = array<i32>} : memref<1x1x4x4x8xbf16, #tpu.memory_space<vmem>>, vector<1x1x4x4x8xbf16>,
    return
  }
  func.func @transform_0(%arg0: i32, %arg1: i32, %arg2: i32) -> (i32, i32, i32, i32, i32) {
    %c0_i32 = arith.constant 0 : i32
    %c0_i32_0 = arith.constant 0 : i32
    %c0_i32_1 = arith.constant 0 : i32
    return %arg2, %arg0, %arg1, %c0_i32, %c0_i32_0 : i32, i32, i32, i32, i32
  }
  func.func @transform_1(%arg0: i32, %arg1: i32, %arg2: i32) -> (i32, i32, i32, i32, i32) {
    %c2_i32 = arith.constant 2 : i32
    %0 = arith.muli %arg1, %c2_i32 : i32
    %c4_i32 = arith.constant 4 : i32
    %1 = arith.muli %0, %c4_i32 : i32
    %c1_i32 = arith.constant 1 : i32
    %2 = arith.subi %1, %c1_i32 : i32
    %c0_i32 = arith.constant 0 : i32
    %3 = arith.maxsi %2, %c0_i32 : i32
    %c0_i32_0 = arith.constant 0 : i32
    %c0_i32_1 = arith.constant 0 : i32
    %c0_i32_2 = arith.constant 0 : i32
    return %arg2, %arg0, %3, %c0_i32_0, %c0_i32_1 : i32, i32, i32, i32, i32
  }
  func.func @transform_2(%arg0: i32, %arg1: i32, %arg2: i32) -> (i32, i32, i32, i32, i32) {
    %c0_i32 = arith.constant 0 : i32
    %c0_i32_0 = arith.constant 0 : i32
    %c0_i32_1 = arith.constant 0 : i32
    return %arg2, %arg0, %arg1, %c0_i32, %c0_i32_0 : i32, i32, i32, i32, i32
  }
}

module attributes {stable_mosaic.version = 11 : i64} {
  func.func @_conv_bn_kernel(%arg0: i32, %arg1: memref<4x4x4x8xbf16, #tpu.memory_space<vmem>>, %arg2: memref<72x16xbf16, #tpu.memory_space<vmem>>, %arg3: memref<1x16xf32, #tpu.memory_space<vmem>>, %arg4: memref<4x4x4x16xbf16, #tpu.memory_space<vmem>>) attributes {dimension_semantics = [#tpu.dimension_semantics<parallel>], iteration_bounds = array<i64: 1>, scalar_prefetch = 0 : i64, scratch_operands = 0 : i64, tpu.core_type = #tpu.core_type<tc>, window_params = [{transform_indices = @transform_0, window_bounds = array<i64: 4, 4, 4, 8>}, {pipeline_mode = #tpu.pipeline_mode<synchronous>, transform_indices = @transform_1, window_bounds = array<i64: 72, 16>}, {pipeline_mode = #tpu.pipeline_mode<synchronous>, transform_indices = @transform_2, window_bounds = array<i64: 1, 16>}, {transform_indices = @transform_3, window_bounds = array<i64: 4, 4, 4, 16>}]} {
    %c0 = arith.constant 0 : index
    %c0_0 = arith.constant 0 : index
    %c0_1 = arith.constant 0 : index
    %c0_2 = arith.constant 0 : index
    %0 = vector.load %arg1[%c0, %c0_0, %c0_1, %c0_2] : memref<4x4x4x8xbf16, #tpu.memory_space<vmem>>, vector<4x4x4x8xbf16>
    %c0_3 = arith.constant 0 : index
    %c0_4 = arith.constant 0 : index
    %1 = vector.load %arg2[%c0_3, %c0_4] : memref<72x16xbf16, #tpu.memory_space<vmem>>, vector<72x16xbf16>
    %c0_5 = arith.constant 0 : index
    %c0_6 = arith.constant 0 : index
    %2 = vector.load %arg3[%c0_5, %c0_6] : memref<1x16xf32, #tpu.memory_space<vmem>>, vector<1x16xf32>
    %cst = arith.constant 0.000000e+00 : bf16
    %3 = vector.broadcast %cst : bf16 to vector<4x1x4x8xbf16>
    %4 = tpu.concatenate %3, %0, %3 in 1 : vector<4x1x4x8xbf16>, vector<4x4x4x8xbf16>, vector<4x1x4x8xbf16> -> vector<4x6x4x8xbf16>
    %cst_7 = arith.constant 0.000000e+00 : bf16
    %5 = vector.broadcast %cst_7 : bf16 to vector<4x6x1x8xbf16>
    %6 = tpu.concatenate %5, %4, %5 in 2 : vector<4x6x1x8xbf16>, vector<4x6x4x8xbf16>, vector<4x6x1x8xbf16> -> vector<4x6x6x8xbf16>
    %7 = vector.extract_strided_slice %6 {offsets = [0, 0, 0, 0], sizes = [4, 4, 4, 8], strides = [1, 1, 1, 1]} : vector<4x6x6x8xbf16> to vector<4x4x4x8xbf16>
    %8 = vector.extract_strided_slice %6 {offsets = [0, 0, 1, 0], sizes = [4, 4, 4, 8], strides = [1, 1, 1, 1]} : vector<4x6x6x8xbf16> to vector<4x4x4x8xbf16>
    %9 = vector.extract_strided_slice %6 {offsets = [0, 0, 2, 0], sizes = [4, 4, 4, 8], strides = [1, 1, 1, 1]} : vector<4x6x6x8xbf16> to vector<4x4x4x8xbf16>
    %10 = vector.extract_strided_slice %6 {offsets = [0, 1, 0, 0], sizes = [4, 4, 4, 8], strides = [1, 1, 1, 1]} : vector<4x6x6x8xbf16> to vector<4x4x4x8xbf16>
    %11 = vector.extract_strided_slice %6 {offsets = [0, 1, 1, 0], sizes = [4, 4, 4, 8], strides = [1, 1, 1, 1]} : vector<4x6x6x8xbf16> to vector<4x4x4x8xbf16>
    %12 = vector.extract_strided_slice %6 {offsets = [0, 1, 2, 0], sizes = [4, 4, 4, 8], strides = [1, 1, 1, 1]} : vector<4x6x6x8xbf16> to vector<4x4x4x8xbf16>
    %13 = vector.extract_strided_slice %6 {offsets = [0, 2, 0, 0], sizes = [4, 4, 4, 8], strides = [1, 1, 1, 1]} : vector<4x6x6x8xbf16> to vector<4x4x4x8xbf16>
    %14 = vector.extract_strided_slice %6 {offsets = [0, 2, 1, 0], sizes = [4, 4, 4, 8], strides = [1, 1, 1, 1]} : vector<4x6x6x8xbf16> to vector<4x4x4x8xbf16>
    %15 = vector.extract_strided_slice %6 {offsets = [0, 2, 2, 0], sizes = [4, 4, 4, 8], strides = [1, 1, 1, 1]} : vector<4x6x6x8xbf16> to vector<4x4x4x8xbf16>
    %16 = tpu.concatenate %7, %8, %9, %10, %11, %12, %13, %14, %15 in 3 : vector<4x4x4x8xbf16>, vector<4x4x4x8xbf16>, vector<4x4x4x8xbf16>, vector<4x4x4x8xbf16>, vector<4x4x4x8xbf16>, vector<4x4x4x8xbf16>, vector<4x4x4x8xbf16>, vector<4x4x4x8xbf16>, vector<4x4x4x8xbf16> -> vector<4x4x4x72xbf16>
    %17 = vector.extract_strided_slice %16 {offsets = [0, 0, 0, 0], sizes = [1, 1, 4, 72], strides = [1, 1, 1, 1]} : vector<4x4x4x72xbf16> to vector<1x1x4x72xbf16>
    %18 = vector.shape_cast %17 : vector<1x1x4x72xbf16> to vector<4x72xbf16>
    %cst_8 = arith.constant dense<0.000000e+00> : vector<4x16xf32>
    %19 = tpu.matmul %18, %1, %cst_8 {dimension_numbers = #tpu.dot_dimension_numbers<[1], [0], [0], [1], [0, 0, 1, 1], [], []>} : vector<4x72xbf16>, vector<72x16xbf16>, vector<4x16xf32> -> vector<4x16xf32>
    %20 = vector.broadcast %2 : vector<1x16xf32> to vector<4x16xf32>
    %21 = arith.addf %19, %20 : vector<4x16xf32>
    %22 = vector.extract_strided_slice %16 {offsets = [0, 1, 0, 0], sizes = [1, 1, 4, 72], strides = [1, 1, 1, 1]} : vector<4x4x4x72xbf16> to vector<1x1x4x72xbf16>
    %23 = vector.shape_cast %22 : vector<1x1x4x72xbf16> to vector<4x72xbf16>
    %cst_9 = arith.constant dense<0.000000e+00> : vector<4x16xf32>
    %24 = tpu.matmul %23, %1, %cst_9 {dimension_numbers = #tpu.dot_dimension_numbers<[1], [0], [0], [1], [0, 0, 1, 1], [], []>} : vector<4x72xbf16>, vector<72x16xbf16>, vector<4x16xf32> -> vector<4x16xf32>
    %25 = vector.broadcast %2 : vector<1x16xf32> to vector<4x16xf32>
    %26 = arith.addf %24, %25 : vector<4x16xf32>
    %27 = vector.extract_strided_slice %16 {offsets = [0, 2, 0, 0], sizes = [1, 1, 4, 72], strides = [1, 1, 1, 1]} : vector<4x4x4x72xbf16> to vector<1x1x4x72xbf16>
    %28 = vector.shape_cast %27 : vector<1x1x4x72xbf16> to vector<4x72xbf16>
    %cst_10 = arith.constant dense<0.000000e+00> : vector<4x16xf32>
    %29 = tpu.matmul %28, %1, %cst_10 {dimension_numbers = #tpu.dot_dimension_numbers<[1], [0], [0], [1], [0, 0, 1, 1], [], []>} : vector<4x72xbf16>, vector<72x16xbf16>, vector<4x16xf32> -> vector<4x16xf32>
    %30 = vector.broadcast %2 : vector<1x16xf32> to vector<4x16xf32>
    %31 = arith.addf %29, %30 : vector<4x16xf32>
    %32 = vector.extract_strided_slice %16 {offsets = [0, 3, 0, 0], sizes = [1, 1, 4, 72], strides = [1, 1, 1, 1]} : vector<4x4x4x72xbf16> to vector<1x1x4x72xbf16>
    %33 = vector.shape_cast %32 : vector<1x1x4x72xbf16> to vector<4x72xbf16>
    %cst_11 = arith.constant dense<0.000000e+00> : vector<4x16xf32>
    %34 = tpu.matmul %33, %1, %cst_11 {dimension_numbers = #tpu.dot_dimension_numbers<[1], [0], [0], [1], [0, 0, 1, 1], [], []>} : vector<4x72xbf16>, vector<72x16xbf16>, vector<4x16xf32> -> vector<4x16xf32>
    %35 = vector.broadcast %2 : vector<1x16xf32> to vector<4x16xf32>
    %36 = arith.addf %34, %35 : vector<4x16xf32>
    %37 = vector.extract_strided_slice %16 {offsets = [1, 0, 0, 0], sizes = [1, 1, 4, 72], strides = [1, 1, 1, 1]} : vector<4x4x4x72xbf16> to vector<1x1x4x72xbf16>
    %38 = vector.shape_cast %37 : vector<1x1x4x72xbf16> to vector<4x72xbf16>
    %cst_12 = arith.constant dense<0.000000e+00> : vector<4x16xf32>
    %39 = tpu.matmul %38, %1, %cst_12 {dimension_numbers = #tpu.dot_dimension_numbers<[1], [0], [0], [1], [0, 0, 1, 1], [], []>} : vector<4x72xbf16>, vector<72x16xbf16>, vector<4x16xf32> -> vector<4x16xf32>
    %40 = vector.broadcast %2 : vector<1x16xf32> to vector<4x16xf32>
    %41 = arith.addf %39, %40 : vector<4x16xf32>
    %42 = vector.extract_strided_slice %16 {offsets = [1, 1, 0, 0], sizes = [1, 1, 4, 72], strides = [1, 1, 1, 1]} : vector<4x4x4x72xbf16> to vector<1x1x4x72xbf16>
    %43 = vector.shape_cast %42 : vector<1x1x4x72xbf16> to vector<4x72xbf16>
    %cst_13 = arith.constant dense<0.000000e+00> : vector<4x16xf32>
    %44 = tpu.matmul %43, %1, %cst_13 {dimension_numbers = #tpu.dot_dimension_numbers<[1], [0], [0], [1], [0, 0, 1, 1], [], []>} : vector<4x72xbf16>, vector<72x16xbf16>, vector<4x16xf32> -> vector<4x16xf32>
    %45 = vector.broadcast %2 : vector<1x16xf32> to vector<4x16xf32>
    %46 = arith.addf %44, %45 : vector<4x16xf32>
    %47 = vector.extract_strided_slice %16 {offsets = [1, 2, 0, 0], sizes = [1, 1, 4, 72], strides = [1, 1, 1, 1]} : vector<4x4x4x72xbf16> to vector<1x1x4x72xbf16>
    %48 = vector.shape_cast %47 : vector<1x1x4x72xbf16> to vector<4x72xbf16>
    %cst_14 = arith.constant dense<0.000000e+00> : vector<4x16xf32>
    %49 = tpu.matmul %48, %1, %cst_14 {dimension_numbers = #tpu.dot_dimension_numbers<[1], [0], [0], [1], [0, 0, 1, 1], [], []>} : vector<4x72xbf16>, vector<72x16xbf16>, vector<4x16xf32> -> vector<4x16xf32>
    %50 = vector.broadcast %2 : vector<1x16xf32> to vector<4x16xf32>
    %51 = arith.addf %49, %50 : vector<4x16xf32>
    %52 = vector.extract_strided_slice %16 {offsets = [1, 3, 0, 0], sizes = [1, 1, 4, 72], strides = [1, 1, 1, 1]} : vector<4x4x4x72xbf16> to vector<1x1x4x72xbf16>
    %53 = vector.shape_cast %52 : vector<1x1x4x72xbf16> to vector<4x72xbf16>
    %cst_15 = arith.constant dense<0.000000e+00> : vector<4x16xf32>
    %54 = tpu.matmul %53, %1, %cst_15 {dimension_numbers = #tpu.dot_dimension_numbers<[1], [0], [0], [1], [0, 0, 1, 1], [], []>} : vector<4x72xbf16>, vector<72x16xbf16>, vector<4x16xf32> -> vector<4x16xf32>
    %55 = vector.broadcast %2 : vector<1x16xf32> to vector<4x16xf32>
    %56 = arith.addf %54, %55 : vector<4x16xf32>
    %57 = vector.extract_strided_slice %16 {offsets = [2, 0, 0, 0], sizes = [1, 1, 4, 72], strides = [1, 1, 1, 1]} : vector<4x4x4x72xbf16> to vector<1x1x4x72xbf16>
    %58 = vector.shape_cast %57 : vector<1x1x4x72xbf16> to vector<4x72xbf16>
    %cst_16 = arith.constant dense<0.000000e+00> : vector<4x16xf32>
    %59 = tpu.matmul %58, %1, %cst_16 {dimension_numbers = #tpu.dot_dimension_numbers<[1], [0], [0], [1], [0, 0, 1, 1], [], []>} : vector<4x72xbf16>, vector<72x16xbf16>, vector<4x16xf32> -> vector<4x16xf32>
    %60 = vector.broadcast %2 : vector<1x16xf32> to vector<4x16xf32>
    %61 = arith.addf %59, %60 : vector<4x16xf32>
    %62 = vector.extract_strided_slice %16 {offsets = [2, 1, 0, 0], sizes = [1, 1, 4, 72], strides = [1, 1, 1, 1]} : vector<4x4x4x72xbf16> to vector<1x1x4x72xbf16>
    %63 = vector.shape_cast %62 : vector<1x1x4x72xbf16> to vector<4x72xbf16>
    %cst_17 = arith.constant dense<0.000000e+00> : vector<4x16xf32>
    %64 = tpu.matmul %63, %1, %cst_17 {dimension_numbers = #tpu.dot_dimension_numbers<[1], [0], [0], [1], [0, 0, 1, 1], [], []>} : vector<4x72xbf16>, vector<72x16xbf16>, vector<4x16xf32> -> vector<4x16xf32>
    %65 = vector.broadcast %2 : vector<1x16xf32> to vector<4x16xf32>
    %66 = arith.addf %64, %65 : vector<4x16xf32>
    %67 = vector.extract_strided_slice %16 {offsets = [2, 2, 0, 0], sizes = [1, 1, 4, 72], strides = [1, 1, 1, 1]} : vector<4x4x4x72xbf16> to vector<1x1x4x72xbf16>
    %68 = vector.shape_cast %67 : vector<1x1x4x72xbf16> to vector<4x72xbf16>
    %cst_18 = arith.constant dense<0.000000e+00> : vector<4x16xf32>
    %69 = tpu.matmul %68, %1, %cst_18 {dimension_numbers = #tpu.dot_dimension_numbers<[1], [0], [0], [1], [0, 0, 1, 1], [], []>} : vector<4x72xbf16>, vector<72x16xbf16>, vector<4x16xf32> -> vector<4x16xf32>
    %70 = vector.broadcast %2 : vector<1x16xf32> to vector<4x16xf32>
    %71 = arith.addf %69, %70 : vector<4x16xf32>
    %72 = vector.extract_strided_slice %16 {offsets = [2, 3, 0, 0], sizes = [1, 1, 4, 72], strides = [1, 1, 1, 1]} : vector<4x4x4x72xbf16> to vector<1x1x4x72xbf16>
    %73 = vector.shape_cast %72 : vector<1x1x4x72xbf16> to vector<4x72xbf16>
    %cst_19 = arith.constant dense<0.000000e+00> : vector<4x16xf32>
    %74 = tpu.matmul %73, %1, %cst_19 {dimension_numbers = #tpu.dot_dimension_numbers<[1], [0], [0], [1], [0, 0, 1, 1], [], []>} : vector<4x72xbf16>, vector<72x16xbf16>, vector<4x16xf32> -> vector<4x16xf32>
    %75 = vector.broadcast %2 : vector<1x16xf32> to vector<4x16xf32>
    %76 = arith.addf %74, %75 : vector<4x16xf32>
    %77 = vector.extract_strided_slice %16 {offsets = [3, 0, 0, 0], sizes = [1, 1, 4, 72], strides = [1, 1, 1, 1]} : vector<4x4x4x72xbf16> to vector<1x1x4x72xbf16>
    %78 = vector.shape_cast %77 : vector<1x1x4x72xbf16> to vector<4x72xbf16>
    %cst_20 = arith.constant dense<0.000000e+00> : vector<4x16xf32>
    %79 = tpu.matmul %78, %1, %cst_20 {dimension_numbers = #tpu.dot_dimension_numbers<[1], [0], [0], [1], [0, 0, 1, 1], [], []>} : vector<4x72xbf16>, vector<72x16xbf16>, vector<4x16xf32> -> vector<4x16xf32>
    %80 = vector.broadcast %2 : vector<1x16xf32> to vector<4x16xf32>
    %81 = arith.addf %79, %80 : vector<4x16xf32>
    %82 = vector.extract_strided_slice %16 {offsets = [3, 1, 0, 0], sizes = [1, 1, 4, 72], strides = [1, 1, 1, 1]} : vector<4x4x4x72xbf16> to vector<1x1x4x72xbf16>
    %83 = vector.shape_cast %82 : vector<1x1x4x72xbf16> to vector<4x72xbf16>
    %cst_21 = arith.constant dense<0.000000e+00> : vector<4x16xf32>
    %84 = tpu.matmul %83, %1, %cst_21 {dimension_numbers = #tpu.dot_dimension_numbers<[1], [0], [0], [1], [0, 0, 1, 1], [], []>} : vector<4x72xbf16>, vector<72x16xbf16>, vector<4x16xf32> -> vector<4x16xf32>
    %85 = vector.broadcast %2 : vector<1x16xf32> to vector<4x16xf32>
    %86 = arith.addf %84, %85 : vector<4x16xf32>
    %87 = vector.extract_strided_slice %16 {offsets = [3, 2, 0, 0], sizes = [1, 1, 4, 72], strides = [1, 1, 1, 1]} : vector<4x4x4x72xbf16> to vector<1x1x4x72xbf16>
    %88 = vector.shape_cast %87 : vector<1x1x4x72xbf16> to vector<4x72xbf16>
    %cst_22 = arith.constant dense<0.000000e+00> : vector<4x16xf32>
    %89 = tpu.matmul %88, %1, %cst_22 {dimension_numbers = #tpu.dot_dimension_numbers<[1], [0], [0], [1], [0, 0, 1, 1], [], []>} : vector<4x72xbf16>, vector<72x16xbf16>, vector<4x16xf32> -> vector<4x16xf32>
    %90 = vector.broadcast %2 : vector<1x16xf32> to vector<4x16xf32>
    %91 = arith.addf %89, %90 : vector<4x16xf32>
    %92 = vector.extract_strided_slice %16 {offsets = [3, 3, 0, 0], sizes = [1, 1, 4, 72], strides = [1, 1, 1, 1]} : vector<4x4x4x72xbf16> to vector<1x1x4x72xbf16>
    %93 = vector.shape_cast %92 : vector<1x1x4x72xbf16> to vector<4x72xbf16>
    %cst_23 = arith.constant dense<0.000000e+00> : vector<4x16xf32>
    %94 = tpu.matmul %93, %1, %cst_23 {dimension_numbers = #tpu.dot_dimension_numbers<[1], [0], [0], [1], [0, 0, 1, 1], [], []>} : vector<4x72xbf16>, vector<72x16xbf16>, vector<4x16xf32> -> vector<4x16xf32>
    %95 = vector.broadcast %2 : vector<1x16xf32> to vector<4x16xf32>
    %96 = arith.addf %94, %95 : vector<4x16xf32>
    %97 = vector.shape_cast %21 : vector<4x16xf32> to vector<1x4x16xf32>
    %98 = vector.shape_cast %26 : vector<4x16xf32> to vector<1x4x16xf32>
    %99 = vector.shape_cast %31 : vector<4x16xf32> to vector<1x4x16xf32>
    %100 = vector.shape_cast %36 : vector<4x16xf32> to vector<1x4x16xf32>
    %101 = vector.shape_cast %41 : vector<4x16xf32> to vector<1x4x16xf32>
    %102 = vector.shape_cast %46 : vector<4x16xf32> to vector<1x4x16xf32>
    %103 = vector.shape_cast %51 : vector<4x16xf32> to vector<1x4x16xf32>
    %104 = vector.shape_cast %56 : vector<4x16xf32> to vector<1x4x16xf32>
    %105 = vector.shape_cast %61 : vector<4x16xf32> to vector<1x4x16xf32>
    %106 = vector.shape_cast %66 : vector<4x16xf32> to vector<1x4x16xf32>
    %107 = vector.shape_cast %71 : vector<4x16xf32> to vector<1x4x16xf32>
    %108 = vector.shape_cast %76 : vector<4x16xf32> to vector<1x4x16xf32>
    %109 = vector.shape_cast %81 : vector<4x16xf32> to vector<1x4x16xf32>
    %110 = vector.shape_cast %86 : vector<4x16xf32> to vector<1x4x16xf32>
    %111 = vector.shape_cast %91 : vector<4x16xf32> to vector<1x4x16xf32>
    %112 = vector.shape_cast %96 : vector<4x16xf32> to vector<1x4x16xf32>
    %113 = tpu.concatenate %97, %98, %99, %100, %101, %102, %103, %104, %105, %106, %107, %108, %109, %110, %111, %112 in 0 : vector<1x4x16xf32>, vector<1x4x16xf32>, vector<1x4x16xf32>, vector<1x4x16xf32>, vector<1x4x16xf32>, vector<1x4x16xf32>, vector<1x4x16xf32>, vector<1x4x16xf32>, vector<1x4x16xf32>, vector<1x4x16xf32>, vector<1x4x16xf32>, vector<1x4x16xf32>, vector<1x4x16xf32>, vector<1x4x16xf32>, vector<1x4x16xf32>, vector<1x4x16xf32> -> vector<16x4x16xf32>
    %114 = vector.shape_cast %113 : vector<16x4x16xf32> to vector<4x4x4x16xf32>
    %115 = arith.truncf %114 : vector<4x4x4x16xf32> to vector<4x4x4x16xbf16>
    %c0_24 = arith.constant 0 : index
    %c0_25 = arith.constant 0 : index
    %c0_26 = arith.constant 0 : index
    %c0_27 = arith.constant 0 : index
    %116 = vector.load %arg4[%c0_24, %c0_25, %c0_26, %c0_27] : memref<4x4x4x16xbf16, #tpu.memory_space<vmem>>, vector<4x4x4x16xbf16>
    tpu.vector_store %arg4[%c0_24, %c0_25, %c0_26, %c0_27], %115 {strides = array<i32>} : memref<4x4x4x16xbf16, #tpu.memory_space<vmem>>, vector<4x4x4x16xbf16>,
    return
  }
  func.func @transform_0(%arg0: i32) -> (i32, i32, i32, i32) {
    %c0_i32 = arith.constant 0 : i32
    %c0_i32_0 = arith.constant 0 : i32
    %c0_i32_1 = arith.constant 0 : i32
    %c0_i32_2 = arith.constant 0 : i32
    return %arg0, %c0_i32, %c0_i32_0, %c0_i32_1 : i32, i32, i32, i32
  }
  func.func @transform_1(%arg0: i32) -> (i32, i32) {
    %c0_i32 = arith.constant 0 : i32
    %c0_i32_0 = arith.constant 0 : i32
    %c0_i32_1 = arith.constant 0 : i32
    return %c0_i32, %c0_i32_0 : i32, i32
  }
  func.func @transform_2(%arg0: i32) -> (i32, i32) {
    %c0_i32 = arith.constant 0 : i32
    %c0_i32_0 = arith.constant 0 : i32
    %c0_i32_1 = arith.constant 0 : i32
    return %c0_i32, %c0_i32_0 : i32, i32
  }
  func.func @transform_3(%arg0: i32) -> (i32, i32, i32, i32) {
    %c0_i32 = arith.constant 0 : i32
    %c0_i32_0 = arith.constant 0 : i32
    %c0_i32_1 = arith.constant 0 : i32
    %c0_i32_2 = arith.constant 0 : i32
    return %arg0, %c0_i32, %c0_i32_0, %c0_i32_1 : i32, i32, i32, i32
  }
}

module attributes {stable_mosaic.version = 11 : i64} {
  func.func @_lif_pool_kernel(%arg0: i32, %arg1: i32, %arg2: i32, %arg3: memref<1x1x4x4x16xbf16, #tpu.memory_space<vmem>>, %arg4: memref<1x1x1x4x16xbf16, #tpu.memory_space<vmem>>, %arg5: memref<1x1x2x2x16xbf16, #tpu.memory_space<vmem>>, %arg6: memref<5x4x16xf32, #tpu.memory_space<vmem>>, %arg7: memref<2x4x16xf32, #tpu.memory_space<vmem>>) attributes {dimension_semantics = [#tpu.dimension_semantics<parallel>, #tpu.dimension_semantics<parallel>, #tpu.dimension_semantics<arbitrary>], iteration_bounds = array<i64: 2, 1, 2>, scalar_prefetch = 0 : i64, scratch_operands = 2 : i64, tpu.core_type = #tpu.core_type<tc>, window_params = [{transform_indices = @transform_0, window_bounds = array<i64: 1, 1, 4, 4, 16>}, {transform_indices = @transform_1, window_bounds = array<i64: 1, 1, 1, 4, 16>}, {transform_indices = @transform_2, window_bounds = array<i64: 1, 1, 2, 2, 16>}]} {
    %c0_i32 = arith.constant 0 : i32
    %0 = arith.cmpi eq, %arg2, %c0_i32 : i32
    %1 = arith.extui %0 : i1 to i32
    %c0_i32_0 = arith.constant 0 : i32
    %2 = arith.cmpi ne, %1, %c0_i32_0 : i32
    scf.if %2 {
      %cst_31 = arith.constant 0.000000e+00 : f32
      %43 = vector.broadcast %cst_31 : f32 to vector<5x4x16xf32>
      %c0_32 = arith.constant 0 : index
      %c0_33 = arith.constant 0 : index
      %c0_34 = arith.constant 0 : index
      %44 = vector.load %arg6[%c0_32, %c0_33, %c0_34] : memref<5x4x16xf32, #tpu.memory_space<vmem>>, vector<5x4x16xf32>
      tpu.vector_store %arg6[%c0_32, %c0_33, %c0_34], %43 {strides = array<i32>} : memref<5x4x16xf32, #tpu.memory_space<vmem>>, vector<5x4x16xf32>,
    } else {
    }
    %c0 = arith.constant 0 : index
    %c0_1 = arith.constant 0 : index
    %c0_2 = arith.constant 0 : index
    %c0_3 = arith.constant 0 : index
    %c0_4 = arith.constant 0 : index
    %3 = vector.load %arg4[%c0, %c0_1, %c0_2, %c0_3, %c0_4] : memref<1x1x1x4x16xbf16, #tpu.memory_space<vmem>>, vector<1x1x1x4x16xbf16>
    %4 = vector.shape_cast %3 : vector<1x1x1x4x16xbf16> to vector<1x4x16xbf16>
    %5 = arith.extf %4 : vector<1x4x16xbf16> to vector<1x4x16xf32>
    %c0_5 = arith.constant 0 : index
    %c0_6 = arith.constant 0 : index
    %c0_7 = arith.constant 0 : index
    %c0_8 = arith.constant 0 : index
    %c0_9 = arith.constant 0 : index
    %6 = vector.load %arg3[%c0_5, %c0_6, %c0_7, %c0_8, %c0_9] : memref<1x1x4x4x16xbf16, #tpu.memory_space<vmem>>, vector<1x1x4x4x16xbf16>
    %7 = vector.shape_cast %6 : vector<1x1x4x4x16xbf16> to vector<4x4x16xbf16>
    %8 = arith.extf %7 : vector<4x4x16xbf16> to vector<4x4x16xf32>
    %9 = tpu.concatenate %5, %8 in 0 : vector<1x4x16xf32>, vector<4x4x16xf32> -> vector<5x4x16xf32>
    %c0_10 = arith.constant 0 : index
    %c0_11 = arith.constant 0 : index
    %c0_12 = arith.constant 0 : index
    %10 = vector.load %arg6[%c0_10, %c0_11, %c0_12] : memref<5x4x16xf32, #tpu.memory_space<vmem>>, vector<5x4x16xf32>
    %11 = arith.subf %9, %10 : vector<5x4x16xf32>
    %cst = arith.constant 0.666666686 : f32
    %12 = vector.broadcast %cst : f32 to vector<5x4x16xf32>
    %13 = arith.mulf %11, %12 : vector<5x4x16xf32>
    %14 = arith.addf %10, %13 : vector<5x4x16xf32>
    %cst_13 = arith.constant 1.000000e+00 : f32
    %15 = vector.broadcast %cst_13 : f32 to vector<5x4x16xf32>
    %16 = arith.cmpf oge, %14, %15 : vector<5x4x16xf32>
    %cst_14 = arith.constant 0.000000e+00 : f32
    %17 = vector.broadcast %cst_14 : f32 to vector<5x4x16xf32>
    %18 = arith.select %16, %17, %14 : vector<5x4x16xi1>, vector<5x4x16xf32>
    %c0_15 = arith.constant 0 : index
    %c0_16 = arith.constant 0 : index
    %c0_17 = arith.constant 0 : index
    %19 = vector.load %arg6[%c0_15, %c0_16, %c0_17] : memref<5x4x16xf32, #tpu.memory_space<vmem>>, vector<5x4x16xf32>
    tpu.vector_store %arg6[%c0_15, %c0_16, %c0_17], %18 {strides = array<i32>} : memref<5x4x16xf32, #tpu.memory_space<vmem>>, vector<5x4x16xf32>,
    %20 = arith.extui %16 : vector<5x4x16xi1> to vector<5x4x16xi32>
    %21 = arith.sitofp %20 : vector<5x4x16xi32> to vector<5x4x16xf32>
    %cst_18 = arith.constant 0.000000e+00 : f32
    %22 = vector.broadcast %cst_18 : f32 to vector<5x1x16xf32>
    %23 = vector.extract_strided_slice %21 {offsets = [0, 0, 0], sizes = [5, 3, 16], strides = [1, 1, 1]} : vector<5x4x16xf32> to vector<5x3x16xf32>
    %24 = tpu.concatenate %22, %23 in 1 : vector<5x1x16xf32>, vector<5x3x16xf32> -> vector<5x4x16xf32>
    %25 = vector.extract_strided_slice %21 {offsets = [0, 1, 0], sizes = [5, 3, 16], strides = [1, 1, 1]} : vector<5x4x16xf32> to vector<5x3x16xf32>
    %26 = tpu.concatenate %25, %22 in 1 : vector<5x3x16xf32>, vector<5x1x16xf32> -> vector<5x4x16xf32>
    %27 = arith.maximumf %24, %21 : vector<5x4x16xf32>
    %28 = arith.maximumf %27, %26 : vector<5x4x16xf32>
    %29 = vector.extract_strided_slice %28 {offsets = [0, 0, 0], sizes = [4, 4, 16], strides = [1, 1, 1]} : vector<5x4x16xf32> to vector<4x4x16xf32>
    %30 = vector.shape_cast %29 : vector<4x4x16xf32> to vector<2x2x4x16xf32>
    %cst_19 = arith.constant dense<0xFF800000> : vector<2x4x16xf32>
    %31 = vector.multi_reduction <maximumf>, %30, %cst_19 [1] : vector<2x2x4x16xf32> to vector<2x4x16xf32>
    %32 = vector.extract_strided_slice %28 {offsets = [1, 0, 0], sizes = [4, 4, 16], strides = [1, 1, 1]} : vector<5x4x16xf32> to vector<4x4x16xf32>
    %33 = vector.shape_cast %32 : vector<4x4x16xf32> to vector<2x2x4x16xf32>
    %34 = vector.extract_strided_slice %33 {offsets = [0, 1, 0, 0], sizes = [2, 1, 4, 16], strides = [1, 1, 1, 1]} : vector<2x2x4x16xf32> to vector<2x1x4x16xf32>
    %35 = vector.shape_cast %34 : vector<2x1x4x16xf32> to vector<2x4x16xf32>
    %36 = arith.maximumf %31, %35 : vector<2x4x16xf32>
    %c0_20 = arith.constant 0 : index
    %c0_21 = arith.constant 0 : index
    %c0_22 = arith.constant 0 : index
    %37 = vector.load %arg7[%c0_20, %c0_21, %c0_22] : memref<2x4x16xf32, #tpu.memory_space<vmem>>, vector<2x4x16xf32>
    tpu.vector_store %arg7[%c0_20, %c0_21, %c0_22], %36 {strides = array<i32>} : memref<2x4x16xf32, #tpu.memory_space<vmem>>, vector<2x4x16xf32>,
    %c0_23 = arith.constant 0 : index
    %c0_24 = arith.constant 0 : index
    %c0_25 = arith.constant 0 : index
    %38 = tpu.strided_load %arg7[%c0_23, %c0_24, %c0_25] {strides = array<i32: 1, 2, 1>} : memref<2x4x16xf32, #tpu.memory_space<vmem>>, vector<2x2x16xf32>
    %39 = arith.truncf %38 : vector<2x2x16xf32> to vector<2x2x16xbf16>
    %c0_26 = arith.constant 0 : index
    %c0_27 = arith.constant 0 : index
    %c0_28 = arith.constant 0 : index
    %c0_29 = arith.constant 0 : index
    %c0_30 = arith.constant 0 : index
    %40 = vector.load %arg5[%c0_26, %c0_27, %c0_28, %c0_29, %c0_30] : memref<1x1x2x2x16xbf16, #tpu.memory_space<vmem>>, vector<1x1x2x2x16xbf16>
    %41 = vector.shape_cast %40 : vector<1x1x2x2x16xbf16> to vector<2x2x16xbf16>
    %42 = vector.shape_cast %39 : vector<2x2x16xbf16> to vector<1x1x2x2x16xbf16>
    tpu.vector_store %arg5[%c0_26, %c0_27, %c0_28, %c0_29, %c0_30], %42 {strides = array<i32>} : memref<1x1x2x2x16xbf16, #tpu.memory_space<vmem>>, vector<1x1x2x2x16xbf16>,
    return
  }
  func.func @transform_0(%arg0: i32, %arg1: i32, %arg2: i32) -> (i32, i32, i32, i32, i32) {
    %c0_i32 = arith.constant 0 : i32
    %c0_i32_0 = arith.constant 0 : i32
    %c0_i32_1 = arith.constant 0 : i32
    return %arg2, %arg0, %arg1, %c0_i32, %c0_i32_0 : i32, i32, i32, i32, i32
  }
  func.func @transform_1(%arg0: i32, %arg1: i32, %arg2: i32) -> (i32, i32, i32, i32, i32) {
    %c2_i32 = arith.constant 2 : i32
    %0 = arith.muli %arg1, %c2_i32 : i32
    %c2_i32_0 = arith.constant 2 : i32
    %1 = arith.muli %0, %c2_i32_0 : i32
    %c1_i32 = arith.constant 1 : i32
    %2 = arith.subi %1, %c1_i32 : i32
    %c0_i32 = arith.constant 0 : i32
    %3 = arith.maxsi %2, %c0_i32 : i32
    %c0_i32_1 = arith.constant 0 : i32
    %c0_i32_2 = arith.constant 0 : i32
    %c0_i32_3 = arith.constant 0 : i32
    return %arg2, %arg0, %3, %c0_i32_1, %c0_i32_2 : i32, i32, i32, i32, i32
  }
  func.func @transform_2(%arg0: i32, %arg1: i32, %arg2: i32) -> (i32, i32, i32, i32, i32) {
    %c0_i32 = arith.constant 0 : i32
    %c0_i32_0 = arith.constant 0 : i32
    %c0_i32_1 = arith.constant 0 : i32
    return %arg2, %arg0, %arg1, %c0_i32, %c0_i32_0 : i32, i32, i32, i32, i32
  }
}

module attributes {stable_mosaic.version = 11 : i64} {
  func.func @_conv_bn_kernel(%arg0: i32, %arg1: memref<4x2x2x16xbf16, #tpu.memory_space<vmem>>, %arg2: memref<144x32xbf16, #tpu.memory_space<vmem>>, %arg3: memref<1x32xf32, #tpu.memory_space<vmem>>, %arg4: memref<4x2x2x32xbf16, #tpu.memory_space<vmem>>) attributes {dimension_semantics = [#tpu.dimension_semantics<parallel>], iteration_bounds = array<i64: 1>, scalar_prefetch = 0 : i64, scratch_operands = 0 : i64, tpu.core_type = #tpu.core_type<tc>, window_params = [{transform_indices = @transform_0, window_bounds = array<i64: 4, 2, 2, 16>}, {pipeline_mode = #tpu.pipeline_mode<synchronous>, transform_indices = @transform_1, window_bounds = array<i64: 144, 32>}, {pipeline_mode = #tpu.pipeline_mode<synchronous>, transform_indices = @transform_2, window_bounds = array<i64: 1, 32>}, {transform_indices = @transform_3, window_bounds = array<i64: 4, 2, 2, 32>}]} {
    %c0 = arith.constant 0 : index
    %c0_0 = arith.constant 0 : index
    %c0_1 = arith.constant 0 : index
    %c0_2 = arith.constant 0 : index
    %0 = vector.load %arg1[%c0, %c0_0, %c0_1, %c0_2] : memref<4x2x2x16xbf16, #tpu.memory_space<vmem>>, vector<4x2x2x16xbf16>
    %c0_3 = arith.constant 0 : index
    %c0_4 = arith.constant 0 : index
    %1 = vector.load %arg2[%c0_3, %c0_4] : memref<144x32xbf16, #tpu.memory_space<vmem>>, vector<144x32xbf16>
    %c0_5 = arith.constant 0 : index
    %c0_6 = arith.constant 0 : index
    %2 = vector.load %arg3[%c0_5, %c0_6] : memref<1x32xf32, #tpu.memory_space<vmem>>, vector<1x32xf32>
    %cst = arith.constant 0.000000e+00 : bf16
    %3 = vector.broadcast %cst : bf16 to vector<4x1x2x16xbf16>
    %4 = tpu.concatenate %3, %0, %3 in 1 : vector<4x1x2x16xbf16>, vector<4x2x2x16xbf16>, vector<4x1x2x16xbf16> -> vector<4x4x2x16xbf16>
    %cst_7 = arith.constant 0.000000e+00 : bf16
    %5 = vector.broadcast %cst_7 : bf16 to vector<4x4x1x16xbf16>
    %6 = tpu.concatenate %5, %4, %5 in 2 : vector<4x4x1x16xbf16>, vector<4x4x2x16xbf16>, vector<4x4x1x16xbf16> -> vector<4x4x4x16xbf16>
    %7 = vector.extract_strided_slice %6 {offsets = [0, 0, 0, 0], sizes = [4, 2, 2, 16], strides = [1, 1, 1, 1]} : vector<4x4x4x16xbf16> to vector<4x2x2x16xbf16>
    %8 = vector.extract_strided_slice %6 {offsets = [0, 0, 1, 0], sizes = [4, 2, 2, 16], strides = [1, 1, 1, 1]} : vector<4x4x4x16xbf16> to vector<4x2x2x16xbf16>
    %9 = vector.extract_strided_slice %6 {offsets = [0, 0, 2, 0], sizes = [4, 2, 2, 16], strides = [1, 1, 1, 1]} : vector<4x4x4x16xbf16> to vector<4x2x2x16xbf16>
    %10 = vector.extract_strided_slice %6 {offsets = [0, 1, 0, 0], sizes = [4, 2, 2, 16], strides = [1, 1, 1, 1]} : vector<4x4x4x16xbf16> to vector<4x2x2x16xbf16>
    %11 = vector.extract_strided_slice %6 {offsets = [0, 1, 1, 0], sizes = [4, 2, 2, 16], strides = [1, 1, 1, 1]} : vector<4x4x4x16xbf16> to vector<4x2x2x16xbf16>
    %12 = vector.extract_strided_slice %6 {offsets = [0, 1, 2, 0], sizes = [4, 2, 2, 16], strides = [1, 1, 1, 1]} : vector<4x4x4x16xbf16> to vector<4x2x2x16xbf16>
    %13 = vector.extract_strided_slice %6 {offsets = [0, 2, 0, 0], sizes = [4, 2, 2, 16], strides = [1, 1, 1, 1]} : vector<4x4x4x16xbf16> to vector<4x2x2x16xbf16>
    %14 = vector.extract_strided_slice %6 {offsets = [0, 2, 1, 0], sizes = [4, 2, 2, 16], strides = [1, 1, 1, 1]} : vector<4x4x4x16xbf16> to vector<4x2x2x16xbf16>
    %15 = vector.extract_strided_slice %6 {offsets = [0, 2, 2, 0], sizes = [4, 2, 2, 16], strides = [1, 1, 1, 1]} : vector<4x4x4x16xbf16> to vector<4x2x2x16xbf16>
    %16 = tpu.concatenate %7, %8, %9, %10, %11, %12, %13, %14, %15 in 3 : vector<4x2x2x16xbf16>, vector<4x2x2x16xbf16>, vector<4x2x2x16xbf16>, vector<4x2x2x16xbf16>, vector<4x2x2x16xbf16>, vector<4x2x2x16xbf16>, vector<4x2x2x16xbf16>, vector<4x2x2x16xbf16>, vector<4x2x2x16xbf16> -> vector<4x2x2x144xbf16>
    %17 = vector.extract_strided_slice %16 {offsets = [0, 0, 0, 0], sizes = [1, 1, 2, 144], strides = [1, 1, 1, 1]} : vector<4x2x2x144xbf16> to vector<1x1x2x144xbf16>
    %18 = vector.shape_cast %17 : vector<1x1x2x144xbf16> to vector<2x144xbf16>
    %cst_8 = arith.constant dense<0.000000e+00> : vector<2x32xf32>
    %19 = tpu.matmul %18, %1, %cst_8 {dimension_numbers = #tpu.dot_dimension_numbers<[1], [0], [0], [1], [0, 0, 1, 1], [], []>} : vector<2x144xbf16>, vector<144x32xbf16>, vector<2x32xf32> -> vector<2x32xf32>
    %20 = vector.broadcast %2 : vector<1x32xf32> to vector<2x32xf32>
    %21 = arith.addf %19, %20 : vector<2x32xf32>
    %22 = vector.extract_strided_slice %16 {offsets = [0, 1, 0, 0], sizes = [1, 1, 2, 144], strides = [1, 1, 1, 1]} : vector<4x2x2x144xbf16> to vector<1x1x2x144xbf16>
    %23 = vector.shape_cast %22 : vector<1x1x2x144xbf16> to vector<2x144xbf16>
    %cst_9 = arith.constant dense<0.000000e+00> : vector<2x32xf32>
    %24 = tpu.matmul %23, %1, %cst_9 {dimension_numbers = #tpu.dot_dimension_numbers<[1], [0], [0], [1], [0, 0, 1, 1], [], []>} : vector<2x144xbf16>, vector<144x32xbf16>, vector<2x32xf32> -> vector<2x32xf32>
    %25 = vector.broadcast %2 : vector<1x32xf32> to vector<2x32xf32>
    %26 = arith.addf %24, %25 : vector<2x32xf32>
    %27 = vector.extract_strided_slice %16 {offsets = [1, 0, 0, 0], sizes = [1, 1, 2, 144], strides = [1, 1, 1, 1]} : vector<4x2x2x144xbf16> to vector<1x1x2x144xbf16>
    %28 = vector.shape_cast %27 : vector<1x1x2x144xbf16> to vector<2x144xbf16>
    %cst_10 = arith.constant dense<0.000000e+00> : vector<2x32xf32>
    %29 = tpu.matmul %28, %1, %cst_10 {dimension_numbers = #tpu.dot_dimension_numbers<[1], [0], [0], [1], [0, 0, 1, 1], [], []>} : vector<2x144xbf16>, vector<144x32xbf16>, vector<2x32xf32> -> vector<2x32xf32>
    %30 = vector.broadcast %2 : vector<1x32xf32> to vector<2x32xf32>
    %31 = arith.addf %29, %30 : vector<2x32xf32>
    %32 = vector.extract_strided_slice %16 {offsets = [1, 1, 0, 0], sizes = [1, 1, 2, 144], strides = [1, 1, 1, 1]} : vector<4x2x2x144xbf16> to vector<1x1x2x144xbf16>
    %33 = vector.shape_cast %32 : vector<1x1x2x144xbf16> to vector<2x144xbf16>
    %cst_11 = arith.constant dense<0.000000e+00> : vector<2x32xf32>
    %34 = tpu.matmul %33, %1, %cst_11 {dimension_numbers = #tpu.dot_dimension_numbers<[1], [0], [0], [1], [0, 0, 1, 1], [], []>} : vector<2x144xbf16>, vector<144x32xbf16>, vector<2x32xf32> -> vector<2x32xf32>
    %35 = vector.broadcast %2 : vector<1x32xf32> to vector<2x32xf32>
    %36 = arith.addf %34, %35 : vector<2x32xf32>
    %37 = vector.extract_strided_slice %16 {offsets = [2, 0, 0, 0], sizes = [1, 1, 2, 144], strides = [1, 1, 1, 1]} : vector<4x2x2x144xbf16> to vector<1x1x2x144xbf16>
    %38 = vector.shape_cast %37 : vector<1x1x2x144xbf16> to vector<2x144xbf16>
    %cst_12 = arith.constant dense<0.000000e+00> : vector<2x32xf32>
    %39 = tpu.matmul %38, %1, %cst_12 {dimension_numbers = #tpu.dot_dimension_numbers<[1], [0], [0], [1], [0, 0, 1, 1], [], []>} : vector<2x144xbf16>, vector<144x32xbf16>, vector<2x32xf32> -> vector<2x32xf32>
    %40 = vector.broadcast %2 : vector<1x32xf32> to vector<2x32xf32>
    %41 = arith.addf %39, %40 : vector<2x32xf32>
    %42 = vector.extract_strided_slice %16 {offsets = [2, 1, 0, 0], sizes = [1, 1, 2, 144], strides = [1, 1, 1, 1]} : vector<4x2x2x144xbf16> to vector<1x1x2x144xbf16>
    %43 = vector.shape_cast %42 : vector<1x1x2x144xbf16> to vector<2x144xbf16>
    %cst_13 = arith.constant dense<0.000000e+00> : vector<2x32xf32>
    %44 = tpu.matmul %43, %1, %cst_13 {dimension_numbers = #tpu.dot_dimension_numbers<[1], [0], [0], [1], [0, 0, 1, 1], [], []>} : vector<2x144xbf16>, vector<144x32xbf16>, vector<2x32xf32> -> vector<2x32xf32>
    %45 = vector.broadcast %2 : vector<1x32xf32> to vector<2x32xf32>
    %46 = arith.addf %44, %45 : vector<2x32xf32>
    %47 = vector.extract_strided_slice %16 {offsets = [3, 0, 0, 0], sizes = [1, 1, 2, 144], strides = [1, 1, 1, 1]} : vector<4x2x2x144xbf16> to vector<1x1x2x144xbf16>
    %48 = vector.shape_cast %47 : vector<1x1x2x144xbf16> to vector<2x144xbf16>
    %cst_14 = arith.constant dense<0.000000e+00> : vector<2x32xf32>
    %49 = tpu.matmul %48, %1, %cst_14 {dimension_numbers = #tpu.dot_dimension_numbers<[1], [0], [0], [1], [0, 0, 1, 1], [], []>} : vector<2x144xbf16>, vector<144x32xbf16>, vector<2x32xf32> -> vector<2x32xf32>
    %50 = vector.broadcast %2 : vector<1x32xf32> to vector<2x32xf32>
    %51 = arith.addf %49, %50 : vector<2x32xf32>
    %52 = vector.extract_strided_slice %16 {offsets = [3, 1, 0, 0], sizes = [1, 1, 2, 144], strides = [1, 1, 1, 1]} : vector<4x2x2x144xbf16> to vector<1x1x2x144xbf16>
    %53 = vector.shape_cast %52 : vector<1x1x2x144xbf16> to vector<2x144xbf16>
    %cst_15 = arith.constant dense<0.000000e+00> : vector<2x32xf32>
    %54 = tpu.matmul %53, %1, %cst_15 {dimension_numbers = #tpu.dot_dimension_numbers<[1], [0], [0], [1], [0, 0, 1, 1], [], []>} : vector<2x144xbf16>, vector<144x32xbf16>, vector<2x32xf32> -> vector<2x32xf32>
    %55 = vector.broadcast %2 : vector<1x32xf32> to vector<2x32xf32>
    %56 = arith.addf %54, %55 : vector<2x32xf32>
    %57 = vector.shape_cast %21 : vector<2x32xf32> to vector<1x2x32xf32>
    %58 = vector.shape_cast %26 : vector<2x32xf32> to vector<1x2x32xf32>
    %59 = vector.shape_cast %31 : vector<2x32xf32> to vector<1x2x32xf32>
    %60 = vector.shape_cast %36 : vector<2x32xf32> to vector<1x2x32xf32>
    %61 = vector.shape_cast %41 : vector<2x32xf32> to vector<1x2x32xf32>
    %62 = vector.shape_cast %46 : vector<2x32xf32> to vector<1x2x32xf32>
    %63 = vector.shape_cast %51 : vector<2x32xf32> to vector<1x2x32xf32>
    %64 = vector.shape_cast %56 : vector<2x32xf32> to vector<1x2x32xf32>
    %65 = tpu.concatenate %57, %58, %59, %60, %61, %62, %63, %64 in 0 : vector<1x2x32xf32>, vector<1x2x32xf32>, vector<1x2x32xf32>, vector<1x2x32xf32>, vector<1x2x32xf32>, vector<1x2x32xf32>, vector<1x2x32xf32>, vector<1x2x32xf32> -> vector<8x2x32xf32>
    %66 = vector.shape_cast %65 : vector<8x2x32xf32> to vector<4x2x2x32xf32>
    %67 = arith.truncf %66 : vector<4x2x2x32xf32> to vector<4x2x2x32xbf16>
    %c0_16 = arith.constant 0 : index
    %c0_17 = arith.constant 0 : index
    %c0_18 = arith.constant 0 : index
    %c0_19 = arith.constant 0 : index
    %68 = vector.load %arg4[%c0_16, %c0_17, %c0_18, %c0_19] : memref<4x2x2x32xbf16, #tpu.memory_space<vmem>>, vector<4x2x2x32xbf16>
    tpu.vector_store %arg4[%c0_16, %c0_17, %c0_18, %c0_19], %67 {strides = array<i32>} : memref<4x2x2x32xbf16, #tpu.memory_space<vmem>>, vector<4x2x2x32xbf16>,
    return
  }
  func.func @transform_0(%arg0: i32) -> (i32, i32, i32, i32) {
    %c0_i32 = arith.constant 0 : i32
    %c0_i32_0 = arith.constant 0 : i32
    %c0_i32_1 = arith.constant 0 : i32
    %c0_i32_2 = arith.constant 0 : i32
    return %arg0, %c0_i32, %c0_i32_0, %c0_i32_1 : i32, i32, i32, i32
  }
  func.func @transform_1(%arg0: i32) -> (i32, i32) {
    %c0_i32 = arith.constant 0 : i32
    %c0_i32_0 = arith.constant 0 : i32
    %c0_i32_1 = arith.constant 0 : i32
    return %c0_i32, %c0_i32_0 : i32, i32
  }
  func.func @transform_2(%arg0: i32) -> (i32, i32) {
    %c0_i32 = arith.constant 0 : i32
    %c0_i32_0 = arith.constant 0 : i32
    %c0_i32_1 = arith.constant 0 : i32
    return %c0_i32, %c0_i32_0 : i32, i32
  }
  func.func @transform_3(%arg0: i32) -> (i32, i32, i32, i32) {
    %c0_i32 = arith.constant 0 : i32
    %c0_i32_0 = arith.constant 0 : i32
    %c0_i32_1 = arith.constant 0 : i32
    %c0_i32_2 = arith.constant 0 : i32
    return %arg0, %c0_i32, %c0_i32_0, %c0_i32_1 : i32, i32, i32, i32
  }
}

module attributes {stable_mosaic.version = 11 : i64} {
  func.func @_lif_pool_kernel(%arg0: i32, %arg1: i32, %arg2: i32, %arg3: memref<1x1x2x2x32xbf16, #tpu.memory_space<vmem>>, %arg4: memref<1x1x1x2x32xbf16, #tpu.memory_space<vmem>>, %arg5: memref<1x1x1x1x32xbf16, #tpu.memory_space<vmem>>, %arg6: memref<3x2x32xf32, #tpu.memory_space<vmem>>, %arg7: memref<1x2x32xf32, #tpu.memory_space<vmem>>) attributes {dimension_semantics = [#tpu.dimension_semantics<parallel>, #tpu.dimension_semantics<parallel>, #tpu.dimension_semantics<arbitrary>], iteration_bounds = array<i64: 2, 1, 2>, scalar_prefetch = 0 : i64, scratch_operands = 2 : i64, tpu.core_type = #tpu.core_type<tc>, window_params = [{transform_indices = @transform_0, window_bounds = array<i64: 1, 1, 2, 2, 32>}, {transform_indices = @transform_1, window_bounds = array<i64: 1, 1, 1, 2, 32>}, {transform_indices = @transform_2, window_bounds = array<i64: 1, 1, 1, 1, 32>}]} {
    %c0_i32 = arith.constant 0 : i32
    %0 = arith.cmpi eq, %arg2, %c0_i32 : i32
    %1 = arith.extui %0 : i1 to i32
    %c0_i32_0 = arith.constant 0 : i32
    %2 = arith.cmpi ne, %1, %c0_i32_0 : i32
    scf.if %2 {
      %cst_31 = arith.constant 0.000000e+00 : f32
      %43 = vector.broadcast %cst_31 : f32 to vector<3x2x32xf32>
      %c0_32 = arith.constant 0 : index
      %c0_33 = arith.constant 0 : index
      %c0_34 = arith.constant 0 : index
      %44 = vector.load %arg6[%c0_32, %c0_33, %c0_34] : memref<3x2x32xf32, #tpu.memory_space<vmem>>, vector<3x2x32xf32>
      tpu.vector_store %arg6[%c0_32, %c0_33, %c0_34], %43 {strides = array<i32>} : memref<3x2x32xf32, #tpu.memory_space<vmem>>, vector<3x2x32xf32>,
    } else {
    }
    %c0 = arith.constant 0 : index
    %c0_1 = arith.constant 0 : index
    %c0_2 = arith.constant 0 : index
    %c0_3 = arith.constant 0 : index
    %c0_4 = arith.constant 0 : index
    %3 = vector.load %arg4[%c0, %c0_1, %c0_2, %c0_3, %c0_4] : memref<1x1x1x2x32xbf16, #tpu.memory_space<vmem>>, vector<1x1x1x2x32xbf16>
    %4 = vector.shape_cast %3 : vector<1x1x1x2x32xbf16> to vector<1x2x32xbf16>
    %5 = arith.extf %4 : vector<1x2x32xbf16> to vector<1x2x32xf32>
    %c0_5 = arith.constant 0 : index
    %c0_6 = arith.constant 0 : index
    %c0_7 = arith.constant 0 : index
    %c0_8 = arith.constant 0 : index
    %c0_9 = arith.constant 0 : index
    %6 = vector.load %arg3[%c0_5, %c0_6, %c0_7, %c0_8, %c0_9] : memref<1x1x2x2x32xbf16, #tpu.memory_space<vmem>>, vector<1x1x2x2x32xbf16>
    %7 = vector.shape_cast %6 : vector<1x1x2x2x32xbf16> to vector<2x2x32xbf16>
    %8 = arith.extf %7 : vector<2x2x32xbf16> to vector<2x2x32xf32>
    %9 = tpu.concatenate %5, %8 in 0 : vector<1x2x32xf32>, vector<2x2x32xf32> -> vector<3x2x32xf32>
    %c0_10 = arith.constant 0 : index
    %c0_11 = arith.constant 0 : index
    %c0_12 = arith.constant 0 : index
    %10 = vector.load %arg6[%c0_10, %c0_11, %c0_12] : memref<3x2x32xf32, #tpu.memory_space<vmem>>, vector<3x2x32xf32>
    %11 = arith.subf %9, %10 : vector<3x2x32xf32>
    %cst = arith.constant 0.666666686 : f32
    %12 = vector.broadcast %cst : f32 to vector<3x2x32xf32>
    %13 = arith.mulf %11, %12 : vector<3x2x32xf32>
    %14 = arith.addf %10, %13 : vector<3x2x32xf32>
    %cst_13 = arith.constant 1.000000e+00 : f32
    %15 = vector.broadcast %cst_13 : f32 to vector<3x2x32xf32>
    %16 = arith.cmpf oge, %14, %15 : vector<3x2x32xf32>
    %cst_14 = arith.constant 0.000000e+00 : f32
    %17 = vector.broadcast %cst_14 : f32 to vector<3x2x32xf32>
    %18 = arith.select %16, %17, %14 : vector<3x2x32xi1>, vector<3x2x32xf32>
    %c0_15 = arith.constant 0 : index
    %c0_16 = arith.constant 0 : index
    %c0_17 = arith.constant 0 : index
    %19 = vector.load %arg6[%c0_15, %c0_16, %c0_17] : memref<3x2x32xf32, #tpu.memory_space<vmem>>, vector<3x2x32xf32>
    tpu.vector_store %arg6[%c0_15, %c0_16, %c0_17], %18 {strides = array<i32>} : memref<3x2x32xf32, #tpu.memory_space<vmem>>, vector<3x2x32xf32>,
    %20 = arith.extui %16 : vector<3x2x32xi1> to vector<3x2x32xi32>
    %21 = arith.sitofp %20 : vector<3x2x32xi32> to vector<3x2x32xf32>
    %cst_18 = arith.constant 0.000000e+00 : f32
    %22 = vector.broadcast %cst_18 : f32 to vector<3x1x32xf32>
    %23 = vector.extract_strided_slice %21 {offsets = [0, 0, 0], sizes = [3, 1, 32], strides = [1, 1, 1]} : vector<3x2x32xf32> to vector<3x1x32xf32>
    %24 = tpu.concatenate %22, %23 in 1 : vector<3x1x32xf32>, vector<3x1x32xf32> -> vector<3x2x32xf32>
    %25 = vector.extract_strided_slice %21 {offsets = [0, 1, 0], sizes = [3, 1, 32], strides = [1, 1, 1]} : vector<3x2x32xf32> to vector<3x1x32xf32>
    %26 = tpu.concatenate %25, %22 in 1 : vector<3x1x32xf32>, vector<3x1x32xf32> -> vector<3x2x32xf32>
    %27 = arith.maximumf %24, %21 : vector<3x2x32xf32>
    %28 = arith.maximumf %27, %26 : vector<3x2x32xf32>
    %29 = vector.extract_strided_slice %28 {offsets = [0, 0, 0], sizes = [2, 2, 32], strides = [1, 1, 1]} : vector<3x2x32xf32> to vector<2x2x32xf32>
    %30 = vector.shape_cast %29 : vector<2x2x32xf32> to vector<1x2x2x32xf32>
    %cst_19 = arith.constant dense<0xFF800000> : vector<1x2x32xf32>
    %31 = vector.multi_reduction <maximumf>, %30, %cst_19 [1] : vector<1x2x2x32xf32> to vector<1x2x32xf32>
    %32 = vector.extract_strided_slice %28 {offsets = [1, 0, 0], sizes = [2, 2, 32], strides = [1, 1, 1]} : vector<3x2x32xf32> to vector<2x2x32xf32>
    %33 = vector.shape_cast %32 : vector<2x2x32xf32> to vector<1x2x2x32xf32>
    %34 = vector.extract_strided_slice %33 {offsets = [0, 1, 0, 0], sizes = [1, 1, 2, 32], strides = [1, 1, 1, 1]} : vector<1x2x2x32xf32> to vector<1x1x2x32xf32>
    %35 = vector.shape_cast %34 : vector<1x1x2x32xf32> to vector<1x2x32xf32>
    %36 = arith.maximumf %31, %35 : vector<1x2x32xf32>
    %c0_20 = arith.constant 0 : index
    %c0_21 = arith.constant 0 : index
    %c0_22 = arith.constant 0 : index
    %37 = vector.load %arg7[%c0_20, %c0_21, %c0_22] : memref<1x2x32xf32, #tpu.memory_space<vmem>>, vector<1x2x32xf32>
    tpu.vector_store %arg7[%c0_20, %c0_21, %c0_22], %36 {strides = array<i32>} : memref<1x2x32xf32, #tpu.memory_space<vmem>>, vector<1x2x32xf32>,
    %c0_23 = arith.constant 0 : index
    %c0_24 = arith.constant 0 : index
    %c0_25 = arith.constant 0 : index
    %38 = tpu.strided_load %arg7[%c0_23, %c0_24, %c0_25] {strides = array<i32: 1, 2, 1>} : memref<1x2x32xf32, #tpu.memory_space<vmem>>, vector<1x1x32xf32>
    %39 = arith.truncf %38 : vector<1x1x32xf32> to vector<1x1x32xbf16>
    %c0_26 = arith.constant 0 : index
    %c0_27 = arith.constant 0 : index
    %c0_28 = arith.constant 0 : index
    %c0_29 = arith.constant 0 : index
    %c0_30 = arith.constant 0 : index
    %40 = vector.load %arg5[%c0_26, %c0_27, %c0_28, %c0_29, %c0_30] : memref<1x1x1x1x32xbf16, #tpu.memory_space<vmem>>, vector<1x1x1x1x32xbf16>
    %41 = vector.shape_cast %40 : vector<1x1x1x1x32xbf16> to vector<1x1x32xbf16>
    %42 = vector.shape_cast %39 : vector<1x1x32xbf16> to vector<1x1x1x1x32xbf16>
    tpu.vector_store %arg5[%c0_26, %c0_27, %c0_28, %c0_29, %c0_30], %42 {strides = array<i32>} : memref<1x1x1x1x32xbf16, #tpu.memory_space<vmem>>, vector<1x1x1x1x32xbf16>,
    return
  }
  func.func @transform_0(%arg0: i32, %arg1: i32, %arg2: i32) -> (i32, i32, i32, i32, i32) {
    %c0_i32 = arith.constant 0 : i32
    %c0_i32_0 = arith.constant 0 : i32
    %c0_i32_1 = arith.constant 0 : i32
    return %arg2, %arg0, %arg1, %c0_i32, %c0_i32_0 : i32, i32, i32, i32, i32
  }
  func.func @transform_1(%arg0: i32, %arg1: i32, %arg2: i32) -> (i32, i32, i32, i32, i32) {
    %c2_i32 = arith.constant 2 : i32
    %0 = arith.muli %arg1, %c2_i32 : i32
    %c1_i32 = arith.constant 1 : i32
    %1 = arith.muli %0, %c1_i32 : i32
    %c1_i32_0 = arith.constant 1 : i32
    %2 = arith.subi %1, %c1_i32_0 : i32
    %c0_i32 = arith.constant 0 : i32
    %3 = arith.maxsi %2, %c0_i32 : i32
    %c0_i32_1 = arith.constant 0 : i32
    %c0_i32_2 = arith.constant 0 : i32
    %c0_i32_3 = arith.constant 0 : i32
    return %arg2, %arg0, %3, %c0_i32_1, %c0_i32_2 : i32, i32, i32, i32, i32
  }
  func.func @transform_2(%arg0: i32, %arg1: i32, %arg2: i32) -> (i32, i32, i32, i32, i32) {
    %c0_i32 = arith.constant 0 : i32
    %c0_i32_0 = arith.constant 0 : i32
    %c0_i32_1 = arith.constant 0 : i32
    return %arg2, %arg0, %arg1, %c0_i32, %c0_i32_0 : i32, i32, i32, i32, i32
  }
}

module attributes {stable_mosaic.version = 11 : i64} {
  func.func @_conv_bn_kernel(%arg0: i32, %arg1: memref<4x1x1x32xbf16, #tpu.memory_space<vmem>>, %arg2: memref<288x32xbf16, #tpu.memory_space<vmem>>, %arg3: memref<1x32xf32, #tpu.memory_space<vmem>>, %arg4: memref<4x1x1x32xf32, #tpu.memory_space<vmem>>) attributes {dimension_semantics = [#tpu.dimension_semantics<parallel>], iteration_bounds = array<i64: 1>, scalar_prefetch = 0 : i64, scratch_operands = 0 : i64, tpu.core_type = #tpu.core_type<tc>, window_params = [{transform_indices = @transform_0, window_bounds = array<i64: 4, 1, 1, 32>}, {pipeline_mode = #tpu.pipeline_mode<synchronous>, transform_indices = @transform_1, window_bounds = array<i64: 288, 32>}, {pipeline_mode = #tpu.pipeline_mode<synchronous>, transform_indices = @transform_2, window_bounds = array<i64: 1, 32>}, {transform_indices = @transform_3, window_bounds = array<i64: 4, 1, 1, 32>}]} {
    %c0 = arith.constant 0 : index
    %c0_0 = arith.constant 0 : index
    %c0_1 = arith.constant 0 : index
    %c0_2 = arith.constant 0 : index
    %0 = vector.load %arg1[%c0, %c0_0, %c0_1, %c0_2] : memref<4x1x1x32xbf16, #tpu.memory_space<vmem>>, vector<4x1x1x32xbf16>
    %c0_3 = arith.constant 0 : index
    %c0_4 = arith.constant 0 : index
    %1 = vector.load %arg2[%c0_3, %c0_4] : memref<288x32xbf16, #tpu.memory_space<vmem>>, vector<288x32xbf16>
    %c0_5 = arith.constant 0 : index
    %c0_6 = arith.constant 0 : index
    %2 = vector.load %arg3[%c0_5, %c0_6] : memref<1x32xf32, #tpu.memory_space<vmem>>, vector<1x32xf32>
    %cst = arith.constant 0.000000e+00 : bf16
    %3 = vector.broadcast %cst : bf16 to vector<4x1x1x32xbf16>
    %4 = tpu.concatenate %3, %0, %3 in 1 : vector<4x1x1x32xbf16>, vector<4x1x1x32xbf16>, vector<4x1x1x32xbf16> -> vector<4x3x1x32xbf16>
    %cst_7 = arith.constant 0.000000e+00 : bf16
    %5 = vector.broadcast %cst_7 : bf16 to vector<4x3x1x32xbf16>
    %6 = tpu.concatenate %5, %4, %5 in 2 : vector<4x3x1x32xbf16>, vector<4x3x1x32xbf16>, vector<4x3x1x32xbf16> -> vector<4x3x3x32xbf16>
    %7 = vector.extract_strided_slice %6 {offsets = [0, 0, 0, 0], sizes = [4, 1, 1, 32], strides = [1, 1, 1, 1]} : vector<4x3x3x32xbf16> to vector<4x1x1x32xbf16>
    %8 = vector.extract_strided_slice %6 {offsets = [0, 0, 1, 0], sizes = [4, 1, 1, 32], strides = [1, 1, 1, 1]} : vector<4x3x3x32xbf16> to vector<4x1x1x32xbf16>
    %9 = vector.extract_strided_slice %6 {offsets = [0, 0, 2, 0], sizes = [4, 1, 1, 32], strides = [1, 1, 1, 1]} : vector<4x3x3x32xbf16> to vector<4x1x1x32xbf16>
    %10 = vector.extract_strided_slice %6 {offsets = [0, 1, 0, 0], sizes = [4, 1, 1, 32], strides = [1, 1, 1, 1]} : vector<4x3x3x32xbf16> to vector<4x1x1x32xbf16>
    %11 = vector.extract_strided_slice %6 {offsets = [0, 1, 1, 0], sizes = [4, 1, 1, 32], strides = [1, 1, 1, 1]} : vector<4x3x3x32xbf16> to vector<4x1x1x32xbf16>
    %12 = vector.extract_strided_slice %6 {offsets = [0, 1, 2, 0], sizes = [4, 1, 1, 32], strides = [1, 1, 1, 1]} : vector<4x3x3x32xbf16> to vector<4x1x1x32xbf16>
    %13 = vector.extract_strided_slice %6 {offsets = [0, 2, 0, 0], sizes = [4, 1, 1, 32], strides = [1, 1, 1, 1]} : vector<4x3x3x32xbf16> to vector<4x1x1x32xbf16>
    %14 = vector.extract_strided_slice %6 {offsets = [0, 2, 1, 0], sizes = [4, 1, 1, 32], strides = [1, 1, 1, 1]} : vector<4x3x3x32xbf16> to vector<4x1x1x32xbf16>
    %15 = vector.extract_strided_slice %6 {offsets = [0, 2, 2, 0], sizes = [4, 1, 1, 32], strides = [1, 1, 1, 1]} : vector<4x3x3x32xbf16> to vector<4x1x1x32xbf16>
    %16 = tpu.concatenate %7, %8, %9, %10, %11, %12, %13, %14, %15 in 3 : vector<4x1x1x32xbf16>, vector<4x1x1x32xbf16>, vector<4x1x1x32xbf16>, vector<4x1x1x32xbf16>, vector<4x1x1x32xbf16>, vector<4x1x1x32xbf16>, vector<4x1x1x32xbf16>, vector<4x1x1x32xbf16>, vector<4x1x1x32xbf16> -> vector<4x1x1x288xbf16>
    %17 = vector.extract_strided_slice %16 {offsets = [0, 0, 0, 0], sizes = [1, 1, 1, 288], strides = [1, 1, 1, 1]} : vector<4x1x1x288xbf16> to vector<1x1x1x288xbf16>
    %18 = vector.shape_cast %17 : vector<1x1x1x288xbf16> to vector<1x288xbf16>
    %cst_8 = arith.constant dense<0.000000e+00> : vector<1x32xf32>
    %19 = tpu.matmul %18, %1, %cst_8 {dimension_numbers = #tpu.dot_dimension_numbers<[1], [0], [0], [1], [0, 0, 1, 1], [], []>} : vector<1x288xbf16>, vector<288x32xbf16>, vector<1x32xf32> -> vector<1x32xf32>
    %20 = arith.addf %19, %2 : vector<1x32xf32>
    %21 = vector.extract_strided_slice %16 {offsets = [1, 0, 0, 0], sizes = [1, 1, 1, 288], strides = [1, 1, 1, 1]} : vector<4x1x1x288xbf16> to vector<1x1x1x288xbf16>
    %22 = vector.shape_cast %21 : vector<1x1x1x288xbf16> to vector<1x288xbf16>
    %cst_9 = arith.constant dense<0.000000e+00> : vector<1x32xf32>
    %23 = tpu.matmul %22, %1, %cst_9 {dimension_numbers = #tpu.dot_dimension_numbers<[1], [0], [0], [1], [0, 0, 1, 1], [], []>} : vector<1x288xbf16>, vector<288x32xbf16>, vector<1x32xf32> -> vector<1x32xf32>
    %24 = arith.addf %23, %2 : vector<1x32xf32>
    %25 = vector.extract_strided_slice %16 {offsets = [2, 0, 0, 0], sizes = [1, 1, 1, 288], strides = [1, 1, 1, 1]} : vector<4x1x1x288xbf16> to vector<1x1x1x288xbf16>
    %26 = vector.shape_cast %25 : vector<1x1x1x288xbf16> to vector<1x288xbf16>
    %cst_10 = arith.constant dense<0.000000e+00> : vector<1x32xf32>
    %27 = tpu.matmul %26, %1, %cst_10 {dimension_numbers = #tpu.dot_dimension_numbers<[1], [0], [0], [1], [0, 0, 1, 1], [], []>} : vector<1x288xbf16>, vector<288x32xbf16>, vector<1x32xf32> -> vector<1x32xf32>
    %28 = arith.addf %27, %2 : vector<1x32xf32>
    %29 = vector.extract_strided_slice %16 {offsets = [3, 0, 0, 0], sizes = [1, 1, 1, 288], strides = [1, 1, 1, 1]} : vector<4x1x1x288xbf16> to vector<1x1x1x288xbf16>
    %30 = vector.shape_cast %29 : vector<1x1x1x288xbf16> to vector<1x288xbf16>
    %cst_11 = arith.constant dense<0.000000e+00> : vector<1x32xf32>
    %31 = tpu.matmul %30, %1, %cst_11 {dimension_numbers = #tpu.dot_dimension_numbers<[1], [0], [0], [1], [0, 0, 1, 1], [], []>} : vector<1x288xbf16>, vector<288x32xbf16>, vector<1x32xf32> -> vector<1x32xf32>
    %32 = arith.addf %31, %2 : vector<1x32xf32>
    %33 = vector.shape_cast %20 : vector<1x32xf32> to vector<1x1x32xf32>
    %34 = vector.shape_cast %24 : vector<1x32xf32> to vector<1x1x32xf32>
    %35 = vector.shape_cast %28 : vector<1x32xf32> to vector<1x1x32xf32>
    %36 = vector.shape_cast %32 : vector<1x32xf32> to vector<1x1x32xf32>
    %37 = tpu.concatenate %33, %34, %35, %36 in 0 : vector<1x1x32xf32>, vector<1x1x32xf32>, vector<1x1x32xf32>, vector<1x1x32xf32> -> vector<4x1x32xf32>
    %38 = vector.shape_cast %37 : vector<4x1x32xf32> to vector<4x1x1x32xf32>
    %c0_12 = arith.constant 0 : index
    %c0_13 = arith.constant 0 : index
    %c0_14 = arith.constant 0 : index
    %c0_15 = arith.constant 0 : index
    %39 = vector.load %arg4[%c0_12, %c0_13, %c0_14, %c0_15] : memref<4x1x1x32xf32, #tpu.memory_space<vmem>>, vector<4x1x1x32xf32>
    tpu.vector_store %arg4[%c0_12, %c0_13, %c0_14, %c0_15], %38 {strides = array<i32>} : memref<4x1x1x32xf32, #tpu.memory_space<vmem>>, vector<4x1x1x32xf32>,
    return
  }
  func.func @transform_0(%arg0: i32) -> (i32, i32, i32, i32) {
    %c0_i32 = arith.constant 0 : i32
    %c0_i32_0 = arith.constant 0 : i32
    %c0_i32_1 = arith.constant 0 : i32
    %c0_i32_2 = arith.constant 0 : i32
    return %arg0, %c0_i32, %c0_i32_0, %c0_i32_1 : i32, i32, i32, i32
  }
  func.func @transform_1(%arg0: i32) -> (i32, i32) {
    %c0_i32 = arith.constant 0 : i32
    %c0_i32_0 = arith.constant 0 : i32
    %c0_i32_1 = arith.constant 0 : i32
    return %c0_i32, %c0_i32_0 : i32, i32
  }
  func.func @transform_2(%arg0: i32) -> (i32, i32) {
    %c0_i32 = arith.constant 0 : i32
    %c0_i32_0 = arith.constant 0 : i32
    %c0_i32_1 = arith.constant 0 : i32
    return %c0_i32, %c0_i32_0 : i32, i32
  }
  func.func @transform_3(%arg0: i32) -> (i32, i32, i32, i32) {
    %c0_i32 = arith.constant 0 : i32
    %c0_i32_0 = arith.constant 0 : i32
    %c0_i32_1 = arith.constant 0 : i32
    %c0_i32_2 = arith.constant 0 : i32
    return %arg0, %c0_i32, %c0_i32_0, %c0_i32_1 : i32, i32, i32, i32
  }
}

</mosaic_0001>

<llo_original>
// kernel: spiking_tokenizer.10
$region0: #{spiking_tokenizer.10}
  #allocation0 [shape = 'u32[]', space=smem, size = 0x4, offset = 0x4, fixed_abs, tag = 'smem constant byte address 0x4 - core index']
  #allocation1 [shape = 'u32[144,128]{1,0:T(1,128)}', space=vmem, size = 0x12000, scoped, tag = 'internal scratch']
  #allocation2 [shape = 'f32[17,16,4]{2,1,0:T(8,128)}', space=vmem, size = 0x22000, scoped, tag = 'scratch operand']
  #allocation3 [shape = 'f32[8,16,4]{2,1,0:T(8,128)}', space=vmem, size = 0x10000, scoped, tag = 'scratch operand']
  %s0 = inlined_call_operand.vmem [shape: bf16[2,2,16,16,4], index: 0, kind: input, shape index: {}, may-alias: {0,1}]
  %s1 = inlined_call_operand.vmem [shape: bf16[2,2,16,16,4], index: 1, kind: input, shape index: {}, may-alias: {0,1}]
  %s2 = inlined_call_operand.vmem [shape: bf16[2,2,8,8,4], index: 2, kind: output, shape index: {}]
  %s3 = sld [smem:[#allocation0]]
  $region45: #{spiking_tokenizer.10} parent=0
    _
  %s5 = ssub.s32 1, %s3
  %s6 = scalar_select 0, %s5, %s3
  loop: start=0, step=1, limit=6
  $region2: #{spiking_tokenizer.10} parent=0 // loop_pre_header
    _
  $region3: #{spiking_tokenizer.10} parent=0 // loop_header
    %s8 = sphi 0, %s12
    %p9 = scmp.ge.s32.totalorder %s8, 6
    %s15 = sphi 0, %s34
    %s16 = sphi 0, %s30
    %s17 = sphi 0, %s26
    %s18 = sphi 0, %s15
    %s19 = sphi 0, %s16
    %s20 = sphi 0, %s17
    %s21 = sphi 0, %s18
    %s22 = sphi 0, %s19
    %s23 = sphi 0, %s20
    %s41 = sphi 0, %s43
    %s44 = sphi 0, %s41
    %s45 = sphi 0, %s44
    %s61 = sphi 0, %s45
    %s79 = sphi 0, %s81
    %s82 = sphi 0, %s79
    %s83 = sphi 0, %s82
    %s99 = sphi 0, %s83
    %s109 = sphi 0, %s111
    %s112 = sphi 0, %s109
    %s113 = sphi 0, %s112
    %s129 = sphi 0, %s113
  $region4: #{spiking_tokenizer.10} parent=0 // loop_header_branch
    %11 = sbr.rel (%p9) target = $region8
  $region5: #{spiking_tokenizer.10} parent=0 // loop_body
    %s13 = ssub.s32 %s8, 1
    %s14 = ssub.s32 %s8, 2
    %s24 = sadd.s32 1, %s17
    %p25 = scmp.ge.s32.totalorder %s24, 2
    %s26 = scalar_select %p25, 0, %s24
    %s27 = sadd.s32 1, %s16
    %s28 = scalar_select %p25, %s27, %s16
    %p29 = scmp.ge.s32.totalorder %s28, 1
    %s30 = scalar_select %p29, 0, %s28
    %s31 = sadd.s32 1, %s15
    %s32 = scalar_select %p29, %s31, %s15
    %p33 = scmp.ge.s32.totalorder %s32, 2
    %s34 = scalar_select %p33, 0, %s32
    %s35 = ssub.s32 %s17, %s26
    %s36 = ssub.s32 %s15, %s34
    %s37 = sor.u32 %s35, %s36
    %s38 = ssub.s32 %s16, %s30
    %s39 = sor.u32 %s37, %s38
    %p40 = scmp.eq.s32.totalorder %s39, 0
    %s42 = sadd.s32 %s41, 1
    %s43 = scalar_select %p40, %s41, %s42
    %p46 = pneg %p40
    %p47 = scmp.eq.s32.totalorder %s8, 3
    %p48 = por %p46, %p47
    %p49 = scmp.ne.s32.totalorder %s41, %s44
    %p50 = scmp.eq.s32.totalorder %s8, 0
    %p51 = por %p49, %p50
    %p52 = scmp.ne.s32.totalorder %s41, %s44
    %p53 = scmp.eq.s32.totalorder %s13, 3
    %p54 = por %p52, %p53
    %p55 = scmp.ne.s32.totalorder %s44, %s45
    %p56 = scmp.eq.s32.totalorder %s13, 0
    %p57 = por %p55, %p56
    %p58 = scmp.ne.s32.totalorder %s44, %s45
    %p59 = scmp.eq.s32.totalorder %s14, 3
    %p60 = por %p58, %p59
    %p62 = scmp.ne.s32.totalorder %s45, %s61
    %p63 = scmp.eq.s32.totalorder %s14, 0
    %p64 = por %p62, %p63
    %s65 = smul.u32 %s16, 16
    %s66 = ssub.s32 %s65, 1
    %p67 = scmp.gt.s32.totalorder %s66, 0
    %s68 = scalar_select %p67, %s66, 0
    %s69 = smul.u32 %s30, 16
    %s70 = ssub.s32 %s69, 1
    %p71 = scmp.gt.s32.totalorder %s70, 0
    %s72 = scalar_select %p71, %s70, 0
    %s73 = ssub.s32 %s17, %s26
    %s74 = ssub.s32 %s15, %s34
    %s75 = sor.u32 %s73, %s74
    %s76 = ssub.s32 %s68, %s72
    %s77 = sor.u32 %s75, %s76
    %p78 = scmp.eq.s32.totalorder %s77, 0
    %s80 = sadd.s32 %s79, 1
    %s81 = scalar_select %p78, %s79, %s80
    %p84 = pneg %p78
    %p85 = scmp.eq.s32.totalorder %s8, 3
    %p86 = por %p84, %p85
    %p87 = scmp.ne.s32.totalorder %s79, %s82
    %p88 = scmp.eq.s32.totalorder %s8, 0
    %p89 = por %p87, %p88
    %p90 = scmp.ne.s32.totalorder %s79, %s82
    %p91 = scmp.eq.s32.totalorder %s13, 3
    %p92 = por %p90, %p91
    %p93 = scmp.ne.s32.totalorder %s82, %s83
    %p94 = scmp.eq.s32.totalorder %s13, 0
    %p95 = por %p93, %p94
    %p96 = scmp.ne.s32.totalorder %s82, %s83
    %p97 = scmp.eq.s32.totalorder %s14, 3
    %p98 = por %p96, %p97
    %p100 = scmp.ne.s32.totalorder %s83, %s99
    %p101 = scmp.eq.s32.totalorder %s14, 0
    %p102 = por %p100, %p101
    %s103 = ssub.s32 %s17, %s26
    %s104 = ssub.s32 %s15, %s34
    %s105 = sor.u32 %s103, %s104
    %s106 = ssub.s32 %s16, %s30
    %s107 = sor.u32 %s105, %s106
    %p108 = scmp.eq.s32.totalorder %s107, 0
    %s110 = sadd.s32 %s109, 1
    %s111 = scalar_select %p108, %s109, %s110
    %p114 = pneg %p108
    %p115 = scmp.eq.s32.totalorder %s8, 3
    %p116 = por %p114, %p115
    %p117 = scmp.ne.s32.totalorder %s109, %s112
    %p118 = scmp.eq.s32.totalorder %s8, 0
    %p119 = por %p117, %p118
    %p120 = scmp.ne.s32.totalorder %s109, %s112
    %p121 = scmp.eq.s32.totalorder %s13, 3
    %p122 = por %p120, %p121
    %p123 = scmp.ne.s32.totalorder %s112, %s113
    %p124 = scmp.eq.s32.totalorder %s13, 0
    %p125 = por %p123, %p124
    %p126 = scmp.ne.s32.totalorder %s112, %s113
    %p127 = scmp.eq.s32.totalorder %s14, 3
    %p128 = por %p126, %p127
    %p130 = scmp.ne.s32.totalorder %s113, %s129
    %p131 = scmp.eq.s32.totalorder %s14, 0
    %p132 = por %p130, %p131
    %p133 = scmp.le.s32.totalorder 1, %s8
    %p134 = scmp.lt.s32.totalorder %s8, 5
    %p135 = pnand %p133, %p134
    %p136 = pneg %p135
    // Predicated region
    $region9: #{spiking_tokenizer.10} parent=5 // pred_check
      _
    $region10: #{spiking_tokenizer.10} parent=5 // pred_check_branch
      %138 = sbr.rel (%p135) target = $region12
    $region11: #{spiking_tokenizer.10} parent=5 // pred_region
      %s139 = ssub.s32 %s8, 1
    $region12: #{spiking_tokenizer.10} parent=5 // pred_fallthru
      _
    %p140 = scmp.lt.s32.totalorder %s8, 4
    // Predicated region
    $region13: #{spiking_tokenizer.10} parent=5 // pred_check
      %p141 = pneg %p140
    $region14: #{spiking_tokenizer.10} parent=5 // pred_check_branch
      %143 = sbr.rel (%p141) target = $region16
    $region15: #{spiking_tokenizer.10} parent=5 // pred_region
      // Predicated region
      $region17: #{spiking_tokenizer.10} parent=15 // pred_check
        %p144 = pneg %p51
      $region18: #{spiking_tokenizer.10} parent=15 // pred_check_branch
        %146 = sbr.rel (%p144) target = $region20
      $region19: #{spiking_tokenizer.10} parent=15 // pred_region
        %s147 = smul.u32 16, %s16
        %p148 = scmp.lt.s32.totalorder %s17, 1
        %s149 = scalar_select %p148, %s17, 1
        %p150 = scmp.lt.s32.totalorder %s15, 1
        %s151 = scalar_select %p150, %s15, 1
        %p152 = scmp.lt.s32.totalorder %s147, 15
        %s153 = scalar_select %p152, %s147, 15
        %s154 = smul.addr %s153, 2
        %s155 = smul.addr %s151, 32
        %s156 = sadd.s32 %s154, %s155
        %s157 = smul.addr %s149, 64
        %s158 = sadd.s32 %s156, %s157
        %s159 = smul.addr %s158, 4
        %s160 = scalar_lea.vmem %s0, %s159
        %s161 = smul.u32 16, %s16
      $region20: #{spiking_tokenizer.10} parent=15 // pred_fallthru
        _
      // Predicated region
      $region21: #{spiking_tokenizer.10} parent=15 // pred_check
        %p162 = pneg %p89
      $region22: #{spiking_tokenizer.10} parent=15 // pred_check_branch
        %164 = sbr.rel (%p162) target = $region24
      $region23: #{spiking_tokenizer.10} parent=15 // pred_region
        %s165 = smul.u32 %s16, 16
        %s166 = ssub.s32 %s165, 1
        %p167 = scmp.gt.s32.totalorder %s166, 0
        %s168 = scalar_select %p167, %s166, 0
        %p169 = scmp.lt.s32.totalorder %s17, 1
        %s170 = scalar_select %p169, %s17, 1
        %p171 = scmp.lt.s32.totalorder %s15, 1
        %s172 = scalar_select %p171, %s15, 1
        %p173 = scmp.lt.s32.totalorder %s168, 15
        %s174 = scalar_select %p173, %s168, 15
        %s175 = smul.addr %s174, 2
        %s176 = smul.addr %s172, 32
        %s177 = sadd.s32 %s175, %s176
        %s178 = smul.addr %s170, 64
        %s179 = sadd.s32 %s177, %s178
        %s180 = smul.addr %s179, 4
        %s181 = scalar_lea.vmem %s1, %s180
        %s182 = smul.u32 %s16, 16
        %s183 = ssub.s32 %s182, 1
        %p184 = scmp.gt.s32.totalorder %s183, 0
        %s185 = scalar_select %p184, %s183, 0
      $region24: #{spiking_tokenizer.10} parent=15 // pred_fallthru
        _
    $region16: #{spiking_tokenizer.10} parent=5 // pred_fallthru
      _
    %p186 = scmp.le.s32.totalorder 1, %s8
    %p187 = scmp.lt.s32.totalorder %s8, 5
    %p188 = pnand %p186, %p187
    %p189 = pneg %p188
    // Predicated region
    $region25: #{spiking_tokenizer.10} parent=5 // pred_check
      _
    $region26: #{spiking_tokenizer.10} parent=5 // pred_check_branch
      %191 = sbr.rel (%p188) target = $region28
    $region27: #{spiking_tokenizer.10} parent=5 // pred_region
      %s192 = ssub.s32 %s8, 1
      %s193 = smul.u32 16, %s19
      %p194 = scmp.lt.s32.totalorder %s20, 1
      %s195 = scalar_select %p194, %s20, 1
      %p196 = scmp.lt.s32.totalorder %s18, 1
      %s197 = scalar_select %p196, %s18, 1
      %p198 = scmp.lt.s32.totalorder %s193, 15
      %s199 = scalar_select %p198, %s193, 15
      %s200 = smul.addr %s199, 2
      %s201 = smul.addr %s197, 32
      %s202 = sadd.s32 %s200, %s201
      %s203 = smul.addr %s195, 64
      %s204 = sadd.s32 %s202, %s203
      %s205 = smul.addr %s204, 4
      %s206 = scalar_lea.vmem %s0, %s205
      %p207 = pneg %p57
      %p208 = pneg %p54
      %s209 = smul.u32 %s19, 16
      %s210 = ssub.s32 %s209, 1
      %p211 = scmp.gt.s32.totalorder %s210, 0
      %s212 = scalar_select %p211, %s210, 0
      %p213 = scmp.lt.s32.totalorder %s20, 1
      %s214 = scalar_select %p213, %s20, 1
      %p215 = scmp.lt.s32.totalorder %s18, 1
      %s216 = scalar_select %p215, %s18, 1
      %p217 = scmp.lt.s32.totalorder %s212, 15
      %s218 = scalar_select %p217, %s212, 15
      %s219 = smul.addr %s218, 2
      %s220 = smul.addr %s216, 32
      %s221 = sadd.s32 %s219, %s220
      %s222 = smul.addr %s214, 64
      %s223 = sadd.s32 %s221, %s222
      %s224 = smul.addr %s223, 4
      %s225 = scalar_lea.vmem %s1, %s224
      %p226 = pneg %p95
      %p227 = pneg %p92
      %p228 = pneg %p125
      %p229 = pneg %p122
      %s230 = smul.u32 8, %s19
      %p231 = scmp.lt.s32.totalorder %s20, 1
      %s232 = scalar_select %p231, %s20, 1
      %p233 = scmp.lt.s32.totalorder %s18, 1
      %s234 = scalar_select %p233, %s18, 1
      %p235 = scmp.lt.s32.totalorder %s230, 7
      %s236 = scalar_select %p235, %s230, 7
      %s237 = smul.addr %s234, 8
      %s238 = sadd.s32 %s236, %s237
      %s239 = smul.addr %s232, 16
      %s240 = sadd.s32 %s238, %s239
      %s241 = smul.addr %s240, 4
      %s242 = scalar_lea.vmem %s2, %s241
      %s243 = smul.u32 16, %s19
      %p244 = scmp.lt.s32.totalorder %s20, 1
      %s245 = scalar_select %p244, %s20, 1
      %p246 = scmp.lt.s32.totalorder %s18, 1
      %s247 = scalar_select %p246, %s18, 1
      %p248 = scmp.lt.s32.totalorder %s243, 15
      %s249 = scalar_select %p248, %s243, 15
      %s250 = smul.addr %s249, 2
      %s251 = smul.addr %s247, 32
      %s252 = sadd.s32 %s250, %s251
      %s253 = smul.addr %s245, 64
      %s254 = sadd.s32 %s252, %s253
      %s255 = smul.addr %s254, 4
      %s256 = scalar_lea.vmem %s0, %s255
      %s257 = smul.u32 16, %s19
      %s258 = smul.u32 %s19, 16
      %s259 = ssub.s32 %s258, 1
      %p260 = scmp.gt.s32.totalorder %s259, 0
      %s261 = scalar_select %p260, %s259, 0
      %p262 = scmp.lt.s32.totalorder %s20, 1
      %s263 = scalar_select %p262, %s20, 1
      %p264 = scmp.lt.s32.totalorder %s18, 1
      %s265 = scalar_select %p264, %s18, 1
      %p266 = scmp.lt.s32.totalorder %s261, 15
      %s267 = scalar_select %p266, %s261, 15
      %s268 = smul.addr %s267, 2
      %s269 = smul.addr %s265, 32
      %s270 = sadd.s32 %s268, %s269
      %s271 = smul.addr %s263, 64
      %s272 = sadd.s32 %s270, %s271
      %s273 = smul.addr %s272, 4
      %s274 = scalar_lea.vmem %s1, %s273
      %s275 = smul.u32 %s19, 16
      %s276 = ssub.s32 %s275, 1
      %p277 = scmp.gt.s32.totalorder %s276, 0
      %s278 = scalar_select %p277, %s276, 0
      %s279 = smul.u32 8, %s19
      %p280 = scmp.lt.s32.totalorder %s20, 1
      %s281 = scalar_select %p280, %s20, 1
      %p282 = scmp.lt.s32.totalorder %s18, 1
      %s283 = scalar_select %p282, %s18, 1
      %p284 = scmp.lt.s32.totalorder %s279, 7
      %s285 = scalar_select %p284, %s279, 7
      %s286 = smul.addr %s283, 8
      %s287 = sadd.s32 %s285, %s286
      %s288 = smul.addr %s281, 16
      %s289 = sadd.s32 %s287, %s288
      %s290 = smul.addr %s289, 4
      %s291 = scalar_lea.vmem %s2, %s290
      %s292 = smul.u32 8, %s19
      %p293 = scmp.eq.s32.totalorder %s20, 0
      // Predicated region
      $region29: #{spiking_tokenizer.10} parent=27 // pred_check
        %p294 = pneg %p293
      $region30: #{spiking_tokenizer.10} parent=27 // pred_check_branch
        %296 = sbr.rel (%p294) target = $region32
      $region31: #{spiking_tokenizer.10} parent=27 // pred_region
        %vm297 = vcmask 31744
        %298 = vst.msk [vmem:[#allocation2] sm:$0xff] %vm297, 0.0
        %299 = vst.msk [vmem:[#allocation2 + $0x8] sm:$0xff] %vm297, 0.0
        %300 = vst.msk [vmem:[#allocation2 + $0x10] sm:$0xff] %vm297, 0.0
        %301 = vst.msk [vmem:[#allocation2 + $0x18] sm:$0xff] %vm297, 0.0
        %302 = vst.msk [vmem:[#allocation2 + $0x20] sm:$0xff] %vm297, 0.0
        %303 = vst.msk [vmem:[#allocation2 + $0x28] sm:$0xff] %vm297, 0.0
        %304 = vst.msk [vmem:[#allocation2 + $0x30] sm:$0xff] %vm297, 0.0
        %305 = vst.msk [vmem:[#allocation2 + $0x38] sm:$0xff] %vm297, 0.0
        %306 = vst.msk [vmem:[#allocation2 + $0x40] sm:$0xff] %vm297, 0.0
        %307 = vst.msk [vmem:[#allocation2 + $0x48] sm:$0xff] %vm297, 0.0
        %308 = vst.msk [vmem:[#allocation2 + $0x50] sm:$0xff] %vm297, 0.0
        %309 = vst.msk [vmem:[#allocation2 + $0x58] sm:$0xff] %vm297, 0.0
        %310 = vst.msk [vmem:[#allocation2 + $0x60] sm:$0xff] %vm297, 0.0
        %311 = vst.msk [vmem:[#allocation2 + $0x68] sm:$0xff] %vm297, 0.0
        %312 = vst.msk [vmem:[#allocation2 + $0x70] sm:$0xff] %vm297, 0.0
        %313 = vst.msk [vmem:[#allocation2 + $0x78] sm:$0xff] %vm297, 0.0
        %314 = vst.msk [vmem:[#allocation2 + $0x80] sm:$0xff] %vm297, 0.0
        %315 = vst.msk [vmem:[#allocation2 + $0x88] sm:$0xff] %vm297, 0.0
        %316 = vst.msk [vmem:[#allocation2 + $0x90] sm:$0xff] %vm297, 0.0
        %317 = vst.msk [vmem:[#allocation2 + $0x98] sm:$0xff] %vm297, 0.0
        %318 = vst.msk [vmem:[#allocation2 + $0xa0] sm:$0xff] %vm297, 0.0
        %319 = vst.msk [vmem:[#allocation2 + $0xa8] sm:$0xff] %vm297, 0.0
        %320 = vst.msk [vmem:[#allocation2 + $0xb0] sm:$0xff] %vm297, 0.0
        %321 = vst.msk [vmem:[#allocation2 + $0xb8] sm:$0xff] %vm297, 0.0
        %322 = vst.msk [vmem:[#allocation2 + $0xc0] sm:$0xff] %vm297, 0.0
        %323 = vst.msk [vmem:[#allocation2 + $0xc8] sm:$0xff] %vm297, 0.0
        %324 = vst.msk [vmem:[#allocation2 + $0xd0] sm:$0xff] %vm297, 0.0
        %325 = vst.msk [vmem:[#allocation2 + $0xd8] sm:$0xff] %vm297, 0.0
        %326 = vst.msk [vmem:[#allocation2 + $0xe0] sm:$0xff] %vm297, 0.0
        %327 = vst.msk [vmem:[#allocation2 + $0xe8] sm:$0xff] %vm297, 0.0
        %328 = vst.msk [vmem:[#allocation2 + $0xf0] sm:$0xff] %vm297, 0.0
        %329 = vst.msk [vmem:[#allocation2 + $0xf8] sm:$0xff] %vm297, 0.0
        %330 = vst.msk [vmem:[#allocation2 + $0x100] sm:$0xff] %vm297, 0.0
        %331 = vst.msk [vmem:[#allocation2 + $0x108] sm:$0xff] %vm297, 0.0
      $region32: #{spiking_tokenizer.10} parent=27 // pred_fallthru
        _
      %v332 = vld [vmem:[%s274] sm:$0xf]
      %v333 = vld [vmem:[%s274 + $0x4] sm:$0xf]
      %v334 = vunpack.c.l.bf16 %v332
      %v335 = vunpack.c.l.bf16 %v333
      %v336 = vld [vmem:[%s256] sm:$0xf]
      %v337 = vld [vmem:[%s256 + $0x4] sm:$0xf]
      %v338 = vld [vmem:[%s256 + $0x8] sm:$0xf]
      %v339 = vld [vmem:[%s256 + $0xc] sm:$0xf]
      %v340 = vld [vmem:[%s256 + $0x10] sm:$0xf]
      %v341 = vld [vmem:[%s256 + $0x14] sm:$0xf]
      %v342 = vld [vmem:[%s256 + $0x18] sm:$0xf]
      %v343 = vld [vmem:[%s256 + $0x1c] sm:$0xf]
      %v344 = vld [vmem:[%s256 + $0x20] sm:$0xf]
      %v345 = vld [vmem:[%s256 + $0x24] sm:$0xf]
      %v346 = vld [vmem:[%s256 + $0x28] sm:$0xf]
      %v347 = vld [vmem:[%s256 + $0x2c] sm:$0xf]
      %v348 = vld [vmem:[%s256 + $0x30] sm:$0xf]
      %v349 = vld [vmem:[%s256 + $0x34] sm:$0xf]
      %v350 = vld [vmem:[%s256 + $0x38] sm:$0xf]
      %v351 = vld [vmem:[%s256 + $0x3c] sm:$0xf]
      %v352 = vld [vmem:[%s256 + $0x40] sm:$0xf]
      %v353 = vld [vmem:[%s256 + $0x44] sm:$0xf]
      %v354 = vld [vmem:[%s256 + $0x48] sm:$0xf]
      %v355 = vld [vmem:[%s256 + $0x4c] sm:$0xf]
      %v356 = vld [vmem:[%s256 + $0x50] sm:$0xf]
      %v357 = vld [vmem:[%s256 + $0x54] sm:$0xf]
      %v358 = vld [vmem:[%s256 + $0x58] sm:$0xf]
      %v359 = vld [vmem:[%s256 + $0x5c] sm:$0xf]
      %v360 = vld [vmem:[%s256 + $0x60] sm:$0xf]
      %v361 = vld [vmem:[%s256 + $0x64] sm:$0xf]
      %v362 = vld [vmem:[%s256 + $0x68] sm:$0xf]
      %v363 = vld [vmem:[%s256 + $0x6c] sm:$0xf]
      %v364 = vld [vmem:[%s256 + $0x70] sm:$0xf]
      %v365 = vld [vmem:[%s256 + $0x74] sm:$0xf]
      %v366 = vld [vmem:[%s256 + $0x78] sm:$0xf]
      %v367 = vld [vmem:[%s256 + $0x7c] sm:$0xf]
      %v368 = vunpack.c.l.bf16 %v336
      %v369 = vunpack.c.l.bf16 %v337
      %v370 = vunpack.c.l.bf16 %v338
      %v371 = vunpack.c.l.bf16 %v339
      %v372 = vunpack.c.l.bf16 %v340
      %v373 = vunpack.c.l.bf16 %v341
      %v374 = vunpack.c.l.bf16 %v342
      %v375 = vunpack.c.l.bf16 %v343
      %v376 = vunpack.c.l.bf16 %v344
      %v377 = vunpack.c.l.bf16 %v345
      %v378 = vunpack.c.l.bf16 %v346
      %v379 = vunpack.c.l.bf16 %v347
      %v380 = vunpack.c.l.bf16 %v348
      %v381 = vunpack.c.l.bf16 %v349
      %v382 = vunpack.c.l.bf16 %v350
      %v383 = vunpack.c.l.bf16 %v351
      %v384 = vunpack.c.l.bf16 %v352
      %v385 = vunpack.c.l.bf16 %v353
      %v386 = vunpack.c.l.bf16 %v354
      %v387 = vunpack.c.l.bf16 %v355
      %v388 = vunpack.c.l.bf16 %v356
      %v389 = vunpack.c.l.bf16 %v357
      %v390 = vunpack.c.l.bf16 %v358
      %v391 = vunpack.c.l.bf16 %v359
      %v392 = vunpack.c.l.bf16 %v360
      %v393 = vunpack.c.l.bf16 %v361
      %v394 = vunpack.c.l.bf16 %v362
      %v395 = vunpack.c.l.bf16 %v363
      %v396 = vunpack.c.l.bf16 %v364
      %v397 = vunpack.c.l.bf16 %v365
      %v398 = vunpack.c.l.bf16 %v366
      %v399 = vunpack.c.l.bf16 %v367
      %v400 = vld [vmem:[#allocation2] sm:$0xff]
      %v401 = vld [vmem:[#allocation2 + $0x8] sm:$0xff]
      %v402 = vld [vmem:[#allocation2 + $0x10] sm:$0xff]
      %v403 = vld [vmem:[#allocation2 + $0x18] sm:$0xff]
      %v404 = vld [vmem:[#allocation2 + $0x20] sm:$0xff]
      %v405 = vld [vmem:[#allocation2 + $0x28] sm:$0xff]
      %v406 = vld [vmem:[#allocation2 + $0x30] sm:$0xff]
      %v407 = vld [vmem:[#allocation2 + $0x38] sm:$0xff]
      %v408 = vld [vmem:[#allocation2 + $0x40] sm:$0xff]
      %v409 = vld [vmem:[#allocation2 + $0x48] sm:$0xff]
      %v410 = vld [vmem:[#allocation2 + $0x50] sm:$0xff]
      %v411 = vld [vmem:[#allocation2 + $0x58] sm:$0xff]
      %v412 = vld [vmem:[#allocation2 + $0x60] sm:$0xff]
      %v413 = vld [vmem:[#allocation2 + $0x68] sm:$0xff]
      %v414 = vld [vmem:[#allocation2 + $0x70] sm:$0xff]
      %v415 = vld [vmem:[#allocation2 + $0x78] sm:$0xff]
      %v416 = vld [vmem:[#allocation2 + $0x80] sm:$0xff]
      %v417 = vld [vmem:[#allocation2 + $0x88] sm:$0xff]
      %v418 = vld [vmem:[#allocation2 + $0x90] sm:$0xff]
      %v419 = vld [vmem:[#allocation2 + $0x98] sm:$0xff]
      %v420 = vld [vmem:[#allocation2 + $0xa0] sm:$0xff]
      %v421 = vld [vmem:[#allocation2 + $0xa8] sm:$0xff]
      %v422 = vld [vmem:[#allocation2 + $0xb0] sm:$0xff]
      %v423 = vld [vmem:[#allocation2 + $0xb8] sm:$0xff]
      %v424 = vld [vmem:[#allocation2 + $0xc0] sm:$0xff]
      %v425 = vld [vmem:[#allocation2 + $0xc8] sm:$0xff]
      %v426 = vld [vmem:[#allocation2 + $0xd0] sm:$0xff]
      %v427 = vld [vmem:[#allocation2 + $0xd8] sm:$0xff]
      %v428 = vld [vmem:[#allocation2 + $0xe0] sm:$0xff]
      %v429 = vld [vmem:[#allocation2 + $0xe8] sm:$0xff]
      %v430 = vld [vmem:[#allocation2 + $0xf0] sm:$0xff]
      %v431 = vld [vmem:[#allocation2 + $0xf8] sm:$0xff]
      %v432 = vld [vmem:[#allocation2 + $0x100] sm:$0xff]
      %v433 = vld [vmem:[#allocation2 + $0x108] sm:$0xff]
      %v434 = vsub.f32 %v334, %v400
      %v435 = vsub.f32 %v335, %v401
      %v436 = vsub.f32 %v368, %v402
      %v437 = vsub.f32 %v369, %v403
      %v438 = vsub.f32 %v370, %v404
      %v439 = vsub.f32 %v371, %v405
      %v440 = vsub.f32 %v372, %v406
      %v441 = vsub.f32 %v373, %v407
      %v442 = vsub.f32 %v374, %v408
      %v443 = vsub.f32 %v375, %v409
      %v444 = vsub.f32 %v376, %v410
      %v445 = vsub.f32 %v377, %v411
      %v446 = vsub.f32 %v378, %v412
      %v447 = vsub.f32 %v379, %v413
      %v448 = vsub.f32 %v380, %v414
      %v449 = vsub.f32 %v381, %v415
      %v450 = vsub.f32 %v382, %v416
      %v451 = vsub.f32 %v383, %v417
      %v452 = vsub.f32 %v384, %v418
      %v453 = vsub.f32 %v385, %v419
      %v454 = vsub.f32 %v386, %v420
      %v455 = vsub.f32 %v387, %v421
      %v456 = vsub.f32 %v388, %v422
      %v457 = vsub.f32 %v389, %v423
      %v458 = vsub.f32 %v390, %v424
      %v459 = vsub.f32 %v391, %v425
      %v460 = vsub.f32 %v392, %v426
      %v461 = vsub.f32 %v393, %v427
      %v462 = vsub.f32 %v394, %v428
      %v463 = vsub.f32 %v395, %v429
      %v464 = vsub.f32 %v396, %v430
      %v465 = vsub.f32 %v397, %v431
      %v466 = vsub.f32 %v398, %v432
      %v467 = vsub.f32 %v399, %v433
      %v468 = vmul.f32 %v434, 0.6666667
      %v469 = vmul.f32 %v435, 0.6666667
      %v470 = vmul.f32 %v436, 0.6666667
      %v471 = vmul.f32 %v437, 0.6666667
      %v472 = vmul.f32 %v438, 0.6666667
      %v473 = vmul.f32 %v439, 0.6666667
      %v474 = vmul.f32 %v440, 0.6666667
      %v475 = vmul.f32 %v441, 0.6666667
      %v476 = vmul.f32 %v442, 0.6666667
      %v477 = vmul.f32 %v443, 0.6666667
      %v478 = vmul.f32 %v444, 0.6666667
      %v479 = vmul.f32 %v445, 0.6666667
      %v480 = vmul.f32 %v446, 0.6666667
      %v481 = vmul.f32 %v447, 0.6666667
      %v482 = vmul.f32 %v448, 0.6666667
      %v483 = vmul.f32 %v449, 0.6666667
      %v484 = vmul.f32 %v450, 0.6666667
      %v485 = vmul.f32 %v451, 0.6666667
      %v486 = vmul.f32 %v452, 0.6666667
      %v487 = vmul.f32 %v453, 0.6666667
      %v488 = vmul.f32 %v454, 0.6666667
      %v489 = vmul.f32 %v455, 0.6666667
      %v490 = vmul.f32 %v456, 0.6666667
      %v491 = vmul.f32 %v457, 0.6666667
      %v492 = vmul.f32 %v458, 0.6666667
      %v493 = vmul.f32 %v459, 0.6666667
      %v494 = vmul.f32 %v460, 0.6666667
      %v495 = vmul.f32 %v461, 0.6666667
      %v496 = vmul.f32 %v462, 0.6666667
      %v497 = vmul.f32 %v463, 0.6666667
      %v498 = vmul.f32 %v464, 0.6666667
      %v499 = vmul.f32 %v465, 0.6666667
      %v500 = vmul.f32 %v466, 0.6666667
      %v501 = vmul.f32 %v467, 0.6666667
      %v502 = vadd.f32 %v400, %v468
      %v503 = vadd.f32 %v401, %v469
      %v504 = vadd.f32 %v402, %v470
      %v505 = vadd.f32 %v403, %v471
      %v506 = vadd.f32 %v404, %v472
      %v507 = vadd.f32 %v405, %v473
      %v508 = vadd.f32 %v406, %v474
      %v509 = vadd.f32 %v407, %v475
      %v510 = vadd.f32 %v408, %v476
      %v511 = vadd.f32 %v409, %v477
      %v512 = vadd.f32 %v410, %v478
      %v513 = vadd.f32 %v411, %v479
      %v514 = vadd.f32 %v412, %v480
      %v515 = vadd.f32 %v413, %v481
      %v516 = vadd.f32 %v414, %v482
      %v517 = vadd.f32 %v415, %v483
      %v518 = vadd.f32 %v416, %v484
      %v519 = vadd.f32 %v417, %v485
      %v520 = vadd.f32 %v418, %v486
      %v521 = vadd.f32 %v419, %v487
      %v522 = vadd.f32 %v420, %v488
      %v523 = vadd.f32 %v421, %v489
      %v524 = vadd.f32 %v422, %v490
      %v525 = vadd.f32 %v423, %v491
      %v526 = vadd.f32 %v424, %v492
      %v527 = vadd.f32 %v425, %v493
      %v528 = vadd.f32 %v426, %v494
      %v529 = vadd.f32 %v427, %v495
      %v530 = vadd.f32 %v428, %v496
      %v531 = vadd.f32 %v429, %v497
      %v532 = vadd.f32 %v430, %v498
      %v533 = vadd.f32 %v431, %v499
      %v534 = vadd.f32 %v432, %v500
      %v535 = vadd.f32 %v433, %v501
      %vm536 = vcmp.ge.f32.partialorder %v502, 1.0
      %vm537 = vcmp.ge.f32.partialorder %v503, 1.0
      %vm538 = vcmp.ge.f32.partialorder %v504, 1.0
      %vm539 = vcmp.ge.f32.partialorder %v505, 1.0
      %vm540 = vcmp.ge.f32.partialorder %v506, 1.0
      %vm541 = vcmp.ge.f32.partialorder %v507, 1.0
      %vm542 = vcmp.ge.f32.partialorder %v508, 1.0
      %vm543 = vcmp.ge.f32.partialorder %v509, 1.0
      %vm544 = vcmp.ge.f32.partialorder %v510, 1.0
      %vm545 = vcmp.ge.f32.partialorder %v511, 1.0
      %vm546 = vcmp.ge.f32.partialorder %v512, 1.0
      %vm547 = vcmp.ge.f32.partialorder %v513, 1.0
      %vm548 = vcmp.ge.f32.partialorder %v514, 1.0
      %vm549 = vcmp.ge.f32.partialorder %v515, 1.0
      %vm550 = vcmp.ge.f32.partialorder %v516, 1.0
      %vm551 = vcmp.ge.f32.partialorder %v517, 1.0
      %vm552 = vcmp.ge.f32.partialorder %v518, 1.0
      %vm553 = vcmp.ge.f32.partialorder %v519, 1.0
      %vm554 = vcmp.ge.f32.partialorder %v520, 1.0
      %vm555 = vcmp.ge.f32.partialorder %v521, 1.0
      %vm556 = vcmp.ge.f32.partialorder %v522, 1.0
      %vm557 = vcmp.ge.f32.partialorder %v523, 1.0
      %vm558 = vcmp.ge.f32.partialorder %v524, 1.0
      %vm559 = vcmp.ge.f32.partialorder %v525, 1.0
      %vm560 = vcmp.ge.f32.partialorder %v526, 1.0
      %vm561 = vcmp.ge.f32.partialorder %v527, 1.0
      %vm562 = vcmp.ge.f32.partialorder %v528, 1.0
      %vm563 = vcmp.ge.f32.partialorder %v529, 1.0
      %vm564 = vcmp.ge.f32.partialorder %v530, 1.0
      %vm565 = vcmp.ge.f32.partialorder %v531, 1.0
      %vm566 = vcmp.ge.f32.partialorder %v532, 1.0
      %vm567 = vcmp.ge.f32.partialorder %v533, 1.0
      %vm568 = vcmp.ge.f32.partialorder %v534, 1.0
      %vm569 = vcmp.ge.f32.partialorder %v535, 1.0
      %v570 = vsel %vm536, 0.0, %v502
      %v571 = vsel %vm537, 0.0, %v503
      %v572 = vsel %vm538, 0.0, %v504
      %v573 = vsel %vm539, 0.0, %v505
      %v574 = vsel %vm540, 0.0, %v506
      %v575 = vsel %vm541, 0.0, %v507
      %v576 = vsel %vm542, 0.0, %v508
      %v577 = vsel %vm543, 0.0, %v509
      %v578 = vsel %vm544, 0.0, %v510
      %v579 = vsel %vm545, 0.0, %v511
      %v580 = vsel %vm546, 0.0, %v512
      %v581 = vsel %vm547, 0.0, %v513
      %v582 = vsel %vm548, 0.0, %v514
      %v583 = vsel %vm549, 0.0, %v515
      %v584 = vsel %vm550, 0.0, %v516
      %v585 = vsel %vm551, 0.0, %v517
      %v586 = vsel %vm552, 0.0, %v518
      %v587 = vsel %vm553, 0.0, %v519
      %v588 = vsel %vm554, 0.0, %v520
      %v589 = vsel %vm555, 0.0, %v521
      %v590 = vsel %vm556, 0.0, %v522
      %v591 = vsel %vm557, 0.0, %v523
      %v592 = vsel %vm558, 0.0, %v524
      %v593 = vsel %vm559, 0.0, %v525
      %v594 = vsel %vm560, 0.0, %v526
      %v595 = vsel %vm561, 0.0, %v527
      %v596 = vsel %vm562, 0.0, %v528
      %v597 = vsel %vm563, 0.0, %v529
      %v598 = vsel %vm564, 0.0, %v530
      %v599 = vsel %vm565, 0.0, %v531
      %v600 = vsel %vm566, 0.0, %v532
      %v601 = vsel %vm567, 0.0, %v533
      %v602 = vsel %vm568, 0.0, %v534
      %v603 = vsel %vm569, 0.0, %v535
      %vm604 = vcmask 31744
      %605 = vst.msk [vmem:[#allocation2] sm:$0xff] %vm604, %v570
      %606 = vst.msk [vmem:[#allocation2 + $0x8] sm:$0xff] %vm604, %v571
      %607 = vst.msk [vmem:[#allocation2 + $0x10] sm:$0xff] %vm604, %v572
      %608 = vst.msk [vmem:[#allocation2 + $0x18] sm:$0xff] %vm604, %v573
      %609 = vst.msk [vmem:[#allocation2 + $0x20] sm:$0xff] %vm604, %v574
      %610 = vst.msk [vmem:[#allocation2 + $0x28] sm:$0xff] %vm604, %v575
      %611 = vst.msk [vmem:[#allocation2 + $0x30] sm:$0xff] %vm604, %v576
      %612 = vst.msk [vmem:[#allocation2 + $0x38] sm:$0xff] %vm604, %v577
      %613 = vst.msk [vmem:[#allocation2 + $0x40] sm:$0xff] %vm604, %v578
      %614 = vst.msk [vmem:[#allocation2 + $0x48] sm:$0xff] %vm604, %v579
      %615 = vst.msk [vmem:[#allocation2 + $0x50] sm:$0xff] %vm604, %v580
      %616 = vst.msk [vmem:[#allocation2 + $0x58] sm:$0xff] %vm604, %v581
      %617 = vst.msk [vmem:[#allocation2 + $0x60] sm:$0xff] %vm604, %v582
      %618 = vst.msk [vmem:[#allocation2 + $0x68] sm:$0xff] %vm604, %v583
      %619 = vst.msk [vmem:[#allocation2 + $0x70] sm:$0xff] %vm604, %v584
      %620 = vst.msk [vmem:[#allocation2 + $0x78] sm:$0xff] %vm604, %v585
      %621 = vst.msk [vmem:[#allocation2 + $0x80] sm:$0xff] %vm604, %v586
      %622 = vst.msk [vmem:[#allocation2 + $0x88] sm:$0xff] %vm604, %v587
      %623 = vst.msk [vmem:[#allocation2 + $0x90] sm:$0xff] %vm604, %v588
      %624 = vst.msk [vmem:[#allocation2 + $0x98] sm:$0xff] %vm604, %v589
      %625 = vst.msk [vmem:[#allocation2 + $0xa0] sm:$0xff] %vm604, %v590
      %626 = vst.msk [vmem:[#allocation2 + $0xa8] sm:$0xff] %vm604, %v591
      %627 = vst.msk [vmem:[#allocation2 + $0xb0] sm:$0xff] %vm604, %v592
      %628 = vst.msk [vmem:[#allocation2 + $0xb8] sm:$0xff] %vm604, %v593
      %629 = vst.msk [vmem:[#allocation2 + $0xc0] sm:$0xff] %vm604, %v594
      %630 = vst.msk [vmem:[#allocation2 + $0xc8] sm:$0xff] %vm604, %v595
      %631 = vst.msk [vmem:[#allocation2 + $0xd0] sm:$0xff] %vm604, %v596
      %632 = vst.msk [vmem:[#allocation2 + $0xd8] sm:$0xff] %vm604, %v597
      %633 = vst.msk [vmem:[#allocation2 + $0xe0] sm:$0xff] %vm604, %v598
      %634 = vst.msk [vmem:[#allocation2 + $0xe8] sm:$0xff] %vm604, %v599
      %635 = vst.msk [vmem:[#allocation2 + $0xf0] sm:$0xff] %vm604, %v600
      %636 = vst.msk [vmem:[#allocation2 + $0xf8] sm:$0xff] %vm604, %v601
      %637 = vst.msk [vmem:[#allocation2 + $0x100] sm:$0xff] %vm604, %v602
      %638 = vst.msk [vmem:[#allocation2 + $0x108] sm:$0xff] %vm604, %v603
      %v639 = vsel %vm536, 1, 0
      %v640 = vsel %vm537, 1, 0
      %v641 = vsel %vm538, 1, 0
      %v642 = vsel %vm539, 1, 0
      %v643 = vsel %vm540, 1, 0
      %v644 = vsel %vm541, 1, 0
      %v645 = vsel %vm542, 1, 0
      %v646 = vsel %vm543, 1, 0
      %v647 = vsel %vm544, 1, 0
      %v648 = vsel %vm545, 1, 0
      %v649 = vsel %vm546, 1, 0
      %v650 = vsel %vm547, 1, 0
      %v651 = vsel %vm548, 1, 0
      %v652 = vsel %vm549, 1, 0
      %v653 = vsel %vm550, 1, 0
      %v654 = vsel %vm551, 1, 0
      %v655 = vsel %vm552, 1, 0
      %v656 = vsel %vm553, 1, 0
      %v657 = vsel %vm554, 1, 0
      %v658 = vsel %vm555, 1, 0
      %v659 = vsel %vm556, 1, 0
      %v660 = vsel %vm557, 1, 0
      %v661 = vsel %vm558, 1, 0
      %v662 = vsel %vm559, 1, 0
      %v663 = vsel %vm560, 1, 0
      %v664 = vsel %vm561, 1, 0
      %v665 = vsel %vm562, 1, 0
      %v666 = vsel %vm563, 1, 0
      %v667 = vsel %vm564, 1, 0
      %v668 = vsel %vm565, 1, 0
      %v669 = vsel %vm566, 1, 0
      %v670 = vsel %vm567, 1, 0
      %v671 = vsel %vm568, 1, 0
      %v672 = vsel %vm569, 1, 0
      %v673 = vcvt.s32.f32 %v639
      %v674 = vcvt.s32.f32 %v640
      %v675 = vcvt.s32.f32 %v641
      %v676 = vcvt.s32.f32 %v642
      %v677 = vcvt.s32.f32 %v643
      %v678 = vcvt.s32.f32 %v644
      %v679 = vcvt.s32.f32 %v645
      %v680 = vcvt.s32.f32 %v646
      %v681 = vcvt.s32.f32 %v647
      %v682 = vcvt.s32.f32 %v648
      %v683 = vcvt.s32.f32 %v649
      %v684 = vcvt.s32.f32 %v650
      %v685 = vcvt.s32.f32 %v651
      %v686 = vcvt.s32.f32 %v652
      %v687 = vcvt.s32.f32 %v653
      %v688 = vcvt.s32.f32 %v654
      %v689 = vcvt.s32.f32 %v655
      %v690 = vcvt.s32.f32 %v656
      %v691 = vcvt.s32.f32 %v657
      %v692 = vcvt.s32.f32 %v658
      %v693 = vcvt.s32.f32 %v659
      %v694 = vcvt.s32.f32 %v660
      %v695 = vcvt.s32.f32 %v661
      %v696 = vcvt.s32.f32 %v662
      %v697 = vcvt.s32.f32 %v663
      %v698 = vcvt.s32.f32 %v664
      %v699 = vcvt.s32.f32 %v665
      %v700 = vcvt.s32.f32 %v666
      %v701 = vcvt.s32.f32 %v667
      %v702 = vcvt.s32.f32 %v668
      %v703 = vcvt.s32.f32 %v669
      %v704 = vcvt.s32.f32 %v670
      %v705 = vcvt.s32.f32 %v671
      %v706 = vcvt.s32.f32 %v672
      %vm741 = vcmask 1040384
      %v742 = vrot.slane %v673, 7
      %v743 = vrot.slane %v674, 7
      %v744 = vsel %vm741, %v742, %v743
      %v745 = vrot.slane %v675, 7
      %v746 = vrot.slane %v676, 7
      %v747 = vsel %vm741, %v745, %v746
      %v748 = vrot.slane %v677, 7
      %v749 = vrot.slane %v678, 7
      %v750 = vsel %vm741, %v748, %v749
      %v751 = vrot.slane %v679, 7
      %v752 = vrot.slane %v680, 7
      %v753 = vsel %vm741, %v751, %v752
      %v754 = vrot.slane %v681, 7
      %v755 = vrot.slane %v682, 7
      %v756 = vsel %vm741, %v754, %v755
      %v757 = vrot.slane %v683, 7
      %v758 = vrot.slane %v684, 7
      %v759 = vsel %vm741, %v757, %v758
      %v760 = vrot.slane %v685, 7
      %v761 = vrot.slane %v686, 7
      %v762 = vsel %vm741, %v760, %v761
      %v763 = vrot.slane %v687, 7
      %v764 = vrot.slane %v688, 7
      %v765 = vsel %vm741, %v763, %v764
      %v766 = vrot.slane %v689, 7
      %v767 = vrot.slane %v690, 7
      %v768 = vsel %vm741, %v766, %v767
      %v769 = vrot.slane %v691, 7
      %v770 = vrot.slane %v692, 7
      %v771 = vsel %vm741, %v769, %v770
      %v772 = vrot.slane %v693, 7
      %v773 = vrot.slane %v694, 7
      %v774 = vsel %vm741, %v772, %v773
      %v775 = vrot.slane %v695, 7
      %v776 = vrot.slane %v696, 7
      %v777 = vsel %vm741, %v775, %v776
      %v778 = vrot.slane %v697, 7
      %v779 = vrot.slane %v698, 7
      %v780 = vsel %vm741, %v778, %v779
      %v781 = vrot.slane %v699, 7
      %v782 = vrot.slane %v700, 7
      %v783 = vsel %vm741, %v781, %v782
      %v784 = vrot.slane %v701, 7
      %v785 = vrot.slane %v702, 7
      %v786 = vsel %vm741, %v784, %v785
      %v787 = vrot.slane %v703, 7
      %v788 = vrot.slane %v704, 7
      %v789 = vsel %vm741, %v787, %v788
      %v790 = vrot.slane %v705, 7
      %v791 = vrot.slane %v706, 7
      %v792 = vsel %vm741, %v790, %v791
      %v827 = vsel %vm741, 0.0, %v742
      %v828 = vsel %vm741, 0.0, %v745
      %v829 = vsel %vm741, 0.0, %v748
      %v830 = vsel %vm741, 0.0, %v751
      %v831 = vsel %vm741, 0.0, %v754
      %v832 = vsel %vm741, 0.0, %v757
      %v833 = vsel %vm741, 0.0, %v760
      %v834 = vsel %vm741, 0.0, %v763
      %v835 = vsel %vm741, 0.0, %v766
      %v836 = vsel %vm741, 0.0, %v769
      %v837 = vsel %vm741, 0.0, %v772
      %v838 = vsel %vm741, 0.0, %v775
      %v839 = vsel %vm741, 0.0, %v778
      %v840 = vsel %vm741, 0.0, %v781
      %v841 = vsel %vm741, 0.0, %v784
      %v842 = vsel %vm741, 0.0, %v787
      %v843 = vsel %vm741, 0.0, %v790
      %vm844 = vcmask 1046528
      %v845 = vrot.slane %v673, 1
      %v846 = vrot.slane %v674, 1
      %v847 = vsel %vm844, %v845, %v846
      %v848 = vrot.slane %v675, 1
      %v849 = vrot.slane %v676, 1
      %v850 = vsel %vm844, %v848, %v849
      %v851 = vrot.slane %v677, 1
      %v852 = vrot.slane %v678, 1
      %v853 = vsel %vm844, %v851, %v852
      %v854 = vrot.slane %v679, 1
      %v855 = vrot.slane %v680, 1
      %v856 = vsel %vm844, %v854, %v855
      %v857 = vrot.slane %v681, 1
      %v858 = vrot.slane %v682, 1
      %v859 = vsel %vm844, %v857, %v858
      %v860 = vrot.slane %v683, 1
      %v861 = vrot.slane %v684, 1
      %v862 = vsel %vm844, %v860, %v861
      %v863 = vrot.slane %v685, 1
      %v864 = vrot.slane %v686, 1
      %v865 = vsel %vm844, %v863, %v864
      %v866 = vrot.slane %v687, 1
      %v867 = vrot.slane %v688, 1
      %v868 = vsel %vm844, %v866, %v867
      %v869 = vrot.slane %v689, 1
      %v870 = vrot.slane %v690, 1
      %v871 = vsel %vm844, %v869, %v870
      %v872 = vrot.slane %v691, 1
      %v873 = vrot.slane %v692, 1
      %v874 = vsel %vm844, %v872, %v873
      %v875 = vrot.slane %v693, 1
      %v876 = vrot.slane %v694, 1
      %v877 = vsel %vm844, %v875, %v876
      %v878 = vrot.slane %v695, 1
      %v879 = vrot.slane %v696, 1
      %v880 = vsel %vm844, %v878, %v879
      %v881 = vrot.slane %v697, 1
      %v882 = vrot.slane %v698, 1
      %v883 = vsel %vm844, %v881, %v882
      %v884 = vrot.slane %v699, 1
      %v885 = vrot.slane %v700, 1
      %v886 = vsel %vm844, %v884, %v885
      %v887 = vrot.slane %v701, 1
      %v888 = vrot.slane %v702, 1
      %v889 = vsel %vm844, %v887, %v888
      %v890 = vrot.slane %v703, 1
      %v891 = vrot.slane %v704, 1
      %v892 = vsel %vm844, %v890, %v891
      %v893 = vrot.slane %v705, 1
      %v894 = vrot.slane %v706, 1
      %v895 = vsel %vm844, %v893, %v894
      %v930 = vsel %vm844, %v846, 0.0
      %v931 = vsel %vm844, %v849, 0.0
      %v932 = vsel %vm844, %v852, 0.0
      %v933 = vsel %vm844, %v855, 0.0
      %v934 = vsel %vm844, %v858, 0.0
      %v935 = vsel %vm844, %v861, 0.0
      %v936 = vsel %vm844, %v864, 0.0
      %v937 = vsel %vm844, %v867, 0.0
      %v938 = vsel %vm844, %v870, 0.0
      %v939 = vsel %vm844, %v873, 0.0
      %v940 = vsel %vm844, %v876, 0.0
      %v941 = vsel %vm844, %v879, 0.0
      %v942 = vsel %vm844, %v882, 0.0
      %v943 = vsel %vm844, %v885, 0.0
      %v944 = vsel %vm844, %v888, 0.0
      %v945 = vsel %vm844, %v891, 0.0
      %v946 = vsel %vm844, %v894, 0.0
      %v947 = vmax.f32 %v827, %v673
      %v948 = vmax.f32 %v744, %v674
      %v949 = vmax.f32 %v828, %v675
      %v950 = vmax.f32 %v747, %v676
      %v951 = vmax.f32 %v829, %v677
      %v952 = vmax.f32 %v750, %v678
      %v953 = vmax.f32 %v830, %v679
      %v954 = vmax.f32 %v753, %v680
      %v955 = vmax.f32 %v831, %v681
      %v956 = vmax.f32 %v756, %v682
      %v957 = vmax.f32 %v832, %v683
      %v958 = vmax.f32 %v759, %v684
      %v959 = vmax.f32 %v833, %v685
      %v960 = vmax.f32 %v762, %v686
      %v961 = vmax.f32 %v834, %v687
      %v962 = vmax.f32 %v765, %v688
      %v963 = vmax.f32 %v835, %v689
      %v964 = vmax.f32 %v768, %v690
      %v965 = vmax.f32 %v836, %v691
      %v966 = vmax.f32 %v771, %v692
      %v967 = vmax.f32 %v837, %v693
      %v968 = vmax.f32 %v774, %v694
      %v969 = vmax.f32 %v838, %v695
      %v970 = vmax.f32 %v777, %v696
      %v971 = vmax.f32 %v839, %v697
      %v972 = vmax.f32 %v780, %v698
      %v973 = vmax.f32 %v840, %v699
      %v974 = vmax.f32 %v783, %v700
      %v975 = vmax.f32 %v841, %v701
      %v976 = vmax.f32 %v786, %v702
      %v977 = vmax.f32 %v842, %v703
      %v978 = vmax.f32 %v789, %v704
      %v979 = vmax.f32 %v843, %v705
      %v980 = vmax.f32 %v792, %v706
      %v981 = vmax.f32 %v947, %v847
      %v982 = vmax.f32 %v948, %v930
      %v983 = vmax.f32 %v949, %v850
      %v984 = vmax.f32 %v950, %v931
      %v985 = vmax.f32 %v951, %v853
      %v986 = vmax.f32 %v952, %v932
      %v987 = vmax.f32 %v953, %v856
      %v988 = vmax.f32 %v954, %v933
      %v989 = vmax.f32 %v955, %v859
      %v990 = vmax.f32 %v956, %v934
      %v991 = vmax.f32 %v957, %v862
      %v992 = vmax.f32 %v958, %v935
      %v993 = vmax.f32 %v959, %v865
      %v994 = vmax.f32 %v960, %v936
      %v995 = vmax.f32 %v961, %v868
      %v996 = vmax.f32 %v962, %v937
      %v997 = vmax.f32 %v963, %v871
      %v998 = vmax.f32 %v964, %v938
      %v999 = vmax.f32 %v965, %v874
      %v1000 = vmax.f32 %v966, %v939
      %v1001 = vmax.f32 %v967, %v877
      %v1002 = vmax.f32 %v968, %v940
      %v1003 = vmax.f32 %v969, %v880
      %v1004 = vmax.f32 %v970, %v941
      %v1005 = vmax.f32 %v971, %v883
      %v1006 = vmax.f32 %v972, %v942
      %v1007 = vmax.f32 %v973, %v886
      %v1008 = vmax.f32 %v974, %v943
      %v1009 = vmax.f32 %v975, %v889
      %v1010 = vmax.f32 %v976, %v944
      %v1011 = vmax.f32 %v977, %v892
      %v1012 = vmax.f32 %v978, %v945
      %v1013 = vmax.f32 %v979, %v895
      %v1014 = vmax.f32 %v980, %v946
      %v1015 = vsel %vm604, %v981, -inf
      %v1016 = vsel %vm604, %v983, -inf
      %v1017 = vmax.f32 %v1015, %v1016
      %v1018 = vsel %vm604, %v982, -inf
      %v1019 = vsel %vm604, %v984, -inf
      %v1020 = vmax.f32 %v1018, %v1019
      %v1021 = vsel %vm604, %v985, -inf
      %v1022 = vsel %vm604, %v987, -inf
      %v1023 = vmax.f32 %v1021, %v1022
      %v1024 = vsel %vm604, %v986, -inf
      %v1025 = vsel %vm604, %v988, -inf
      %v1026 = vmax.f32 %v1024, %v1025
      %v1027 = vsel %vm604, %v989, -inf
      %v1028 = vsel %vm604, %v991, -inf
      %v1029 = vmax.f32 %v1027, %v1028
      %v1030 = vsel %vm604, %v990, -inf
      %v1031 = vsel %vm604, %v992, -inf
      %v1032 = vmax.f32 %v1030, %v1031
      %v1033 = vsel %vm604, %v993, -inf
      %v1034 = vsel %vm604, %v995, -inf
      %v1035 = vmax.f32 %v1033, %v1034
      %v1036 = vsel %vm604, %v994, -inf
      %v1037 = vsel %vm604, %v996, -inf
      %v1038 = vmax.f32 %v1036, %v1037
      %v1039 = vsel %vm604, %v997, -inf
      %v1040 = vsel %vm604, %v999, -inf
      %v1041 = vmax.f32 %v1039, %v1040
      %v1042 = vsel %vm604, %v998, -inf
      %v1043 = vsel %vm604, %v1000, -inf
      %v1044 = vmax.f32 %v1042, %v1043
      %v1045 = vsel %vm604, %v1001, -inf
      %v1046 = vsel %vm604, %v1003, -inf
      %v1047 = vmax.f32 %v1045, %v1046
      %v1048 = vsel %vm604, %v1002, -inf
      %v1049 = vsel %vm604, %v1004, -inf
      %v1050 = vmax.f32 %v1048, %v1049
      %v1051 = vsel %vm604, %v1005, -inf
      %v1052 = vsel %vm604, %v1007, -inf
      %v1053 = vmax.f32 %v1051, %v1052
      %v1054 = vsel %vm604, %v1006, -inf
      %v1055 = vsel %vm604, %v1008, -inf
      %v1056 = vmax.f32 %v1054, %v1055
      %v1057 = vsel %vm604, %v1009, -inf
      %v1058 = vsel %vm604, %v1011, -inf
      %v1059 = vmax.f32 %v1057, %v1058
      %v1060 = vsel %vm604, %v1010, -inf
      %v1061 = vsel %vm604, %v1012, -inf
      %v1062 = vmax.f32 %v1060, %v1061
      %v1063 = vmax.f32 %v1017, %v985
      %v1064 = vmax.f32 %v1020, %v986
      %v1065 = vmax.f32 %v1023, %v989
      %v1066 = vmax.f32 %v1026, %v990
      %v1067 = vmax.f32 %v1029, %v993
      %v1068 = vmax.f32 %v1032, %v994
      %v1069 = vmax.f32 %v1035, %v997
      %v1070 = vmax.f32 %v1038, %v998
      %v1071 = vmax.f32 %v1041, %v1001
      %v1072 = vmax.f32 %v1044, %v1002
      %v1073 = vmax.f32 %v1047, %v1005
      %v1074 = vmax.f32 %v1050, %v1006
      %v1075 = vmax.f32 %v1053, %v1009
      %v1076 = vmax.f32 %v1056, %v1010
      %v1077 = vmax.f32 %v1059, %v1013
      %v1078 = vmax.f32 %v1062, %v1014
      %1079 = vst.msk [vmem:[#allocation3] sm:$0xff] %vm604, %v1063
      %1080 = vst.msk [vmem:[#allocation3 + $0x8] sm:$0xff] %vm604, %v1064
      %1081 = vst.msk [vmem:[#allocation3 + $0x10] sm:$0xff] %vm604, %v1065
      %1082 = vst.msk [vmem:[#allocation3 + $0x18] sm:$0xff] %vm604, %v1066
      %1083 = vst.msk [vmem:[#allocation3 + $0x20] sm:$0xff] %vm604, %v1067
      %1084 = vst.msk [vmem:[#allocation3 + $0x28] sm:$0xff] %vm604, %v1068
      %1085 = vst.msk [vmem:[#allocation3 + $0x30] sm:$0xff] %vm604, %v1069
      %1086 = vst.msk [vmem:[#allocation3 + $0x38] sm:$0xff] %vm604, %v1070
      %1087 = vst.msk [vmem:[#allocation3 + $0x40] sm:$0xff] %vm604, %v1071
      %1088 = vst.msk [vmem:[#allocation3 + $0x48] sm:$0xff] %vm604, %v1072
      %1089 = vst.msk [vmem:[#allocation3 + $0x50] sm:$0xff] %vm604, %v1073
      %1090 = vst.msk [vmem:[#allocation3 + $0x58] sm:$0xff] %vm604, %v1074
      %1091 = vst.msk [vmem:[#allocation3 + $0x60] sm:$0xff] %vm604, %v1075
      %1092 = vst.msk [vmem:[#allocation3 + $0x68] sm:$0xff] %vm604, %v1076
      %1093 = vst.msk [vmem:[#allocation3 + $0x70] sm:$0xff] %vm604, %v1077
      %1094 = vst.msk [vmem:[#allocation3 + $0x78] sm:$0xff] %vm604, %v1078
      %v1095 = vld [vmem:[#allocation3] ss:$2 sm:$0xff]
      %s1096 = scalar_lea.vmem [#allocation3], 16
      %v1097 = vld [vmem:[%s1096] ss:$2 sm:$0xff]
      %s1098 = scalar_lea.vmem [#allocation3], 32
      %v1099 = vld [vmem:[%s1098] ss:$2 sm:$0xff]
      %s1100 = scalar_lea.vmem [#allocation3], 48
      %v1101 = vld [vmem:[%s1100] ss:$2 sm:$0xff]
      %s1102 = scalar_lea.vmem [#allocation3], 64
      %v1103 = vld [vmem:[%s1102] ss:$2 sm:$0xff]
      %s1104 = scalar_lea.vmem [#allocation3], 80
      %v1105 = vld [vmem:[%s1104] ss:$2 sm:$0xff]
      %s1106 = scalar_lea.vmem [#allocation3], 96
      %v1107 = vld [vmem:[%s1106] ss:$2 sm:$0xff]
      %s1108 = scalar_lea.vmem [#allocation3], 112
      %v1109 = vld [vmem:[%s1108] ss:$2 sm:$0xff]
      %v1110 = vpack.c.bf16 %v1095, %v1095
      %v1111 = vpack.c.bf16 %v1097, %v1097
      %v1112 = vpack.c.bf16 %v1099, %v1099
      %v1113 = vpack.c.bf16 %v1101, %v1101
      %v1114 = vpack.c.bf16 %v1103, %v1103
      %v1115 = vpack.c.bf16 %v1105, %v1105
      %v1116 = vpack.c.bf16 %v1107, %v1107
      %v1117 = vpack.c.bf16 %v1109, %v1109
      %vm1118 = vcmask 27648
      %1119 = vst.msk [vmem:[%s291] sm:$0xf] %vm1118, %v1110
      %1120 = vst.msk [vmem:[%s291 + $0x4] sm:$0xf] %vm1118, %v1111
      %1121 = vst.msk [vmem:[%s291 + $0x8] sm:$0xf] %vm1118, %v1112
      %1122 = vst.msk [vmem:[%s291 + $0xc] sm:$0xf] %vm1118, %v1113
      %1123 = vst.msk [vmem:[%s291 + $0x10] sm:$0xf] %vm1118, %v1114
      %1124 = vst.msk [vmem:[%s291 + $0x14] sm:$0xf] %vm1118, %v1115
      %1125 = vst.msk [vmem:[%s291 + $0x18] sm:$0xf] %vm1118, %v1116
      %1126 = vst.msk [vmem:[%s291 + $0x1c] sm:$0xf] %vm1118, %v1117
      %s1127 = smul.u32 8, %s19
      %p1128 = scmp.lt.s32.totalorder %s20, 1
      %s1129 = scalar_select %p1128, %s20, 1
      %p1130 = scmp.lt.s32.totalorder %s18, 1
      %s1131 = scalar_select %p1130, %s18, 1
      %p1132 = scmp.lt.s32.totalorder %s1127, 7
      %s1133 = scalar_select %p1132, %s1127, 7
      %s1134 = smul.addr %s1131, 8
      %s1135 = sadd.s32 %s1133, %s1134
      %s1136 = smul.addr %s1129, 16
      %s1137 = sadd.s32 %s1135, %s1136
      %s1138 = smul.addr %s1137, 4
      %s1139 = scalar_lea.vmem %s2, %s1138
      // Predicated region
      $region33: #{spiking_tokenizer.10} parent=27 // pred_check
        %p1140 = pneg %p122
      $region34: #{spiking_tokenizer.10} parent=27 // pred_check_branch
        %1142 = sbr.rel (%p1140) target = $region36
      $region35: #{spiking_tokenizer.10} parent=27 // pred_region
        %s1143 = smul.u32 8, %s19
      $region36: #{spiking_tokenizer.10} parent=27 // pred_fallthru
        _
    $region28: #{spiking_tokenizer.10} parent=5 // pred_fallthru
      _
    %p1144 = scmp.le.s32.totalorder 2, %s8
    // Predicated region
    $region37: #{spiking_tokenizer.10} parent=5 // pred_check
      %p1145 = pneg %p1144
    $region38: #{spiking_tokenizer.10} parent=5 // pred_check_branch
      %1147 = sbr.rel (%p1145) target = $region40
    $region39: #{spiking_tokenizer.10} parent=5 // pred_region
      %s1148 = ssub.s32 %s8, 2
      // Predicated region
      $region41: #{spiking_tokenizer.10} parent=39 // pred_check
        %p1149 = pneg %p128
      $region42: #{spiking_tokenizer.10} parent=39 // pred_check_branch
        %1151 = sbr.rel (%p1149) target = $region44
      $region43: #{spiking_tokenizer.10} parent=39 // pred_region
        %s1152 = smul.u32 8, %s22
        %p1153 = scmp.lt.s32.totalorder %s23, 1
        %s1154 = scalar_select %p1153, %s23, 1
        %p1155 = scmp.lt.s32.totalorder %s21, 1
        %s1156 = scalar_select %p1155, %s21, 1
        %p1157 = scmp.lt.s32.totalorder %s1152, 7
        %s1158 = scalar_select %p1157, %s1152, 7
        %s1159 = smul.addr %s1156, 8
        %s1160 = sadd.s32 %s1158, %s1159
        %s1161 = smul.addr %s1154, 16
        %s1162 = sadd.s32 %s1160, %s1161
        %s1163 = smul.addr %s1162, 4
        %s1164 = scalar_lea.vmem %s2, %s1163
      $region44: #{spiking_tokenizer.10} parent=39 // pred_fallthru
        _
    $region40: #{spiking_tokenizer.10} parent=5 // pred_fallthru
      _
  $region6: #{spiking_tokenizer.10} parent=0 // loop_footer
    %s12 = sadd.s32 1, %s8
  $region7: #{spiking_tokenizer.10} parent=0 // loop_footer_branch
    %7 = sbr.rel target = $region3
  $region8: #{spiking_tokenizer.10} parent=0 // loop_exit
    _

// kernel: spiking_tokenizer.12
$region0: #{spiking_tokenizer.12}
  #allocation0 [shape = 'u32[]', space=smem, size = 0x4, offset = 0x4, fixed_abs, tag = 'smem constant byte address 0x4 - core index']
  #allocation1 [shape = 'u32[144,128]{1,0:T(1,128)}', space=vmem, size = 0x12000, scoped, tag = 'internal scratch']
  #allocation2 [shape = 'f32[9,8,8]{2,1,0:T(8,128)}', space=vmem, size = 0x9000, scoped, tag = 'scratch operand']
  #allocation3 [shape = 'f32[4,8,8]{2,1,0:T(8,128)}', space=vmem, size = 0x4000, scoped, tag = 'scratch operand']
  %s0 = inlined_call_operand.vmem [shape: bf16[2,2,8,8,8], index: 0, kind: input, shape index: {}, may-alias: {0,1}]
  %s1 = inlined_call_operand.vmem [shape: bf16[2,2,8,8,8], index: 1, kind: input, shape index: {}, may-alias: {0,1}]
  %s2 = inlined_call_operand.vmem [shape: bf16[2,2,4,4,8], index: 2, kind: output, shape index: {}]
  %s3 = sld [smem:[#allocation0]]
  $region45: #{spiking_tokenizer.12} parent=0
    _
  %s5 = ssub.s32 1, %s3
  %s6 = scalar_select 0, %s5, %s3
  loop: start=0, step=1, limit=6
  $region2: #{spiking_tokenizer.12} parent=0 // loop_pre_header
    _
  $region3: #{spiking_tokenizer.12} parent=0 // loop_header
    %s8 = sphi 0, %s12
    %p9 = scmp.ge.s32.totalorder %s8, 6
    %s15 = sphi 0, %s34
    %s16 = sphi 0, %s30
    %s17 = sphi 0, %s26
    %s18 = sphi 0, %s15
    %s19 = sphi 0, %s16
    %s20 = sphi 0, %s17
    %s21 = sphi 0, %s18
    %s22 = sphi 0, %s19
    %s23 = sphi 0, %s20
    %s41 = sphi 0, %s43
    %s44 = sphi 0, %s41
    %s45 = sphi 0, %s44
    %s61 = sphi 0, %s45
    %s79 = sphi 0, %s81
    %s82 = sphi 0, %s79
    %s83 = sphi 0, %s82
    %s99 = sphi 0, %s83
    %s109 = sphi 0, %s111
    %s112 = sphi 0, %s109
    %s113 = sphi 0, %s112
    %s129 = sphi 0, %s113
  $region4: #{spiking_tokenizer.12} parent=0 // loop_header_branch
    %11 = sbr.rel (%p9) target = $region8
  $region5: #{spiking_tokenizer.12} parent=0 // loop_body
    %s13 = ssub.s32 %s8, 1
    %s14 = ssub.s32 %s8, 2
    %s24 = sadd.s32 1, %s17
    %p25 = scmp.ge.s32.totalorder %s24, 2
    %s26 = scalar_select %p25, 0, %s24
    %s27 = sadd.s32 1, %s16
    %s28 = scalar_select %p25, %s27, %s16
    %p29 = scmp.ge.s32.totalorder %s28, 1
    %s30 = scalar_select %p29, 0, %s28
    %s31 = sadd.s32 1, %s15
    %s32 = scalar_select %p29, %s31, %s15
    %p33 = scmp.ge.s32.totalorder %s32, 2
    %s34 = scalar_select %p33, 0, %s32
    %s35 = ssub.s32 %s17, %s26
    %s36 = ssub.s32 %s15, %s34
    %s37 = sor.u32 %s35, %s36
    %s38 = ssub.s32 %s16, %s30
    %s39 = sor.u32 %s37, %s38
    %p40 = scmp.eq.s32.totalorder %s39, 0
    %s42 = sadd.s32 %s41, 1
    %s43 = scalar_select %p40, %s41, %s42
    %p46 = pneg %p40
    %p47 = scmp.eq.s32.totalorder %s8, 3
    %p48 = por %p46, %p47
    %p49 = scmp.ne.s32.totalorder %s41, %s44
    %p50 = scmp.eq.s32.totalorder %s8, 0
    %p51 = por %p49, %p50
    %p52 = scmp.ne.s32.totalorder %s41, %s44
    %p53 = scmp.eq.s32.totalorder %s13, 3
    %p54 = por %p52, %p53
    %p55 = scmp.ne.s32.totalorder %s44, %s45
    %p56 = scmp.eq.s32.totalorder %s13, 0
    %p57 = por %p55, %p56
    %p58 = scmp.ne.s32.totalorder %s44, %s45
    %p59 = scmp.eq.s32.totalorder %s14, 3
    %p60 = por %p58, %p59
    %p62 = scmp.ne.s32.totalorder %s45, %s61
    %p63 = scmp.eq.s32.totalorder %s14, 0
    %p64 = por %p62, %p63
    %s65 = smul.u32 %s16, 8
    %s66 = ssub.s32 %s65, 1
    %p67 = scmp.gt.s32.totalorder %s66, 0
    %s68 = scalar_select %p67, %s66, 0
    %s69 = smul.u32 %s30, 8
    %s70 = ssub.s32 %s69, 1
    %p71 = scmp.gt.s32.totalorder %s70, 0
    %s72 = scalar_select %p71, %s70, 0
    %s73 = ssub.s32 %s17, %s26
    %s74 = ssub.s32 %s15, %s34
    %s75 = sor.u32 %s73, %s74
    %s76 = ssub.s32 %s68, %s72
    %s77 = sor.u32 %s75, %s76
    %p78 = scmp.eq.s32.totalorder %s77, 0
    %s80 = sadd.s32 %s79, 1
    %s81 = scalar_select %p78, %s79, %s80
    %p84 = pneg %p78
    %p85 = scmp.eq.s32.totalorder %s8, 3
    %p86 = por %p84, %p85
    %p87 = scmp.ne.s32.totalorder %s79, %s82
    %p88 = scmp.eq.s32.totalorder %s8, 0
    %p89 = por %p87, %p88
    %p90 = scmp.ne.s32.totalorder %s79, %s82
    %p91 = scmp.eq.s32.totalorder %s13, 3
    %p92 = por %p90, %p91
    %p93 = scmp.ne.s32.totalorder %s82, %s83
    %p94 = scmp.eq.s32.totalorder %s13, 0
    %p95 = por %p93, %p94
    %p96 = scmp.ne.s32.totalorder %s82, %s83
    %p97 = scmp.eq.s32.totalorder %s14, 3
    %p98 = por %p96, %p97
    %p100 = scmp.ne.s32.totalorder %s83, %s99
    %p101 = scmp.eq.s32.totalorder %s14, 0
    %p102 = por %p100, %p101
    %s103 = ssub.s32 %s17, %s26
    %s104 = ssub.s32 %s15, %s34
    %s105 = sor.u32 %s103, %s104
    %s106 = ssub.s32 %s16, %s30
    %s107 = sor.u32 %s105, %s106
    %p108 = scmp.eq.s32.totalorder %s107, 0
    %s110 = sadd.s32 %s109, 1
    %s111 = scalar_select %p108, %s109, %s110
    %p114 = pneg %p108
    %p115 = scmp.eq.s32.totalorder %s8, 3
    %p116 = por %p114, %p115
    %p117 = scmp.ne.s32.totalorder %s109, %s112
    %p118 = scmp.eq.s32.totalorder %s8, 0
    %p119 = por %p117, %p118
    %p120 = scmp.ne.s32.totalorder %s109, %s112
    %p121 = scmp.eq.s32.totalorder %s13, 3
    %p122 = por %p120, %p121
    %p123 = scmp.ne.s32.totalorder %s112, %s113
    %p124 = scmp.eq.s32.totalorder %s13, 0
    %p125 = por %p123, %p124
    %p126 = scmp.ne.s32.totalorder %s112, %s113
    %p127 = scmp.eq.s32.totalorder %s14, 3
    %p128 = por %p126, %p127
    %p130 = scmp.ne.s32.totalorder %s113, %s129
    %p131 = scmp.eq.s32.totalorder %s14, 0
    %p132 = por %p130, %p131
    %p133 = scmp.le.s32.totalorder 1, %s8
    %p134 = scmp.lt.s32.totalorder %s8, 5
    %p135 = pnand %p133, %p134
    %p136 = pneg %p135
    // Predicated region
    $region9: #{spiking_tokenizer.12} parent=5 // pred_check
      _
    $region10: #{spiking_tokenizer.12} parent=5 // pred_check_branch
      %138 = sbr.rel (%p135) target = $region12
    $region11: #{spiking_tokenizer.12} parent=5 // pred_region
      %s139 = ssub.s32 %s8, 1
    $region12: #{spiking_tokenizer.12} parent=5 // pred_fallthru
      _
    %p140 = scmp.lt.s32.totalorder %s8, 4
    // Predicated region
    $region13: #{spiking_tokenizer.12} parent=5 // pred_check
      %p141 = pneg %p140
    $region14: #{spiking_tokenizer.12} parent=5 // pred_check_branch
      %143 = sbr.rel (%p141) target = $region16
    $region15: #{spiking_tokenizer.12} parent=5 // pred_region
      // Predicated region
      $region17: #{spiking_tokenizer.12} parent=15 // pred_check
        %p144 = pneg %p51
      $region18: #{spiking_tokenizer.12} parent=15 // pred_check_branch
        %146 = sbr.rel (%p144) target = $region20
      $region19: #{spiking_tokenizer.12} parent=15 // pred_region
        %s147 = smul.u32 8, %s16
        %p148 = scmp.lt.s32.totalorder %s17, 1
        %s149 = scalar_select %p148, %s17, 1
        %p150 = scmp.lt.s32.totalorder %s15, 1
        %s151 = scalar_select %p150, %s15, 1
        %p152 = scmp.lt.s32.totalorder %s147, 7
        %s153 = scalar_select %p152, %s147, 7
        %s154 = smul.addr %s151, 8
        %s155 = sadd.s32 %s153, %s154
        %s156 = smul.addr %s149, 16
        %s157 = sadd.s32 %s155, %s156
        %s158 = smul.addr %s157, 4
        %s159 = scalar_lea.vmem %s0, %s158
        %s160 = smul.u32 8, %s16
      $region20: #{spiking_tokenizer.12} parent=15 // pred_fallthru
        _
      // Predicated region
      $region21: #{spiking_tokenizer.12} parent=15 // pred_check
        %p161 = pneg %p89
      $region22: #{spiking_tokenizer.12} parent=15 // pred_check_branch
        %163 = sbr.rel (%p161) target = $region24
      $region23: #{spiking_tokenizer.12} parent=15 // pred_region
        %s164 = smul.u32 %s16, 8
        %s165 = ssub.s32 %s164, 1
        %p166 = scmp.gt.s32.totalorder %s165, 0
        %s167 = scalar_select %p166, %s165, 0
        %p168 = scmp.lt.s32.totalorder %s17, 1
        %s169 = scalar_select %p168, %s17, 1
        %p170 = scmp.lt.s32.totalorder %s15, 1
        %s171 = scalar_select %p170, %s15, 1
        %p172 = scmp.lt.s32.totalorder %s167, 7
        %s173 = scalar_select %p172, %s167, 7
        %s174 = smul.addr %s171, 8
        %s175 = sadd.s32 %s173, %s174
        %s176 = smul.addr %s169, 16
        %s177 = sadd.s32 %s175, %s176
        %s178 = smul.addr %s177, 4
        %s179 = scalar_lea.vmem %s1, %s178
        %s180 = smul.u32 %s16, 8
        %s181 = ssub.s32 %s180, 1
        %p182 = scmp.gt.s32.totalorder %s181, 0
        %s183 = scalar_select %p182, %s181, 0
      $region24: #{spiking_tokenizer.12} parent=15 // pred_fallthru
        _
    $region16: #{spiking_tokenizer.12} parent=5 // pred_fallthru
      _
    %p184 = scmp.le.s32.totalorder 1, %s8
    %p185 = scmp.lt.s32.totalorder %s8, 5
    %p186 = pnand %p184, %p185
    %p187 = pneg %p186
    // Predicated region
    $region25: #{spiking_tokenizer.12} parent=5 // pred_check
      _
    $region26: #{spiking_tokenizer.12} parent=5 // pred_check_branch
      %189 = sbr.rel (%p186) target = $region28
    $region27: #{spiking_tokenizer.12} parent=5 // pred_region
      %s190 = ssub.s32 %s8, 1
      %s191 = smul.u32 8, %s19
      %p192 = scmp.lt.s32.totalorder %s20, 1
      %s193 = scalar_select %p192, %s20, 1
      %p194 = scmp.lt.s32.totalorder %s18, 1
      %s195 = scalar_select %p194, %s18, 1
      %p196 = scmp.lt.s32.totalorder %s191, 7
      %s197 = scalar_select %p196, %s191, 7
      %s198 = smul.addr %s195, 8
      %s199 = sadd.s32 %s197, %s198
      %s200 = smul.addr %s193, 16
      %s201 = sadd.s32 %s199, %s200
      %s202 = smul.addr %s201, 4
      %s203 = scalar_lea.vmem %s0, %s202
      %p204 = pneg %p57
      %p205 = pneg %p54
      %s206 = smul.u32 %s19, 8
      %s207 = ssub.s32 %s206, 1
      %p208 = scmp.gt.s32.totalorder %s207, 0
      %s209 = scalar_select %p208, %s207, 0
      %p210 = scmp.lt.s32.totalorder %s20, 1
      %s211 = scalar_select %p210, %s20, 1
      %p212 = scmp.lt.s32.totalorder %s18, 1
      %s213 = scalar_select %p212, %s18, 1
      %p214 = scmp.lt.s32.totalorder %s209, 7
      %s215 = scalar_select %p214, %s209, 7
      %s216 = smul.addr %s213, 8
      %s217 = sadd.s32 %s215, %s216
      %s218 = smul.addr %s211, 16
      %s219 = sadd.s32 %s217, %s218
      %s220 = smul.addr %s219, 4
      %s221 = scalar_lea.vmem %s1, %s220
      %p222 = pneg %p95
      %p223 = pneg %p92
      %p224 = pneg %p125
      %p225 = pneg %p122
      %s226 = smul.u32 4, %s19
      %p227 = scmp.lt.s32.totalorder %s20, 1
      %s228 = scalar_select %p227, %s20, 1
      %p229 = scmp.lt.s32.totalorder %s18, 1
      %s230 = scalar_select %p229, %s18, 1
      %p231 = scmp.lt.s32.totalorder %s226, 3
      %s232 = scalar_select %p231, %s226, 3
      %s233 = smul.addr %s230, 4
      %s234 = sadd.s32 %s232, %s233
      %s235 = smul.addr %s228, 8
      %s236 = sadd.s32 %s234, %s235
      %s237 = smul.addr %s236, 2
      %s238 = scalar_lea.vmem %s2, %s237
      %s239 = smul.u32 8, %s19
      %p240 = scmp.lt.s32.totalorder %s20, 1
      %s241 = scalar_select %p240, %s20, 1
      %p242 = scmp.lt.s32.totalorder %s18, 1
      %s243 = scalar_select %p242, %s18, 1
      %p244 = scmp.lt.s32.totalorder %s239, 7
      %s245 = scalar_select %p244, %s239, 7
      %s246 = smul.addr %s243, 8
      %s247 = sadd.s32 %s245, %s246
      %s248 = smul.addr %s241, 16
      %s249 = sadd.s32 %s247, %s248
      %s250 = smul.addr %s249, 4
      %s251 = scalar_lea.vmem %s0, %s250
      %s252 = smul.u32 8, %s19
      %s253 = smul.u32 %s19, 8
      %s254 = ssub.s32 %s253, 1
      %p255 = scmp.gt.s32.totalorder %s254, 0
      %s256 = scalar_select %p255, %s254, 0
      %p257 = scmp.lt.s32.totalorder %s20, 1
      %s258 = scalar_select %p257, %s20, 1
      %p259 = scmp.lt.s32.totalorder %s18, 1
      %s260 = scalar_select %p259, %s18, 1
      %p261 = scmp.lt.s32.totalorder %s256, 7
      %s262 = scalar_select %p261, %s256, 7
      %s263 = smul.addr %s260, 8
      %s264 = sadd.s32 %s262, %s263
      %s265 = smul.addr %s258, 16
      %s266 = sadd.s32 %s264, %s265
      %s267 = smul.addr %s266, 4
      %s268 = scalar_lea.vmem %s1, %s267
      %s269 = smul.u32 %s19, 8
      %s270 = ssub.s32 %s269, 1
      %p271 = scmp.gt.s32.totalorder %s270, 0
      %s272 = scalar_select %p271, %s270, 0
      %s273 = smul.u32 4, %s19
      %p274 = scmp.lt.s32.totalorder %s20, 1
      %s275 = scalar_select %p274, %s20, 1
      %p276 = scmp.lt.s32.totalorder %s18, 1
      %s277 = scalar_select %p276, %s18, 1
      %p278 = scmp.lt.s32.totalorder %s273, 3
      %s279 = scalar_select %p278, %s273, 3
      %s280 = smul.addr %s277, 4
      %s281 = sadd.s32 %s279, %s280
      %s282 = smul.addr %s275, 8
      %s283 = sadd.s32 %s281, %s282
      %s284 = smul.addr %s283, 2
      %s285 = scalar_lea.vmem %s2, %s284
      %s286 = smul.u32 4, %s19
      %p287 = scmp.eq.s32.totalorder %s20, 0
      // Predicated region
      $region29: #{spiking_tokenizer.12} parent=27 // pred_check
        %p288 = pneg %p287
      $region30: #{spiking_tokenizer.12} parent=27 // pred_check_branch
        %290 = sbr.rel (%p288) target = $region32
      $region31: #{spiking_tokenizer.12} parent=27 // pred_region
        %vm291 = vcmask 64512
        %292 = vst.msk [vmem:[#allocation2] sm:$0xff] %vm291, 0.0
        %293 = vst.msk [vmem:[#allocation2 + $0x8] sm:$0xff] %vm291, 0.0
        %294 = vst.msk [vmem:[#allocation2 + $0x10] sm:$0xff] %vm291, 0.0
        %295 = vst.msk [vmem:[#allocation2 + $0x18] sm:$0xff] %vm291, 0.0
        %296 = vst.msk [vmem:[#allocation2 + $0x20] sm:$0xff] %vm291, 0.0
        %297 = vst.msk [vmem:[#allocation2 + $0x28] sm:$0xff] %vm291, 0.0
        %298 = vst.msk [vmem:[#allocation2 + $0x30] sm:$0xff] %vm291, 0.0
        %299 = vst.msk [vmem:[#allocation2 + $0x38] sm:$0xff] %vm291, 0.0
        %300 = vst.msk [vmem:[#allocation2 + $0x40] sm:$0xff] %vm291, 0.0
      $region32: #{spiking_tokenizer.12} parent=27 // pred_fallthru
        _
      %v301 = vld [vmem:[%s268] sm:$0xf]
      %v302 = vunpack.c.l.bf16 %v301
      %v303 = vld [vmem:[%s251] sm:$0xf]
      %v304 = vld [vmem:[%s251 + $0x4] sm:$0xf]
      %v305 = vld [vmem:[%s251 + $0x8] sm:$0xf]
      %v306 = vld [vmem:[%s251 + $0xc] sm:$0xf]
      %v307 = vld [vmem:[%s251 + $0x10] sm:$0xf]
      %v308 = vld [vmem:[%s251 + $0x14] sm:$0xf]
      %v309 = vld [vmem:[%s251 + $0x18] sm:$0xf]
      %v310 = vld [vmem:[%s251 + $0x1c] sm:$0xf]
      %v311 = vunpack.c.l.bf16 %v303
      %v312 = vunpack.c.l.bf16 %v304
      %v313 = vunpack.c.l.bf16 %v305
      %v314 = vunpack.c.l.bf16 %v306
      %v315 = vunpack.c.l.bf16 %v307
      %v316 = vunpack.c.l.bf16 %v308
      %v317 = vunpack.c.l.bf16 %v309
      %v318 = vunpack.c.l.bf16 %v310
      %v319 = vld [vmem:[#allocation2] sm:$0xff]
      %v320 = vld [vmem:[#allocation2 + $0x8] sm:$0xff]
      %v321 = vld [vmem:[#allocation2 + $0x10] sm:$0xff]
      %v322 = vld [vmem:[#allocation2 + $0x18] sm:$0xff]
      %v323 = vld [vmem:[#allocation2 + $0x20] sm:$0xff]
      %v324 = vld [vmem:[#allocation2 + $0x28] sm:$0xff]
      %v325 = vld [vmem:[#allocation2 + $0x30] sm:$0xff]
      %v326 = vld [vmem:[#allocation2 + $0x38] sm:$0xff]
      %v327 = vld [vmem:[#allocation2 + $0x40] sm:$0xff]
      %v328 = vsub.f32 %v302, %v319
      %v329 = vsub.f32 %v311, %v320
      %v330 = vsub.f32 %v312, %v321
      %v331 = vsub.f32 %v313, %v322
      %v332 = vsub.f32 %v314, %v323
      %v333 = vsub.f32 %v315, %v324
      %v334 = vsub.f32 %v316, %v325
      %v335 = vsub.f32 %v317, %v326
      %v336 = vsub.f32 %v318, %v327
      %v337 = vmul.f32 %v328, 0.6666667
      %v338 = vmul.f32 %v329, 0.6666667
      %v339 = vmul.f32 %v330, 0.6666667
      %v340 = vmul.f32 %v331, 0.6666667
      %v341 = vmul.f32 %v332, 0.6666667
      %v342 = vmul.f32 %v333, 0.6666667
      %v343 = vmul.f32 %v334, 0.6666667
      %v344 = vmul.f32 %v335, 0.6666667
      %v345 = vmul.f32 %v336, 0.6666667
      %v346 = vadd.f32 %v319, %v337
      %v347 = vadd.f32 %v320, %v338
      %v348 = vadd.f32 %v321, %v339
      %v349 = vadd.f32 %v322, %v340
      %v350 = vadd.f32 %v323, %v341
      %v351 = vadd.f32 %v324, %v342
      %v352 = vadd.f32 %v325, %v343
      %v353 = vadd.f32 %v326, %v344
      %v354 = vadd.f32 %v327, %v345
      %vm355 = vcmp.ge.f32.partialorder %v346, 1.0
      %vm356 = vcmp.ge.f32.partialorder %v347, 1.0
      %vm357 = vcmp.ge.f32.partialorder %v348, 1.0
      %vm358 = vcmp.ge.f32.partialorder %v349, 1.0
      %vm359 = vcmp.ge.f32.partialorder %v350, 1.0
      %vm360 = vcmp.ge.f32.partialorder %v351, 1.0
      %vm361 = vcmp.ge.f32.partialorder %v352, 1.0
      %vm362 = vcmp.ge.f32.partialorder %v353, 1.0
      %vm363 = vcmp.ge.f32.partialorder %v354, 1.0
      %v364 = vsel %vm355, 0.0, %v346
      %v365 = vsel %vm356, 0.0, %v347
      %v366 = vsel %vm357, 0.0, %v348
      %v367 = vsel %vm358, 0.0, %v349
      %v368 = vsel %vm359, 0.0, %v350
      %v369 = vsel %vm360, 0.0, %v351
      %v370 = vsel %vm361, 0.0, %v352
      %v371 = vsel %vm362, 0.0, %v353
      %v372 = vsel %vm363, 0.0, %v354
      %vm373 = vcmask 64512
      %374 = vst.msk [vmem:[#allocation2] sm:$0xff] %vm373, %v364
      %375 = vst.msk [vmem:[#allocation2 + $0x8] sm:$0xff] %vm373, %v365
      %376 = vst.msk [vmem:[#allocation2 + $0x10] sm:$0xff] %vm373, %v366
      %377 = vst.msk [vmem:[#allocation2 + $0x18] sm:$0xff] %vm373, %v367
      %378 = vst.msk [vmem:[#allocation2 + $0x20] sm:$0xff] %vm373, %v368
      %379 = vst.msk [vmem:[#allocation2 + $0x28] sm:$0xff] %vm373, %v369
      %380 = vst.msk [vmem:[#allocation2 + $0x30] sm:$0xff] %vm373, %v370
      %381 = vst.msk [vmem:[#allocation2 + $0x38] sm:$0xff] %vm373, %v371
      %382 = vst.msk [vmem:[#allocation2 + $0x40] sm:$0xff] %vm373, %v372
      %v383 = vsel %vm355, 1, 0
      %v384 = vsel %vm356, 1, 0
      %v385 = vsel %vm357, 1, 0
      %v386 = vsel %vm358, 1, 0
      %v387 = vsel %vm359, 1, 0
      %v388 = vsel %vm360, 1, 0
      %v389 = vsel %vm361, 1, 0
      %v390 = vsel %vm362, 1, 0
      %v391 = vsel %vm363, 1, 0
      %v392 = vcvt.s32.f32 %v383
      %v393 = vcvt.s32.f32 %v384
      %v394 = vcvt.s32.f32 %v385
      %v395 = vcvt.s32.f32 %v386
      %v396 = vcvt.s32.f32 %v387
      %v397 = vcvt.s32.f32 %v388
      %v398 = vcvt.s32.f32 %v389
      %v399 = vcvt.s32.f32 %v390
      %v400 = vcvt.s32.f32 %v391
      %v410 = vrot.slane %v392, 7
      %v411 = vrot.slane %v393, 7
      %v412 = vrot.slane %v394, 7
      %v413 = vrot.slane %v395, 7
      %v414 = vrot.slane %v396, 7
      %v415 = vrot.slane %v397, 7
      %v416 = vrot.slane %v398, 7
      %v417 = vrot.slane %v399, 7
      %v418 = vrot.slane %v400, 7
      %vm428 = vcmask 1040384
      %v429 = vsel %vm428, 0.0, %v410
      %v430 = vsel %vm428, 0.0, %v411
      %v431 = vsel %vm428, 0.0, %v412
      %v432 = vsel %vm428, 0.0, %v413
      %v433 = vsel %vm428, 0.0, %v414
      %v434 = vsel %vm428, 0.0, %v415
      %v435 = vsel %vm428, 0.0, %v416
      %v436 = vsel %vm428, 0.0, %v417
      %v437 = vsel %vm428, 0.0, %v418
      %v438 = vrot.slane %v392, 1
      %v439 = vrot.slane %v393, 1
      %v440 = vrot.slane %v394, 1
      %v441 = vrot.slane %v395, 1
      %v442 = vrot.slane %v396, 1
      %v443 = vrot.slane %v397, 1
      %v444 = vrot.slane %v398, 1
      %v445 = vrot.slane %v399, 1
      %v446 = vrot.slane %v400, 1
      %vm456 = vcmask 1046528
      %v457 = vsel %vm456, %v438, 0.0
      %v458 = vsel %vm456, %v439, 0.0
      %v459 = vsel %vm456, %v440, 0.0
      %v460 = vsel %vm456, %v441, 0.0
      %v461 = vsel %vm456, %v442, 0.0
      %v462 = vsel %vm456, %v443, 0.0
      %v463 = vsel %vm456, %v444, 0.0
      %v464 = vsel %vm456, %v445, 0.0
      %v465 = vsel %vm456, %v446, 0.0
      %v466 = vmax.f32 %v429, %v392
      %v467 = vmax.f32 %v430, %v393
      %v468 = vmax.f32 %v431, %v394
      %v469 = vmax.f32 %v432, %v395
      %v470 = vmax.f32 %v433, %v396
      %v471 = vmax.f32 %v434, %v397
      %v472 = vmax.f32 %v435, %v398
      %v473 = vmax.f32 %v436, %v399
      %v474 = vmax.f32 %v437, %v400
      %v475 = vmax.f32 %v466, %v457
      %v476 = vmax.f32 %v467, %v458
      %v477 = vmax.f32 %v468, %v459
      %v478 = vmax.f32 %v469, %v460
      %v479 = vmax.f32 %v470, %v461
      %v480 = vmax.f32 %v471, %v462
      %v481 = vmax.f32 %v472, %v463
      %v482 = vmax.f32 %v473, %v464
      %v483 = vmax.f32 %v474, %v465
      %v484 = vsel %vm373, %v475, -inf
      %v485 = vsel %vm373, %v476, -inf
      %v486 = vmax.f32 %v484, %v485
      %v487 = vsel %vm373, %v477, -inf
      %v488 = vsel %vm373, %v478, -inf
      %v489 = vmax.f32 %v487, %v488
      %v490 = vsel %vm373, %v479, -inf
      %v491 = vsel %vm373, %v480, -inf
      %v492 = vmax.f32 %v490, %v491
      %v493 = vsel %vm373, %v481, -inf
      %v494 = vsel %vm373, %v482, -inf
      %v495 = vmax.f32 %v493, %v494
      %v496 = vmax.f32 %v486, %v477
      %v497 = vmax.f32 %v489, %v479
      %v498 = vmax.f32 %v492, %v481
      %v499 = vmax.f32 %v495, %v483
      %500 = vst.msk [vmem:[#allocation3] sm:$0xff] %vm373, %v496
      %501 = vst.msk [vmem:[#allocation3 + $0x8] sm:$0xff] %vm373, %v497
      %502 = vst.msk [vmem:[#allocation3 + $0x10] sm:$0xff] %vm373, %v498
      %503 = vst.msk [vmem:[#allocation3 + $0x18] sm:$0xff] %vm373, %v499
      %v504 = vld [vmem:[#allocation3] ss:$2 sm:$0xf]
      %s505 = scalar_lea.vmem [#allocation3], 8
      %v506 = vld [vmem:[%s505] ss:$2 sm:$0xf]
      %s507 = scalar_lea.vmem [#allocation3], 16
      %v508 = vld [vmem:[%s507] ss:$2 sm:$0xf]
      %s509 = scalar_lea.vmem [#allocation3], 24
      %v510 = vld [vmem:[%s509] ss:$2 sm:$0xf]
      %v511 = vpack.c.bf16 %v504, %v504
      %v512 = vpack.c.bf16 %v506, %v506
      %v513 = vpack.c.bf16 %v508, %v508
      %v514 = vpack.c.bf16 %v510, %v510
      %vm515 = vcmask 58368
      %516 = vst.msk [vmem:[%s285] sm:$0x3] %vm515, %v511
      %517 = vst.msk [vmem:[%s285 + $0x2] sm:$0x3] %vm515, %v512
      %518 = vst.msk [vmem:[%s285 + $0x4] sm:$0x3] %vm515, %v513
      %519 = vst.msk [vmem:[%s285 + $0x6] sm:$0x3] %vm515, %v514
      %s520 = smul.u32 4, %s19
      %p521 = scmp.lt.s32.totalorder %s20, 1
      %s522 = scalar_select %p521, %s20, 1
      %p523 = scmp.lt.s32.totalorder %s18, 1
      %s524 = scalar_select %p523, %s18, 1
      %p525 = scmp.lt.s32.totalorder %s520, 3
      %s526 = scalar_select %p525, %s520, 3
      %s527 = smul.addr %s524, 4
      %s528 = sadd.s32 %s526, %s527
      %s529 = smul.addr %s522, 8
      %s530 = sadd.s32 %s528, %s529
      %s531 = smul.addr %s530, 2
      %s532 = scalar_lea.vmem %s2, %s531
      // Predicated region
      $region33: #{spiking_tokenizer.12} parent=27 // pred_check
        %p533 = pneg %p122
      $region34: #{spiking_tokenizer.12} parent=27 // pred_check_branch
        %535 = sbr.rel (%p533) target = $region36
      $region35: #{spiking_tokenizer.12} parent=27 // pred_region
        %s536 = smul.u32 4, %s19
      $region36: #{spiking_tokenizer.12} parent=27 // pred_fallthru
        _
    $region28: #{spiking_tokenizer.12} parent=5 // pred_fallthru
      _
    %p537 = scmp.le.s32.totalorder 2, %s8
    // Predicated region
    $region37: #{spiking_tokenizer.12} parent=5 // pred_check
      %p538 = pneg %p537
    $region38: #{spiking_tokenizer.12} parent=5 // pred_check_branch
      %540 = sbr.rel (%p538) target = $region40
    $region39: #{spiking_tokenizer.12} parent=5 // pred_region
      %s541 = ssub.s32 %s8, 2
      // Predicated region
      $region41: #{spiking_tokenizer.12} parent=39 // pred_check
        %p542 = pneg %p128
      $region42: #{spiking_tokenizer.12} parent=39 // pred_check_branch
        %544 = sbr.rel (%p542) target = $region44
      $region43: #{spiking_tokenizer.12} parent=39 // pred_region
        %s545 = smul.u32 4, %s22
        %p546 = scmp.lt.s32.totalorder %s23, 1
        %s547 = scalar_select %p546, %s23, 1
        %p548 = scmp.lt.s32.totalorder %s21, 1
        %s549 = scalar_select %p548, %s21, 1
        %p550 = scmp.lt.s32.totalorder %s545, 3
        %s551 = scalar_select %p550, %s545, 3
        %s552 = smul.addr %s549, 4
        %s553 = sadd.s32 %s551, %s552
        %s554 = smul.addr %s547, 8
        %s555 = sadd.s32 %s553, %s554
        %s556 = smul.addr %s555, 2
        %s557 = scalar_lea.vmem %s2, %s556
      $region44: #{spiking_tokenizer.12} parent=39 // pred_fallthru
        _
    $region40: #{spiking_tokenizer.12} parent=5 // pred_fallthru
      _
  $region6: #{spiking_tokenizer.12} parent=0 // loop_footer
    %s12 = sadd.s32 1, %s8
  $region7: #{spiking_tokenizer.12} parent=0 // loop_footer_branch
    %7 = sbr.rel target = $region3
  $region8: #{spiking_tokenizer.12} parent=0 // loop_exit
    _

// kernel: spiking_tokenizer.11
$region0: #{spiking_tokenizer.11}
  #allocation0 [shape = 'u32[]', space=smem, size = 0x4, offset = 0x4, fixed_abs, tag = 'smem constant byte address 0x4 - core index']
  #allocation1 [shape = 'u32[144,128]{1,0:T(1,128)}', space=vmem, size = 0x12000, scoped, tag = 'internal scratch']
  %s0 = inlined_call_operand.vmem [shape: bf16[4,8,8,4], index: 0, kind: input, shape index: {}]
  %s1 = inlined_call_operand.vmem [shape: bf16[36,8], index: 1, kind: input, shape index: {}]
  %s2 = inlined_call_operand.vmem [shape: f32[1,8], index: 2, kind: input, shape index: {}]
  %s3 = inlined_call_operand.vmem [shape: bf16[4,8,8,8], index: 3, kind: output, shape index: {}]
  %s4 = sld [smem:[#allocation0]]
  $region22: #{spiking_tokenizer.11} parent=0
    _
  %s6 = ssub.s32 1, %s4
  %s7 = scalar_select 0, %s6, %s4
  // Predicated region
  $region2: #{spiking_tokenizer.11} parent=0 // pred_check
    _
  $region3: #{spiking_tokenizer.11} parent=0 // pred_check_branch
    %9 = sbr.rel (0) target = $region5
  $region4: #{spiking_tokenizer.11} parent=0 // pred_region
    _
  $region5: #{spiking_tokenizer.11} parent=0 // pred_fallthru
    _
  // Predicated region
  $region6: #{spiking_tokenizer.11} parent=0 // pred_check
    _
  $region7: #{spiking_tokenizer.11} parent=0 // pred_check_branch
    %11 = sbr.rel (0) target = $region9
  $region8: #{spiking_tokenizer.11} parent=0 // pred_region
    _
  $region9: #{spiking_tokenizer.11} parent=0 // pred_fallthru
    _
  // Predicated region
  $region10: #{spiking_tokenizer.11} parent=0 // pred_check
    _
  $region11: #{spiking_tokenizer.11} parent=0 // pred_check_branch
    %13 = sbr.rel (0) target = $region13
  $region12: #{spiking_tokenizer.11} parent=0 // pred_region
    _
  $region13: #{spiking_tokenizer.11} parent=0 // pred_fallthru
    _
  %v15 = vld [vmem:[%s0] sm:$0xf]
  %v16 = vld [vmem:[%s0 + $0x4] sm:$0xf]
  %v17 = vld [vmem:[%s0 + $0x8] sm:$0xf]
  %v18 = vld [vmem:[%s0 + $0xc] sm:$0xf]
  %v19 = vld [vmem:[%s0 + $0x10] sm:$0xf]
  %v20 = vld [vmem:[%s0 + $0x14] sm:$0xf]
  %v21 = vld [vmem:[%s0 + $0x18] sm:$0xf]
  %v22 = vld [vmem:[%s0 + $0x1c] sm:$0xf]
  %v23 = vld [vmem:[%s0 + $0x20] sm:$0xf]
  %v24 = vld [vmem:[%s0 + $0x24] sm:$0xf]
  %v25 = vld [vmem:[%s0 + $0x28] sm:$0xf]
  %v26 = vld [vmem:[%s0 + $0x2c] sm:$0xf]
  %v27 = vld [vmem:[%s0 + $0x30] sm:$0xf]
  %v28 = vld [vmem:[%s0 + $0x34] sm:$0xf]
  %v29 = vld [vmem:[%s0 + $0x38] sm:$0xf]
  %v30 = vld [vmem:[%s0 + $0x3c] sm:$0xf]
  %v31 = vld [vmem:[%s0 + $0x40] sm:$0xf]
  %v32 = vld [vmem:[%s0 + $0x44] sm:$0xf]
  %v33 = vld [vmem:[%s0 + $0x48] sm:$0xf]
  %v34 = vld [vmem:[%s0 + $0x4c] sm:$0xf]
  %v35 = vld [vmem:[%s0 + $0x50] sm:$0xf]
  %v36 = vld [vmem:[%s0 + $0x54] sm:$0xf]
  %v37 = vld [vmem:[%s0 + $0x58] sm:$0xf]
  %v38 = vld [vmem:[%s0 + $0x5c] sm:$0xf]
  %v39 = vld [vmem:[%s0 + $0x60] sm:$0xf]
  %v40 = vld [vmem:[%s0 + $0x64] sm:$0xf]
  %v41 = vld [vmem:[%s0 + $0x68] sm:$0xf]
  %v42 = vld [vmem:[%s0 + $0x6c] sm:$0xf]
  %v43 = vld [vmem:[%s0 + $0x70] sm:$0xf]
  %v44 = vld [vmem:[%s0 + $0x74] sm:$0xf]
  %v45 = vld [vmem:[%s0 + $0x78] sm:$0xf]
  %v46 = vld [vmem:[%s0 + $0x7c] sm:$0xf]
  %v47 = vld [vmem:[%s1] sm:$0xf]
  %v48 = vld [vmem:[%s1 + $0x4] sm:$0xf]
  %v49 = vld [vmem:[%s1 + $0x8] sm:$0xf]
  %v50 = vld [vmem:[%s1 + $0xc] sm:$0xf]
  %v51 = vld [vmem:[%s1 + $0x10] sm:$0x3]
  %v52 = vld [vmem:[%s2] sm:$0x1]
  %v54 = vshrl.u32 0, 16
  %v56 = vrot.slane %v54, 7
  %v57 = vshll.u32 0, 16
  %v59 = vor.u32 %v56, %v57
  %v61 = vshrl.u32 %v15, 16
  %v63 = vrot.slane %v61, 7
  %v64 = vshll.u32 %v15, 16
  %v66 = vor.u32 %v63, %v64
  %v68 = vshrl.u32 %v16, 16
  %v70 = vrot.slane %v68, 7
  %v71 = vshll.u32 %v16, 16
  %v73 = vor.u32 %v70, %v71
  %v75 = vshrl.u32 %v17, 16
  %v77 = vrot.slane %v75, 7
  %v78 = vshll.u32 %v17, 16
  %v80 = vor.u32 %v77, %v78
  %v82 = vshrl.u32 %v18, 16
  %v84 = vrot.slane %v82, 7
  %v85 = vshll.u32 %v18, 16
  %v87 = vor.u32 %v84, %v85
  %v89 = vshrl.u32 %v19, 16
  %v91 = vrot.slane %v89, 7
  %v92 = vshll.u32 %v19, 16
  %v94 = vor.u32 %v91, %v92
  %v96 = vshrl.u32 %v20, 16
  %v98 = vrot.slane %v96, 7
  %v99 = vshll.u32 %v20, 16
  %v101 = vor.u32 %v98, %v99
  %v103 = vshrl.u32 %v21, 16
  %v105 = vrot.slane %v103, 7
  %v106 = vshll.u32 %v21, 16
  %v108 = vor.u32 %v105, %v106
  %v110 = vshrl.u32 %v22, 16
  %v112 = vrot.slane %v110, 7
  %v113 = vshll.u32 %v22, 16
  %v115 = vor.u32 %v112, %v113
  %v117 = vshrl.u32 %v23, 16
  %v119 = vrot.slane %v117, 7
  %v120 = vshll.u32 %v23, 16
  %v122 = vor.u32 %v119, %v120
  %v124 = vshrl.u32 %v24, 16
  %v126 = vrot.slane %v124, 7
  %v127 = vshll.u32 %v24, 16
  %v129 = vor.u32 %v126, %v127
  %v131 = vshrl.u32 %v25, 16
  %v133 = vrot.slane %v131, 7
  %v134 = vshll.u32 %v25, 16
  %v136 = vor.u32 %v133, %v134
  %v138 = vshrl.u32 %v26, 16
  %v140 = vrot.slane %v138, 7
  %v141 = vshll.u32 %v26, 16
  %v143 = vor.u32 %v140, %v141
  %v145 = vshrl.u32 %v27, 16
  %v147 = vrot.slane %v145, 7
  %v148 = vshll.u32 %v27, 16
  %v150 = vor.u32 %v147, %v148
  %v152 = vshrl.u32 %v28, 16
  %v154 = vrot.slane %v152, 7
  %v155 = vshll.u32 %v28, 16
  %v157 = vor.u32 %v154, %v155
  %v159 = vshrl.u32 %v29, 16
  %v161 = vrot.slane %v159, 7
  %v162 = vshll.u32 %v29, 16
  %v164 = vor.u32 %v161, %v162
  %v166 = vshrl.u32 %v30, 16
  %v168 = vrot.slane %v166, 7
  %v169 = vshll.u32 %v30, 16
  %v171 = vor.u32 %v168, %v169
  %v173 = vshrl.u32 %v31, 16
  %v175 = vrot.slane %v173, 7
  %v176 = vshll.u32 %v31, 16
  %v178 = vor.u32 %v175, %v176
  %v180 = vshrl.u32 %v32, 16
  %v182 = vrot.slane %v180, 7
  %v183 = vshll.u32 %v32, 16
  %v185 = vor.u32 %v182, %v183
  %v187 = vshrl.u32 %v33, 16
  %v189 = vrot.slane %v187, 7
  %v190 = vshll.u32 %v33, 16
  %v192 = vor.u32 %v189, %v190
  %v194 = vshrl.u32 %v34, 16
  %v196 = vrot.slane %v194, 7
  %v197 = vshll.u32 %v34, 16
  %v199 = vor.u32 %v196, %v197
  %v201 = vshrl.u32 %v35, 16
  %v203 = vrot.slane %v201, 7
  %v204 = vshll.u32 %v35, 16
  %v206 = vor.u32 %v203, %v204
  %v208 = vshrl.u32 %v36, 16
  %v210 = vrot.slane %v208, 7
  %v211 = vshll.u32 %v36, 16
  %v213 = vor.u32 %v210, %v211
  %v215 = vshrl.u32 %v37, 16
  %v217 = vrot.slane %v215, 7
  %v218 = vshll.u32 %v37, 16
  %v220 = vor.u32 %v217, %v218
  %v222 = vshrl.u32 %v38, 16
  %v224 = vrot.slane %v222, 7
  %v225 = vshll.u32 %v38, 16
  %v227 = vor.u32 %v224, %v225
  %v229 = vshrl.u32 %v39, 16
  %v231 = vrot.slane %v229, 7
  %v232 = vshll.u32 %v39, 16
  %v234 = vor.u32 %v231, %v232
  %v236 = vshrl.u32 %v40, 16
  %v238 = vrot.slane %v236, 7
  %v239 = vshll.u32 %v40, 16
  %v241 = vor.u32 %v238, %v239
  %v243 = vshrl.u32 %v41, 16
  %v245 = vrot.slane %v243, 7
  %v246 = vshll.u32 %v41, 16
  %v248 = vor.u32 %v245, %v246
  %v250 = vshrl.u32 %v42, 16
  %v252 = vrot.slane %v250, 7
  %v253 = vshll.u32 %v42, 16
  %v255 = vor.u32 %v252, %v253
  %v257 = vshrl.u32 %v43, 16
  %v259 = vrot.slane %v257, 7
  %v260 = vshll.u32 %v43, 16
  %v262 = vor.u32 %v259, %v260
  %v264 = vshrl.u32 %v44, 16
  %v266 = vrot.slane %v264, 7
  %v267 = vshll.u32 %v44, 16
  %v269 = vor.u32 %v266, %v267
  %v271 = vshrl.u32 %v45, 16
  %v273 = vrot.slane %v271, 7
  %v274 = vshll.u32 %v45, 16
  %v276 = vor.u32 %v273, %v274
  %v278 = vshrl.u32 %v46, 16
  %v280 = vrot.slane %v278, 7
  %v281 = vshll.u32 %v46, 16
  %v283 = vor.u32 %v280, %v281
  %vm317 = vcmask 1040384
  %vm318 = vsmask.f32 256
  %vm319 = vmand %vm317, %vm318
  %v320 = vsel %vm319, 0, %v59
  %v321 = vsel %vm319, 0, %v66
  %v322 = vsel %vm319, 0, %v73
  %v323 = vsel %vm319, 0, %v80
  %v324 = vsel %vm319, 0, %v87
  %v325 = vsel %vm319, 0, %v94
  %v326 = vsel %vm319, 0, %v101
  %v327 = vsel %vm319, 0, %v108
  %v328 = vsel %vm319, 0, %v115
  %v329 = vsel %vm319, 0, %v122
  %v330 = vsel %vm319, 0, %v129
  %v331 = vsel %vm319, 0, %v136
  %v332 = vsel %vm319, 0, %v143
  %v333 = vsel %vm319, 0, %v150
  %v334 = vsel %vm319, 0, %v157
  %v335 = vsel %vm319, 0, %v164
  %v336 = vsel %vm319, 0, %v171
  %v337 = vsel %vm319, 0, %v178
  %v338 = vsel %vm319, 0, %v185
  %v339 = vsel %vm319, 0, %v192
  %v340 = vsel %vm319, 0, %v199
  %v341 = vsel %vm319, 0, %v206
  %v342 = vsel %vm319, 0, %v213
  %v343 = vsel %vm319, 0, %v220
  %v344 = vsel %vm319, 0, %v227
  %v345 = vsel %vm319, 0, %v234
  %v346 = vsel %vm319, 0, %v241
  %v347 = vsel %vm319, 0, %v248
  %v348 = vsel %vm319, 0, %v255
  %v349 = vsel %vm319, 0, %v262
  %v350 = vsel %vm319, 0, %v269
  %v351 = vsel %vm319, 0, %v276
  %v352 = vsel %vm319, 0, %v283
  %vm353 = vcmask 1044480
  %vm354 = vsmask.f32 4352
  %vm355 = vmand %vm353, %vm354
  %v356 = vsel %vm355, %v320, 0
  %v357 = vsel %vm355, %v321, 0
  %v358 = vsel %vm355, %v322, 0
  %v359 = vsel %vm355, %v323, 0
  %v360 = vsel %vm355, %v324, 0
  %v361 = vsel %vm355, %v325, 0
  %v362 = vsel %vm355, %v326, 0
  %v363 = vsel %vm355, %v327, 0
  %v364 = vsel %vm355, %v328, 0
  %v365 = vsel %vm355, %v329, 0
  %v366 = vsel %vm355, %v330, 0
  %v367 = vsel %vm355, %v331, 0
  %v368 = vsel %vm355, %v332, 0
  %v369 = vsel %vm355, %v333, 0
  %v370 = vsel %vm355, %v334, 0
  %v371 = vsel %vm355, %v335, 0
  %v372 = vsel %vm355, %v336, 0
  %v373 = vsel %vm355, %v337, 0
  %v374 = vsel %vm355, %v338, 0
  %v375 = vsel %vm355, %v339, 0
  %v376 = vsel %vm355, %v340, 0
  %v377 = vsel %vm355, %v341, 0
  %v378 = vsel %vm355, %v342, 0
  %v379 = vsel %vm355, %v343, 0
  %v380 = vsel %vm355, %v344, 0
  %v381 = vsel %vm355, %v345, 0
  %v382 = vsel %vm355, %v346, 0
  %v383 = vsel %vm355, %v347, 0
  %v384 = vsel %vm355, %v348, 0
  %v385 = vsel %vm355, %v349, 0
  %v386 = vsel %vm355, %v350, 0
  %v387 = vsel %vm355, %v351, 0
  %v388 = vsel %vm355, %v352, 0
  %v390 = vshrl.u32 %v356, 16
  %v392 = vshll.u32 %v356, 16
  %v394 = vrot.slane %v392, 1
  %v395 = vor.u32 %v390, %v394
  %v397 = vshrl.u32 %v357, 16
  %v399 = vshll.u32 %v357, 16
  %v401 = vrot.slane %v399, 1
  %v402 = vor.u32 %v397, %v401
  %v404 = vshrl.u32 %v358, 16
  %v406 = vshll.u32 %v358, 16
  %v408 = vrot.slane %v406, 1
  %v409 = vor.u32 %v404, %v408
  %v411 = vshrl.u32 %v359, 16
  %v413 = vshll.u32 %v359, 16
  %v415 = vrot.slane %v413, 1
  %v416 = vor.u32 %v411, %v415
  %v418 = vshrl.u32 %v360, 16
  %v420 = vshll.u32 %v360, 16
  %v422 = vrot.slane %v420, 1
  %v423 = vor.u32 %v418, %v422
  %v425 = vshrl.u32 %v361, 16
  %v427 = vshll.u32 %v361, 16
  %v429 = vrot.slane %v427, 1
  %v430 = vor.u32 %v425, %v429
  %v432 = vshrl.u32 %v362, 16
  %v434 = vshll.u32 %v362, 16
  %v436 = vrot.slane %v434, 1
  %v437 = vor.u32 %v432, %v436
  %v439 = vshrl.u32 %v363, 16
  %v441 = vshll.u32 %v363, 16
  %v443 = vrot.slane %v441, 1
  %v444 = vor.u32 %v439, %v443
  %v446 = vshrl.u32 %v365, 16
  %v448 = vshll.u32 %v365, 16
  %v450 = vrot.slane %v448, 1
  %v451 = vor.u32 %v446, %v450
  %v453 = vshrl.u32 %v366, 16
  %v455 = vshll.u32 %v366, 16
  %v457 = vrot.slane %v455, 1
  %v458 = vor.u32 %v453, %v457
  %v460 = vshrl.u32 %v367, 16
  %v462 = vshll.u32 %v367, 16
  %v464 = vrot.slane %v462, 1
  %v465 = vor.u32 %v460, %v464
  %v467 = vshrl.u32 %v368, 16
  %v469 = vshll.u32 %v368, 16
  %v471 = vrot.slane %v469, 1
  %v472 = vor.u32 %v467, %v471
  %v474 = vshrl.u32 %v369, 16
  %v476 = vshll.u32 %v369, 16
  %v478 = vrot.slane %v476, 1
  %v479 = vor.u32 %v474, %v478
  %v481 = vshrl.u32 %v370, 16
  %v483 = vshll.u32 %v370, 16
  %v485 = vrot.slane %v483, 1
  %v486 = vor.u32 %v481, %v485
  %v488 = vshrl.u32 %v371, 16
  %v490 = vshll.u32 %v371, 16
  %v492 = vrot.slane %v490, 1
  %v493 = vor.u32 %v488, %v492
  %v495 = vshrl.u32 %v373, 16
  %v497 = vshll.u32 %v373, 16
  %v499 = vrot.slane %v497, 1
  %v500 = vor.u32 %v495, %v499
  %v502 = vshrl.u32 %v374, 16
  %v504 = vshll.u32 %v374, 16
  %v506 = vrot.slane %v504, 1
  %v507 = vor.u32 %v502, %v506
  %v509 = vshrl.u32 %v375, 16
  %v511 = vshll.u32 %v375, 16
  %v513 = vrot.slane %v511, 1
  %v514 = vor.u32 %v509, %v513
  %v516 = vshrl.u32 %v376, 16
  %v518 = vshll.u32 %v376, 16
  %v520 = vrot.slane %v518, 1
  %v521 = vor.u32 %v516, %v520
  %v523 = vshrl.u32 %v377, 16
  %v525 = vshll.u32 %v377, 16
  %v527 = vrot.slane %v525, 1
  %v528 = vor.u32 %v523, %v527
  %v530 = vshrl.u32 %v378, 16
  %v532 = vshll.u32 %v378, 16
  %v534 = vrot.slane %v532, 1
  %v535 = vor.u32 %v530, %v534
  %v537 = vshrl.u32 %v379, 16
  %v539 = vshll.u32 %v379, 16
  %v541 = vrot.slane %v539, 1
  %v542 = vor.u32 %v537, %v541
  %v544 = vshrl.u32 %v381, 16
  %v546 = vshll.u32 %v381, 16
  %v548 = vrot.slane %v546, 1
  %v549 = vor.u32 %v544, %v548
  %v551 = vshrl.u32 %v382, 16
  %v553 = vshll.u32 %v382, 16
  %v555 = vrot.slane %v553, 1
  %v556 = vor.u32 %v551, %v555
  %v558 = vshrl.u32 %v383, 16
  %v560 = vshll.u32 %v383, 16
  %v562 = vrot.slane %v560, 1
  %v563 = vor.u32 %v558, %v562
  %v565 = vshrl.u32 %v384, 16
  %v567 = vshll.u32 %v384, 16
  %v569 = vrot.slane %v567, 1
  %v570 = vor.u32 %v565, %v569
  %v572 = vshrl.u32 %v385, 16
  %v574 = vshll.u32 %v385, 16
  %v576 = vrot.slane %v574, 1
  %v577 = vor.u32 %v572, %v576
  %v579 = vshrl.u32 %v386, 16
  %v581 = vshll.u32 %v386, 16
  %v583 = vrot.slane %v581, 1
  %v584 = vor.u32 %v579, %v583
  %v586 = vshrl.u32 %v387, 16
  %v588 = vshll.u32 %v387, 16
  %v590 = vrot.slane %v588, 1
  %v591 = vor.u32 %v586, %v590
  %592 = vrot.lane.b32.xlu0 %v395, 4
  %v593 = vpop.permute.xlu0 %592
  %594 = vrot.lane.b32.xlu0 %v402, 4
  %v595 = vpop.permute.xlu0 %594
  %596 = vrot.lane.b32.xlu0 %v409, 4
  %v597 = vpop.permute.xlu0 %596
  %598 = vrot.lane.b32.xlu0 %v416, 4
  %v599 = vpop.permute.xlu0 %598
  %600 = vrot.lane.b32.xlu0 %v423, 4
  %v601 = vpop.permute.xlu0 %600
  %602 = vrot.lane.b32.xlu0 %v430, 4
  %v603 = vpop.permute.xlu0 %602
  %604 = vrot.lane.b32.xlu0 %v437, 4
  %v605 = vpop.permute.xlu0 %604
  %606 = vrot.lane.b32.xlu0 %v444, 4
  %v607 = vpop.permute.xlu0 %606
  %608 = vrot.lane.b32.xlu0 %v451, 4
  %v609 = vpop.permute.xlu0 %608
  %610 = vrot.lane.b32.xlu0 %v458, 4
  %v611 = vpop.permute.xlu0 %610
  %612 = vrot.lane.b32.xlu0 %v465, 4
  %v613 = vpop.permute.xlu0 %612
  %614 = vrot.lane.b32.xlu0 %v472, 4
  %v615 = vpop.permute.xlu0 %614
  %616 = vrot.lane.b32.xlu0 %v479, 4
  %v617 = vpop.permute.xlu0 %616
  %618 = vrot.lane.b32.xlu0 %v486, 4
  %v619 = vpop.permute.xlu0 %618
  %620 = vrot.lane.b32.xlu0 %v493, 4
  %v621 = vpop.permute.xlu0 %620
  %622 = vrot.lane.b32.xlu0 %v500, 4
  %v623 = vpop.permute.xlu0 %622
  %624 = vrot.lane.b32.xlu0 %v507, 4
  %v625 = vpop.permute.xlu0 %624
  %626 = vrot.lane.b32.xlu0 %v514, 4
  %v627 = vpop.permute.xlu0 %626
  %628 = vrot.lane.b32.xlu0 %v521, 4
  %v629 = vpop.permute.xlu0 %628
  %630 = vrot.lane.b32.xlu0 %v528, 4
  %v631 = vpop.permute.xlu0 %630
  %632 = vrot.lane.b32.xlu0 %v535, 4
  %v633 = vpop.permute.xlu0 %632
  %634 = vrot.lane.b32.xlu0 %v542, 4
  %v635 = vpop.permute.xlu0 %634
  %636 = vrot.lane.b32.xlu0 %v549, 4
  %v637 = vpop.permute.xlu0 %636
  %638 = vrot.lane.b32.xlu0 %v556, 4
  %v639 = vpop.permute.xlu0 %638
  %640 = vrot.lane.b32.xlu0 %v563, 4
  %v641 = vpop.permute.xlu0 %640
  %642 = vrot.lane.b32.xlu0 %v570, 4
  %v643 = vpop.permute.xlu0 %642
  %644 = vrot.lane.b32.xlu0 %v577, 4
  %v645 = vpop.permute.xlu0 %644
  %646 = vrot.lane.b32.xlu0 %v584, 4
  %v647 = vpop.permute.xlu0 %646
  %648 = vrot.lane.b32.xlu0 %v591, 4
  %v649 = vpop.permute.xlu0 %648
  %v679 = vrot.slane %v356, 1
  %v680 = vrot.slane %v357, 1
  %v681 = vrot.slane %v358, 1
  %v682 = vrot.slane %v359, 1
  %v683 = vrot.slane %v360, 1
  %v684 = vrot.slane %v361, 1
  %v685 = vrot.slane %v362, 1
  %v686 = vrot.slane %v363, 1
  %v687 = vrot.slane %v365, 1
  %v688 = vrot.slane %v366, 1
  %v689 = vrot.slane %v367, 1
  %v690 = vrot.slane %v368, 1
  %v691 = vrot.slane %v369, 1
  %v692 = vrot.slane %v370, 1
  %v693 = vrot.slane %v371, 1
  %v694 = vrot.slane %v373, 1
  %v695 = vrot.slane %v374, 1
  %v696 = vrot.slane %v375, 1
  %v697 = vrot.slane %v376, 1
  %v698 = vrot.slane %v377, 1
  %v699 = vrot.slane %v378, 1
  %v700 = vrot.slane %v379, 1
  %v701 = vrot.slane %v381, 1
  %v702 = vrot.slane %v382, 1
  %v703 = vrot.slane %v383, 1
  %v704 = vrot.slane %v384, 1
  %v705 = vrot.slane %v385, 1
  %v706 = vrot.slane %v386, 1
  %v707 = vrot.slane %v387, 1
  %708 = vrot.lane.b32.xlu0 %v679, 8
  %v709 = vpop.permute.xlu0 %708
  %710 = vrot.lane.b32.xlu0 %v680, 8
  %v711 = vpop.permute.xlu0 %710
  %712 = vrot.lane.b32.xlu0 %v681, 8
  %v713 = vpop.permute.xlu0 %712
  %714 = vrot.lane.b32.xlu0 %v682, 8
  %v715 = vpop.permute.xlu0 %714
  %716 = vrot.lane.b32.xlu0 %v683, 8
  %v717 = vpop.permute.xlu0 %716
  %718 = vrot.lane.b32.xlu0 %v684, 8
  %v719 = vpop.permute.xlu0 %718
  %720 = vrot.lane.b32.xlu0 %v685, 8
  %v721 = vpop.permute.xlu0 %720
  %722 = vrot.lane.b32.xlu0 %v686, 8
  %v723 = vpop.permute.xlu0 %722
  %724 = vrot.lane.b32.xlu0 %v687, 8
  %v725 = vpop.permute.xlu0 %724
  %726 = vrot.lane.b32.xlu0 %v688, 8
  %v727 = vpop.permute.xlu0 %726
  %728 = vrot.lane.b32.xlu0 %v689, 8
  %v729 = vpop.permute.xlu0 %728
  %730 = vrot.lane.b32.xlu0 %v690, 8
  %v731 = vpop.permute.xlu0 %730
  %732 = vrot.lane.b32.xlu0 %v691, 8
  %v733 = vpop.permute.xlu0 %732
  %734 = vrot.lane.b32.xlu0 %v692, 8
  %v735 = vpop.permute.xlu0 %734
  %736 = vrot.lane.b32.xlu0 %v693, 8
  %v737 = vpop.permute.xlu0 %736
  %738 = vrot.lane.b32.xlu0 %v694, 8
  %v739 = vpop.permute.xlu0 %738
  %740 = vrot.lane.b32.xlu0 %v695, 8
  %v741 = vpop.permute.xlu0 %740
  %742 = vrot.lane.b32.xlu0 %v696, 8
  %v743 = vpop.permute.xlu0 %742
  %744 = vrot.lane.b32.xlu0 %v697, 8
  %v745 = vpop.permute.xlu0 %744
  %746 = vrot.lane.b32.xlu0 %v698, 8
  %v747 = vpop.permute.xlu0 %746
  %748 = vrot.lane.b32.xlu0 %v699, 8
  %v749 = vpop.permute.xlu0 %748
  %750 = vrot.lane.b32.xlu0 %v700, 8
  %v751 = vpop.permute.xlu0 %750
  %752 = vrot.lane.b32.xlu0 %v701, 8
  %v753 = vpop.permute.xlu0 %752
  %754 = vrot.lane.b32.xlu0 %v702, 8
  %v755 = vpop.permute.xlu0 %754
  %756 = vrot.lane.b32.xlu0 %v703, 8
  %v757 = vpop.permute.xlu0 %756
  %758 = vrot.lane.b32.xlu0 %v704, 8
  %v759 = vpop.permute.xlu0 %758
  %760 = vrot.lane.b32.xlu0 %v705, 8
  %v761 = vpop.permute.xlu0 %760
  %762 = vrot.lane.b32.xlu0 %v706, 8
  %v763 = vpop.permute.xlu0 %762
  %764 = vrot.lane.b32.xlu0 %v707, 8
  %v765 = vpop.permute.xlu0 %764
  %770 = vrot.lane.b32.xlu0 %v357, 12
  %v771 = vpop.permute.xlu0 %770
  %772 = vrot.lane.b32.xlu0 %v358, 12
  %v773 = vpop.permute.xlu0 %772
  %774 = vrot.lane.b32.xlu0 %v359, 12
  %v775 = vpop.permute.xlu0 %774
  %776 = vrot.lane.b32.xlu0 %v360, 12
  %v777 = vpop.permute.xlu0 %776
  %778 = vrot.lane.b32.xlu0 %v361, 12
  %v779 = vpop.permute.xlu0 %778
  %780 = vrot.lane.b32.xlu0 %v362, 12
  %v781 = vpop.permute.xlu0 %780
  %782 = vrot.lane.b32.xlu0 %v363, 12
  %v783 = vpop.permute.xlu0 %782
  %784 = vrot.lane.b32.xlu0 %v364, 12
  %v785 = vpop.permute.xlu0 %784
  %786 = vrot.lane.b32.xlu0 %v365, 12
  %v787 = vpop.permute.xlu0 %786
  %788 = vrot.lane.b32.xlu0 %v366, 12
  %v789 = vpop.permute.xlu0 %788
  %790 = vrot.lane.b32.xlu0 %v367, 12
  %v791 = vpop.permute.xlu0 %790
  %792 = vrot.lane.b32.xlu0 %v368, 12
  %v793 = vpop.permute.xlu0 %792
  %794 = vrot.lane.b32.xlu0 %v369, 12
  %v795 = vpop.permute.xlu0 %794
  %796 = vrot.lane.b32.xlu0 %v370, 12
  %v797 = vpop.permute.xlu0 %796
  %798 = vrot.lane.b32.xlu0 %v371, 12
  %v799 = vpop.permute.xlu0 %798
  %800 = vrot.lane.b32.xlu0 %v372, 12
  %v801 = vpop.permute.xlu0 %800
  %802 = vrot.lane.b32.xlu0 %v373, 12
  %v803 = vpop.permute.xlu0 %802
  %804 = vrot.lane.b32.xlu0 %v374, 12
  %v805 = vpop.permute.xlu0 %804
  %806 = vrot.lane.b32.xlu0 %v375, 12
  %v807 = vpop.permute.xlu0 %806
  %808 = vrot.lane.b32.xlu0 %v376, 12
  %v809 = vpop.permute.xlu0 %808
  %810 = vrot.lane.b32.xlu0 %v377, 12
  %v811 = vpop.permute.xlu0 %810
  %812 = vrot.lane.b32.xlu0 %v378, 12
  %v813 = vpop.permute.xlu0 %812
  %814 = vrot.lane.b32.xlu0 %v379, 12
  %v815 = vpop.permute.xlu0 %814
  %816 = vrot.lane.b32.xlu0 %v380, 12
  %v817 = vpop.permute.xlu0 %816
  %818 = vrot.lane.b32.xlu0 %v381, 12
  %v819 = vpop.permute.xlu0 %818
  %820 = vrot.lane.b32.xlu0 %v382, 12
  %v821 = vpop.permute.xlu0 %820
  %822 = vrot.lane.b32.xlu0 %v383, 12
  %v823 = vpop.permute.xlu0 %822
  %824 = vrot.lane.b32.xlu0 %v384, 12
  %v825 = vpop.permute.xlu0 %824
  %826 = vrot.lane.b32.xlu0 %v385, 12
  %v827 = vpop.permute.xlu0 %826
  %828 = vrot.lane.b32.xlu0 %v386, 12
  %v829 = vpop.permute.xlu0 %828
  %830 = vrot.lane.b32.xlu0 %v387, 12
  %v831 = vpop.permute.xlu0 %830
  %832 = vrot.lane.b32.xlu0 %v388, 12
  %v833 = vpop.permute.xlu0 %832
  %v835 = vshrl.u32 %v364, 16
  %v837 = vshll.u32 %v364, 16
  %v839 = vrot.slane %v837, 1
  %v840 = vor.u32 %v835, %v839
  %v842 = vshrl.u32 %v372, 16
  %v844 = vshll.u32 %v372, 16
  %v846 = vrot.slane %v844, 1
  %v847 = vor.u32 %v842, %v846
  %v849 = vshrl.u32 %v380, 16
  %v851 = vshll.u32 %v380, 16
  %v853 = vrot.slane %v851, 1
  %v854 = vor.u32 %v849, %v853
  %v856 = vshrl.u32 %v388, 16
  %v858 = vshll.u32 %v388, 16
  %v860 = vrot.slane %v858, 1
  %v861 = vor.u32 %v856, %v860
  %862 = vrot.lane.b32.xlu0 %v402, 16
  %v863 = vpop.permute.xlu0 %862
  %864 = vrot.lane.b32.xlu0 %v409, 16
  %v865 = vpop.permute.xlu0 %864
  %866 = vrot.lane.b32.xlu0 %v416, 16
  %v867 = vpop.permute.xlu0 %866
  %868 = vrot.lane.b32.xlu0 %v423, 16
  %v869 = vpop.permute.xlu0 %868
  %870 = vrot.lane.b32.xlu0 %v430, 16
  %v871 = vpop.permute.xlu0 %870
  %872 = vrot.lane.b32.xlu0 %v437, 16
  %v873 = vpop.permute.xlu0 %872
  %874 = vrot.lane.b32.xlu0 %v444, 16
  %v875 = vpop.permute.xlu0 %874
  %876 = vrot.lane.b32.xlu0 %v840, 16
  %v877 = vpop.permute.xlu0 %876
  %878 = vrot.lane.b32.xlu0 %v451, 16
  %v879 = vpop.permute.xlu0 %878
  %880 = vrot.lane.b32.xlu0 %v458, 16
  %v881 = vpop.permute.xlu0 %880
  %882 = vrot.lane.b32.xlu0 %v465, 16
  %v883 = vpop.permute.xlu0 %882
  %884 = vrot.lane.b32.xlu0 %v472, 16
  %v885 = vpop.permute.xlu0 %884
  %886 = vrot.lane.b32.xlu0 %v479, 16
  %v887 = vpop.permute.xlu0 %886
  %888 = vrot.lane.b32.xlu0 %v486, 16
  %v889 = vpop.permute.xlu0 %888
  %890 = vrot.lane.b32.xlu0 %v493, 16
  %v891 = vpop.permute.xlu0 %890
  %892 = vrot.lane.b32.xlu0 %v847, 16
  %v893 = vpop.permute.xlu0 %892
  %894 = vrot.lane.b32.xlu0 %v500, 16
  %v895 = vpop.permute.xlu0 %894
  %896 = vrot.lane.b32.xlu0 %v507, 16
  %v897 = vpop.permute.xlu0 %896
  %898 = vrot.lane.b32.xlu0 %v514, 16
  %v899 = vpop.permute.xlu0 %898
  %900 = vrot.lane.b32.xlu0 %v521, 16
  %v901 = vpop.permute.xlu0 %900
  %902 = vrot.lane.b32.xlu0 %v528, 16
  %v903 = vpop.permute.xlu0 %902
  %904 = vrot.lane.b32.xlu0 %v535, 16
  %v905 = vpop.permute.xlu0 %904
  %906 = vrot.lane.b32.xlu0 %v542, 16
  %v907 = vpop.permute.xlu0 %906
  %908 = vrot.lane.b32.xlu0 %v854, 16
  %v909 = vpop.permute.xlu0 %908
  %910 = vrot.lane.b32.xlu0 %v549, 16
  %v911 = vpop.permute.xlu0 %910
  %912 = vrot.lane.b32.xlu0 %v556, 16
  %v913 = vpop.permute.xlu0 %912
  %914 = vrot.lane.b32.xlu0 %v563, 16
  %v915 = vpop.permute.xlu0 %914
  %916 = vrot.lane.b32.xlu0 %v570, 16
  %v917 = vpop.permute.xlu0 %916
  %918 = vrot.lane.b32.xlu0 %v577, 16
  %v919 = vpop.permute.xlu0 %918
  %920 = vrot.lane.b32.xlu0 %v584, 16
  %v921 = vpop.permute.xlu0 %920
  %922 = vrot.lane.b32.xlu0 %v591, 16
  %v923 = vpop.permute.xlu0 %922
  %924 = vrot.lane.b32.xlu0 %v861, 16
  %v925 = vpop.permute.xlu0 %924
  %v926 = vrot.slane %v364, 1
  %v927 = vrot.slane %v372, 1
  %v928 = vrot.slane %v380, 1
  %v929 = vrot.slane %v388, 1
  %930 = vrot.lane.b32.xlu0 %v680, 20
  %v931 = vpop.permute.xlu0 %930
  %932 = vrot.lane.b32.xlu0 %v681, 20
  %v933 = vpop.permute.xlu0 %932
  %934 = vrot.lane.b32.xlu0 %v682, 20
  %v935 = vpop.permute.xlu0 %934
  %936 = vrot.lane.b32.xlu0 %v683, 20
  %v937 = vpop.permute.xlu0 %936
  %938 = vrot.lane.b32.xlu0 %v684, 20
  %v939 = vpop.permute.xlu0 %938
  %940 = vrot.lane.b32.xlu0 %v685, 20
  %v941 = vpop.permute.xlu0 %940
  %942 = vrot.lane.b32.xlu0 %v686, 20
  %v943 = vpop.permute.xlu0 %942
  %944 = vrot.lane.b32.xlu0 %v926, 20
  %v945 = vpop.permute.xlu0 %944
  %946 = vrot.lane.b32.xlu0 %v687, 20
  %v947 = vpop.permute.xlu0 %946
  %948 = vrot.lane.b32.xlu0 %v688, 20
  %v949 = vpop.permute.xlu0 %948
  %950 = vrot.lane.b32.xlu0 %v689, 20
  %v951 = vpop.permute.xlu0 %950
  %952 = vrot.lane.b32.xlu0 %v690, 20
  %v953 = vpop.permute.xlu0 %952
  %954 = vrot.lane.b32.xlu0 %v691, 20
  %v955 = vpop.permute.xlu0 %954
  %956 = vrot.lane.b32.xlu0 %v692, 20
  %v957 = vpop.permute.xlu0 %956
  %958 = vrot.lane.b32.xlu0 %v693, 20
  %v959 = vpop.permute.xlu0 %958
  %960 = vrot.lane.b32.xlu0 %v927, 20
  %v961 = vpop.permute.xlu0 %960
  %962 = vrot.lane.b32.xlu0 %v694, 20
  %v963 = vpop.permute.xlu0 %962
  %964 = vrot.lane.b32.xlu0 %v695, 20
  %v965 = vpop.permute.xlu0 %964
  %966 = vrot.lane.b32.xlu0 %v696, 20
  %v967 = vpop.permute.xlu0 %966
  %968 = vrot.lane.b32.xlu0 %v697, 20
  %v969 = vpop.permute.xlu0 %968
  %970 = vrot.lane.b32.xlu0 %v698, 20
  %v971 = vpop.permute.xlu0 %970
  %972 = vrot.lane.b32.xlu0 %v699, 20
  %v973 = vpop.permute.xlu0 %972
  %974 = vrot.lane.b32.xlu0 %v700, 20
  %v975 = vpop.permute.xlu0 %974
  %976 = vrot.lane.b32.xlu0 %v928, 20
  %v977 = vpop.permute.xlu0 %976
  %978 = vrot.lane.b32.xlu0 %v701, 20
  %v979 = vpop.permute.xlu0 %978
  %980 = vrot.lane.b32.xlu0 %v702, 20
  %v981 = vpop.permute.xlu0 %980
  %982 = vrot.lane.b32.xlu0 %v703, 20
  %v983 = vpop.permute.xlu0 %982
  %984 = vrot.lane.b32.xlu0 %v704, 20
  %v985 = vpop.permute.xlu0 %984
  %986 = vrot.lane.b32.xlu0 %v705, 20
  %v987 = vpop.permute.xlu0 %986
  %988 = vrot.lane.b32.xlu0 %v706, 20
  %v989 = vpop.permute.xlu0 %988
  %990 = vrot.lane.b32.xlu0 %v707, 20
  %v991 = vpop.permute.xlu0 %990
  %992 = vrot.lane.b32.xlu0 %v929, 20
  %v993 = vpop.permute.xlu0 %992
  %994 = vrot.lane.b32.xlu0 %v358, 24
  %v995 = vpop.permute.xlu0 %994
  %996 = vrot.lane.b32.xlu0 %v359, 24
  %v997 = vpop.permute.xlu0 %996
  %998 = vrot.lane.b32.xlu0 %v360, 24
  %v999 = vpop.permute.xlu0 %998
  %1000 = vrot.lane.b32.xlu0 %v361, 24
  %v1001 = vpop.permute.xlu0 %1000
  %1002 = vrot.lane.b32.xlu0 %v362, 24
  %v1003 = vpop.permute.xlu0 %1002
  %1004 = vrot.lane.b32.xlu0 %v363, 24
  %v1005 = vpop.permute.xlu0 %1004
  %1006 = vrot.lane.b32.xlu0 %v364, 24
  %v1007 = vpop.permute.xlu0 %1006
  %1008 = vrot.lane.b32.xlu0 %v356, 24
  %v1009 = vpop.permute.xlu0 %1008
  %1010 = vrot.lane.b32.xlu0 %v366, 24
  %v1011 = vpop.permute.xlu0 %1010
  %1012 = vrot.lane.b32.xlu0 %v367, 24
  %v1013 = vpop.permute.xlu0 %1012
  %1014 = vrot.lane.b32.xlu0 %v368, 24
  %v1015 = vpop.permute.xlu0 %1014
  %1016 = vrot.lane.b32.xlu0 %v369, 24
  %v1017 = vpop.permute.xlu0 %1016
  %1018 = vrot.lane.b32.xlu0 %v370, 24
  %v1019 = vpop.permute.xlu0 %1018
  %1020 = vrot.lane.b32.xlu0 %v371, 24
  %v1021 = vpop.permute.xlu0 %1020
  %1022 = vrot.lane.b32.xlu0 %v372, 24
  %v1023 = vpop.permute.xlu0 %1022
  %1024 = vrot.lane.b32.xlu0 %v374, 24
  %v1025 = vpop.permute.xlu0 %1024
  %1026 = vrot.lane.b32.xlu0 %v375, 24
  %v1027 = vpop.permute.xlu0 %1026
  %1028 = vrot.lane.b32.xlu0 %v376, 24
  %v1029 = vpop.permute.xlu0 %1028
  %1030 = vrot.lane.b32.xlu0 %v377, 24
  %v1031 = vpop.permute.xlu0 %1030
  %1032 = vrot.lane.b32.xlu0 %v378, 24
  %v1033 = vpop.permute.xlu0 %1032
  %1034 = vrot.lane.b32.xlu0 %v379, 24
  %v1035 = vpop.permute.xlu0 %1034
  %1036 = vrot.lane.b32.xlu0 %v380, 24
  %v1037 = vpop.permute.xlu0 %1036
  %1038 = vrot.lane.b32.xlu0 %v382, 24
  %v1039 = vpop.permute.xlu0 %1038
  %1040 = vrot.lane.b32.xlu0 %v383, 24
  %v1041 = vpop.permute.xlu0 %1040
  %1042 = vrot.lane.b32.xlu0 %v384, 24
  %v1043 = vpop.permute.xlu0 %1042
  %1044 = vrot.lane.b32.xlu0 %v385, 24
  %v1045 = vpop.permute.xlu0 %1044
  %1046 = vrot.lane.b32.xlu0 %v386, 24
  %v1047 = vpop.permute.xlu0 %1046
  %1048 = vrot.lane.b32.xlu0 %v387, 24
  %v1049 = vpop.permute.xlu0 %1048
  %1050 = vrot.lane.b32.xlu0 %v388, 24
  %v1051 = vpop.permute.xlu0 %1050
  %1052 = vrot.lane.b32.xlu0 %v409, 28
  %v1053 = vpop.permute.xlu0 %1052
  %1054 = vrot.lane.b32.xlu0 %v416, 28
  %v1055 = vpop.permute.xlu0 %1054
  %1056 = vrot.lane.b32.xlu0 %v423, 28
  %v1057 = vpop.permute.xlu0 %1056
  %1058 = vrot.lane.b32.xlu0 %v430, 28
  %v1059 = vpop.permute.xlu0 %1058
  %1060 = vrot.lane.b32.xlu0 %v437, 28
  %v1061 = vpop.permute.xlu0 %1060
  %1062 = vrot.lane.b32.xlu0 %v444, 28
  %v1063 = vpop.permute.xlu0 %1062
  %1064 = vrot.lane.b32.xlu0 %v840, 28
  %v1065 = vpop.permute.xlu0 %1064
  %1066 = vrot.lane.b32.xlu0 %v395, 28
  %v1067 = vpop.permute.xlu0 %1066
  %1068 = vrot.lane.b32.xlu0 %v458, 28
  %v1069 = vpop.permute.xlu0 %1068
  %1070 = vrot.lane.b32.xlu0 %v465, 28
  %v1071 = vpop.permute.xlu0 %1070
  %1072 = vrot.lane.b32.xlu0 %v472, 28
  %v1073 = vpop.permute.xlu0 %1072
  %1074 = vrot.lane.b32.xlu0 %v479, 28
  %v1075 = vpop.permute.xlu0 %1074
  %1076 = vrot.lane.b32.xlu0 %v486, 28
  %v1077 = vpop.permute.xlu0 %1076
  %1078 = vrot.lane.b32.xlu0 %v493, 28
  %v1079 = vpop.permute.xlu0 %1078
  %1080 = vrot.lane.b32.xlu0 %v847, 28
  %v1081 = vpop.permute.xlu0 %1080
  %1082 = vrot.lane.b32.xlu0 %v507, 28
  %v1083 = vpop.permute.xlu0 %1082
  %1084 = vrot.lane.b32.xlu0 %v514, 28
  %v1085 = vpop.permute.xlu0 %1084
  %1086 = vrot.lane.b32.xlu0 %v521, 28
  %v1087 = vpop.permute.xlu0 %1086
  %1088 = vrot.lane.b32.xlu0 %v528, 28
  %v1089 = vpop.permute.xlu0 %1088
  %1090 = vrot.lane.b32.xlu0 %v535, 28
  %v1091 = vpop.permute.xlu0 %1090
  %1092 = vrot.lane.b32.xlu0 %v542, 28
  %v1093 = vpop.permute.xlu0 %1092
  %1094 = vrot.lane.b32.xlu0 %v854, 28
  %v1095 = vpop.permute.xlu0 %1094
  %1096 = vrot.lane.b32.xlu0 %v556, 28
  %v1097 = vpop.permute.xlu0 %1096
  %1098 = vrot.lane.b32.xlu0 %v563, 28
  %v1099 = vpop.permute.xlu0 %1098
  %1100 = vrot.lane.b32.xlu0 %v570, 28
  %v1101 = vpop.permute.xlu0 %1100
  %1102 = vrot.lane.b32.xlu0 %v577, 28
  %v1103 = vpop.permute.xlu0 %1102
  %1104 = vrot.lane.b32.xlu0 %v584, 28
  %v1105 = vpop.permute.xlu0 %1104
  %1106 = vrot.lane.b32.xlu0 %v591, 28
  %v1107 = vpop.permute.xlu0 %1106
  %1108 = vrot.lane.b32.xlu0 %v861, 28
  %v1109 = vpop.permute.xlu0 %1108
  %1110 = vrot.lane.b32.xlu0 %v681, 32
  %v1111 = vpop.permute.xlu0 %1110
  %1112 = vrot.lane.b32.xlu0 %v682, 32
  %v1113 = vpop.permute.xlu0 %1112
  %1114 = vrot.lane.b32.xlu0 %v683, 32
  %v1115 = vpop.permute.xlu0 %1114
  %1116 = vrot.lane.b32.xlu0 %v684, 32
  %v1117 = vpop.permute.xlu0 %1116
  %1118 = vrot.lane.b32.xlu0 %v685, 32
  %v1119 = vpop.permute.xlu0 %1118
  %1120 = vrot.lane.b32.xlu0 %v686, 32
  %v1121 = vpop.permute.xlu0 %1120
  %1122 = vrot.lane.b32.xlu0 %v926, 32
  %v1123 = vpop.permute.xlu0 %1122
  %1124 = vrot.lane.b32.xlu0 %v679, 32
  %v1125 = vpop.permute.xlu0 %1124
  %1126 = vrot.lane.b32.xlu0 %v688, 32
  %v1127 = vpop.permute.xlu0 %1126
  %1128 = vrot.lane.b32.xlu0 %v689, 32
  %v1129 = vpop.permute.xlu0 %1128
  %1130 = vrot.lane.b32.xlu0 %v690, 32
  %v1131 = vpop.permute.xlu0 %1130
  %1132 = vrot.lane.b32.xlu0 %v691, 32
  %v1133 = vpop.permute.xlu0 %1132
  %1134 = vrot.lane.b32.xlu0 %v692, 32
  %v1135 = vpop.permute.xlu0 %1134
  %1136 = vrot.lane.b32.xlu0 %v693, 32
  %v1137 = vpop.permute.xlu0 %1136
  %1138 = vrot.lane.b32.xlu0 %v927, 32
  %v1139 = vpop.permute.xlu0 %1138
  %1140 = vrot.lane.b32.xlu0 %v695, 32
  %v1141 = vpop.permute.xlu0 %1140
  %1142 = vrot.lane.b32.xlu0 %v696, 32
  %v1143 = vpop.permute.xlu0 %1142
  %1144 = vrot.lane.b32.xlu0 %v697, 32
  %v1145 = vpop.permute.xlu0 %1144
  %1146 = vrot.lane.b32.xlu0 %v698, 32
  %v1147 = vpop.permute.xlu0 %1146
  %1148 = vrot.lane.b32.xlu0 %v699, 32
  %v1149 = vpop.permute.xlu0 %1148
  %1150 = vrot.lane.b32.xlu0 %v700, 32
  %v1151 = vpop.permute.xlu0 %1150
  %1152 = vrot.lane.b32.xlu0 %v928, 32
  %v1153 = vpop.permute.xlu0 %1152
  %1154 = vrot.lane.b32.xlu0 %v702, 32
  %v1155 = vpop.permute.xlu0 %1154
  %1156 = vrot.lane.b32.xlu0 %v703, 32
  %v1157 = vpop.permute.xlu0 %1156
  %1158 = vrot.lane.b32.xlu0 %v704, 32
  %v1159 = vpop.permute.xlu0 %1158
  %1160 = vrot.lane.b32.xlu0 %v705, 32
  %v1161 = vpop.permute.xlu0 %1160
  %1162 = vrot.lane.b32.xlu0 %v706, 32
  %v1163 = vpop.permute.xlu0 %1162
  %1164 = vrot.lane.b32.xlu0 %v707, 32
  %v1165 = vpop.permute.xlu0 %1164
  %1166 = vrot.lane.b32.xlu0 %v929, 32
  %v1167 = vpop.permute.xlu0 %1166
  %vm1168 = vcmask 31744
  %v1170 = vsel %vm1168, %v356, %v593
  %v1172 = vsel %vm1168, %v357, %v595
  %v1174 = vsel %vm1168, %v358, %v597
  %v1176 = vsel %vm1168, %v359, %v599
  %v1178 = vsel %vm1168, %v360, %v601
  %v1180 = vsel %vm1168, %v361, %v603
  %v1182 = vsel %vm1168, %v362, %v605
  %v1184 = vsel %vm1168, %v363, %v607
  %v1186 = vsel %vm1168, %v365, %v609
  %v1188 = vsel %vm1168, %v366, %v611
  %v1190 = vsel %vm1168, %v367, %v613
  %v1192 = vsel %vm1168, %v368, %v615
  %v1194 = vsel %vm1168, %v369, %v617
  %v1196 = vsel %vm1168, %v370, %v619
  %v1198 = vsel %vm1168, %v371, %v621
  %v1200 = vsel %vm1168, %v373, %v623
  %v1202 = vsel %vm1168, %v374, %v625
  %v1204 = vsel %vm1168, %v375, %v627
  %v1206 = vsel %vm1168, %v376, %v629
  %v1208 = vsel %vm1168, %v377, %v631
  %v1210 = vsel %vm1168, %v378, %v633
  %v1212 = vsel %vm1168, %v379, %v635
  %v1214 = vsel %vm1168, %v381, %v637
  %v1216 = vsel %vm1168, %v382, %v639
  %v1218 = vsel %vm1168, %v383, %v641
  %v1220 = vsel %vm1168, %v384, %v643
  %v1222 = vsel %vm1168, %v385, %v645
  %v1224 = vsel %vm1168, %v386, %v647
  %v1226 = vsel %vm1168, %v387, %v649
  %vm1227 = vcmask 64512
  %v1229 = vsel %vm1227, %v1170, %v709
  %v1231 = vsel %vm1227, %v1172, %v711
  %v1233 = vsel %vm1227, %v1174, %v713
  %v1235 = vsel %vm1227, %v1176, %v715
  %v1237 = vsel %vm1227, %v1178, %v717
  %v1239 = vsel %vm1227, %v1180, %v719
  %v1241 = vsel %vm1227, %v1182, %v721
  %v1243 = vsel %vm1227, %v1184, %v723
  %v1245 = vsel %vm1227, %v1186, %v725
  %v1247 = vsel %vm1227, %v1188, %v727
  %v1249 = vsel %vm1227, %v1190, %v729
  %v1251 = vsel %vm1227, %v1192, %v731
  %v1253 = vsel %vm1227, %v1194, %v733
  %v1255 = vsel %vm1227, %v1196, %v735
  %v1257 = vsel %vm1227, %v1198, %v737
  %v1259 = vsel %vm1227, %v1200, %v739
  %v1261 = vsel %vm1227, %v1202, %v741
  %v1263 = vsel %vm1227, %v1204, %v743
  %v1265 = vsel %vm1227, %v1206, %v745
  %v1267 = vsel %vm1227, %v1208, %v747
  %v1269 = vsel %vm1227, %v1210, %v749
  %v1271 = vsel %vm1227, %v1212, %v751
  %v1273 = vsel %vm1227, %v1214, %v753
  %v1275 = vsel %vm1227, %v1216, %v755
  %v1277 = vsel %vm1227, %v1218, %v757
  %v1279 = vsel %vm1227, %v1220, %v759
  %v1281 = vsel %vm1227, %v1222, %v761
  %v1283 = vsel %vm1227, %v1224, %v763
  %v1285 = vsel %vm1227, %v1226, %v765
  %vm1286 = vcmask 97280
  %v1288 = vsel %vm1286, %v1229, %v771
  %v1290 = vsel %vm1286, %v1231, %v773
  %v1292 = vsel %vm1286, %v1233, %v775
  %v1294 = vsel %vm1286, %v1235, %v777
  %v1296 = vsel %vm1286, %v1237, %v779
  %v1298 = vsel %vm1286, %v1239, %v781
  %v1300 = vsel %vm1286, %v1241, %v783
  %v1302 = vsel %vm1286, %v1243, %v785
  %v1304 = vsel %vm1286, %v1229, %v787
  %v1306 = vsel %vm1286, %v1245, %v789
  %v1308 = vsel %vm1286, %v1247, %v791
  %v1310 = vsel %vm1286, %v1249, %v793
  %v1312 = vsel %vm1286, %v1251, %v795
  %v1314 = vsel %vm1286, %v1253, %v797
  %v1316 = vsel %vm1286, %v1255, %v799
  %v1318 = vsel %vm1286, %v1257, %v801
  %v1320 = vsel %vm1286, %v1229, %v803
  %v1322 = vsel %vm1286, %v1259, %v805
  %v1324 = vsel %vm1286, %v1261, %v807
  %v1326 = vsel %vm1286, %v1263, %v809
  %v1328 = vsel %vm1286, %v1265, %v811
  %v1330 = vsel %vm1286, %v1267, %v813
  %v1332 = vsel %vm1286, %v1269, %v815
  %v1334 = vsel %vm1286, %v1271, %v817
  %v1336 = vsel %vm1286, %v1229, %v819
  %v1338 = vsel %vm1286, %v1273, %v821
  %v1340 = vsel %vm1286, %v1275, %v823
  %v1342 = vsel %vm1286, %v1277, %v825
  %v1344 = vsel %vm1286, %v1279, %v827
  %v1346 = vsel %vm1286, %v1281, %v829
  %v1348 = vsel %vm1286, %v1283, %v831
  %v1350 = vsel %vm1286, %v1285, %v833
  %vm1351 = vcmask 130048
  %v1353 = vsel %vm1351, %v1288, %v863
  %v1355 = vsel %vm1351, %v1290, %v865
  %v1357 = vsel %vm1351, %v1292, %v867
  %v1359 = vsel %vm1351, %v1294, %v869
  %v1361 = vsel %vm1351, %v1296, %v871
  %v1363 = vsel %vm1351, %v1298, %v873
  %v1365 = vsel %vm1351, %v1300, %v875
  %v1367 = vsel %vm1351, %v1302, %v877
  %v1369 = vsel %vm1351, %v1304, %v879
  %v1371 = vsel %vm1351, %v1306, %v881
  %v1373 = vsel %vm1351, %v1308, %v883
  %v1375 = vsel %vm1351, %v1310, %v885
  %v1377 = vsel %vm1351, %v1312, %v887
  %v1379 = vsel %vm1351, %v1314, %v889
  %v1381 = vsel %vm1351, %v1316, %v891
  %v1383 = vsel %vm1351, %v1318, %v893
  %v1385 = vsel %vm1351, %v1320, %v895
  %v1387 = vsel %vm1351, %v1322, %v897
  %v1389 = vsel %vm1351, %v1324, %v899
  %v1391 = vsel %vm1351, %v1326, %v901
  %v1393 = vsel %vm1351, %v1328, %v903
  %v1395 = vsel %vm1351, %v1330, %v905
  %v1397 = vsel %vm1351, %v1332, %v907
  %v1399 = vsel %vm1351, %v1334, %v909
  %v1401 = vsel %vm1351, %v1336, %v911
  %v1403 = vsel %vm1351, %v1338, %v913
  %v1405 = vsel %vm1351, %v1340, %v915
  %v1407 = vsel %vm1351, %v1342, %v917
  %v1409 = vsel %vm1351, %v1344, %v919
  %v1411 = vsel %vm1351, %v1346, %v921
  %v1413 = vsel %vm1351, %v1348, %v923
  %v1415 = vsel %vm1351, %v1350, %v925
  %vm1416 = vcmask 162816
  %v1418 = vsel %vm1416, %v1353, %v931
  %v1420 = vsel %vm1416, %v1355, %v933
  %v1422 = vsel %vm1416, %v1357, %v935
  %v1424 = vsel %vm1416, %v1359, %v937
  %v1426 = vsel %vm1416, %v1361, %v939
  %v1428 = vsel %vm1416, %v1363, %v941
  %v1430 = vsel %vm1416, %v1365, %v943
  %v1432 = vsel %vm1416, %v1367, %v945
  %v1434 = vsel %vm1416, %v1369, %v947
  %v1436 = vsel %vm1416, %v1371, %v949
  %v1438 = vsel %vm1416, %v1373, %v951
  %v1440 = vsel %vm1416, %v1375, %v953
  %v1442 = vsel %vm1416, %v1377, %v955
  %v1444 = vsel %vm1416, %v1379, %v957
  %v1446 = vsel %vm1416, %v1381, %v959
  %v1448 = vsel %vm1416, %v1383, %v961
  %v1450 = vsel %vm1416, %v1385, %v963
  %v1452 = vsel %vm1416, %v1387, %v965
  %v1454 = vsel %vm1416, %v1389, %v967
  %v1456 = vsel %vm1416, %v1391, %v969
  %v1458 = vsel %vm1416, %v1393, %v971
  %v1460 = vsel %vm1416, %v1395, %v973
  %v1462 = vsel %vm1416, %v1397, %v975
  %v1464 = vsel %vm1416, %v1399, %v977
  %v1466 = vsel %vm1416, %v1401, %v979
  %v1468 = vsel %vm1416, %v1403, %v981
  %v1470 = vsel %vm1416, %v1405, %v983
  %v1472 = vsel %vm1416, %v1407, %v985
  %v1474 = vsel %vm1416, %v1409, %v987
  %v1476 = vsel %vm1416, %v1411, %v989
  %v1478 = vsel %vm1416, %v1413, %v991
  %v1480 = vsel %vm1416, %v1415, %v993
  %vm1481 = vcmask 195584
  %v1483 = vsel %vm1481, %v1418, %v995
  %v1485 = vsel %vm1481, %v1420, %v997
  %v1487 = vsel %vm1481, %v1422, %v999
  %v1489 = vsel %vm1481, %v1424, %v1001
  %v1491 = vsel %vm1481, %v1426, %v1003
  %v1493 = vsel %vm1481, %v1428, %v1005
  %v1495 = vsel %vm1481, %v1430, %v1007
  %v1497 = vsel %vm1481, %v1432, %v1009
  %v1499 = vsel %vm1481, %v1434, %v1011
  %v1501 = vsel %vm1481, %v1436, %v1013
  %v1503 = vsel %vm1481, %v1438, %v1015
  %v1505 = vsel %vm1481, %v1440, %v1017
  %v1507 = vsel %vm1481, %v1442, %v1019
  %v1509 = vsel %vm1481, %v1444, %v1021
  %v1511 = vsel %vm1481, %v1446, %v1023
  %v1512 = vsel %vm1481, %v1448, %v1009
  %v1514 = vsel %vm1481, %v1450, %v1025
  %v1516 = vsel %vm1481, %v1452, %v1027
  %v1518 = vsel %vm1481, %v1454, %v1029
  %v1520 = vsel %vm1481, %v1456, %v1031
  %v1522 = vsel %vm1481, %v1458, %v1033
  %v1524 = vsel %vm1481, %v1460, %v1035
  %v1526 = vsel %vm1481, %v1462, %v1037
  %v1527 = vsel %vm1481, %v1464, %v1009
  %v1529 = vsel %vm1481, %v1466, %v1039
  %v1531 = vsel %vm1481, %v1468, %v1041
  %v1533 = vsel %vm1481, %v1470, %v1043
  %v1535 = vsel %vm1481, %v1472, %v1045
  %v1537 = vsel %vm1481, %v1474, %v1047
  %v1539 = vsel %vm1481, %v1476, %v1049
  %v1541 = vsel %vm1481, %v1478, %v1051
  %v1542 = vsel %vm1481, %v1480, %v1009
  %vm1543 = vcmask 228352
  %v1545 = vsel %vm1543, %v1483, %v1053
  %v1547 = vsel %vm1543, %v1485, %v1055
  %v1549 = vsel %vm1543, %v1487, %v1057
  %v1551 = vsel %vm1543, %v1489, %v1059
  %v1553 = vsel %vm1543, %v1491, %v1061
  %v1555 = vsel %vm1543, %v1493, %v1063
  %v1557 = vsel %vm1543, %v1495, %v1065
  %v1559 = vsel %vm1543, %v1497, %v1067
  %v1561 = vsel %vm1543, %v1499, %v1069
  %v1563 = vsel %vm1543, %v1501, %v1071
  %v1565 = vsel %vm1543, %v1503, %v1073
  %v1567 = vsel %vm1543, %v1505, %v1075
  %v1569 = vsel %vm1543, %v1507, %v1077
  %v1571 = vsel %vm1543, %v1509, %v1079
  %v1573 = vsel %vm1543, %v1511, %v1081
  %v1574 = vsel %vm1543, %v1512, %v1067
  %v1576 = vsel %vm1543, %v1514, %v1083
  %v1578 = vsel %vm1543, %v1516, %v1085
  %v1580 = vsel %vm1543, %v1518, %v1087
  %v1582 = vsel %vm1543, %v1520, %v1089
  %v1584 = vsel %vm1543, %v1522, %v1091
  %v1586 = vsel %vm1543, %v1524, %v1093
  %v1588 = vsel %vm1543, %v1526, %v1095
  %v1589 = vsel %vm1543, %v1527, %v1067
  %v1591 = vsel %vm1543, %v1529, %v1097
  %v1593 = vsel %vm1543, %v1531, %v1099
  %v1595 = vsel %vm1543, %v1533, %v1101
  %v1597 = vsel %vm1543, %v1535, %v1103
  %v1599 = vsel %vm1543, %v1537, %v1105
  %v1601 = vsel %vm1543, %v1539, %v1107
  %v1603 = vsel %vm1543, %v1541, %v1109
  %v1604 = vsel %vm1543, %v1542, %v1067
  %vm1605 = vcmask 261120
  %v1607 = vsel %vm1605, %v1545, %v1111
  %v1609 = vsel %vm1605, %v1547, %v1113
  %v1611 = vsel %vm1605, %v1549, %v1115
  %v1613 = vsel %vm1605, %v1551, %v1117
  %v1615 = vsel %vm1605, %v1553, %v1119
  %v1617 = vsel %vm1605, %v1555, %v1121
  %v1619 = vsel %vm1605, %v1557, %v1123
  %v1621 = vsel %vm1605, %v1559, %v1125
  %v1623 = vsel %vm1605, %v1561, %v1127
  %v1625 = vsel %vm1605, %v1563, %v1129
  %v1627 = vsel %vm1605, %v1565, %v1131
  %v1629 = vsel %vm1605, %v1567, %v1133
  %v1631 = vsel %vm1605, %v1569, %v1135
  %v1633 = vsel %vm1605, %v1571, %v1137
  %v1635 = vsel %vm1605, %v1573, %v1139
  %v1636 = vsel %vm1605, %v1574, %v1125
  %v1638 = vsel %vm1605, %v1576, %v1141
  %v1640 = vsel %vm1605, %v1578, %v1143
  %v1642 = vsel %vm1605, %v1580, %v1145
  %v1644 = vsel %vm1605, %v1582, %v1147
  %v1646 = vsel %vm1605, %v1584, %v1149
  %v1648 = vsel %vm1605, %v1586, %v1151
  %v1650 = vsel %vm1605, %v1588, %v1153
  %v1651 = vsel %vm1605, %v1589, %v1125
  %v1653 = vsel %vm1605, %v1591, %v1155
  %v1655 = vsel %vm1605, %v1593, %v1157
  %v1657 = vsel %vm1605, %v1595, %v1159
  %v1659 = vsel %vm1605, %v1597, %v1161
  %v1661 = vsel %vm1605, %v1599, %v1163
  %v1663 = vsel %vm1605, %v1601, %v1165
  %v1665 = vsel %vm1605, %v1603, %v1167
  %v1666 = vsel %vm1605, %v1604, %v1125
  %v1668 = vlaneseq
  %v1669 = vshrl.u32 %v1668, 7
  %v1670 = vsub.s32 0, %v1669
  %v1671 = vrot.slane %v52, %v1670
  %v1705 = vunpack.c.l.b16 %v1607
  %v1706 = vunpack.c.l.b16 %v1609
  %v1707 = vunpack.c.l.b16 %v1611
  %v1708 = vunpack.c.l.b16 %v1613
  %v1709 = vunpack.c.l.b16 %v1615
  %v1710 = vunpack.c.l.b16 %v1617
  %v1711 = vunpack.c.l.b16 %v1619
  %v1712 = vunpack.c.l.b16 %v1621
  %v1713 = vunpack.c.l.b16 %v1623
  %v1714 = vunpack.c.l.b16 %v1625
  %v1715 = vunpack.c.l.b16 %v1627
  %v1716 = vunpack.c.l.b16 %v1629
  %v1717 = vunpack.c.l.b16 %v1631
  %v1718 = vunpack.c.l.b16 %v1633
  %v1719 = vunpack.c.l.b16 %v1635
  %v1720 = vunpack.c.l.b16 %v1636
  %v1721 = vunpack.c.l.b16 %v1638
  %v1722 = vunpack.c.l.b16 %v1640
  %v1723 = vunpack.c.l.b16 %v1642
  %v1724 = vunpack.c.l.b16 %v1644
  %v1725 = vunpack.c.l.b16 %v1646
  %v1726 = vunpack.c.l.b16 %v1648
  %v1727 = vunpack.c.l.b16 %v1650
  %v1728 = vunpack.c.l.b16 %v1651
  %v1729 = vunpack.c.l.b16 %v1653
  %v1730 = vunpack.c.l.b16 %v1655
  %v1731 = vunpack.c.l.b16 %v1657
  %v1732 = vunpack.c.l.b16 %v1659
  %v1733 = vunpack.c.l.b16 %v1661
  %v1734 = vunpack.c.l.b16 %v1663
  %v1735 = vunpack.c.l.b16 %v1665
  %v1736 = vunpack.c.l.b16 %v1666
  %v1737 = vpack.c.b16 %v1706, %v1705
  %v1738 = vpack.c.b16 %v1708, %v1707
  %v1739 = vpack.c.b16 %v1710, %v1709
  %v1740 = vpack.c.b16 %v1712, %v1711
  %v1741 = vpack.c.b16 %v1714, %v1713
  %v1742 = vpack.c.b16 %v1716, %v1715
  %v1743 = vpack.c.b16 %v1718, %v1717
  %v1744 = vpack.c.b16 %v1720, %v1719
  %v1745 = vpack.c.b16 %v1722, %v1721
  %v1746 = vpack.c.b16 %v1724, %v1723
  %v1747 = vpack.c.b16 %v1726, %v1725
  %v1748 = vpack.c.b16 %v1728, %v1727
  %v1749 = vpack.c.b16 %v1730, %v1729
  %v1750 = vpack.c.b16 %v1732, %v1731
  %v1751 = vpack.c.b16 %v1734, %v1733
  %v1752 = vpack.c.b16 %v1736, %v1735
  %v1758 = vunpack.c.l.b16 %v47
  %v1759 = vunpack.c.l.b16 %v48
  %v1760 = vunpack.c.l.b16 %v49
  %v1761 = vunpack.c.l.b16 %v50
  %v1762 = vunpack.c.l.b16 %v51
  %v1763 = vpack.c.b16 %v1759, %v1758
  %v1764 = vpack.c.b16 %v1761, %v1760
  %v1765 = vpack.c.b16 %v1762, %v1762
  %vm1768 = vcmask 293888
  %v1770 = vsel %vm1768, %v1737, 0
  %v1773 = vsel %vm1768, %v1738, 0
  %v1776 = vsel %vm1768, %v1739, 0
  %v1779 = vsel %vm1768, %v1740, 0
  %v1782 = vsel %vm1768, %v1741, 0
  %v1785 = vsel %vm1768, %v1742, 0
  %v1788 = vsel %vm1768, %v1743, 0
  %v1791 = vsel %vm1768, %v1744, 0
  %v1794 = vsel %vm1768, %v1745, 0
  %v1797 = vsel %vm1768, %v1746, 0
  %v1800 = vsel %vm1768, %v1747, 0
  %v1803 = vsel %vm1768, %v1748, 0
  %v1806 = vsel %vm1768, %v1749, 0
  %v1809 = vsel %vm1768, %v1750, 0
  %v1812 = vsel %vm1768, %v1751, 0
  %v1815 = vsel %vm1768, %v1752, 0
  %vm1817 = vcmask 1041408
  %v1819 = vsel %vm1817, %v1765, 0
  %1821 = vmatprep.subr.bf16.mxu0 0
  %1822 = vmatpush1.bf16.msra.mxu0 0
  %1823 = vmatprep.subr.bf16.mxu0 0
  %1824 = vmatpush1.bf16.msra.mxu0 0
  %1825 = vmatprep.subr.bf16.mxu0 0
  %1826 = vmatpush1.bf16.msra.mxu0 0
  %1827 = vmatprep.subr.bf16.mxu0 0
  %1828 = vmatpush1.bf16.msra.mxu0 0
  %1829 = vmatprep.subr.bf16.mxu0 0
  %1830 = vmatpush1.bf16.msra.mxu0 0
  %1831 = vmatprep.subr.bf16.mxu0 0
  %1832 = vmatpush1.bf16.msra.mxu0 %v1819
  %1833 = vmatprep.subr.bf16.mxu0 0
  %1834 = vmatpush1.bf16.msra.mxu0 %v1764
  %1835 = vmatprep.subr.bf16.mxu0 0
  %1836 = vmatpush1.bf16.msra.mxu0 %v1763
  %1837 = vmatprep.subr.bf16.mxu0 0
  %1838 = vmatpush2.bf16.msra.mxu0 0
  %1839 = vmatprep.subr.bf16.mxu0 0
  %1840 = vmatpush2.bf16.msra.mxu0 0
  %1841 = vmatprep.subr.bf16.mxu0 0
  %1842 = vmatpush2.bf16.msra.mxu0 0
  %1843 = vmatprep.subr.bf16.mxu0 0
  %1844 = vmatpush2.bf16.msra.mxu0 0
  %1845 = vmatprep.subr.bf16.mxu0 0
  %1846 = vmatpush2.bf16.msra.mxu0 0
  %1847 = vmatprep.subr.bf16.mxu0 0
  %1848 = vmatpush2.bf16.msra.mxu0 0
  %1849 = vmatprep.subr.bf16.mxu0 0
  %1850 = vmatpush2.bf16.msra.mxu0 0
  %1851 = vmatprep.subr.bf16.mxu0 0
  %1852 = vmatpush2.bf16.msra.mxu0 0
  %1853 = vmatprep.mubr.bf16.mxu0 0
  %1854 = vmatmul.mubr.bf16.gmra.mxu0 %v1770
  %v1855 = vpop.f32.mrf.mxu0
  %v1856 = vadd.f32 %v1671, %v1855
  %v1857 = vpop.f32.mrf.mxu0
  %v1858 = vpop.f32.mrf.mxu0
  %v1859 = vadd.f32 %v1671, %v1858
  %v1860 = vpop.f32.mrf.mxu0
  %1861 = vmatprep.mubr.bf16.mxu0 0
  %1862 = vmatmul.mubr.bf16.gmra.mxu0 %v1773
  %v1863 = vpop.f32.mrf.mxu0
  %v1864 = vadd.f32 %v1671, %v1863
  %v1865 = vpop.f32.mrf.mxu0
  %v1866 = vpop.f32.mrf.mxu0
  %v1867 = vadd.f32 %v1671, %v1866
  %v1868 = vpop.f32.mrf.mxu0
  %1869 = vmatprep.mubr.bf16.mxu0 0
  %1870 = vmatmul.mubr.bf16.gmra.mxu0 %v1776
  %v1871 = vpop.f32.mrf.mxu0
  %v1872 = vadd.f32 %v1671, %v1871
  %v1873 = vpop.f32.mrf.mxu0
  %v1874 = vpop.f32.mrf.mxu0
  %v1875 = vadd.f32 %v1671, %v1874
  %v1876 = vpop.f32.mrf.mxu0
  %1877 = vmatprep.mubr.bf16.mxu0 0
  %1878 = vmatmul.mubr.bf16.gmra.mxu0 %v1779
  %v1879 = vpop.f32.mrf.mxu0
  %v1880 = vadd.f32 %v1671, %v1879
  %v1881 = vpop.f32.mrf.mxu0
  %v1882 = vpop.f32.mrf.mxu0
  %v1883 = vadd.f32 %v1671, %v1882
  %v1884 = vpop.f32.mrf.mxu0
  %1885 = vmatprep.mubr.bf16.mxu0 0
  %1886 = vmatmul.mubr.bf16.gmra.mxu0 %v1782
  %v1887 = vpop.f32.mrf.mxu0
  %v1888 = vadd.f32 %v1671, %v1887
  %v1889 = vpop.f32.mrf.mxu0
  %v1890 = vpop.f32.mrf.mxu0
  %v1891 = vadd.f32 %v1671, %v1890
  %v1892 = vpop.f32.mrf.mxu0
  %1893 = vmatprep.mubr.bf16.mxu0 0
  %1894 = vmatmul.mubr.bf16.gmra.mxu0 %v1785
  %v1895 = vpop.f32.mrf.mxu0
  %v1896 = vadd.f32 %v1671, %v1895
  %v1897 = vpop.f32.mrf.mxu0
  %v1898 = vpop.f32.mrf.mxu0
  %v1899 = vadd.f32 %v1671, %v1898
  %v1900 = vpop.f32.mrf.mxu0
  %1901 = vmatprep.mubr.bf16.mxu0 0
  %1902 = vmatmul.mubr.bf16.gmra.mxu0 %v1788
  %v1903 = vpop.f32.mrf.mxu0
  %v1904 = vadd.f32 %v1671, %v1903
  %v1905 = vpop.f32.mrf.mxu0
  %v1906 = vpop.f32.mrf.mxu0
  %v1907 = vadd.f32 %v1671, %v1906
  %v1908 = vpop.f32.mrf.mxu0
  %1909 = vmatprep.mubr.bf16.mxu0 0
  %1910 = vmatmul.mubr.bf16.gmra.mxu0 %v1791
  %v1911 = vpop.f32.mrf.mxu0
  %v1912 = vadd.f32 %v1671, %v1911
  %v1913 = vpop.f32.mrf.mxu0
  %v1914 = vpop.f32.mrf.mxu0
  %v1915 = vadd.f32 %v1671, %v1914
  %v1916 = vpop.f32.mrf.mxu0
  %1917 = vmatprep.mubr.bf16.mxu0 0
  %1918 = vmatmul.mubr.bf16.gmra.mxu0 %v1794
  %v1919 = vpop.f32.mrf.mxu0
  %v1920 = vadd.f32 %v1671, %v1919
  %v1921 = vpop.f32.mrf.mxu0
  %v1922 = vpop.f32.mrf.mxu0
  %v1923 = vadd.f32 %v1671, %v1922
  %v1924 = vpop.f32.mrf.mxu0
  %1925 = vmatprep.mubr.bf16.mxu0 0
  %1926 = vmatmul.mubr.bf16.gmra.mxu0 %v1797
  %v1927 = vpop.f32.mrf.mxu0
  %v1928 = vadd.f32 %v1671, %v1927
  %v1929 = vpop.f32.mrf.mxu0
  %v1930 = vpop.f32.mrf.mxu0
  %v1931 = vadd.f32 %v1671, %v1930
  %v1932 = vpop.f32.mrf.mxu0
  %1933 = vmatprep.mubr.bf16.mxu0 0
  %1934 = vmatmul.mubr.bf16.gmra.mxu0 %v1800
  %v1935 = vpop.f32.mrf.mxu0
  %v1936 = vadd.f32 %v1671, %v1935
  %v1937 = vpop.f32.mrf.mxu0
  %v1938 = vpop.f32.mrf.mxu0
  %v1939 = vadd.f32 %v1671, %v1938
  %v1940 = vpop.f32.mrf.mxu0
  %1941 = vmatprep.mubr.bf16.mxu0 0
  %1942 = vmatmul.mubr.bf16.gmra.mxu0 %v1803
  %v1943 = vpop.f32.mrf.mxu0
  %v1944 = vadd.f32 %v1671, %v1943
  %v1945 = vpop.f32.mrf.mxu0
  %v1946 = vpop.f32.mrf.mxu0
  %v1947 = vadd.f32 %v1671, %v1946
  %v1948 = vpop.f32.mrf.mxu0
  %1949 = vmatprep.mubr.bf16.mxu0 0
  %1950 = vmatmul.mubr.bf16.gmra.mxu0 %v1806
  %v1951 = vpop.f32.mrf.mxu0
  %v1952 = vadd.f32 %v1671, %v1951
  %v1953 = vpop.f32.mrf.mxu0
  %v1954 = vpop.f32.mrf.mxu0
  %v1955 = vadd.f32 %v1671, %v1954
  %v1956 = vpop.f32.mrf.mxu0
  %1957 = vmatprep.mubr.bf16.mxu0 0
  %1958 = vmatmul.mubr.bf16.gmra.mxu0 %v1809
  %v1959 = vpop.f32.mrf.mxu0
  %v1960 = vadd.f32 %v1671, %v1959
  %v1961 = vpop.f32.mrf.mxu0
  %v1962 = vpop.f32.mrf.mxu0
  %v1963 = vadd.f32 %v1671, %v1962
  %v1964 = vpop.f32.mrf.mxu0
  %1965 = vmatprep.mubr.bf16.mxu0 0
  %1966 = vmatmul.mubr.bf16.gmra.mxu0 %v1812
  %v1967 = vpop.f32.mrf.mxu0
  %v1968 = vadd.f32 %v1671, %v1967
  %v1969 = vpop.f32.mrf.mxu0
  %v1970 = vpop.f32.mrf.mxu0
  %v1971 = vadd.f32 %v1671, %v1970
  %v1972 = vpop.f32.mrf.mxu0
  %1973 = vmatprep.mubr.bf16.mxu0 0
  %1974 = vmatmul.mubr.bf16.gmra.mxu0 %v1815
  %v1975 = vpop.f32.mrf.mxu0
  %v1976 = vadd.f32 %v1671, %v1975
  %v1977 = vpop.f32.mrf.mxu0
  %v1978 = vpop.f32.mrf.mxu0
  %v1979 = vadd.f32 %v1671, %v1978
  %v1980 = vpop.f32.mrf.mxu0
  %1981 = vdwg.mxu0
  %v1982 = vpack.c.bf16 %v1856, %v1856
  %v1983 = vpack.c.bf16 %v1859, %v1859
  %v1984 = vpack.c.bf16 %v1864, %v1864
  %v1985 = vpack.c.bf16 %v1867, %v1867
  %v1986 = vpack.c.bf16 %v1872, %v1872
  %v1987 = vpack.c.bf16 %v1875, %v1875
  %v1988 = vpack.c.bf16 %v1880, %v1880
  %v1989 = vpack.c.bf16 %v1883, %v1883
  %v1990 = vpack.c.bf16 %v1888, %v1888
  %v1991 = vpack.c.bf16 %v1891, %v1891
  %v1992 = vpack.c.bf16 %v1896, %v1896
  %v1993 = vpack.c.bf16 %v1899, %v1899
  %v1994 = vpack.c.bf16 %v1904, %v1904
  %v1995 = vpack.c.bf16 %v1907, %v1907
  %v1996 = vpack.c.bf16 %v1912, %v1912
  %v1997 = vpack.c.bf16 %v1915, %v1915
  %v1998 = vpack.c.bf16 %v1920, %v1920
  %v1999 = vpack.c.bf16 %v1923, %v1923
  %v2000 = vpack.c.bf16 %v1928, %v1928
  %v2001 = vpack.c.bf16 %v1931, %v1931
  %v2002 = vpack.c.bf16 %v1936, %v1936
  %v2003 = vpack.c.bf16 %v1939, %v1939
  %v2004 = vpack.c.bf16 %v1944, %v1944
  %v2005 = vpack.c.bf16 %v1947, %v1947
  %v2006 = vpack.c.bf16 %v1952, %v1952
  %v2007 = vpack.c.bf16 %v1955, %v1955
  %v2008 = vpack.c.bf16 %v1960, %v1960
  %v2009 = vpack.c.bf16 %v1963, %v1963
  %v2010 = vpack.c.bf16 %v1968, %v1968
  %v2011 = vpack.c.bf16 %v1971, %v1971
  %v2012 = vpack.c.bf16 %v1976, %v1976
  %v2013 = vpack.c.bf16 %v1979, %v1979
  %vm2014 = vcmask 60416
  %2015 = vst.msk [vmem:[%s3] sm:$0xf] %vm2014, %v1982
  %2016 = vst.msk [vmem:[%s3 + $0x4] sm:$0xf] %vm2014, %v1983
  %2017 = vst.msk [vmem:[%s3 + $0x8] sm:$0xf] %vm2014, %v1984
  %2018 = vst.msk [vmem:[%s3 + $0xc] sm:$0xf] %vm2014, %v1985
  %2019 = vst.msk [vmem:[%s3 + $0x10] sm:$0xf] %vm2014, %v1986
  %2020 = vst.msk [vmem:[%s3 + $0x14] sm:$0xf] %vm2014, %v1987
  %2021 = vst.msk [vmem:[%s3 + $0x18] sm:$0xf] %vm2014, %v1988
  %2022 = vst.msk [vmem:[%s3 + $0x1c] sm:$0xf] %vm2014, %v1989
  %2023 = vst.msk [vmem:[%s3 + $0x20] sm:$0xf] %vm2014, %v1990
  %2024 = vst.msk [vmem:[%s3 + $0x24] sm:$0xf] %vm2014, %v1991
  %2025 = vst.msk [vmem:[%s3 + $0x28] sm:$0xf] %vm2014, %v1992
  %2026 = vst.msk [vmem:[%s3 + $0x2c] sm:$0xf] %vm2014, %v1993
  %2027 = vst.msk [vmem:[%s3 + $0x30] sm:$0xf] %vm2014, %v1994
  %2028 = vst.msk [vmem:[%s3 + $0x34] sm:$0xf] %vm2014, %v1995
  %2029 = vst.msk [vmem:[%s3 + $0x38] sm:$0xf] %vm2014, %v1996
  %2030 = vst.msk [vmem:[%s3 + $0x3c] sm:$0xf] %vm2014, %v1997
  %2031 = vst.msk [vmem:[%s3 + $0x40] sm:$0xf] %vm2014, %v1998
  %2032 = vst.msk [vmem:[%s3 + $0x44] sm:$0xf] %vm2014, %v1999
  %2033 = vst.msk [vmem:[%s3 + $0x48] sm:$0xf] %vm2014, %v2000
  %2034 = vst.msk [vmem:[%s3 + $0x4c] sm:$0xf] %vm2014, %v2001
  %2035 = vst.msk [vmem:[%s3 + $0x50] sm:$0xf] %vm2014, %v2002
  %2036 = vst.msk [vmem:[%s3 + $0x54] sm:$0xf] %vm2014, %v2003
  %2037 = vst.msk [vmem:[%s3 + $0x58] sm:$0xf] %vm2014, %v2004
  %2038 = vst.msk [vmem:[%s3 + $0x5c] sm:$0xf] %vm2014, %v2005
  %2039 = vst.msk [vmem:[%s3 + $0x60] sm:$0xf] %vm2014, %v2006
  %2040 = vst.msk [vmem:[%s3 + $0x64] sm:$0xf] %vm2014, %v2007
  %2041 = vst.msk [vmem:[%s3 + $0x68] sm:$0xf] %vm2014, %v2008
  %2042 = vst.msk [vmem:[%s3 + $0x6c] sm:$0xf] %vm2014, %v2009
  %2043 = vst.msk [vmem:[%s3 + $0x70] sm:$0xf] %vm2014, %v2010
  %2044 = vst.msk [vmem:[%s3 + $0x74] sm:$0xf] %vm2014, %v2011
  %2045 = vst.msk [vmem:[%s3 + $0x78] sm:$0xf] %vm2014, %v2012
  %2046 = vst.msk [vmem:[%s3 + $0x7c] sm:$0xf] %vm2014, %v2013
  // Predicated region
  $region14: #{spiking_tokenizer.11} parent=0 // pred_check
    _
  $region15: #{spiking_tokenizer.11} parent=0 // pred_check_branch
    %2048 = sbr.rel (0) target = $region17
  $region16: #{spiking_tokenizer.11} parent=0 // pred_region
    _
  $region17: #{spiking_tokenizer.11} parent=0 // pred_fallthru
    _
  // Predicated region
  $region18: #{spiking_tokenizer.11} parent=0 // pred_check
    _
  $region19: #{spiking_tokenizer.11} parent=0 // pred_check_branch
    %2050 = sbr.rel (0) target = $region21
  $region20: #{spiking_tokenizer.11} parent=0 // pred_region
    _
  $region21: #{spiking_tokenizer.11} parent=0 // pred_fallthru
    _

// kernel: spiking_tokenizer.9
$region0: #{spiking_tokenizer.9}
  #allocation0 [shape = 'u32[]', space=smem, size = 0x4, offset = 0x4, fixed_abs, tag = 'smem constant byte address 0x4 - core index']
  #allocation1 [shape = 'u32[144,128]{1,0:T(1,128)}', space=vmem, size = 0x12000, scoped, tag = 'internal scratch']
  %s0 = inlined_call_operand.vmem [shape: bf16[4,16,16,2], index: 0, kind: input, shape index: {}]
  %s1 = inlined_call_operand.vmem [shape: bf16[18,4], index: 1, kind: input, shape index: {}]
  %s2 = inlined_call_operand.vmem [shape: f32[1,4], index: 2, kind: input, shape index: {}]
  %s3 = inlined_call_operand.vmem [shape: bf16[4,16,16,4], index: 3, kind: output, shape index: {}]
  %s4 = sld [smem:[#allocation0]]
  $region45: #{spiking_tokenizer.9} parent=0
    _
  %s6 = ssub.s32 1, %s4
  %s7 = scalar_select 0, %s6, %s4
  loop: start=0, step=1, limit=4
  $region2: #{spiking_tokenizer.9} parent=0 // loop_pre_header
    _
  $region3: #{spiking_tokenizer.9} parent=0 // loop_header
    %s9 = sphi 0, %s13
    %p10 = scmp.ge.s32.totalorder %s9, 4
    %s19 = sphi 0, %s21
    %s22 = sphi 0, %s19
    %s23 = sphi 0, %s22
    %s39 = sphi 0, %s23
    %s43 = sphi 0, %s43
    %s45 = sphi 0, %s43
    %s46 = sphi 0, %s45
    %s60 = sphi 0, %s46
    %s64 = sphi 0, %s64
    %s66 = sphi 0, %s64
    %s67 = sphi 0, %s66
    %s81 = sphi 0, %s67
    %s87 = sphi 0, %s89
    %s90 = sphi 0, %s87
    %s91 = sphi 0, %s90
    %s107 = sphi 0, %s91
  $region4: #{spiking_tokenizer.9} parent=0 // loop_header_branch
    %12 = sbr.rel (%p10) target = $region8
  $region5: #{spiking_tokenizer.9} parent=0 // loop_body
    %s14 = ssub.s32 %s9, 1
    %s15 = ssub.s32 %s9, 2
    %s16 = sadd.s32 %s9, 1
    %s17 = ssub.s32 %s9, %s16
    %p18 = scmp.eq.s32.totalorder %s17, 0
    %s20 = sadd.s32 %s19, 1
    %s21 = scalar_select %p18, %s19, %s20
    %p24 = pneg %p18
    %p25 = scmp.eq.s32.totalorder %s9, 1
    %p26 = por %p24, %p25
    %p27 = scmp.ne.s32.totalorder %s19, %s22
    %p28 = scmp.eq.s32.totalorder %s9, 0
    %p29 = por %p27, %p28
    %p30 = scmp.ne.s32.totalorder %s19, %s22
    %p31 = scmp.eq.s32.totalorder %s14, 1
    %p32 = por %p30, %p31
    %p33 = scmp.ne.s32.totalorder %s22, %s23
    %p34 = scmp.eq.s32.totalorder %s14, 0
    %p35 = por %p33, %p34
    %p36 = scmp.ne.s32.totalorder %s22, %s23
    %p37 = scmp.eq.s32.totalorder %s15, 1
    %p38 = por %p36, %p37
    %p40 = scmp.ne.s32.totalorder %s23, %s39
    %p41 = scmp.eq.s32.totalorder %s15, 0
    %p42 = por %p40, %p41
    %s44 = sadd.s32 %s43, 1
    %p47 = scmp.eq.s32.totalorder %s9, 1
    %p48 = scmp.ne.s32.totalorder %s43, %s45
    %p49 = scmp.eq.s32.totalorder %s9, 0
    %p50 = por %p48, %p49
    %p51 = scmp.ne.s32.totalorder %s43, %s45
    %p52 = scmp.eq.s32.totalorder %s14, 1
    %p53 = por %p51, %p52
    %p54 = scmp.ne.s32.totalorder %s45, %s46
    %p55 = scmp.eq.s32.totalorder %s14, 0
    %p56 = por %p54, %p55
    %p57 = scmp.ne.s32.totalorder %s45, %s46
    %p58 = scmp.eq.s32.totalorder %s15, 1
    %p59 = por %p57, %p58
    %p61 = scmp.ne.s32.totalorder %s46, %s60
    %p62 = scmp.eq.s32.totalorder %s15, 0
    %p63 = por %p61, %p62
    %s65 = sadd.s32 %s64, 1
    %p68 = scmp.eq.s32.totalorder %s9, 1
    %p69 = scmp.ne.s32.totalorder %s64, %s66
    %p70 = scmp.eq.s32.totalorder %s9, 0
    %p71 = por %p69, %p70
    %p72 = scmp.ne.s32.totalorder %s64, %s66
    %p73 = scmp.eq.s32.totalorder %s14, 1
    %p74 = por %p72, %p73
    %p75 = scmp.ne.s32.totalorder %s66, %s67
    %p76 = scmp.eq.s32.totalorder %s14, 0
    %p77 = por %p75, %p76
    %p78 = scmp.ne.s32.totalorder %s66, %s67
    %p79 = scmp.eq.s32.totalorder %s15, 1
    %p80 = por %p78, %p79
    %p82 = scmp.ne.s32.totalorder %s67, %s81
    %p83 = scmp.eq.s32.totalorder %s15, 0
    %p84 = por %p82, %p83
    %s85 = ssub.s32 %s9, %s16
    %p86 = scmp.eq.s32.totalorder %s85, 0
    %s88 = sadd.s32 %s87, 1
    %s89 = scalar_select %p86, %s87, %s88
    %p92 = pneg %p86
    %p93 = scmp.eq.s32.totalorder %s9, 1
    %p94 = por %p92, %p93
    %p95 = scmp.ne.s32.totalorder %s87, %s90
    %p96 = scmp.eq.s32.totalorder %s9, 0
    %p97 = por %p95, %p96
    %p98 = scmp.ne.s32.totalorder %s87, %s90
    %p99 = scmp.eq.s32.totalorder %s14, 1
    %p100 = por %p98, %p99
    %p101 = scmp.ne.s32.totalorder %s90, %s91
    %p102 = scmp.eq.s32.totalorder %s14, 0
    %p103 = por %p101, %p102
    %p104 = scmp.ne.s32.totalorder %s90, %s91
    %p105 = scmp.eq.s32.totalorder %s15, 1
    %p106 = por %p104, %p105
    %p108 = scmp.ne.s32.totalorder %s91, %s107
    %p109 = scmp.eq.s32.totalorder %s15, 0
    %p110 = por %p108, %p109
    %p111 = scmp.le.s32.totalorder 1, %s9
    %p112 = scmp.lt.s32.totalorder %s9, 3
    %p113 = pnand %p111, %p112
    %p114 = pneg %p113
    // Predicated region
    $region9: #{spiking_tokenizer.9} parent=5 // pred_check
      _
    $region10: #{spiking_tokenizer.9} parent=5 // pred_check_branch
      %116 = sbr.rel (%p113) target = $region12
    $region11: #{spiking_tokenizer.9} parent=5 // pred_region
      %s117 = ssub.s32 %s9, 1
      // Predicated region
      $region13: #{spiking_tokenizer.9} parent=11 // pred_check
        %p118 = pneg %p56
      $region14: #{spiking_tokenizer.9} parent=11 // pred_check_branch
        %120 = sbr.rel (%p118) target = $region16
      $region15: #{spiking_tokenizer.9} parent=11 // pred_region
        _
      $region16: #{spiking_tokenizer.9} parent=11 // pred_fallthru
        _
      // Predicated region
      $region17: #{spiking_tokenizer.9} parent=11 // pred_check
        %p121 = pneg %p77
      $region18: #{spiking_tokenizer.9} parent=11 // pred_check_branch
        %123 = sbr.rel (%p121) target = $region20
      $region19: #{spiking_tokenizer.9} parent=11 // pred_region
        _
      $region20: #{spiking_tokenizer.9} parent=11 // pred_fallthru
        _
    $region12: #{spiking_tokenizer.9} parent=5 // pred_fallthru
      _
    %p124 = scmp.lt.s32.totalorder %s9, 2
    // Predicated region
    $region21: #{spiking_tokenizer.9} parent=5 // pred_check
      %p125 = pneg %p124
    $region22: #{spiking_tokenizer.9} parent=5 // pred_check_branch
      %127 = sbr.rel (%p125) target = $region24
    $region23: #{spiking_tokenizer.9} parent=5 // pred_region
      // Predicated region
      $region25: #{spiking_tokenizer.9} parent=23 // pred_check
        %p128 = pneg %p29
      $region26: #{spiking_tokenizer.9} parent=23 // pred_check_branch
        %130 = sbr.rel (%p128) target = $region28
      $region27: #{spiking_tokenizer.9} parent=23 // pred_region
        %s131 = smul.u32 2, %s9
        %p132 = scmp.lt.s32.totalorder %s131, 3
        %s133 = scalar_select %p132, %s131, 3
        %s134 = smul.addr %s133, 32
        %s135 = smul.addr %s134, 4
        %s136 = scalar_lea.vmem %s0, %s135
        %s137 = smul.u32 2, %s9
      $region28: #{spiking_tokenizer.9} parent=23 // pred_fallthru
        _
    $region24: #{spiking_tokenizer.9} parent=5 // pred_fallthru
      _
    %p138 = scmp.le.s32.totalorder 1, %s9
    %p139 = scmp.lt.s32.totalorder %s9, 3
    %p140 = pnand %p138, %p139
    %p141 = pneg %p140
    // Predicated region
    $region29: #{spiking_tokenizer.9} parent=5 // pred_check
      _
    $region30: #{spiking_tokenizer.9} parent=5 // pred_check_branch
      %143 = sbr.rel (%p140) target = $region32
    $region31: #{spiking_tokenizer.9} parent=5 // pred_region
      %s144 = ssub.s32 %s9, 1
      %s145 = smul.u32 2, %s14
      %p146 = scmp.lt.s32.totalorder %s145, 3
      %s147 = scalar_select %p146, %s145, 3
      %s148 = smul.addr %s147, 32
      %s149 = smul.addr %s148, 4
      %s150 = scalar_lea.vmem %s0, %s149
      %p151 = pneg %p35
      %p152 = pneg %p32
      %p153 = pneg %p56
      %p154 = pneg %p53
      %p155 = pneg %p77
      %p156 = pneg %p74
      %p157 = pneg %p103
      %p158 = pneg %p100
      %s159 = smul.u32 2, %s14
      %p160 = scmp.lt.s32.totalorder %s159, 3
      %s161 = scalar_select %p160, %s159, 3
      %s162 = smul.addr %s161, 32
      %s163 = smul.addr %s162, 4
      %s164 = scalar_lea.vmem %s3, %s163
      %s165 = smul.u32 2, %s14
      %p166 = scmp.lt.s32.totalorder %s165, 3
      %s167 = scalar_select %p166, %s165, 3
      %s168 = smul.addr %s167, 32
      %s169 = smul.addr %s168, 4
      %s170 = scalar_lea.vmem %s0, %s169
      %s171 = smul.u32 2, %s14
      %s172 = smul.u32 2, %s14
      %p173 = scmp.lt.s32.totalorder %s172, 3
      %s174 = scalar_select %p173, %s172, 3
      %s175 = smul.addr %s174, 32
      %s176 = smul.addr %s175, 4
      %s177 = scalar_lea.vmem %s3, %s176
      %s178 = smul.u32 2, %s14
      %v180 = vld [vmem:[%s170] sm:$0xf]
      %v181 = vld [vmem:[%s170 + $0x4] sm:$0xf]
      %v182 = vld [vmem:[%s170 + $0x8] sm:$0xf]
      %v183 = vld [vmem:[%s170 + $0xc] sm:$0xf]
      %v184 = vld [vmem:[%s170 + $0x10] sm:$0xf]
      %v185 = vld [vmem:[%s170 + $0x14] sm:$0xf]
      %v186 = vld [vmem:[%s170 + $0x18] sm:$0xf]
      %v187 = vld [vmem:[%s170 + $0x1c] sm:$0xf]
      %v188 = vld [vmem:[%s170 + $0x20] sm:$0xf]
      %v189 = vld [vmem:[%s170 + $0x24] sm:$0xf]
      %v190 = vld [vmem:[%s170 + $0x28] sm:$0xf]
      %v191 = vld [vmem:[%s170 + $0x2c] sm:$0xf]
      %v192 = vld [vmem:[%s170 + $0x30] sm:$0xf]
      %v193 = vld [vmem:[%s170 + $0x34] sm:$0xf]
      %v194 = vld [vmem:[%s170 + $0x38] sm:$0xf]
      %v195 = vld [vmem:[%s170 + $0x3c] sm:$0xf]
      %v196 = vld [vmem:[%s170 + $0x40] sm:$0xf]
      %v197 = vld [vmem:[%s170 + $0x44] sm:$0xf]
      %v198 = vld [vmem:[%s170 + $0x48] sm:$0xf]
      %v199 = vld [vmem:[%s170 + $0x4c] sm:$0xf]
      %v200 = vld [vmem:[%s170 + $0x50] sm:$0xf]
      %v201 = vld [vmem:[%s170 + $0x54] sm:$0xf]
      %v202 = vld [vmem:[%s170 + $0x58] sm:$0xf]
      %v203 = vld [vmem:[%s170 + $0x5c] sm:$0xf]
      %v204 = vld [vmem:[%s170 + $0x60] sm:$0xf]
      %v205 = vld [vmem:[%s170 + $0x64] sm:$0xf]
      %v206 = vld [vmem:[%s170 + $0x68] sm:$0xf]
      %v207 = vld [vmem:[%s170 + $0x6c] sm:$0xf]
      %v208 = vld [vmem:[%s170 + $0x70] sm:$0xf]
      %v209 = vld [vmem:[%s170 + $0x74] sm:$0xf]
      %v210 = vld [vmem:[%s170 + $0x78] sm:$0xf]
      %v211 = vld [vmem:[%s170 + $0x7c] sm:$0xf]
      %v212 = vld [vmem:[%s170 + $0x80] sm:$0xf]
      %v213 = vld [vmem:[%s170 + $0x84] sm:$0xf]
      %v214 = vld [vmem:[%s170 + $0x88] sm:$0xf]
      %v215 = vld [vmem:[%s170 + $0x8c] sm:$0xf]
      %v216 = vld [vmem:[%s170 + $0x90] sm:$0xf]
      %v217 = vld [vmem:[%s170 + $0x94] sm:$0xf]
      %v218 = vld [vmem:[%s170 + $0x98] sm:$0xf]
      %v219 = vld [vmem:[%s170 + $0x9c] sm:$0xf]
      %v220 = vld [vmem:[%s170 + $0xa0] sm:$0xf]
      %v221 = vld [vmem:[%s170 + $0xa4] sm:$0xf]
      %v222 = vld [vmem:[%s170 + $0xa8] sm:$0xf]
      %v223 = vld [vmem:[%s170 + $0xac] sm:$0xf]
      %v224 = vld [vmem:[%s170 + $0xb0] sm:$0xf]
      %v225 = vld [vmem:[%s170 + $0xb4] sm:$0xf]
      %v226 = vld [vmem:[%s170 + $0xb8] sm:$0xf]
      %v227 = vld [vmem:[%s170 + $0xbc] sm:$0xf]
      %v228 = vld [vmem:[%s170 + $0xc0] sm:$0xf]
      %v229 = vld [vmem:[%s170 + $0xc4] sm:$0xf]
      %v230 = vld [vmem:[%s170 + $0xc8] sm:$0xf]
      %v231 = vld [vmem:[%s170 + $0xcc] sm:$0xf]
      %v232 = vld [vmem:[%s170 + $0xd0] sm:$0xf]
      %v233 = vld [vmem:[%s170 + $0xd4] sm:$0xf]
      %v234 = vld [vmem:[%s170 + $0xd8] sm:$0xf]
      %v235 = vld [vmem:[%s170 + $0xdc] sm:$0xf]
      %v236 = vld [vmem:[%s170 + $0xe0] sm:$0xf]
      %v237 = vld [vmem:[%s170 + $0xe4] sm:$0xf]
      %v238 = vld [vmem:[%s170 + $0xe8] sm:$0xf]
      %v239 = vld [vmem:[%s170 + $0xec] sm:$0xf]
      %v240 = vld [vmem:[%s170 + $0xf0] sm:$0xf]
      %v241 = vld [vmem:[%s170 + $0xf4] sm:$0xf]
      %v242 = vld [vmem:[%s170 + $0xf8] sm:$0xf]
      %v243 = vld [vmem:[%s170 + $0xfc] sm:$0xf]
      %v244 = vld [vmem:[%s1] sm:$0xf]
      %v245 = vld [vmem:[%s1 + $0x4] sm:$0xf]
      %v246 = vld [vmem:[%s1 + $0x8] sm:$0x1]
      %v247 = vld [vmem:[%s2] sm:$0x1]
      %v312 = vunpack.c.l.b16 %v180
      %v313 = vunpack.c.l.b16 %v181
      %v314 = vunpack.c.l.b16 %v182
      %v315 = vunpack.c.l.b16 %v183
      %v316 = vunpack.c.l.b16 %v184
      %v317 = vunpack.c.l.b16 %v185
      %v318 = vunpack.c.l.b16 %v186
      %v319 = vunpack.c.l.b16 %v187
      %v320 = vunpack.c.l.b16 %v188
      %v321 = vunpack.c.l.b16 %v189
      %v322 = vunpack.c.l.b16 %v190
      %v323 = vunpack.c.l.b16 %v191
      %v324 = vunpack.c.l.b16 %v192
      %v325 = vunpack.c.l.b16 %v193
      %v326 = vunpack.c.l.b16 %v194
      %v327 = vunpack.c.l.b16 %v195
      %v328 = vunpack.c.l.b16 %v196
      %v329 = vunpack.c.l.b16 %v197
      %v330 = vunpack.c.l.b16 %v198
      %v331 = vunpack.c.l.b16 %v199
      %v332 = vunpack.c.l.b16 %v200
      %v333 = vunpack.c.l.b16 %v201
      %v334 = vunpack.c.l.b16 %v202
      %v335 = vunpack.c.l.b16 %v203
      %v336 = vunpack.c.l.b16 %v204
      %v337 = vunpack.c.l.b16 %v205
      %v338 = vunpack.c.l.b16 %v206
      %v339 = vunpack.c.l.b16 %v207
      %v340 = vunpack.c.l.b16 %v208
      %v341 = vunpack.c.l.b16 %v209
      %v342 = vunpack.c.l.b16 %v210
      %v343 = vunpack.c.l.b16 %v211
      %v344 = vunpack.c.l.b16 %v212
      %v345 = vunpack.c.l.b16 %v213
      %v346 = vunpack.c.l.b16 %v214
      %v347 = vunpack.c.l.b16 %v215
      %v348 = vunpack.c.l.b16 %v216
      %v349 = vunpack.c.l.b16 %v217
      %v350 = vunpack.c.l.b16 %v218
      %v351 = vunpack.c.l.b16 %v219
      %v352 = vunpack.c.l.b16 %v220
      %v353 = vunpack.c.l.b16 %v221
      %v354 = vunpack.c.l.b16 %v222
      %v355 = vunpack.c.l.b16 %v223
      %v356 = vunpack.c.l.b16 %v224
      %v357 = vunpack.c.l.b16 %v225
      %v358 = vunpack.c.l.b16 %v226
      %v359 = vunpack.c.l.b16 %v227
      %v360 = vunpack.c.l.b16 %v228
      %v361 = vunpack.c.l.b16 %v229
      %v362 = vunpack.c.l.b16 %v230
      %v363 = vunpack.c.l.b16 %v231
      %v364 = vunpack.c.l.b16 %v232
      %v365 = vunpack.c.l.b16 %v233
      %v366 = vunpack.c.l.b16 %v234
      %v367 = vunpack.c.l.b16 %v235
      %v368 = vunpack.c.l.b16 %v236
      %v369 = vunpack.c.l.b16 %v237
      %v370 = vunpack.c.l.b16 %v238
      %v371 = vunpack.c.l.b16 %v239
      %v372 = vunpack.c.l.b16 %v240
      %v373 = vunpack.c.l.b16 %v241
      %v374 = vunpack.c.l.b16 %v242
      %v375 = vunpack.c.l.b16 %v243
      %v376 = vpack.c.b16 %v313, %v312
      %v377 = vpack.c.b16 %v315, %v314
      %v378 = vpack.c.b16 %v317, %v316
      %v379 = vpack.c.b16 %v319, %v318
      %v380 = vpack.c.b16 %v321, %v320
      %v381 = vpack.c.b16 %v323, %v322
      %v382 = vpack.c.b16 %v325, %v324
      %v383 = vpack.c.b16 %v327, %v326
      %v384 = vpack.c.b16 %v329, %v328
      %v385 = vpack.c.b16 %v331, %v330
      %v386 = vpack.c.b16 %v333, %v332
      %v387 = vpack.c.b16 %v335, %v334
      %v388 = vpack.c.b16 %v337, %v336
      %v389 = vpack.c.b16 %v339, %v338
      %v390 = vpack.c.b16 %v341, %v340
      %v391 = vpack.c.b16 %v343, %v342
      %v392 = vpack.c.b16 %v345, %v344
      %v393 = vpack.c.b16 %v347, %v346
      %v394 = vpack.c.b16 %v349, %v348
      %v395 = vpack.c.b16 %v351, %v350
      %v396 = vpack.c.b16 %v353, %v352
      %v397 = vpack.c.b16 %v355, %v354
      %v398 = vpack.c.b16 %v357, %v356
      %v399 = vpack.c.b16 %v359, %v358
      %v400 = vpack.c.b16 %v361, %v360
      %v401 = vpack.c.b16 %v363, %v362
      %v402 = vpack.c.b16 %v365, %v364
      %v403 = vpack.c.b16 %v367, %v366
      %v404 = vpack.c.b16 %v369, %v368
      %v405 = vpack.c.b16 %v371, %v370
      %v406 = vpack.c.b16 %v373, %v372
      %v407 = vpack.c.b16 %v375, %v374
      %v409 = vshrl.u32 0, 16
      %v411 = vrot.slane %v409, 7
      %v412 = vshll.u32 0, 16
      %v414 = vor.u32 %v411, %v412
      %v416 = vshrl.u32 %v376, 16
      %v418 = vrot.slane %v416, 7
      %v419 = vshll.u32 %v376, 16
      %v421 = vor.u32 %v418, %v419
      %v423 = vshrl.u32 %v377, 16
      %v425 = vrot.slane %v423, 7
      %v426 = vshll.u32 %v377, 16
      %v428 = vor.u32 %v425, %v426
      %v430 = vshrl.u32 %v378, 16
      %v432 = vrot.slane %v430, 7
      %v433 = vshll.u32 %v378, 16
      %v435 = vor.u32 %v432, %v433
      %v437 = vshrl.u32 %v379, 16
      %v439 = vrot.slane %v437, 7
      %v440 = vshll.u32 %v379, 16
      %v442 = vor.u32 %v439, %v440
      %v444 = vshrl.u32 %v380, 16
      %v446 = vrot.slane %v444, 7
      %v447 = vshll.u32 %v380, 16
      %v449 = vor.u32 %v446, %v447
      %v451 = vshrl.u32 %v381, 16
      %v453 = vrot.slane %v451, 7
      %v454 = vshll.u32 %v381, 16
      %v456 = vor.u32 %v453, %v454
      %v458 = vshrl.u32 %v382, 16
      %v460 = vrot.slane %v458, 7
      %v461 = vshll.u32 %v382, 16
      %v463 = vor.u32 %v460, %v461
      %v465 = vshrl.u32 %v383, 16
      %v467 = vrot.slane %v465, 7
      %v468 = vshll.u32 %v383, 16
      %v470 = vor.u32 %v467, %v468
      %v472 = vshrl.u32 %v384, 16
      %v474 = vrot.slane %v472, 7
      %v475 = vshll.u32 %v384, 16
      %v477 = vor.u32 %v474, %v475
      %v479 = vshrl.u32 %v385, 16
      %v481 = vrot.slane %v479, 7
      %v482 = vshll.u32 %v385, 16
      %v484 = vor.u32 %v481, %v482
      %v486 = vshrl.u32 %v386, 16
      %v488 = vrot.slane %v486, 7
      %v489 = vshll.u32 %v386, 16
      %v491 = vor.u32 %v488, %v489
      %v493 = vshrl.u32 %v387, 16
      %v495 = vrot.slane %v493, 7
      %v496 = vshll.u32 %v387, 16
      %v498 = vor.u32 %v495, %v496
      %v500 = vshrl.u32 %v388, 16
      %v502 = vrot.slane %v500, 7
      %v503 = vshll.u32 %v388, 16
      %v505 = vor.u32 %v502, %v503
      %v507 = vshrl.u32 %v389, 16
      %v509 = vrot.slane %v507, 7
      %v510 = vshll.u32 %v389, 16
      %v512 = vor.u32 %v509, %v510
      %v514 = vshrl.u32 %v390, 16
      %v516 = vrot.slane %v514, 7
      %v517 = vshll.u32 %v390, 16
      %v519 = vor.u32 %v516, %v517
      %v521 = vshrl.u32 %v391, 16
      %v523 = vrot.slane %v521, 7
      %v524 = vshll.u32 %v391, 16
      %v526 = vor.u32 %v523, %v524
      %v528 = vshrl.u32 %v392, 16
      %v530 = vrot.slane %v528, 7
      %v531 = vshll.u32 %v392, 16
      %v533 = vor.u32 %v530, %v531
      %v535 = vshrl.u32 %v393, 16
      %v537 = vrot.slane %v535, 7
      %v538 = vshll.u32 %v393, 16
      %v540 = vor.u32 %v537, %v538
      %v542 = vshrl.u32 %v394, 16
      %v544 = vrot.slane %v542, 7
      %v545 = vshll.u32 %v394, 16
      %v547 = vor.u32 %v544, %v545
      %v549 = vshrl.u32 %v395, 16
      %v551 = vrot.slane %v549, 7
      %v552 = vshll.u32 %v395, 16
      %v554 = vor.u32 %v551, %v552
      %v556 = vshrl.u32 %v396, 16
      %v558 = vrot.slane %v556, 7
      %v559 = vshll.u32 %v396, 16
      %v561 = vor.u32 %v558, %v559
      %v563 = vshrl.u32 %v397, 16
      %v565 = vrot.slane %v563, 7
      %v566 = vshll.u32 %v397, 16
      %v568 = vor.u32 %v565, %v566
      %v570 = vshrl.u32 %v398, 16
      %v572 = vrot.slane %v570, 7
      %v573 = vshll.u32 %v398, 16
      %v575 = vor.u32 %v572, %v573
      %v577 = vshrl.u32 %v399, 16
      %v579 = vrot.slane %v577, 7
      %v580 = vshll.u32 %v399, 16
      %v582 = vor.u32 %v579, %v580
      %v584 = vshrl.u32 %v400, 16
      %v586 = vrot.slane %v584, 7
      %v587 = vshll.u32 %v400, 16
      %v589 = vor.u32 %v586, %v587
      %v591 = vshrl.u32 %v401, 16
      %v593 = vrot.slane %v591, 7
      %v594 = vshll.u32 %v401, 16
      %v596 = vor.u32 %v593, %v594
      %v598 = vshrl.u32 %v402, 16
      %v600 = vrot.slane %v598, 7
      %v601 = vshll.u32 %v402, 16
      %v603 = vor.u32 %v600, %v601
      %v605 = vshrl.u32 %v403, 16
      %v607 = vrot.slane %v605, 7
      %v608 = vshll.u32 %v403, 16
      %v610 = vor.u32 %v607, %v608
      %v612 = vshrl.u32 %v404, 16
      %v614 = vrot.slane %v612, 7
      %v615 = vshll.u32 %v404, 16
      %v617 = vor.u32 %v614, %v615
      %v619 = vshrl.u32 %v405, 16
      %v621 = vrot.slane %v619, 7
      %v622 = vshll.u32 %v405, 16
      %v624 = vor.u32 %v621, %v622
      %v626 = vshrl.u32 %v406, 16
      %v628 = vrot.slane %v626, 7
      %v629 = vshll.u32 %v406, 16
      %v631 = vor.u32 %v628, %v629
      %v633 = vshrl.u32 %v407, 16
      %v635 = vrot.slane %v633, 7
      %v636 = vshll.u32 %v407, 16
      %v638 = vor.u32 %v635, %v636
      %vm705 = vcmask 1040384
      %vm706 = vsmask.f32 256
      %vm707 = vmand %vm705, %vm706
      %v708 = vsel %vm707, 0, %v414
      %v709 = vsel %vm707, 0, %v421
      %v710 = vsel %vm707, 0, %v428
      %v711 = vsel %vm707, 0, %v435
      %v712 = vsel %vm707, 0, %v442
      %v713 = vsel %vm707, 0, %v449
      %v714 = vsel %vm707, 0, %v456
      %v715 = vsel %vm707, 0, %v463
      %v716 = vsel %vm707, 0, %v470
      %v717 = vsel %vm707, 0, %v477
      %v718 = vsel %vm707, 0, %v484
      %v719 = vsel %vm707, 0, %v491
      %v720 = vsel %vm707, 0, %v498
      %v721 = vsel %vm707, 0, %v505
      %v722 = vsel %vm707, 0, %v512
      %v723 = vsel %vm707, 0, %v519
      %v724 = vsel %vm707, 0, %v526
      %v725 = vsel %vm707, 0, %v533
      %v726 = vsel %vm707, 0, %v540
      %v727 = vsel %vm707, 0, %v547
      %v728 = vsel %vm707, 0, %v554
      %v729 = vsel %vm707, 0, %v561
      %v730 = vsel %vm707, 0, %v568
      %v731 = vsel %vm707, 0, %v575
      %v732 = vsel %vm707, 0, %v582
      %v733 = vsel %vm707, 0, %v589
      %v734 = vsel %vm707, 0, %v596
      %v735 = vsel %vm707, 0, %v603
      %v736 = vsel %vm707, 0, %v610
      %v737 = vsel %vm707, 0, %v617
      %v738 = vsel %vm707, 0, %v624
      %v739 = vsel %vm707, 0, %v631
      %v740 = vsel %vm707, 0, %v638
      %v741 = vsel %vm707, %v411, 0
      %v742 = vsel %vm707, %v418, 0
      %v743 = vsel %vm707, %v425, 0
      %v744 = vsel %vm707, %v432, 0
      %v745 = vsel %vm707, %v439, 0
      %v746 = vsel %vm707, %v446, 0
      %v747 = vsel %vm707, %v453, 0
      %v748 = vsel %vm707, %v460, 0
      %v749 = vsel %vm707, %v467, 0
      %v750 = vsel %vm707, %v474, 0
      %v751 = vsel %vm707, %v481, 0
      %v752 = vsel %vm707, %v488, 0
      %v753 = vsel %vm707, %v495, 0
      %v754 = vsel %vm707, %v502, 0
      %v755 = vsel %vm707, %v509, 0
      %v756 = vsel %vm707, %v516, 0
      %v757 = vsel %vm707, %v523, 0
      %v758 = vsel %vm707, %v530, 0
      %v759 = vsel %vm707, %v537, 0
      %v760 = vsel %vm707, %v544, 0
      %v761 = vsel %vm707, %v551, 0
      %v762 = vsel %vm707, %v558, 0
      %v763 = vsel %vm707, %v565, 0
      %v764 = vsel %vm707, %v572, 0
      %v765 = vsel %vm707, %v579, 0
      %v766 = vsel %vm707, %v586, 0
      %v767 = vsel %vm707, %v593, 0
      %v768 = vsel %vm707, %v600, 0
      %v769 = vsel %vm707, %v607, 0
      %v770 = vsel %vm707, %v614, 0
      %v771 = vsel %vm707, %v621, 0
      %v772 = vsel %vm707, %v628, 0
      %v773 = vsel %vm707, %v635, 0
      %vm774 = vsmask.f32 7424
      %v776 = vshrl.u32 %v708, 16
      %v778 = vshll.u32 %v708, 16
      %v780 = vrot.slane %v778, 1
      %v781 = vor.u32 %v776, %v780
      %v783 = vshll.u32 %v741, 16
      %v785 = vrot.slane %v783, 1
      %v786 = vsel %vm774, %v781, %v785
      %v788 = vshrl.u32 %v709, 16
      %v790 = vshll.u32 %v709, 16
      %v792 = vrot.slane %v790, 1
      %v793 = vor.u32 %v788, %v792
      %v795 = vshll.u32 %v742, 16
      %v797 = vrot.slane %v795, 1
      %v798 = vsel %vm774, %v793, %v797
      %v800 = vshrl.u32 %v710, 16
      %v802 = vshll.u32 %v710, 16
      %v804 = vrot.slane %v802, 1
      %v805 = vor.u32 %v800, %v804
      %v807 = vshll.u32 %v743, 16
      %v809 = vrot.slane %v807, 1
      %v810 = vsel %vm774, %v805, %v809
      %v812 = vshrl.u32 %v711, 16
      %v814 = vshll.u32 %v711, 16
      %v816 = vrot.slane %v814, 1
      %v817 = vor.u32 %v812, %v816
      %v819 = vshll.u32 %v744, 16
      %v821 = vrot.slane %v819, 1
      %v822 = vsel %vm774, %v817, %v821
      %v824 = vshrl.u32 %v712, 16
      %v826 = vshll.u32 %v712, 16
      %v828 = vrot.slane %v826, 1
      %v829 = vor.u32 %v824, %v828
      %v831 = vshll.u32 %v745, 16
      %v833 = vrot.slane %v831, 1
      %v834 = vsel %vm774, %v829, %v833
      %v836 = vshrl.u32 %v713, 16
      %v838 = vshll.u32 %v713, 16
      %v840 = vrot.slane %v838, 1
      %v841 = vor.u32 %v836, %v840
      %v843 = vshll.u32 %v746, 16
      %v845 = vrot.slane %v843, 1
      %v846 = vsel %vm774, %v841, %v845
      %v848 = vshrl.u32 %v714, 16
      %v850 = vshll.u32 %v714, 16
      %v852 = vrot.slane %v850, 1
      %v853 = vor.u32 %v848, %v852
      %v855 = vshll.u32 %v747, 16
      %v857 = vrot.slane %v855, 1
      %v858 = vsel %vm774, %v853, %v857
      %v860 = vshrl.u32 %v715, 16
      %v862 = vshll.u32 %v715, 16
      %v864 = vrot.slane %v862, 1
      %v865 = vor.u32 %v860, %v864
      %v867 = vshll.u32 %v748, 16
      %v869 = vrot.slane %v867, 1
      %v870 = vsel %vm774, %v865, %v869
      %v872 = vshrl.u32 %v716, 16
      %v874 = vshll.u32 %v716, 16
      %v876 = vrot.slane %v874, 1
      %v877 = vor.u32 %v872, %v876
      %v879 = vshll.u32 %v749, 16
      %v881 = vrot.slane %v879, 1
      %v882 = vsel %vm774, %v877, %v881
      %v884 = vshrl.u32 %v717, 16
      %v886 = vshll.u32 %v717, 16
      %v888 = vrot.slane %v886, 1
      %v889 = vor.u32 %v884, %v888
      %v891 = vshll.u32 %v750, 16
      %v893 = vrot.slane %v891, 1
      %v894 = vsel %vm774, %v889, %v893
      %v896 = vshrl.u32 %v718, 16
      %v898 = vshll.u32 %v718, 16
      %v900 = vrot.slane %v898, 1
      %v901 = vor.u32 %v896, %v900
      %v903 = vshll.u32 %v751, 16
      %v905 = vrot.slane %v903, 1
      %v906 = vsel %vm774, %v901, %v905
      %v908 = vshrl.u32 %v719, 16
      %v910 = vshll.u32 %v719, 16
      %v912 = vrot.slane %v910, 1
      %v913 = vor.u32 %v908, %v912
      %v915 = vshll.u32 %v752, 16
      %v917 = vrot.slane %v915, 1
      %v918 = vsel %vm774, %v913, %v917
      %v920 = vshrl.u32 %v720, 16
      %v922 = vshll.u32 %v720, 16
      %v924 = vrot.slane %v922, 1
      %v925 = vor.u32 %v920, %v924
      %v927 = vshll.u32 %v753, 16
      %v929 = vrot.slane %v927, 1
      %v930 = vsel %vm774, %v925, %v929
      %v932 = vshrl.u32 %v721, 16
      %v934 = vshll.u32 %v721, 16
      %v936 = vrot.slane %v934, 1
      %v937 = vor.u32 %v932, %v936
      %v939 = vshll.u32 %v754, 16
      %v941 = vrot.slane %v939, 1
      %v942 = vsel %vm774, %v937, %v941
      %v944 = vshrl.u32 %v722, 16
      %v946 = vshll.u32 %v722, 16
      %v948 = vrot.slane %v946, 1
      %v949 = vor.u32 %v944, %v948
      %v951 = vshll.u32 %v755, 16
      %v953 = vrot.slane %v951, 1
      %v954 = vsel %vm774, %v949, %v953
      %v956 = vshrl.u32 %v723, 16
      %v958 = vshll.u32 %v723, 16
      %v960 = vrot.slane %v958, 1
      %v961 = vor.u32 %v956, %v960
      %v963 = vshll.u32 %v756, 16
      %v965 = vrot.slane %v963, 1
      %v966 = vsel %vm774, %v961, %v965
      %v968 = vshrl.u32 %v725, 16
      %v970 = vshll.u32 %v725, 16
      %v972 = vrot.slane %v970, 1
      %v973 = vor.u32 %v968, %v972
      %v975 = vshll.u32 %v758, 16
      %v977 = vrot.slane %v975, 1
      %v978 = vsel %vm774, %v973, %v977
      %v980 = vshrl.u32 %v726, 16
      %v982 = vshll.u32 %v726, 16
      %v984 = vrot.slane %v982, 1
      %v985 = vor.u32 %v980, %v984
      %v987 = vshll.u32 %v759, 16
      %v989 = vrot.slane %v987, 1
      %v990 = vsel %vm774, %v985, %v989
      %v992 = vshrl.u32 %v727, 16
      %v994 = vshll.u32 %v727, 16
      %v996 = vrot.slane %v994, 1
      %v997 = vor.u32 %v992, %v996
      %v999 = vshll.u32 %v760, 16
      %v1001 = vrot.slane %v999, 1
      %v1002 = vsel %vm774, %v997, %v1001
      %v1004 = vshrl.u32 %v728, 16
      %v1006 = vshll.u32 %v728, 16
      %v1008 = vrot.slane %v1006, 1
      %v1009 = vor.u32 %v1004, %v1008
      %v1011 = vshll.u32 %v761, 16
      %v1013 = vrot.slane %v1011, 1
      %v1014 = vsel %vm774, %v1009, %v1013
      %v1016 = vshrl.u32 %v729, 16
      %v1018 = vshll.u32 %v729, 16
      %v1020 = vrot.slane %v1018, 1
      %v1021 = vor.u32 %v1016, %v1020
      %v1023 = vshll.u32 %v762, 16
      %v1025 = vrot.slane %v1023, 1
      %v1026 = vsel %vm774, %v1021, %v1025
      %v1028 = vshrl.u32 %v730, 16
      %v1030 = vshll.u32 %v730, 16
      %v1032 = vrot.slane %v1030, 1
      %v1033 = vor.u32 %v1028, %v1032
      %v1035 = vshll.u32 %v763, 16
      %v1037 = vrot.slane %v1035, 1
      %v1038 = vsel %vm774, %v1033, %v1037
      %v1040 = vshrl.u32 %v731, 16
      %v1042 = vshll.u32 %v731, 16
      %v1044 = vrot.slane %v1042, 1
      %v1045 = vor.u32 %v1040, %v1044
      %v1047 = vshll.u32 %v764, 16
      %v1049 = vrot.slane %v1047, 1
      %v1050 = vsel %vm774, %v1045, %v1049
      %v1052 = vshrl.u32 %v732, 16
      %v1054 = vshll.u32 %v732, 16
      %v1056 = vrot.slane %v1054, 1
      %v1057 = vor.u32 %v1052, %v1056
      %v1059 = vshll.u32 %v765, 16
      %v1061 = vrot.slane %v1059, 1
      %v1062 = vsel %vm774, %v1057, %v1061
      %v1064 = vshrl.u32 %v733, 16
      %v1066 = vshll.u32 %v733, 16
      %v1068 = vrot.slane %v1066, 1
      %v1069 = vor.u32 %v1064, %v1068
      %v1071 = vshll.u32 %v766, 16
      %v1073 = vrot.slane %v1071, 1
      %v1074 = vsel %vm774, %v1069, %v1073
      %v1076 = vshrl.u32 %v734, 16
      %v1078 = vshll.u32 %v734, 16
      %v1080 = vrot.slane %v1078, 1
      %v1081 = vor.u32 %v1076, %v1080
      %v1083 = vshll.u32 %v767, 16
      %v1085 = vrot.slane %v1083, 1
      %v1086 = vsel %vm774, %v1081, %v1085
      %v1088 = vshrl.u32 %v735, 16
      %v1090 = vshll.u32 %v735, 16
      %v1092 = vrot.slane %v1090, 1
      %v1093 = vor.u32 %v1088, %v1092
      %v1095 = vshll.u32 %v768, 16
      %v1097 = vrot.slane %v1095, 1
      %v1098 = vsel %vm774, %v1093, %v1097
      %v1100 = vshrl.u32 %v736, 16
      %v1102 = vshll.u32 %v736, 16
      %v1104 = vrot.slane %v1102, 1
      %v1105 = vor.u32 %v1100, %v1104
      %v1107 = vshll.u32 %v769, 16
      %v1109 = vrot.slane %v1107, 1
      %v1110 = vsel %vm774, %v1105, %v1109
      %v1112 = vshrl.u32 %v737, 16
      %v1114 = vshll.u32 %v737, 16
      %v1116 = vrot.slane %v1114, 1
      %v1117 = vor.u32 %v1112, %v1116
      %v1119 = vshll.u32 %v770, 16
      %v1121 = vrot.slane %v1119, 1
      %v1122 = vsel %vm774, %v1117, %v1121
      %v1124 = vshrl.u32 %v738, 16
      %v1126 = vshll.u32 %v738, 16
      %v1128 = vrot.slane %v1126, 1
      %v1129 = vor.u32 %v1124, %v1128
      %v1131 = vshll.u32 %v771, 16
      %v1133 = vrot.slane %v1131, 1
      %v1134 = vsel %vm774, %v1129, %v1133
      %v1136 = vshrl.u32 %v739, 16
      %v1138 = vshll.u32 %v739, 16
      %v1140 = vrot.slane %v1138, 1
      %v1141 = vor.u32 %v1136, %v1140
      %v1143 = vshll.u32 %v772, 16
      %v1145 = vrot.slane %v1143, 1
      %v1146 = vsel %vm774, %v1141, %v1145
      %1147 = vrot.lane.b32.xlu0 %v786, 2
      %v1148 = vpop.permute.xlu0 %1147
      %1149 = vrot.lane.b32.xlu0 %v798, 2
      %v1150 = vpop.permute.xlu0 %1149
      %1151 = vrot.lane.b32.xlu0 %v810, 2
      %v1152 = vpop.permute.xlu0 %1151
      %1153 = vrot.lane.b32.xlu0 %v822, 2
      %v1154 = vpop.permute.xlu0 %1153
      %1155 = vrot.lane.b32.xlu0 %v834, 2
      %v1156 = vpop.permute.xlu0 %1155
      %1157 = vrot.lane.b32.xlu0 %v846, 2
      %v1158 = vpop.permute.xlu0 %1157
      %1159 = vrot.lane.b32.xlu0 %v858, 2
      %v1160 = vpop.permute.xlu0 %1159
      %1161 = vrot.lane.b32.xlu0 %v870, 2
      %v1162 = vpop.permute.xlu0 %1161
      %1163 = vrot.lane.b32.xlu0 %v882, 2
      %v1164 = vpop.permute.xlu0 %1163
      %1165 = vrot.lane.b32.xlu0 %v894, 2
      %v1166 = vpop.permute.xlu0 %1165
      %1167 = vrot.lane.b32.xlu0 %v906, 2
      %v1168 = vpop.permute.xlu0 %1167
      %1169 = vrot.lane.b32.xlu0 %v918, 2
      %v1170 = vpop.permute.xlu0 %1169
      %1171 = vrot.lane.b32.xlu0 %v930, 2
      %v1172 = vpop.permute.xlu0 %1171
      %1173 = vrot.lane.b32.xlu0 %v942, 2
      %v1174 = vpop.permute.xlu0 %1173
      %1175 = vrot.lane.b32.xlu0 %v954, 2
      %v1176 = vpop.permute.xlu0 %1175
      %1177 = vrot.lane.b32.xlu0 %v966, 2
      %v1178 = vpop.permute.xlu0 %1177
      %1179 = vrot.lane.b32.xlu0 %v978, 2
      %v1180 = vpop.permute.xlu0 %1179
      %1181 = vrot.lane.b32.xlu0 %v990, 2
      %v1182 = vpop.permute.xlu0 %1181
      %1183 = vrot.lane.b32.xlu0 %v1002, 2
      %v1184 = vpop.permute.xlu0 %1183
      %1185 = vrot.lane.b32.xlu0 %v1014, 2
      %v1186 = vpop.permute.xlu0 %1185
      %1187 = vrot.lane.b32.xlu0 %v1026, 2
      %v1188 = vpop.permute.xlu0 %1187
      %1189 = vrot.lane.b32.xlu0 %v1038, 2
      %v1190 = vpop.permute.xlu0 %1189
      %1191 = vrot.lane.b32.xlu0 %v1050, 2
      %v1192 = vpop.permute.xlu0 %1191
      %1193 = vrot.lane.b32.xlu0 %v1062, 2
      %v1194 = vpop.permute.xlu0 %1193
      %1195 = vrot.lane.b32.xlu0 %v1074, 2
      %v1196 = vpop.permute.xlu0 %1195
      %1197 = vrot.lane.b32.xlu0 %v1086, 2
      %v1198 = vpop.permute.xlu0 %1197
      %1199 = vrot.lane.b32.xlu0 %v1098, 2
      %v1200 = vpop.permute.xlu0 %1199
      %1201 = vrot.lane.b32.xlu0 %v1110, 2
      %v1202 = vpop.permute.xlu0 %1201
      %1203 = vrot.lane.b32.xlu0 %v1122, 2
      %v1204 = vpop.permute.xlu0 %1203
      %1205 = vrot.lane.b32.xlu0 %v1134, 2
      %v1206 = vpop.permute.xlu0 %1205
      %1207 = vrot.lane.b32.xlu0 %v1146, 2
      %v1208 = vpop.permute.xlu0 %1207
      %vm1271 = vcmask 1046528
      %v1272 = vrot.slane %v708, 1
      %v1273 = vrot.slane %v741, 1
      %v1274 = vsel %vm1271, %v1272, %v1273
      %v1275 = vrot.slane %v709, 1
      %v1276 = vrot.slane %v742, 1
      %v1277 = vsel %vm1271, %v1275, %v1276
      %v1278 = vrot.slane %v710, 1
      %v1279 = vrot.slane %v743, 1
      %v1280 = vsel %vm1271, %v1278, %v1279
      %v1281 = vrot.slane %v711, 1
      %v1282 = vrot.slane %v744, 1
      %v1283 = vsel %vm1271, %v1281, %v1282
      %v1284 = vrot.slane %v712, 1
      %v1285 = vrot.slane %v745, 1
      %v1286 = vsel %vm1271, %v1284, %v1285
      %v1287 = vrot.slane %v713, 1
      %v1288 = vrot.slane %v746, 1
      %v1289 = vsel %vm1271, %v1287, %v1288
      %v1290 = vrot.slane %v714, 1
      %v1291 = vrot.slane %v747, 1
      %v1292 = vsel %vm1271, %v1290, %v1291
      %v1293 = vrot.slane %v715, 1
      %v1294 = vrot.slane %v748, 1
      %v1295 = vsel %vm1271, %v1293, %v1294
      %v1296 = vrot.slane %v716, 1
      %v1297 = vrot.slane %v749, 1
      %v1298 = vsel %vm1271, %v1296, %v1297
      %v1299 = vrot.slane %v717, 1
      %v1300 = vrot.slane %v750, 1
      %v1301 = vsel %vm1271, %v1299, %v1300
      %v1302 = vrot.slane %v718, 1
      %v1303 = vrot.slane %v751, 1
      %v1304 = vsel %vm1271, %v1302, %v1303
      %v1305 = vrot.slane %v719, 1
      %v1306 = vrot.slane %v752, 1
      %v1307 = vsel %vm1271, %v1305, %v1306
      %v1308 = vrot.slane %v720, 1
      %v1309 = vrot.slane %v753, 1
      %v1310 = vsel %vm1271, %v1308, %v1309
      %v1311 = vrot.slane %v721, 1
      %v1312 = vrot.slane %v754, 1
      %v1313 = vsel %vm1271, %v1311, %v1312
      %v1314 = vrot.slane %v722, 1
      %v1315 = vrot.slane %v755, 1
      %v1316 = vsel %vm1271, %v1314, %v1315
      %v1317 = vrot.slane %v723, 1
      %v1318 = vrot.slane %v756, 1
      %v1319 = vsel %vm1271, %v1317, %v1318
      %v1320 = vrot.slane %v725, 1
      %v1321 = vrot.slane %v758, 1
      %v1322 = vsel %vm1271, %v1320, %v1321
      %v1323 = vrot.slane %v726, 1
      %v1324 = vrot.slane %v759, 1
      %v1325 = vsel %vm1271, %v1323, %v1324
      %v1326 = vrot.slane %v727, 1
      %v1327 = vrot.slane %v760, 1
      %v1328 = vsel %vm1271, %v1326, %v1327
      %v1329 = vrot.slane %v728, 1
      %v1330 = vrot.slane %v761, 1
      %v1331 = vsel %vm1271, %v1329, %v1330
      %v1332 = vrot.slane %v729, 1
      %v1333 = vrot.slane %v762, 1
      %v1334 = vsel %vm1271, %v1332, %v1333
      %v1335 = vrot.slane %v730, 1
      %v1336 = vrot.slane %v763, 1
      %v1337 = vsel %vm1271, %v1335, %v1336
      %v1338 = vrot.slane %v731, 1
      %v1339 = vrot.slane %v764, 1
      %v1340 = vsel %vm1271, %v1338, %v1339
      %v1341 = vrot.slane %v732, 1
      %v1342 = vrot.slane %v765, 1
      %v1343 = vsel %vm1271, %v1341, %v1342
      %v1344 = vrot.slane %v733, 1
      %v1345 = vrot.slane %v766, 1
      %v1346 = vsel %vm1271, %v1344, %v1345
      %v1347 = vrot.slane %v734, 1
      %v1348 = vrot.slane %v767, 1
      %v1349 = vsel %vm1271, %v1347, %v1348
      %v1350 = vrot.slane %v735, 1
      %v1351 = vrot.slane %v768, 1
      %v1352 = vsel %vm1271, %v1350, %v1351
      %v1353 = vrot.slane %v736, 1
      %v1354 = vrot.slane %v769, 1
      %v1355 = vsel %vm1271, %v1353, %v1354
      %v1356 = vrot.slane %v737, 1
      %v1357 = vrot.slane %v770, 1
      %v1358 = vsel %vm1271, %v1356, %v1357
      %v1359 = vrot.slane %v738, 1
      %v1360 = vrot.slane %v771, 1
      %v1361 = vsel %vm1271, %v1359, %v1360
      %v1362 = vrot.slane %v739, 1
      %v1363 = vrot.slane %v772, 1
      %v1364 = vsel %vm1271, %v1362, %v1363
      %1365 = vrot.lane.b32.xlu0 %v1274, 4
      %v1366 = vpop.permute.xlu0 %1365
      %1367 = vrot.lane.b32.xlu0 %v1277, 4
      %v1368 = vpop.permute.xlu0 %1367
      %1369 = vrot.lane.b32.xlu0 %v1280, 4
      %v1370 = vpop.permute.xlu0 %1369
      %1371 = vrot.lane.b32.xlu0 %v1283, 4
      %v1372 = vpop.permute.xlu0 %1371
      %1373 = vrot.lane.b32.xlu0 %v1286, 4
      %v1374 = vpop.permute.xlu0 %1373
      %1375 = vrot.lane.b32.xlu0 %v1289, 4
      %v1376 = vpop.permute.xlu0 %1375
      %1377 = vrot.lane.b32.xlu0 %v1292, 4
      %v1378 = vpop.permute.xlu0 %1377
      %1379 = vrot.lane.b32.xlu0 %v1295, 4
      %v1380 = vpop.permute.xlu0 %1379
      %1381 = vrot.lane.b32.xlu0 %v1298, 4
      %v1382 = vpop.permute.xlu0 %1381
      %1383 = vrot.lane.b32.xlu0 %v1301, 4
      %v1384 = vpop.permute.xlu0 %1383
      %1385 = vrot.lane.b32.xlu0 %v1304, 4
      %v1386 = vpop.permute.xlu0 %1385
      %1387 = vrot.lane.b32.xlu0 %v1307, 4
      %v1388 = vpop.permute.xlu0 %1387
      %1389 = vrot.lane.b32.xlu0 %v1310, 4
      %v1390 = vpop.permute.xlu0 %1389
      %1391 = vrot.lane.b32.xlu0 %v1313, 4
      %v1392 = vpop.permute.xlu0 %1391
      %1393 = vrot.lane.b32.xlu0 %v1316, 4
      %v1394 = vpop.permute.xlu0 %1393
      %1395 = vrot.lane.b32.xlu0 %v1319, 4
      %v1396 = vpop.permute.xlu0 %1395
      %1397 = vrot.lane.b32.xlu0 %v1322, 4
      %v1398 = vpop.permute.xlu0 %1397
      %1399 = vrot.lane.b32.xlu0 %v1325, 4
      %v1400 = vpop.permute.xlu0 %1399
      %1401 = vrot.lane.b32.xlu0 %v1328, 4
      %v1402 = vpop.permute.xlu0 %1401
      %1403 = vrot.lane.b32.xlu0 %v1331, 4
      %v1404 = vpop.permute.xlu0 %1403
      %1405 = vrot.lane.b32.xlu0 %v1334, 4
      %v1406 = vpop.permute.xlu0 %1405
      %1407 = vrot.lane.b32.xlu0 %v1337, 4
      %v1408 = vpop.permute.xlu0 %1407
      %1409 = vrot.lane.b32.xlu0 %v1340, 4
      %v1410 = vpop.permute.xlu0 %1409
      %1411 = vrot.lane.b32.xlu0 %v1343, 4
      %v1412 = vpop.permute.xlu0 %1411
      %1413 = vrot.lane.b32.xlu0 %v1346, 4
      %v1414 = vpop.permute.xlu0 %1413
      %1415 = vrot.lane.b32.xlu0 %v1349, 4
      %v1416 = vpop.permute.xlu0 %1415
      %1417 = vrot.lane.b32.xlu0 %v1352, 4
      %v1418 = vpop.permute.xlu0 %1417
      %1419 = vrot.lane.b32.xlu0 %v1355, 4
      %v1420 = vpop.permute.xlu0 %1419
      %1421 = vrot.lane.b32.xlu0 %v1358, 4
      %v1422 = vpop.permute.xlu0 %1421
      %1423 = vrot.lane.b32.xlu0 %v1361, 4
      %v1424 = vpop.permute.xlu0 %1423
      %1425 = vrot.lane.b32.xlu0 %v1364, 4
      %v1426 = vpop.permute.xlu0 %1425
      %1429 = vrot.lane.b32.xlu0 %v709, 6
      %v1430 = vpop.permute.xlu0 %1429
      %1431 = vrot.lane.b32.xlu0 %v710, 6
      %v1432 = vpop.permute.xlu0 %1431
      %1433 = vrot.lane.b32.xlu0 %v711, 6
      %v1434 = vpop.permute.xlu0 %1433
      %1435 = vrot.lane.b32.xlu0 %v712, 6
      %v1436 = vpop.permute.xlu0 %1435
      %1437 = vrot.lane.b32.xlu0 %v713, 6
      %v1438 = vpop.permute.xlu0 %1437
      %1439 = vrot.lane.b32.xlu0 %v714, 6
      %v1440 = vpop.permute.xlu0 %1439
      %1441 = vrot.lane.b32.xlu0 %v715, 6
      %v1442 = vpop.permute.xlu0 %1441
      %1443 = vrot.lane.b32.xlu0 %v716, 6
      %v1444 = vpop.permute.xlu0 %1443
      %1445 = vrot.lane.b32.xlu0 %v717, 6
      %v1446 = vpop.permute.xlu0 %1445
      %1447 = vrot.lane.b32.xlu0 %v718, 6
      %v1448 = vpop.permute.xlu0 %1447
      %1449 = vrot.lane.b32.xlu0 %v719, 6
      %v1450 = vpop.permute.xlu0 %1449
      %1451 = vrot.lane.b32.xlu0 %v720, 6
      %v1452 = vpop.permute.xlu0 %1451
      %1453 = vrot.lane.b32.xlu0 %v721, 6
      %v1454 = vpop.permute.xlu0 %1453
      %1455 = vrot.lane.b32.xlu0 %v722, 6
      %v1456 = vpop.permute.xlu0 %1455
      %1457 = vrot.lane.b32.xlu0 %v723, 6
      %v1458 = vpop.permute.xlu0 %1457
      %1459 = vrot.lane.b32.xlu0 %v724, 6
      %v1460 = vpop.permute.xlu0 %1459
      %1461 = vrot.lane.b32.xlu0 %v725, 6
      %v1462 = vpop.permute.xlu0 %1461
      %1463 = vrot.lane.b32.xlu0 %v726, 6
      %v1464 = vpop.permute.xlu0 %1463
      %1465 = vrot.lane.b32.xlu0 %v727, 6
      %v1466 = vpop.permute.xlu0 %1465
      %1467 = vrot.lane.b32.xlu0 %v728, 6
      %v1468 = vpop.permute.xlu0 %1467
      %1469 = vrot.lane.b32.xlu0 %v729, 6
      %v1470 = vpop.permute.xlu0 %1469
      %1471 = vrot.lane.b32.xlu0 %v730, 6
      %v1472 = vpop.permute.xlu0 %1471
      %1473 = vrot.lane.b32.xlu0 %v731, 6
      %v1474 = vpop.permute.xlu0 %1473
      %1475 = vrot.lane.b32.xlu0 %v732, 6
      %v1476 = vpop.permute.xlu0 %1475
      %1477 = vrot.lane.b32.xlu0 %v733, 6
      %v1478 = vpop.permute.xlu0 %1477
      %1479 = vrot.lane.b32.xlu0 %v734, 6
      %v1480 = vpop.permute.xlu0 %1479
      %1481 = vrot.lane.b32.xlu0 %v735, 6
      %v1482 = vpop.permute.xlu0 %1481
      %1483 = vrot.lane.b32.xlu0 %v736, 6
      %v1484 = vpop.permute.xlu0 %1483
      %1485 = vrot.lane.b32.xlu0 %v737, 6
      %v1486 = vpop.permute.xlu0 %1485
      %1487 = vrot.lane.b32.xlu0 %v738, 6
      %v1488 = vpop.permute.xlu0 %1487
      %1489 = vrot.lane.b32.xlu0 %v739, 6
      %v1490 = vpop.permute.xlu0 %1489
      %1491 = vrot.lane.b32.xlu0 %v740, 6
      %v1492 = vpop.permute.xlu0 %1491
      %v1494 = vshrl.u32 %v724, 16
      %v1496 = vshll.u32 %v724, 16
      %v1498 = vrot.slane %v1496, 1
      %v1499 = vor.u32 %v1494, %v1498
      %v1501 = vshll.u32 %v757, 16
      %v1503 = vrot.slane %v1501, 1
      %v1504 = vsel %vm774, %v1499, %v1503
      %v1506 = vshrl.u32 %v740, 16
      %v1508 = vshll.u32 %v740, 16
      %v1510 = vrot.slane %v1508, 1
      %v1511 = vor.u32 %v1506, %v1510
      %v1513 = vshll.u32 %v773, 16
      %v1515 = vrot.slane %v1513, 1
      %v1516 = vsel %vm774, %v1511, %v1515
      %1517 = vrot.lane.b32.xlu0 %v798, 8
      %v1518 = vpop.permute.xlu0 %1517
      %1519 = vrot.lane.b32.xlu0 %v810, 8
      %v1520 = vpop.permute.xlu0 %1519
      %1521 = vrot.lane.b32.xlu0 %v822, 8
      %v1522 = vpop.permute.xlu0 %1521
      %1523 = vrot.lane.b32.xlu0 %v834, 8
      %v1524 = vpop.permute.xlu0 %1523
      %1525 = vrot.lane.b32.xlu0 %v846, 8
      %v1526 = vpop.permute.xlu0 %1525
      %1527 = vrot.lane.b32.xlu0 %v858, 8
      %v1528 = vpop.permute.xlu0 %1527
      %1529 = vrot.lane.b32.xlu0 %v870, 8
      %v1530 = vpop.permute.xlu0 %1529
      %1531 = vrot.lane.b32.xlu0 %v882, 8
      %v1532 = vpop.permute.xlu0 %1531
      %1533 = vrot.lane.b32.xlu0 %v894, 8
      %v1534 = vpop.permute.xlu0 %1533
      %1535 = vrot.lane.b32.xlu0 %v906, 8
      %v1536 = vpop.permute.xlu0 %1535
      %1537 = vrot.lane.b32.xlu0 %v918, 8
      %v1538 = vpop.permute.xlu0 %1537
      %1539 = vrot.lane.b32.xlu0 %v930, 8
      %v1540 = vpop.permute.xlu0 %1539
      %1541 = vrot.lane.b32.xlu0 %v942, 8
      %v1542 = vpop.permute.xlu0 %1541
      %1543 = vrot.lane.b32.xlu0 %v954, 8
      %v1544 = vpop.permute.xlu0 %1543
      %1545 = vrot.lane.b32.xlu0 %v966, 8
      %v1546 = vpop.permute.xlu0 %1545
      %1547 = vrot.lane.b32.xlu0 %v1504, 8
      %v1548 = vpop.permute.xlu0 %1547
      %1549 = vrot.lane.b32.xlu0 %v978, 8
      %v1550 = vpop.permute.xlu0 %1549
      %1551 = vrot.lane.b32.xlu0 %v990, 8
      %v1552 = vpop.permute.xlu0 %1551
      %1553 = vrot.lane.b32.xlu0 %v1002, 8
      %v1554 = vpop.permute.xlu0 %1553
      %1555 = vrot.lane.b32.xlu0 %v1014, 8
      %v1556 = vpop.permute.xlu0 %1555
      %1557 = vrot.lane.b32.xlu0 %v1026, 8
      %v1558 = vpop.permute.xlu0 %1557
      %1559 = vrot.lane.b32.xlu0 %v1038, 8
      %v1560 = vpop.permute.xlu0 %1559
      %1561 = vrot.lane.b32.xlu0 %v1050, 8
      %v1562 = vpop.permute.xlu0 %1561
      %1563 = vrot.lane.b32.xlu0 %v1062, 8
      %v1564 = vpop.permute.xlu0 %1563
      %1565 = vrot.lane.b32.xlu0 %v1074, 8
      %v1566 = vpop.permute.xlu0 %1565
      %1567 = vrot.lane.b32.xlu0 %v1086, 8
      %v1568 = vpop.permute.xlu0 %1567
      %1569 = vrot.lane.b32.xlu0 %v1098, 8
      %v1570 = vpop.permute.xlu0 %1569
      %1571 = vrot.lane.b32.xlu0 %v1110, 8
      %v1572 = vpop.permute.xlu0 %1571
      %1573 = vrot.lane.b32.xlu0 %v1122, 8
      %v1574 = vpop.permute.xlu0 %1573
      %1575 = vrot.lane.b32.xlu0 %v1134, 8
      %v1576 = vpop.permute.xlu0 %1575
      %1577 = vrot.lane.b32.xlu0 %v1146, 8
      %v1578 = vpop.permute.xlu0 %1577
      %1579 = vrot.lane.b32.xlu0 %v1516, 8
      %v1580 = vpop.permute.xlu0 %1579
      %v1583 = vrot.slane %v724, 1
      %v1584 = vrot.slane %v757, 1
      %v1585 = vsel %vm1271, %v1583, %v1584
      %v1586 = vrot.slane %v740, 1
      %v1587 = vrot.slane %v773, 1
      %v1588 = vsel %vm1271, %v1586, %v1587
      %1589 = vrot.lane.b32.xlu0 %v1277, 10
      %v1590 = vpop.permute.xlu0 %1589
      %1591 = vrot.lane.b32.xlu0 %v1280, 10
      %v1592 = vpop.permute.xlu0 %1591
      %1593 = vrot.lane.b32.xlu0 %v1283, 10
      %v1594 = vpop.permute.xlu0 %1593
      %1595 = vrot.lane.b32.xlu0 %v1286, 10
      %v1596 = vpop.permute.xlu0 %1595
      %1597 = vrot.lane.b32.xlu0 %v1289, 10
      %v1598 = vpop.permute.xlu0 %1597
      %1599 = vrot.lane.b32.xlu0 %v1292, 10
      %v1600 = vpop.permute.xlu0 %1599
      %1601 = vrot.lane.b32.xlu0 %v1295, 10
      %v1602 = vpop.permute.xlu0 %1601
      %1603 = vrot.lane.b32.xlu0 %v1298, 10
      %v1604 = vpop.permute.xlu0 %1603
      %1605 = vrot.lane.b32.xlu0 %v1301, 10
      %v1606 = vpop.permute.xlu0 %1605
      %1607 = vrot.lane.b32.xlu0 %v1304, 10
      %v1608 = vpop.permute.xlu0 %1607
      %1609 = vrot.lane.b32.xlu0 %v1307, 10
      %v1610 = vpop.permute.xlu0 %1609
      %1611 = vrot.lane.b32.xlu0 %v1310, 10
      %v1612 = vpop.permute.xlu0 %1611
      %1613 = vrot.lane.b32.xlu0 %v1313, 10
      %v1614 = vpop.permute.xlu0 %1613
      %1615 = vrot.lane.b32.xlu0 %v1316, 10
      %v1616 = vpop.permute.xlu0 %1615
      %1617 = vrot.lane.b32.xlu0 %v1319, 10
      %v1618 = vpop.permute.xlu0 %1617
      %1619 = vrot.lane.b32.xlu0 %v1585, 10
      %v1620 = vpop.permute.xlu0 %1619
      %1621 = vrot.lane.b32.xlu0 %v1322, 10
      %v1622 = vpop.permute.xlu0 %1621
      %1623 = vrot.lane.b32.xlu0 %v1325, 10
      %v1624 = vpop.permute.xlu0 %1623
      %1625 = vrot.lane.b32.xlu0 %v1328, 10
      %v1626 = vpop.permute.xlu0 %1625
      %1627 = vrot.lane.b32.xlu0 %v1331, 10
      %v1628 = vpop.permute.xlu0 %1627
      %1629 = vrot.lane.b32.xlu0 %v1334, 10
      %v1630 = vpop.permute.xlu0 %1629
      %1631 = vrot.lane.b32.xlu0 %v1337, 10
      %v1632 = vpop.permute.xlu0 %1631
      %1633 = vrot.lane.b32.xlu0 %v1340, 10
      %v1634 = vpop.permute.xlu0 %1633
      %1635 = vrot.lane.b32.xlu0 %v1343, 10
      %v1636 = vpop.permute.xlu0 %1635
      %1637 = vrot.lane.b32.xlu0 %v1346, 10
      %v1638 = vpop.permute.xlu0 %1637
      %1639 = vrot.lane.b32.xlu0 %v1349, 10
      %v1640 = vpop.permute.xlu0 %1639
      %1641 = vrot.lane.b32.xlu0 %v1352, 10
      %v1642 = vpop.permute.xlu0 %1641
      %1643 = vrot.lane.b32.xlu0 %v1355, 10
      %v1644 = vpop.permute.xlu0 %1643
      %1645 = vrot.lane.b32.xlu0 %v1358, 10
      %v1646 = vpop.permute.xlu0 %1645
      %1647 = vrot.lane.b32.xlu0 %v1361, 10
      %v1648 = vpop.permute.xlu0 %1647
      %1649 = vrot.lane.b32.xlu0 %v1364, 10
      %v1650 = vpop.permute.xlu0 %1649
      %1651 = vrot.lane.b32.xlu0 %v1588, 10
      %v1652 = vpop.permute.xlu0 %1651
      %1653 = vrot.lane.b32.xlu0 %v710, 12
      %v1654 = vpop.permute.xlu0 %1653
      %1655 = vrot.lane.b32.xlu0 %v711, 12
      %v1656 = vpop.permute.xlu0 %1655
      %1657 = vrot.lane.b32.xlu0 %v712, 12
      %v1658 = vpop.permute.xlu0 %1657
      %1659 = vrot.lane.b32.xlu0 %v713, 12
      %v1660 = vpop.permute.xlu0 %1659
      %1661 = vrot.lane.b32.xlu0 %v714, 12
      %v1662 = vpop.permute.xlu0 %1661
      %1663 = vrot.lane.b32.xlu0 %v715, 12
      %v1664 = vpop.permute.xlu0 %1663
      %1665 = vrot.lane.b32.xlu0 %v716, 12
      %v1666 = vpop.permute.xlu0 %1665
      %1667 = vrot.lane.b32.xlu0 %v717, 12
      %v1668 = vpop.permute.xlu0 %1667
      %1669 = vrot.lane.b32.xlu0 %v718, 12
      %v1670 = vpop.permute.xlu0 %1669
      %1671 = vrot.lane.b32.xlu0 %v719, 12
      %v1672 = vpop.permute.xlu0 %1671
      %1673 = vrot.lane.b32.xlu0 %v720, 12
      %v1674 = vpop.permute.xlu0 %1673
      %1675 = vrot.lane.b32.xlu0 %v721, 12
      %v1676 = vpop.permute.xlu0 %1675
      %1677 = vrot.lane.b32.xlu0 %v722, 12
      %v1678 = vpop.permute.xlu0 %1677
      %1679 = vrot.lane.b32.xlu0 %v723, 12
      %v1680 = vpop.permute.xlu0 %1679
      %1681 = vrot.lane.b32.xlu0 %v724, 12
      %v1682 = vpop.permute.xlu0 %1681
      %1683 = vrot.lane.b32.xlu0 %v708, 12
      %v1684 = vpop.permute.xlu0 %1683
      %1685 = vrot.lane.b32.xlu0 %v726, 12
      %v1686 = vpop.permute.xlu0 %1685
      %1687 = vrot.lane.b32.xlu0 %v727, 12
      %v1688 = vpop.permute.xlu0 %1687
      %1689 = vrot.lane.b32.xlu0 %v728, 12
      %v1690 = vpop.permute.xlu0 %1689
      %1691 = vrot.lane.b32.xlu0 %v729, 12
      %v1692 = vpop.permute.xlu0 %1691
      %1693 = vrot.lane.b32.xlu0 %v730, 12
      %v1694 = vpop.permute.xlu0 %1693
      %1695 = vrot.lane.b32.xlu0 %v731, 12
      %v1696 = vpop.permute.xlu0 %1695
      %1697 = vrot.lane.b32.xlu0 %v732, 12
      %v1698 = vpop.permute.xlu0 %1697
      %1699 = vrot.lane.b32.xlu0 %v733, 12
      %v1700 = vpop.permute.xlu0 %1699
      %1701 = vrot.lane.b32.xlu0 %v734, 12
      %v1702 = vpop.permute.xlu0 %1701
      %1703 = vrot.lane.b32.xlu0 %v735, 12
      %v1704 = vpop.permute.xlu0 %1703
      %1705 = vrot.lane.b32.xlu0 %v736, 12
      %v1706 = vpop.permute.xlu0 %1705
      %1707 = vrot.lane.b32.xlu0 %v737, 12
      %v1708 = vpop.permute.xlu0 %1707
      %1709 = vrot.lane.b32.xlu0 %v738, 12
      %v1710 = vpop.permute.xlu0 %1709
      %1711 = vrot.lane.b32.xlu0 %v739, 12
      %v1712 = vpop.permute.xlu0 %1711
      %1713 = vrot.lane.b32.xlu0 %v740, 12
      %v1714 = vpop.permute.xlu0 %1713
      %1715 = vrot.lane.b32.xlu0 %v810, 14
      %v1716 = vpop.permute.xlu0 %1715
      %1717 = vrot.lane.b32.xlu0 %v822, 14
      %v1718 = vpop.permute.xlu0 %1717
      %1719 = vrot.lane.b32.xlu0 %v834, 14
      %v1720 = vpop.permute.xlu0 %1719
      %1721 = vrot.lane.b32.xlu0 %v846, 14
      %v1722 = vpop.permute.xlu0 %1721
      %1723 = vrot.lane.b32.xlu0 %v858, 14
      %v1724 = vpop.permute.xlu0 %1723
      %1725 = vrot.lane.b32.xlu0 %v870, 14
      %v1726 = vpop.permute.xlu0 %1725
      %1727 = vrot.lane.b32.xlu0 %v882, 14
      %v1728 = vpop.permute.xlu0 %1727
      %1729 = vrot.lane.b32.xlu0 %v894, 14
      %v1730 = vpop.permute.xlu0 %1729
      %1731 = vrot.lane.b32.xlu0 %v906, 14
      %v1732 = vpop.permute.xlu0 %1731
      %1733 = vrot.lane.b32.xlu0 %v918, 14
      %v1734 = vpop.permute.xlu0 %1733
      %1735 = vrot.lane.b32.xlu0 %v930, 14
      %v1736 = vpop.permute.xlu0 %1735
      %1737 = vrot.lane.b32.xlu0 %v942, 14
      %v1738 = vpop.permute.xlu0 %1737
      %1739 = vrot.lane.b32.xlu0 %v954, 14
      %v1740 = vpop.permute.xlu0 %1739
      %1741 = vrot.lane.b32.xlu0 %v966, 14
      %v1742 = vpop.permute.xlu0 %1741
      %1743 = vrot.lane.b32.xlu0 %v1504, 14
      %v1744 = vpop.permute.xlu0 %1743
      %1745 = vrot.lane.b32.xlu0 %v786, 14
      %v1746 = vpop.permute.xlu0 %1745
      %1747 = vrot.lane.b32.xlu0 %v990, 14
      %v1748 = vpop.permute.xlu0 %1747
      %1749 = vrot.lane.b32.xlu0 %v1002, 14
      %v1750 = vpop.permute.xlu0 %1749
      %1751 = vrot.lane.b32.xlu0 %v1014, 14
      %v1752 = vpop.permute.xlu0 %1751
      %1753 = vrot.lane.b32.xlu0 %v1026, 14
      %v1754 = vpop.permute.xlu0 %1753
      %1755 = vrot.lane.b32.xlu0 %v1038, 14
      %v1756 = vpop.permute.xlu0 %1755
      %1757 = vrot.lane.b32.xlu0 %v1050, 14
      %v1758 = vpop.permute.xlu0 %1757
      %1759 = vrot.lane.b32.xlu0 %v1062, 14
      %v1760 = vpop.permute.xlu0 %1759
      %1761 = vrot.lane.b32.xlu0 %v1074, 14
      %v1762 = vpop.permute.xlu0 %1761
      %1763 = vrot.lane.b32.xlu0 %v1086, 14
      %v1764 = vpop.permute.xlu0 %1763
      %1765 = vrot.lane.b32.xlu0 %v1098, 14
      %v1766 = vpop.permute.xlu0 %1765
      %1767 = vrot.lane.b32.xlu0 %v1110, 14
      %v1768 = vpop.permute.xlu0 %1767
      %1769 = vrot.lane.b32.xlu0 %v1122, 14
      %v1770 = vpop.permute.xlu0 %1769
      %1771 = vrot.lane.b32.xlu0 %v1134, 14
      %v1772 = vpop.permute.xlu0 %1771
      %1773 = vrot.lane.b32.xlu0 %v1146, 14
      %v1774 = vpop.permute.xlu0 %1773
      %1775 = vrot.lane.b32.xlu0 %v1516, 14
      %v1776 = vpop.permute.xlu0 %1775
      %1777 = vrot.lane.b32.xlu0 %v1280, 16
      %v1778 = vpop.permute.xlu0 %1777
      %1779 = vrot.lane.b32.xlu0 %v1283, 16
      %v1780 = vpop.permute.xlu0 %1779
      %1781 = vrot.lane.b32.xlu0 %v1286, 16
      %v1782 = vpop.permute.xlu0 %1781
      %1783 = vrot.lane.b32.xlu0 %v1289, 16
      %v1784 = vpop.permute.xlu0 %1783
      %1785 = vrot.lane.b32.xlu0 %v1292, 16
      %v1786 = vpop.permute.xlu0 %1785
      %1787 = vrot.lane.b32.xlu0 %v1295, 16
      %v1788 = vpop.permute.xlu0 %1787
      %1789 = vrot.lane.b32.xlu0 %v1298, 16
      %v1790 = vpop.permute.xlu0 %1789
      %1791 = vrot.lane.b32.xlu0 %v1301, 16
      %v1792 = vpop.permute.xlu0 %1791
      %1793 = vrot.lane.b32.xlu0 %v1304, 16
      %v1794 = vpop.permute.xlu0 %1793
      %1795 = vrot.lane.b32.xlu0 %v1307, 16
      %v1796 = vpop.permute.xlu0 %1795
      %1797 = vrot.lane.b32.xlu0 %v1310, 16
      %v1798 = vpop.permute.xlu0 %1797
      %1799 = vrot.lane.b32.xlu0 %v1313, 16
      %v1800 = vpop.permute.xlu0 %1799
      %1801 = vrot.lane.b32.xlu0 %v1316, 16
      %v1802 = vpop.permute.xlu0 %1801
      %1803 = vrot.lane.b32.xlu0 %v1319, 16
      %v1804 = vpop.permute.xlu0 %1803
      %1805 = vrot.lane.b32.xlu0 %v1585, 16
      %v1806 = vpop.permute.xlu0 %1805
      %1807 = vrot.lane.b32.xlu0 %v1274, 16
      %v1808 = vpop.permute.xlu0 %1807
      %1809 = vrot.lane.b32.xlu0 %v1325, 16
      %v1810 = vpop.permute.xlu0 %1809
      %1811 = vrot.lane.b32.xlu0 %v1328, 16
      %v1812 = vpop.permute.xlu0 %1811
      %1813 = vrot.lane.b32.xlu0 %v1331, 16
      %v1814 = vpop.permute.xlu0 %1813
      %1815 = vrot.lane.b32.xlu0 %v1334, 16
      %v1816 = vpop.permute.xlu0 %1815
      %1817 = vrot.lane.b32.xlu0 %v1337, 16
      %v1818 = vpop.permute.xlu0 %1817
      %1819 = vrot.lane.b32.xlu0 %v1340, 16
      %v1820 = vpop.permute.xlu0 %1819
      %1821 = vrot.lane.b32.xlu0 %v1343, 16
      %v1822 = vpop.permute.xlu0 %1821
      %1823 = vrot.lane.b32.xlu0 %v1346, 16
      %v1824 = vpop.permute.xlu0 %1823
      %1825 = vrot.lane.b32.xlu0 %v1349, 16
      %v1826 = vpop.permute.xlu0 %1825
      %1827 = vrot.lane.b32.xlu0 %v1352, 16
      %v1828 = vpop.permute.xlu0 %1827
      %1829 = vrot.lane.b32.xlu0 %v1355, 16
      %v1830 = vpop.permute.xlu0 %1829
      %1831 = vrot.lane.b32.xlu0 %v1358, 16
      %v1832 = vpop.permute.xlu0 %1831
      %1833 = vrot.lane.b32.xlu0 %v1361, 16
      %v1834 = vpop.permute.xlu0 %1833
      %1835 = vrot.lane.b32.xlu0 %v1364, 16
      %v1836 = vpop.permute.xlu0 %1835
      %1837 = vrot.lane.b32.xlu0 %v1588, 16
      %v1838 = vpop.permute.xlu0 %1837
      %vm1839 = vcmask 15360
      %v1841 = vsel %vm1839, %v708, %v1148
      %v1843 = vsel %vm1839, %v709, %v1150
      %v1845 = vsel %vm1839, %v710, %v1152
      %v1847 = vsel %vm1839, %v711, %v1154
      %v1849 = vsel %vm1839, %v712, %v1156
      %v1851 = vsel %vm1839, %v713, %v1158
      %v1853 = vsel %vm1839, %v714, %v1160
      %v1855 = vsel %vm1839, %v715, %v1162
      %v1857 = vsel %vm1839, %v716, %v1164
      %v1859 = vsel %vm1839, %v717, %v1166
      %v1861 = vsel %vm1839, %v718, %v1168
      %v1863 = vsel %vm1839, %v719, %v1170
      %v1865 = vsel %vm1839, %v720, %v1172
      %v1867 = vsel %vm1839, %v721, %v1174
      %v1869 = vsel %vm1839, %v722, %v1176
      %v1871 = vsel %vm1839, %v723, %v1178
      %v1873 = vsel %vm1839, %v725, %v1180
      %v1875 = vsel %vm1839, %v726, %v1182
      %v1877 = vsel %vm1839, %v727, %v1184
      %v1879 = vsel %vm1839, %v728, %v1186
      %v1881 = vsel %vm1839, %v729, %v1188
      %v1883 = vsel %vm1839, %v730, %v1190
      %v1885 = vsel %vm1839, %v731, %v1192
      %v1887 = vsel %vm1839, %v732, %v1194
      %v1889 = vsel %vm1839, %v733, %v1196
      %v1891 = vsel %vm1839, %v734, %v1198
      %v1893 = vsel %vm1839, %v735, %v1200
      %v1895 = vsel %vm1839, %v736, %v1202
      %v1897 = vsel %vm1839, %v737, %v1204
      %v1899 = vsel %vm1839, %v738, %v1206
      %v1901 = vsel %vm1839, %v739, %v1208
      %vm1902 = vcmask 31744
      %v1904 = vsel %vm1902, %v1841, %v1366
      %v1906 = vsel %vm1902, %v1843, %v1368
      %v1908 = vsel %vm1902, %v1845, %v1370
      %v1910 = vsel %vm1902, %v1847, %v1372
      %v1912 = vsel %vm1902, %v1849, %v1374
      %v1914 = vsel %vm1902, %v1851, %v1376
      %v1916 = vsel %vm1902, %v1853, %v1378
      %v1918 = vsel %vm1902, %v1855, %v1380
      %v1920 = vsel %vm1902, %v1857, %v1382
      %v1922 = vsel %vm1902, %v1859, %v1384
      %v1924 = vsel %vm1902, %v1861, %v1386
      %v1926 = vsel %vm1902, %v1863, %v1388
      %v1928 = vsel %vm1902, %v1865, %v1390
      %v1930 = vsel %vm1902, %v1867, %v1392
      %v1932 = vsel %vm1902, %v1869, %v1394
      %v1934 = vsel %vm1902, %v1871, %v1396
      %v1936 = vsel %vm1902, %v1873, %v1398
      %v1938 = vsel %vm1902, %v1875, %v1400
      %v1940 = vsel %vm1902, %v1877, %v1402
      %v1942 = vsel %vm1902, %v1879, %v1404
      %v1944 = vsel %vm1902, %v1881, %v1406
      %v1946 = vsel %vm1902, %v1883, %v1408
      %v1948 = vsel %vm1902, %v1885, %v1410
      %v1950 = vsel %vm1902, %v1887, %v1412
      %v1952 = vsel %vm1902, %v1889, %v1414
      %v1954 = vsel %vm1902, %v1891, %v1416
      %v1956 = vsel %vm1902, %v1893, %v1418
      %v1958 = vsel %vm1902, %v1895, %v1420
      %v1960 = vsel %vm1902, %v1897, %v1422
      %v1962 = vsel %vm1902, %v1899, %v1424
      %v1964 = vsel %vm1902, %v1901, %v1426
      %vm1965 = vcmask 48128
      %v1967 = vsel %vm1965, %v1904, %v1430
      %v1969 = vsel %vm1965, %v1906, %v1432
      %v1971 = vsel %vm1965, %v1908, %v1434
      %v1973 = vsel %vm1965, %v1910, %v1436
      %v1975 = vsel %vm1965, %v1912, %v1438
      %v1977 = vsel %vm1965, %v1914, %v1440
      %v1979 = vsel %vm1965, %v1916, %v1442
      %v1981 = vsel %vm1965, %v1918, %v1444
      %v1983 = vsel %vm1965, %v1920, %v1446
      %v1985 = vsel %vm1965, %v1922, %v1448
      %v1987 = vsel %vm1965, %v1924, %v1450
      %v1989 = vsel %vm1965, %v1926, %v1452
      %v1991 = vsel %vm1965, %v1928, %v1454
      %v1993 = vsel %vm1965, %v1930, %v1456
      %v1995 = vsel %vm1965, %v1932, %v1458
      %v1997 = vsel %vm1965, %v1934, %v1460
      %v1999 = vsel %vm1965, %v1904, %v1462
      %v2001 = vsel %vm1965, %v1936, %v1464
      %v2003 = vsel %vm1965, %v1938, %v1466
      %v2005 = vsel %vm1965, %v1940, %v1468
      %v2007 = vsel %vm1965, %v1942, %v1470
      %v2009 = vsel %vm1965, %v1944, %v1472
      %v2011 = vsel %vm1965, %v1946, %v1474
      %v2013 = vsel %vm1965, %v1948, %v1476
      %v2015 = vsel %vm1965, %v1950, %v1478
      %v2017 = vsel %vm1965, %v1952, %v1480
      %v2019 = vsel %vm1965, %v1954, %v1482
      %v2021 = vsel %vm1965, %v1956, %v1484
      %v2023 = vsel %vm1965, %v1958, %v1486
      %v2025 = vsel %vm1965, %v1960, %v1488
      %v2027 = vsel %vm1965, %v1962, %v1490
      %v2029 = vsel %vm1965, %v1964, %v1492
      %vm2030 = vcmask 64512
      %v2032 = vsel %vm2030, %v1967, %v1518
      %v2034 = vsel %vm2030, %v1969, %v1520
      %v2036 = vsel %vm2030, %v1971, %v1522
      %v2038 = vsel %vm2030, %v1973, %v1524
      %v2040 = vsel %vm2030, %v1975, %v1526
      %v2042 = vsel %vm2030, %v1977, %v1528
      %v2044 = vsel %vm2030, %v1979, %v1530
      %v2046 = vsel %vm2030, %v1981, %v1532
      %v2048 = vsel %vm2030, %v1983, %v1534
      %v2050 = vsel %vm2030, %v1985, %v1536
      %v2052 = vsel %vm2030, %v1987, %v1538
      %v2054 = vsel %vm2030, %v1989, %v1540
      %v2056 = vsel %vm2030, %v1991, %v1542
      %v2058 = vsel %vm2030, %v1993, %v1544
      %v2060 = vsel %vm2030, %v1995, %v1546
      %v2062 = vsel %vm2030, %v1997, %v1548
      %v2064 = vsel %vm2030, %v1999, %v1550
      %v2066 = vsel %vm2030, %v2001, %v1552
      %v2068 = vsel %vm2030, %v2003, %v1554
      %v2070 = vsel %vm2030, %v2005, %v1556
      %v2072 = vsel %vm2030, %v2007, %v1558
      %v2074 = vsel %vm2030, %v2009, %v1560
      %v2076 = vsel %vm2030, %v2011, %v1562
      %v2078 = vsel %vm2030, %v2013, %v1564
      %v2080 = vsel %vm2030, %v2015, %v1566
      %v2082 = vsel %vm2030, %v2017, %v1568
      %v2084 = vsel %vm2030, %v2019, %v1570
      %v2086 = vsel %vm2030, %v2021, %v1572
      %v2088 = vsel %vm2030, %v2023, %v1574
      %v2090 = vsel %vm2030, %v2025, %v1576
      %v2092 = vsel %vm2030, %v2027, %v1578
      %v2094 = vsel %vm2030, %v2029, %v1580
      %vm2095 = vcmask 80896
      %v2097 = vsel %vm2095, %v2032, %v1590
      %v2099 = vsel %vm2095, %v2034, %v1592
      %v2101 = vsel %vm2095, %v2036, %v1594
      %v2103 = vsel %vm2095, %v2038, %v1596
      %v2105 = vsel %vm2095, %v2040, %v1598
      %v2107 = vsel %vm2095, %v2042, %v1600
      %v2109 = vsel %vm2095, %v2044, %v1602
      %v2111 = vsel %vm2095, %v2046, %v1604
      %v2113 = vsel %vm2095, %v2048, %v1606
      %v2115 = vsel %vm2095, %v2050, %v1608
      %v2117 = vsel %vm2095, %v2052, %v1610
      %v2119 = vsel %vm2095, %v2054, %v1612
      %v2121 = vsel %vm2095, %v2056, %v1614
      %v2123 = vsel %vm2095, %v2058, %v1616
      %v2125 = vsel %vm2095, %v2060, %v1618
      %v2127 = vsel %vm2095, %v2062, %v1620
      %v2129 = vsel %vm2095, %v2064, %v1622
      %v2131 = vsel %vm2095, %v2066, %v1624
      %v2133 = vsel %vm2095, %v2068, %v1626
      %v2135 = vsel %vm2095, %v2070, %v1628
      %v2137 = vsel %vm2095, %v2072, %v1630
      %v2139 = vsel %vm2095, %v2074, %v1632
      %v2141 = vsel %vm2095, %v2076, %v1634
      %v2143 = vsel %vm2095, %v2078, %v1636
      %v2145 = vsel %vm2095, %v2080, %v1638
      %v2147 = vsel %vm2095, %v2082, %v1640
      %v2149 = vsel %vm2095, %v2084, %v1642
      %v2151 = vsel %vm2095, %v2086, %v1644
      %v2153 = vsel %vm2095, %v2088, %v1646
      %v2155 = vsel %vm2095, %v2090, %v1648
      %v2157 = vsel %vm2095, %v2092, %v1650
      %v2159 = vsel %vm2095, %v2094, %v1652
      %vm2160 = vcmask 97280
      %v2162 = vsel %vm2160, %v2097, %v1654
      %v2164 = vsel %vm2160, %v2099, %v1656
      %v2166 = vsel %vm2160, %v2101, %v1658
      %v2168 = vsel %vm2160, %v2103, %v1660
      %v2170 = vsel %vm2160, %v2105, %v1662
      %v2172 = vsel %vm2160, %v2107, %v1664
      %v2174 = vsel %vm2160, %v2109, %v1666
      %v2176 = vsel %vm2160, %v2111, %v1668
      %v2178 = vsel %vm2160, %v2113, %v1670
      %v2180 = vsel %vm2160, %v2115, %v1672
      %v2182 = vsel %vm2160, %v2117, %v1674
      %v2184 = vsel %vm2160, %v2119, %v1676
      %v2186 = vsel %vm2160, %v2121, %v1678
      %v2188 = vsel %vm2160, %v2123, %v1680
      %v2190 = vsel %vm2160, %v2125, %v1682
      %v2192 = vsel %vm2160, %v2127, %v1684
      %v2194 = vsel %vm2160, %v2129, %v1686
      %v2196 = vsel %vm2160, %v2131, %v1688
      %v2198 = vsel %vm2160, %v2133, %v1690
      %v2200 = vsel %vm2160, %v2135, %v1692
      %v2202 = vsel %vm2160, %v2137, %v1694
      %v2204 = vsel %vm2160, %v2139, %v1696
      %v2206 = vsel %vm2160, %v2141, %v1698
      %v2208 = vsel %vm2160, %v2143, %v1700
      %v2210 = vsel %vm2160, %v2145, %v1702
      %v2212 = vsel %vm2160, %v2147, %v1704
      %v2214 = vsel %vm2160, %v2149, %v1706
      %v2216 = vsel %vm2160, %v2151, %v1708
      %v2218 = vsel %vm2160, %v2153, %v1710
      %v2220 = vsel %vm2160, %v2155, %v1712
      %v2222 = vsel %vm2160, %v2157, %v1714
      %v2223 = vsel %vm2160, %v2159, %v1684
      %vm2224 = vcmask 113664
      %v2226 = vsel %vm2224, %v2162, %v1716
      %v2228 = vsel %vm2224, %v2164, %v1718
      %v2230 = vsel %vm2224, %v2166, %v1720
      %v2232 = vsel %vm2224, %v2168, %v1722
      %v2234 = vsel %vm2224, %v2170, %v1724
      %v2236 = vsel %vm2224, %v2172, %v1726
      %v2238 = vsel %vm2224, %v2174, %v1728
      %v2240 = vsel %vm2224, %v2176, %v1730
      %v2242 = vsel %vm2224, %v2178, %v1732
      %v2244 = vsel %vm2224, %v2180, %v1734
      %v2246 = vsel %vm2224, %v2182, %v1736
      %v2248 = vsel %vm2224, %v2184, %v1738
      %v2250 = vsel %vm2224, %v2186, %v1740
      %v2252 = vsel %vm2224, %v2188, %v1742
      %v2254 = vsel %vm2224, %v2190, %v1744
      %v2256 = vsel %vm2224, %v2192, %v1746
      %v2258 = vsel %vm2224, %v2194, %v1748
      %v2260 = vsel %vm2224, %v2196, %v1750
      %v2262 = vsel %vm2224, %v2198, %v1752
      %v2264 = vsel %vm2224, %v2200, %v1754
      %v2266 = vsel %vm2224, %v2202, %v1756
      %v2268 = vsel %vm2224, %v2204, %v1758
      %v2270 = vsel %vm2224, %v2206, %v1760
      %v2272 = vsel %vm2224, %v2208, %v1762
      %v2274 = vsel %vm2224, %v2210, %v1764
      %v2276 = vsel %vm2224, %v2212, %v1766
      %v2278 = vsel %vm2224, %v2214, %v1768
      %v2280 = vsel %vm2224, %v2216, %v1770
      %v2282 = vsel %vm2224, %v2218, %v1772
      %v2284 = vsel %vm2224, %v2220, %v1774
      %v2286 = vsel %vm2224, %v2222, %v1776
      %v2287 = vsel %vm2224, %v2223, %v1746
      %vm2288 = vcmask 130048
      %v2290 = vsel %vm2288, %v2226, %v1778
      %v2292 = vsel %vm2288, %v2228, %v1780
      %v2294 = vsel %vm2288, %v2230, %v1782
      %v2296 = vsel %vm2288, %v2232, %v1784
      %v2298 = vsel %vm2288, %v2234, %v1786
      %v2300 = vsel %vm2288, %v2236, %v1788
      %v2302 = vsel %vm2288, %v2238, %v1790
      %v2304 = vsel %vm2288, %v2240, %v1792
      %v2306 = vsel %vm2288, %v2242, %v1794
      %v2308 = vsel %vm2288, %v2244, %v1796
      %v2310 = vsel %vm2288, %v2246, %v1798
      %v2312 = vsel %vm2288, %v2248, %v1800
      %v2314 = vsel %vm2288, %v2250, %v1802
      %v2316 = vsel %vm2288, %v2252, %v1804
      %v2318 = vsel %vm2288, %v2254, %v1806
      %v2320 = vsel %vm2288, %v2256, %v1808
      %v2322 = vsel %vm2288, %v2258, %v1810
      %v2324 = vsel %vm2288, %v2260, %v1812
      %v2326 = vsel %vm2288, %v2262, %v1814
      %v2328 = vsel %vm2288, %v2264, %v1816
      %v2330 = vsel %vm2288, %v2266, %v1818
      %v2332 = vsel %vm2288, %v2268, %v1820
      %v2334 = vsel %vm2288, %v2270, %v1822
      %v2336 = vsel %vm2288, %v2272, %v1824
      %v2338 = vsel %vm2288, %v2274, %v1826
      %v2340 = vsel %vm2288, %v2276, %v1828
      %v2342 = vsel %vm2288, %v2278, %v1830
      %v2344 = vsel %vm2288, %v2280, %v1832
      %v2346 = vsel %vm2288, %v2282, %v1834
      %v2348 = vsel %vm2288, %v2284, %v1836
      %v2350 = vsel %vm2288, %v2286, %v1838
      %v2351 = vsel %vm2288, %v2287, %v1808
      %v2353 = vlaneseq
      %v2354 = vshrl.u32 %v2353, 7
      %v2355 = vsub.s32 0, %v2354
      %v2356 = vrot.slane %v247, %v2355
      %v2361 = vunpack.c.l.b16 %v244
      %v2362 = vunpack.c.l.b16 %v245
      %v2363 = vunpack.c.l.b16 %v246
      %v2364 = vpack.c.b16 %v2362, %v2361
      %v2365 = vpack.c.b16 %v2363, %v2363
      %vm2367 = vcmask 146432
      %v2368 = vsel %vm2367, %v2290, 0
      %v2370 = vsel %vm2367, %v2292, 0
      %v2372 = vsel %vm2367, %v2294, 0
      %v2374 = vsel %vm2367, %v2296, 0
      %v2376 = vsel %vm2367, %v2298, 0
      %v2378 = vsel %vm2367, %v2300, 0
      %v2380 = vsel %vm2367, %v2302, 0
      %v2382 = vsel %vm2367, %v2304, 0
      %v2384 = vsel %vm2367, %v2306, 0
      %v2386 = vsel %vm2367, %v2308, 0
      %v2388 = vsel %vm2367, %v2310, 0
      %v2390 = vsel %vm2367, %v2312, 0
      %v2392 = vsel %vm2367, %v2314, 0
      %v2394 = vsel %vm2367, %v2316, 0
      %v2396 = vsel %vm2367, %v2318, 0
      %v2398 = vsel %vm2367, %v2320, 0
      %v2400 = vsel %vm2367, %v2322, 0
      %v2402 = vsel %vm2367, %v2324, 0
      %v2404 = vsel %vm2367, %v2326, 0
      %v2406 = vsel %vm2367, %v2328, 0
      %v2408 = vsel %vm2367, %v2330, 0
      %v2410 = vsel %vm2367, %v2332, 0
      %v2412 = vsel %vm2367, %v2334, 0
      %v2414 = vsel %vm2367, %v2336, 0
      %v2416 = vsel %vm2367, %v2338, 0
      %v2418 = vsel %vm2367, %v2340, 0
      %v2420 = vsel %vm2367, %v2342, 0
      %v2422 = vsel %vm2367, %v2344, 0
      %v2424 = vsel %vm2367, %v2346, 0
      %v2426 = vsel %vm2367, %v2348, 0
      %v2428 = vsel %vm2367, %v2350, 0
      %v2430 = vsel %vm2367, %v2351, 0
      %vm2432 = vcmask 1040384
      %v2434 = vsel %vm2432, %v2365, 0
      %2436 = vmatprep.subr.bf16.mxu0 0
      %2437 = vmatpush1.bf16.msra.mxu0 0
      %2438 = vmatprep.subr.bf16.mxu0 0
      %2439 = vmatpush1.bf16.msra.mxu0 0
      %2440 = vmatprep.subr.bf16.mxu0 0
      %2441 = vmatpush1.bf16.msra.mxu0 0
      %2442 = vmatprep.subr.bf16.mxu0 0
      %2443 = vmatpush1.bf16.msra.mxu0 0
      %2444 = vmatprep.subr.bf16.mxu0 0
      %2445 = vmatpush1.bf16.msra.mxu0 0
      %2446 = vmatprep.subr.bf16.mxu0 0
      %2447 = vmatpush1.bf16.msra.mxu0 0
      %2448 = vmatprep.subr.bf16.mxu0 0
      %2449 = vmatpush1.bf16.msra.mxu0 %v2434
      %2450 = vmatprep.subr.bf16.mxu0 0
      %2451 = vmatpush1.bf16.msra.mxu0 %v2364
      %2452 = vmatprep.subr.bf16.mxu0 0
      %2453 = vmatpush2.bf16.msra.mxu0 0
      %2454 = vmatprep.subr.bf16.mxu0 0
      %2455 = vmatpush2.bf16.msra.mxu0 0
      %2456 = vmatprep.subr.bf16.mxu0 0
      %2457 = vmatpush2.bf16.msra.mxu0 0
      %2458 = vmatprep.subr.bf16.mxu0 0
      %2459 = vmatpush2.bf16.msra.mxu0 0
      %2460 = vmatprep.subr.bf16.mxu0 0
      %2461 = vmatpush2.bf16.msra.mxu0 0
      %2462 = vmatprep.subr.bf16.mxu0 0
      %2463 = vmatpush2.bf16.msra.mxu0 0
      %2464 = vmatprep.subr.bf16.mxu0 0
      %2465 = vmatpush2.bf16.msra.mxu0 0
      %2466 = vmatprep.subr.bf16.mxu0 0
      %2467 = vmatpush2.bf16.msra.mxu0 0
      %2468 = vmatprep.mubr.bf16.mxu0 0
      %2469 = vmatmul.mubr.bf16.gmra.mxu0 %v2368
      %v2470 = vpop.f32.mrf.mxu0
      %v2471 = vadd.f32 %v2356, %v2470
      %v2472 = vpop.f32.mrf.mxu0
      %v2473 = vpop.f32.mrf.mxu0
      %v2474 = vadd.f32 %v2356, %v2473
      %v2475 = vpop.f32.mrf.mxu0
      %2476 = vmatprep.mubr.bf16.mxu0 0
      %2477 = vmatmul.mubr.bf16.gmra.mxu0 %v2370
      %v2478 = vpop.f32.mrf.mxu0
      %v2479 = vadd.f32 %v2356, %v2478
      %v2480 = vpop.f32.mrf.mxu0
      %v2481 = vpop.f32.mrf.mxu0
      %v2482 = vadd.f32 %v2356, %v2481
      %v2483 = vpop.f32.mrf.mxu0
      %2484 = vmatprep.mubr.bf16.mxu0 0
      %2485 = vmatmul.mubr.bf16.gmra.mxu0 %v2372
      %v2486 = vpop.f32.mrf.mxu0
      %v2487 = vadd.f32 %v2356, %v2486
      %v2488 = vpop.f32.mrf.mxu0
      %v2489 = vpop.f32.mrf.mxu0
      %v2490 = vadd.f32 %v2356, %v2489
      %v2491 = vpop.f32.mrf.mxu0
      %2492 = vmatprep.mubr.bf16.mxu0 0
      %2493 = vmatmul.mubr.bf16.gmra.mxu0 %v2374
      %v2494 = vpop.f32.mrf.mxu0
      %v2495 = vadd.f32 %v2356, %v2494
      %v2496 = vpop.f32.mrf.mxu0
      %v2497 = vpop.f32.mrf.mxu0
      %v2498 = vadd.f32 %v2356, %v2497
      %v2499 = vpop.f32.mrf.mxu0
      %2500 = vmatprep.mubr.bf16.mxu0 0
      %2501 = vmatmul.mubr.bf16.gmra.mxu0 %v2376
      %v2502 = vpop.f32.mrf.mxu0
      %v2503 = vadd.f32 %v2356, %v2502
      %v2504 = vpop.f32.mrf.mxu0
      %v2505 = vpop.f32.mrf.mxu0
      %v2506 = vadd.f32 %v2356, %v2505
      %v2507 = vpop.f32.mrf.mxu0
      %2508 = vmatprep.mubr.bf16.mxu0 0
      %2509 = vmatmul.mubr.bf16.gmra.mxu0 %v2378
      %v2510 = vpop.f32.mrf.mxu0
      %v2511 = vadd.f32 %v2356, %v2510
      %v2512 = vpop.f32.mrf.mxu0
      %v2513 = vpop.f32.mrf.mxu0
      %v2514 = vadd.f32 %v2356, %v2513
      %v2515 = vpop.f32.mrf.mxu0
      %2516 = vmatprep.mubr.bf16.mxu0 0
      %2517 = vmatmul.mubr.bf16.gmra.mxu0 %v2380
      %v2518 = vpop.f32.mrf.mxu0
      %v2519 = vadd.f32 %v2356, %v2518
      %v2520 = vpop.f32.mrf.mxu0
      %v2521 = vpop.f32.mrf.mxu0
      %v2522 = vadd.f32 %v2356, %v2521
      %v2523 = vpop.f32.mrf.mxu0
      %2524 = vmatprep.mubr.bf16.mxu0 0
      %2525 = vmatmul.mubr.bf16.gmra.mxu0 %v2382
      %v2526 = vpop.f32.mrf.mxu0
      %v2527 = vadd.f32 %v2356, %v2526
      %v2528 = vpop.f32.mrf.mxu0
      %v2529 = vpop.f32.mrf.mxu0
      %v2530 = vadd.f32 %v2356, %v2529
      %v2531 = vpop.f32.mrf.mxu0
      %2532 = vmatprep.mubr.bf16.mxu0 0
      %2533 = vmatmul.mubr.bf16.gmra.mxu0 %v2384
      %v2534 = vpop.f32.mrf.mxu0
      %v2535 = vadd.f32 %v2356, %v2534
      %v2536 = vpop.f32.mrf.mxu0
      %v2537 = vpop.f32.mrf.mxu0
      %v2538 = vadd.f32 %v2356, %v2537
      %v2539 = vpop.f32.mrf.mxu0
      %2540 = vmatprep.mubr.bf16.mxu0 0
      %2541 = vmatmul.mubr.bf16.gmra.mxu0 %v2386
      %v2542 = vpop.f32.mrf.mxu0
      %v2543 = vadd.f32 %v2356, %v2542
      %v2544 = vpop.f32.mrf.mxu0
      %v2545 = vpop.f32.mrf.mxu0
      %v2546 = vadd.f32 %v2356, %v2545
      %v2547 = vpop.f32.mrf.mxu0
      %2548 = vmatprep.mubr.bf16.mxu0 0
      %2549 = vmatmul.mubr.bf16.gmra.mxu0 %v2388
      %v2550 = vpop.f32.mrf.mxu0
      %v2551 = vadd.f32 %v2356, %v2550
      %v2552 = vpop.f32.mrf.mxu0
      %v2553 = vpop.f32.mrf.mxu0
      %v2554 = vadd.f32 %v2356, %v2553
      %v2555 = vpop.f32.mrf.mxu0
      %2556 = vmatprep.mubr.bf16.mxu0 0
      %2557 = vmatmul.mubr.bf16.gmra.mxu0 %v2390
      %v2558 = vpop.f32.mrf.mxu0
      %v2559 = vadd.f32 %v2356, %v2558
      %v2560 = vpop.f32.mrf.mxu0
      %v2561 = vpop.f32.mrf.mxu0
      %v2562 = vadd.f32 %v2356, %v2561
      %v2563 = vpop.f32.mrf.mxu0
      %2564 = vmatprep.mubr.bf16.mxu0 0
      %2565 = vmatmul.mubr.bf16.gmra.mxu0 %v2392
      %v2566 = vpop.f32.mrf.mxu0
      %v2567 = vadd.f32 %v2356, %v2566
      %v2568 = vpop.f32.mrf.mxu0
      %v2569 = vpop.f32.mrf.mxu0
      %v2570 = vadd.f32 %v2356, %v2569
      %v2571 = vpop.f32.mrf.mxu0
      %2572 = vmatprep.mubr.bf16.mxu0 0
      %2573 = vmatmul.mubr.bf16.gmra.mxu0 %v2394
      %v2574 = vpop.f32.mrf.mxu0
      %v2575 = vadd.f32 %v2356, %v2574
      %v2576 = vpop.f32.mrf.mxu0
      %v2577 = vpop.f32.mrf.mxu0
      %v2578 = vadd.f32 %v2356, %v2577
      %v2579 = vpop.f32.mrf.mxu0
      %2580 = vmatprep.mubr.bf16.mxu0 0
      %2581 = vmatmul.mubr.bf16.gmra.mxu0 %v2396
      %v2582 = vpop.f32.mrf.mxu0
      %v2583 = vadd.f32 %v2356, %v2582
      %v2584 = vpop.f32.mrf.mxu0
      %v2585 = vpop.f32.mrf.mxu0
      %v2586 = vadd.f32 %v2356, %v2585
      %v2587 = vpop.f32.mrf.mxu0
      %2588 = vmatprep.mubr.bf16.mxu0 0
      %2589 = vmatmul.mubr.bf16.gmra.mxu0 %v2398
      %v2590 = vpop.f32.mrf.mxu0
      %v2591 = vadd.f32 %v2356, %v2590
      %v2592 = vpop.f32.mrf.mxu0
      %v2593 = vpop.f32.mrf.mxu0
      %v2594 = vadd.f32 %v2356, %v2593
      %v2595 = vpop.f32.mrf.mxu0
      %2596 = vmatprep.mubr.bf16.mxu0 0
      %2597 = vmatmul.mubr.bf16.gmra.mxu0 %v2400
      %v2598 = vpop.f32.mrf.mxu0
      %v2599 = vadd.f32 %v2356, %v2598
      %v2600 = vpop.f32.mrf.mxu0
      %v2601 = vpop.f32.mrf.mxu0
      %v2602 = vadd.f32 %v2356, %v2601
      %v2603 = vpop.f32.mrf.mxu0
      %2604 = vmatprep.mubr.bf16.mxu0 0
      %2605 = vmatmul.mubr.bf16.gmra.mxu0 %v2402
      %v2606 = vpop.f32.mrf.mxu0
      %v2607 = vadd.f32 %v2356, %v2606
      %v2608 = vpop.f32.mrf.mxu0
      %v2609 = vpop.f32.mrf.mxu0
      %v2610 = vadd.f32 %v2356, %v2609
      %v2611 = vpop.f32.mrf.mxu0
      %2612 = vmatprep.mubr.bf16.mxu0 0
      %2613 = vmatmul.mubr.bf16.gmra.mxu0 %v2404
      %v2614 = vpop.f32.mrf.mxu0
      %v2615 = vadd.f32 %v2356, %v2614
      %v2616 = vpop.f32.mrf.mxu0
      %v2617 = vpop.f32.mrf.mxu0
      %v2618 = vadd.f32 %v2356, %v2617
      %v2619 = vpop.f32.mrf.mxu0
      %2620 = vmatprep.mubr.bf16.mxu0 0
      %2621 = vmatmul.mubr.bf16.gmra.mxu0 %v2406
      %v2622 = vpop.f32.mrf.mxu0
      %v2623 = vadd.f32 %v2356, %v2622
      %v2624 = vpop.f32.mrf.mxu0
      %v2625 = vpop.f32.mrf.mxu0
      %v2626 = vadd.f32 %v2356, %v2625
      %v2627 = vpop.f32.mrf.mxu0
      %2628 = vmatprep.mubr.bf16.mxu0 0
      %2629 = vmatmul.mubr.bf16.gmra.mxu0 %v2408
      %v2630 = vpop.f32.mrf.mxu0
      %v2631 = vadd.f32 %v2356, %v2630
      %v2632 = vpop.f32.mrf.mxu0
      %v2633 = vpop.f32.mrf.mxu0
      %v2634 = vadd.f32 %v2356, %v2633
      %v2635 = vpop.f32.mrf.mxu0
      %2636 = vmatprep.mubr.bf16.mxu0 0
      %2637 = vmatmul.mubr.bf16.gmra.mxu0 %v2410
      %v2638 = vpop.f32.mrf.mxu0
      %v2639 = vadd.f32 %v2356, %v2638
      %v2640 = vpop.f32.mrf.mxu0
      %v2641 = vpop.f32.mrf.mxu0
      %v2642 = vadd.f32 %v2356, %v2641
      %v2643 = vpop.f32.mrf.mxu0
      %2644 = vmatprep.mubr.bf16.mxu0 0
      %2645 = vmatmul.mubr.bf16.gmra.mxu0 %v2412
      %v2646 = vpop.f32.mrf.mxu0
      %v2647 = vadd.f32 %v2356, %v2646
      %v2648 = vpop.f32.mrf.mxu0
      %v2649 = vpop.f32.mrf.mxu0
      %v2650 = vadd.f32 %v2356, %v2649
      %v2651 = vpop.f32.mrf.mxu0
      %2652 = vmatprep.mubr.bf16.mxu0 0
      %2653 = vmatmul.mubr.bf16.gmra.mxu0 %v2414
      %v2654 = vpop.f32.mrf.mxu0
      %v2655 = vadd.f32 %v2356, %v2654
      %v2656 = vpop.f32.mrf.mxu0
      %v2657 = vpop.f32.mrf.mxu0
      %v2658 = vadd.f32 %v2356, %v2657
      %v2659 = vpop.f32.mrf.mxu0
      %2660 = vmatprep.mubr.bf16.mxu0 0
      %2661 = vmatmul.mubr.bf16.gmra.mxu0 %v2416
      %v2662 = vpop.f32.mrf.mxu0
      %v2663 = vadd.f32 %v2356, %v2662
      %v2664 = vpop.f32.mrf.mxu0
      %v2665 = vpop.f32.mrf.mxu0
      %v2666 = vadd.f32 %v2356, %v2665
      %v2667 = vpop.f32.mrf.mxu0
      %2668 = vmatprep.mubr.bf16.mxu0 0
      %2669 = vmatmul.mubr.bf16.gmra.mxu0 %v2418
      %v2670 = vpop.f32.mrf.mxu0
      %v2671 = vadd.f32 %v2356, %v2670
      %v2672 = vpop.f32.mrf.mxu0
      %v2673 = vpop.f32.mrf.mxu0
      %v2674 = vadd.f32 %v2356, %v2673
      %v2675 = vpop.f32.mrf.mxu0
      %2676 = vmatprep.mubr.bf16.mxu0 0
      %2677 = vmatmul.mubr.bf16.gmra.mxu0 %v2420
      %v2678 = vpop.f32.mrf.mxu0
      %v2679 = vadd.f32 %v2356, %v2678
      %v2680 = vpop.f32.mrf.mxu0
      %v2681 = vpop.f32.mrf.mxu0
      %v2682 = vadd.f32 %v2356, %v2681
      %v2683 = vpop.f32.mrf.mxu0
      %2684 = vmatprep.mubr.bf16.mxu0 0
      %2685 = vmatmul.mubr.bf16.gmra.mxu0 %v2422
      %v2686 = vpop.f32.mrf.mxu0
      %v2687 = vadd.f32 %v2356, %v2686
      %v2688 = vpop.f32.mrf.mxu0
      %v2689 = vpop.f32.mrf.mxu0
      %v2690 = vadd.f32 %v2356, %v2689
      %v2691 = vpop.f32.mrf.mxu0
      %2692 = vmatprep.mubr.bf16.mxu0 0
      %2693 = vmatmul.mubr.bf16.gmra.mxu0 %v2424
      %v2694 = vpop.f32.mrf.mxu0
      %v2695 = vadd.f32 %v2356, %v2694
      %v2696 = vpop.f32.mrf.mxu0
      %v2697 = vpop.f32.mrf.mxu0
      %v2698 = vadd.f32 %v2356, %v2697
      %v2699 = vpop.f32.mrf.mxu0
      %2700 = vmatprep.mubr.bf16.mxu0 0
      %2701 = vmatmul.mubr.bf16.gmra.mxu0 %v2426
      %v2702 = vpop.f32.mrf.mxu0
      %v2703 = vadd.f32 %v2356, %v2702
      %v2704 = vpop.f32.mrf.mxu0
      %v2705 = vpop.f32.mrf.mxu0
      %v2706 = vadd.f32 %v2356, %v2705
      %v2707 = vpop.f32.mrf.mxu0
      %2708 = vmatprep.mubr.bf16.mxu0 0
      %2709 = vmatmul.mubr.bf16.gmra.mxu0 %v2428
      %v2710 = vpop.f32.mrf.mxu0
      %v2711 = vadd.f32 %v2356, %v2710
      %v2712 = vpop.f32.mrf.mxu0
      %v2713 = vpop.f32.mrf.mxu0
      %v2714 = vadd.f32 %v2356, %v2713
      %v2715 = vpop.f32.mrf.mxu0
      %2716 = vmatprep.mubr.bf16.mxu0 0
      %2717 = vmatmul.mubr.bf16.gmra.mxu0 %v2430
      %v2718 = vpop.f32.mrf.mxu0
      %v2719 = vadd.f32 %v2356, %v2718
      %v2720 = vpop.f32.mrf.mxu0
      %v2721 = vpop.f32.mrf.mxu0
      %v2722 = vadd.f32 %v2356, %v2721
      %v2723 = vpop.f32.mrf.mxu0
      %2724 = vdwg.mxu0
      %v2725 = vpack.c.bf16 %v2474, %v2471
      %v2726 = vpack.c.bf16 %v2482, %v2479
      %v2727 = vpack.c.bf16 %v2490, %v2487
      %v2728 = vpack.c.bf16 %v2498, %v2495
      %v2729 = vpack.c.bf16 %v2506, %v2503
      %v2730 = vpack.c.bf16 %v2514, %v2511
      %v2731 = vpack.c.bf16 %v2522, %v2519
      %v2732 = vpack.c.bf16 %v2530, %v2527
      %v2733 = vpack.c.bf16 %v2538, %v2535
      %v2734 = vpack.c.bf16 %v2546, %v2543
      %v2735 = vpack.c.bf16 %v2554, %v2551
      %v2736 = vpack.c.bf16 %v2562, %v2559
      %v2737 = vpack.c.bf16 %v2570, %v2567
      %v2738 = vpack.c.bf16 %v2578, %v2575
      %v2739 = vpack.c.bf16 %v2586, %v2583
      %v2740 = vpack.c.bf16 %v2594, %v2591
      %v2741 = vpack.c.bf16 %v2602, %v2599
      %v2742 = vpack.c.bf16 %v2610, %v2607
      %v2743 = vpack.c.bf16 %v2618, %v2615
      %v2744 = vpack.c.bf16 %v2626, %v2623
      %v2745 = vpack.c.bf16 %v2634, %v2631
      %v2746 = vpack.c.bf16 %v2642, %v2639
      %v2747 = vpack.c.bf16 %v2650, %v2647
      %v2748 = vpack.c.bf16 %v2658, %v2655
      %v2749 = vpack.c.bf16 %v2666, %v2663
      %v2750 = vpack.c.bf16 %v2674, %v2671
      %v2751 = vpack.c.bf16 %v2682, %v2679
      %v2752 = vpack.c.bf16 %v2690, %v2687
      %v2753 = vpack.c.bf16 %v2698, %v2695
      %v2754 = vpack.c.bf16 %v2706, %v2703
      %v2755 = vpack.c.bf16 %v2714, %v2711
      %v2756 = vpack.c.bf16 %v2722, %v2719
      %v2789 = vunpack.c.l.b16 %v2725
      %v2790 = vunpack.c.h.b16 %v2725
      %v2791 = vunpack.c.l.b16 %v2726
      %v2792 = vunpack.c.h.b16 %v2726
      %v2793 = vunpack.c.l.b16 %v2727
      %v2794 = vunpack.c.h.b16 %v2727
      %v2795 = vunpack.c.l.b16 %v2728
      %v2796 = vunpack.c.h.b16 %v2728
      %v2797 = vunpack.c.l.b16 %v2729
      %v2798 = vunpack.c.h.b16 %v2729
      %v2799 = vunpack.c.l.b16 %v2730
      %v2800 = vunpack.c.h.b16 %v2730
      %v2801 = vunpack.c.l.b16 %v2731
      %v2802 = vunpack.c.h.b16 %v2731
      %v2803 = vunpack.c.l.b16 %v2732
      %v2804 = vunpack.c.h.b16 %v2732
      %v2805 = vunpack.c.l.b16 %v2733
      %v2806 = vunpack.c.h.b16 %v2733
      %v2807 = vunpack.c.l.b16 %v2734
      %v2808 = vunpack.c.h.b16 %v2734
      %v2809 = vunpack.c.l.b16 %v2735
      %v2810 = vunpack.c.h.b16 %v2735
      %v2811 = vunpack.c.l.b16 %v2736
      %v2812 = vunpack.c.h.b16 %v2736
      %v2813 = vunpack.c.l.b16 %v2737
      %v2814 = vunpack.c.h.b16 %v2737
      %v2815 = vunpack.c.l.b16 %v2738
      %v2816 = vunpack.c.h.b16 %v2738
      %v2817 = vunpack.c.l.b16 %v2739
      %v2818 = vunpack.c.h.b16 %v2739
      %v2819 = vunpack.c.l.b16 %v2740
      %v2820 = vunpack.c.h.b16 %v2740
      %v2821 = vunpack.c.l.b16 %v2741
      %v2822 = vunpack.c.h.b16 %v2741
      %v2823 = vunpack.c.l.b16 %v2742
      %v2824 = vunpack.c.h.b16 %v2742
      %v2825 = vunpack.c.l.b16 %v2743
      %v2826 = vunpack.c.h.b16 %v2743
      %v2827 = vunpack.c.l.b16 %v2744
      %v2828 = vunpack.c.h.b16 %v2744
      %v2829 = vunpack.c.l.b16 %v2745
      %v2830 = vunpack.c.h.b16 %v2745
      %v2831 = vunpack.c.l.b16 %v2746
      %v2832 = vunpack.c.h.b16 %v2746
      %v2833 = vunpack.c.l.b16 %v2747
      %v2834 = vunpack.c.h.b16 %v2747
      %v2835 = vunpack.c.l.b16 %v2748
      %v2836 = vunpack.c.h.b16 %v2748
      %v2837 = vunpack.c.l.b16 %v2749
      %v2838 = vunpack.c.h.b16 %v2749
      %v2839 = vunpack.c.l.b16 %v2750
      %v2840 = vunpack.c.h.b16 %v2750
      %v2841 = vunpack.c.l.b16 %v2751
      %v2842 = vunpack.c.h.b16 %v2751
      %v2843 = vunpack.c.l.b16 %v2752
      %v2844 = vunpack.c.h.b16 %v2752
      %v2845 = vunpack.c.l.b16 %v2753
      %v2846 = vunpack.c.h.b16 %v2753
      %v2847 = vunpack.c.l.b16 %v2754
      %v2848 = vunpack.c.h.b16 %v2754
      %v2849 = vunpack.c.l.b16 %v2755
      %v2850 = vunpack.c.h.b16 %v2755
      %v2851 = vunpack.c.l.b16 %v2756
      %v2852 = vunpack.c.h.b16 %v2756
      %v2853 = vpack.c.b16 %v2789, %v2789
      %v2854 = vpack.c.b16 %v2790, %v2790
      %v2855 = vpack.c.b16 %v2791, %v2791
      %v2856 = vpack.c.b16 %v2792, %v2792
      %v2857 = vpack.c.b16 %v2793, %v2793
      %v2858 = vpack.c.b16 %v2794, %v2794
      %v2859 = vpack.c.b16 %v2795, %v2795
      %v2860 = vpack.c.b16 %v2796, %v2796
      %v2861 = vpack.c.b16 %v2797, %v2797
      %v2862 = vpack.c.b16 %v2798, %v2798
      %v2863 = vpack.c.b16 %v2799, %v2799
      %v2864 = vpack.c.b16 %v2800, %v2800
      %v2865 = vpack.c.b16 %v2801, %v2801
      %v2866 = vpack.c.b16 %v2802, %v2802
      %v2867 = vpack.c.b16 %v2803, %v2803
      %v2868 = vpack.c.b16 %v2804, %v2804
      %v2869 = vpack.c.b16 %v2805, %v2805
      %v2870 = vpack.c.b16 %v2806, %v2806
      %v2871 = vpack.c.b16 %v2807, %v2807
      %v2872 = vpack.c.b16 %v2808, %v2808
      %v2873 = vpack.c.b16 %v2809, %v2809
      %v2874 = vpack.c.b16 %v2810, %v2810
      %v2875 = vpack.c.b16 %v2811, %v2811
      %v2876 = vpack.c.b16 %v2812, %v2812
      %v2877 = vpack.c.b16 %v2813, %v2813
      %v2878 = vpack.c.b16 %v2814, %v2814
      %v2879 = vpack.c.b16 %v2815, %v2815
      %v2880 = vpack.c.b16 %v2816, %v2816
      %v2881 = vpack.c.b16 %v2817, %v2817
      %v2882 = vpack.c.b16 %v2818, %v2818
      %v2883 = vpack.c.b16 %v2819, %v2819
      %v2884 = vpack.c.b16 %v2820, %v2820
      %v2885 = vpack.c.b16 %v2821, %v2821
      %v2886 = vpack.c.b16 %v2822, %v2822
      %v2887 = vpack.c.b16 %v2823, %v2823
      %v2888 = vpack.c.b16 %v2824, %v2824
      %v2889 = vpack.c.b16 %v2825, %v2825
      %v2890 = vpack.c.b16 %v2826, %v2826
      %v2891 = vpack.c.b16 %v2827, %v2827
      %v2892 = vpack.c.b16 %v2828, %v2828
      %v2893 = vpack.c.b16 %v2829, %v2829
      %v2894 = vpack.c.b16 %v2830, %v2830
      %v2895 = vpack.c.b16 %v2831, %v2831
      %v2896 = vpack.c.b16 %v2832, %v2832
      %v2897 = vpack.c.b16 %v2833, %v2833
      %v2898 = vpack.c.b16 %v2834, %v2834
      %v2899 = vpack.c.b16 %v2835, %v2835
      %v2900 = vpack.c.b16 %v2836, %v2836
      %v2901 = vpack.c.b16 %v2837, %v2837
      %v2902 = vpack.c.b16 %v2838, %v2838
      %v2903 = vpack.c.b16 %v2839, %v2839
      %v2904 = vpack.c.b16 %v2840, %v2840
      %v2905 = vpack.c.b16 %v2841, %v2841
      %v2906 = vpack.c.b16 %v2842, %v2842
      %v2907 = vpack.c.b16 %v2843, %v2843
      %v2908 = vpack.c.b16 %v2844, %v2844
      %v2909 = vpack.c.b16 %v2845, %v2845
      %v2910 = vpack.c.b16 %v2846, %v2846
      %v2911 = vpack.c.b16 %v2847, %v2847
      %v2912 = vpack.c.b16 %v2848, %v2848
      %v2913 = vpack.c.b16 %v2849, %v2849
      %v2914 = vpack.c.b16 %v2850, %v2850
      %v2915 = vpack.c.b16 %v2851, %v2851
      %v2916 = vpack.c.b16 %v2852, %v2852
      %vm2981 = vcmask 27648
      %2982 = vst.msk [vmem:[%s177] sm:$0xf] %vm2981, %v2853
      %2983 = vst.msk [vmem:[%s177 + $0x4] sm:$0xf] %vm2981, %v2854
      %2984 = vst.msk [vmem:[%s177 + $0x8] sm:$0xf] %vm2981, %v2855
      %2985 = vst.msk [vmem:[%s177 + $0xc] sm:$0xf] %vm2981, %v2856
      %2986 = vst.msk [vmem:[%s177 + $0x10] sm:$0xf] %vm2981, %v2857
      %2987 = vst.msk [vmem:[%s177 + $0x14] sm:$0xf] %vm2981, %v2858
      %2988 = vst.msk [vmem:[%s177 + $0x18] sm:$0xf] %vm2981, %v2859
      %2989 = vst.msk [vmem:[%s177 + $0x1c] sm:$0xf] %vm2981, %v2860
      %2990 = vst.msk [vmem:[%s177 + $0x20] sm:$0xf] %vm2981, %v2861
      %2991 = vst.msk [vmem:[%s177 + $0x24] sm:$0xf] %vm2981, %v2862
      %2992 = vst.msk [vmem:[%s177 + $0x28] sm:$0xf] %vm2981, %v2863
      %2993 = vst.msk [vmem:[%s177 + $0x2c] sm:$0xf] %vm2981, %v2864
      %2994 = vst.msk [vmem:[%s177 + $0x30] sm:$0xf] %vm2981, %v2865
      %2995 = vst.msk [vmem:[%s177 + $0x34] sm:$0xf] %vm2981, %v2866
      %2996 = vst.msk [vmem:[%s177 + $0x38] sm:$0xf] %vm2981, %v2867
      %2997 = vst.msk [vmem:[%s177 + $0x3c] sm:$0xf] %vm2981, %v2868
      %2998 = vst.msk [vmem:[%s177 + $0x40] sm:$0xf] %vm2981, %v2869
      %2999 = vst.msk [vmem:[%s177 + $0x44] sm:$0xf] %vm2981, %v2870
      %3000 = vst.msk [vmem:[%s177 + $0x48] sm:$0xf] %vm2981, %v2871
      %3001 = vst.msk [vmem:[%s177 + $0x4c] sm:$0xf] %vm2981, %v2872
      %3002 = vst.msk [vmem:[%s177 + $0x50] sm:$0xf] %vm2981, %v2873
      %3003 = vst.msk [vmem:[%s177 + $0x54] sm:$0xf] %vm2981, %v2874
      %3004 = vst.msk [vmem:[%s177 + $0x58] sm:$0xf] %vm2981, %v2875
      %3005 = vst.msk [vmem:[%s177 + $0x5c] sm:$0xf] %vm2981, %v2876
      %3006 = vst.msk [vmem:[%s177 + $0x60] sm:$0xf] %vm2981, %v2877
      %3007 = vst.msk [vmem:[%s177 + $0x64] sm:$0xf] %vm2981, %v2878
      %3008 = vst.msk [vmem:[%s177 + $0x68] sm:$0xf] %vm2981, %v2879
      %3009 = vst.msk [vmem:[%s177 + $0x6c] sm:$0xf] %vm2981, %v2880
      %3010 = vst.msk [vmem:[%s177 + $0x70] sm:$0xf] %vm2981, %v2881
      %3011 = vst.msk [vmem:[%s177 + $0x74] sm:$0xf] %vm2981, %v2882
      %3012 = vst.msk [vmem:[%s177 + $0x78] sm:$0xf] %vm2981, %v2883
      %3013 = vst.msk [vmem:[%s177 + $0x7c] sm:$0xf] %vm2981, %v2884
      %3014 = vst.msk [vmem:[%s177 + $0x80] sm:$0xf] %vm2981, %v2885
      %3015 = vst.msk [vmem:[%s177 + $0x84] sm:$0xf] %vm2981, %v2886
      %3016 = vst.msk [vmem:[%s177 + $0x88] sm:$0xf] %vm2981, %v2887
      %3017 = vst.msk [vmem:[%s177 + $0x8c] sm:$0xf] %vm2981, %v2888
      %3018 = vst.msk [vmem:[%s177 + $0x90] sm:$0xf] %vm2981, %v2889
      %3019 = vst.msk [vmem:[%s177 + $0x94] sm:$0xf] %vm2981, %v2890
      %3020 = vst.msk [vmem:[%s177 + $0x98] sm:$0xf] %vm2981, %v2891
      %3021 = vst.msk [vmem:[%s177 + $0x9c] sm:$0xf] %vm2981, %v2892
      %3022 = vst.msk [vmem:[%s177 + $0xa0] sm:$0xf] %vm2981, %v2893
      %3023 = vst.msk [vmem:[%s177 + $0xa4] sm:$0xf] %vm2981, %v2894
      %3024 = vst.msk [vmem:[%s177 + $0xa8] sm:$0xf] %vm2981, %v2895
      %3025 = vst.msk [vmem:[%s177 + $0xac] sm:$0xf] %vm2981, %v2896
      %3026 = vst.msk [vmem:[%s177 + $0xb0] sm:$0xf] %vm2981, %v2897
      %3027 = vst.msk [vmem:[%s177 + $0xb4] sm:$0xf] %vm2981, %v2898
      %3028 = vst.msk [vmem:[%s177 + $0xb8] sm:$0xf] %vm2981, %v2899
      %3029 = vst.msk [vmem:[%s177 + $0xbc] sm:$0xf] %vm2981, %v2900
      %3030 = vst.msk [vmem:[%s177 + $0xc0] sm:$0xf] %vm2981, %v2901
      %3031 = vst.msk [vmem:[%s177 + $0xc4] sm:$0xf] %vm2981, %v2902
      %3032 = vst.msk [vmem:[%s177 + $0xc8] sm:$0xf] %vm2981, %v2903
      %3033 = vst.msk [vmem:[%s177 + $0xcc] sm:$0xf] %vm2981, %v2904
      %3034 = vst.msk [vmem:[%s177 + $0xd0] sm:$0xf] %vm2981, %v2905
      %3035 = vst.msk [vmem:[%s177 + $0xd4] sm:$0xf] %vm2981, %v2906
      %3036 = vst.msk [vmem:[%s177 + $0xd8] sm:$0xf] %vm2981, %v2907
      %3037 = vst.msk [vmem:[%s177 + $0xdc] sm:$0xf] %vm2981, %v2908
      %3038 = vst.msk [vmem:[%s177 + $0xe0] sm:$0xf] %vm2981, %v2909
      %3039 = vst.msk [vmem:[%s177 + $0xe4] sm:$0xf] %vm2981, %v2910
      %3040 = vst.msk [vmem:[%s177 + $0xe8] sm:$0xf] %vm2981, %v2911
      %3041 = vst.msk [vmem:[%s177 + $0xec] sm:$0xf] %vm2981, %v2912
      %3042 = vst.msk [vmem:[%s177 + $0xf0] sm:$0xf] %vm2981, %v2913
      %3043 = vst.msk [vmem:[%s177 + $0xf4] sm:$0xf] %vm2981, %v2914
      %3044 = vst.msk [vmem:[%s177 + $0xf8] sm:$0xf] %vm2981, %v2915
      %3045 = vst.msk [vmem:[%s177 + $0xfc] sm:$0xf] %vm2981, %v2916
      %s3046 = smul.u32 2, %s14
      %p3047 = scmp.lt.s32.totalorder %s3046, 3
      %s3048 = scalar_select %p3047, %s3046, 3
      %s3049 = smul.addr %s3048, 32
      %s3050 = smul.addr %s3049, 4
      %s3051 = scalar_lea.vmem %s3, %s3050
      // Predicated region
      $region33: #{spiking_tokenizer.9} parent=31 // pred_check
        %p3052 = pneg %p100
      $region34: #{spiking_tokenizer.9} parent=31 // pred_check_branch
        %3054 = sbr.rel (%p3052) target = $region36
      $region35: #{spiking_tokenizer.9} parent=31 // pred_region
        %s3055 = smul.u32 2, %s14
      $region36: #{spiking_tokenizer.9} parent=31 // pred_fallthru
        _
    $region32: #{spiking_tokenizer.9} parent=5 // pred_fallthru
      _
    %p3056 = scmp.le.s32.totalorder 2, %s9
    // Predicated region
    $region37: #{spiking_tokenizer.9} parent=5 // pred_check
      %p3057 = pneg %p3056
    $region38: #{spiking_tokenizer.9} parent=5 // pred_check_branch
      %3059 = sbr.rel (%p3057) target = $region40
    $region39: #{spiking_tokenizer.9} parent=5 // pred_region
      %s3060 = ssub.s32 %s9, 2
      // Predicated region
      $region41: #{spiking_tokenizer.9} parent=39 // pred_check
        %p3061 = pneg %p106
      $region42: #{spiking_tokenizer.9} parent=39 // pred_check_branch
        %3063 = sbr.rel (%p3061) target = $region44
      $region43: #{spiking_tokenizer.9} parent=39 // pred_region
        %s3064 = smul.u32 2, %s15
        %p3065 = scmp.lt.s32.totalorder %s3064, 3
        %s3066 = scalar_select %p3065, %s3064, 3
        %s3067 = smul.addr %s3066, 32
        %s3068 = smul.addr %s3067, 4
        %s3069 = scalar_lea.vmem %s3, %s3068
      $region44: #{spiking_tokenizer.9} parent=39 // pred_fallthru
        _
    $region40: #{spiking_tokenizer.9} parent=5 // pred_fallthru
      _
  $region6: #{spiking_tokenizer.9} parent=0 // loop_footer
    %s13 = sadd.s32 1, %s9
  $region7: #{spiking_tokenizer.9} parent=0 // loop_footer_branch
    %8 = sbr.rel target = $region3
  $region8: #{spiking_tokenizer.9} parent=0 // loop_exit
    _

// kernel: spiking_tokenizer.14
$region0: #{spiking_tokenizer.14}
  #allocation0 [shape = 'u32[]', space=smem, size = 0x4, offset = 0x4, fixed_abs, tag = 'smem constant byte address 0x4 - core index']
  #allocation1 [shape = 'u32[144,128]{1,0:T(1,128)}', space=vmem, size = 0x12000, scoped, tag = 'internal scratch']
  #allocation2 [shape = 'f32[5,4,16]{2,1,0:T(4,128)}', space=vmem, size = 0x2800, scoped, tag = 'scratch operand']
  #allocation3 [shape = 'f32[2,4,16]{2,1,0:T(4,128)}', space=vmem, size = 0x1000, scoped, tag = 'scratch operand']
  %s0 = inlined_call_operand.vmem [shape: bf16[2,2,4,4,16], index: 0, kind: input, shape index: {}, may-alias: {0,1}]
  %s1 = inlined_call_operand.vmem [shape: bf16[2,2,4,4,16], index: 1, kind: input, shape index: {}, may-alias: {0,1}]
  %s2 = inlined_call_operand.vmem [shape: bf16[2,2,2,2,16], index: 2, kind: output, shape index: {}]
  %s3 = sld [smem:[#allocation0]]
  $region45: #{spiking_tokenizer.14} parent=0
    _
  %s5 = ssub.s32 1, %s3
  %s6 = scalar_select 0, %s5, %s3
  loop: start=0, step=1, limit=6
  $region2: #{spiking_tokenizer.14} parent=0 // loop_pre_header
    _
  $region3: #{spiking_tokenizer.14} parent=0 // loop_header
    %s8 = sphi 0, %s12
    %p9 = scmp.ge.s32.totalorder %s8, 6
    %s15 = sphi 0, %s34
    %s16 = sphi 0, %s30
    %s17 = sphi 0, %s26
    %s18 = sphi 0, %s15
    %s19 = sphi 0, %s16
    %s20 = sphi 0, %s17
    %s21 = sphi 0, %s18
    %s22 = sphi 0, %s19
    %s23 = sphi 0, %s20
    %s41 = sphi 0, %s43
    %s44 = sphi 0, %s41
    %s45 = sphi 0, %s44
    %s61 = sphi 0, %s45
    %s79 = sphi 0, %s81
    %s82 = sphi 0, %s79
    %s83 = sphi 0, %s82
    %s99 = sphi 0, %s83
    %s109 = sphi 0, %s111
    %s112 = sphi 0, %s109
    %s113 = sphi 0, %s112
    %s129 = sphi 0, %s113
  $region4: #{spiking_tokenizer.14} parent=0 // loop_header_branch
    %11 = sbr.rel (%p9) target = $region8
  $region5: #{spiking_tokenizer.14} parent=0 // loop_body
    %s13 = ssub.s32 %s8, 1
    %s14 = ssub.s32 %s8, 2
    %s24 = sadd.s32 1, %s17
    %p25 = scmp.ge.s32.totalorder %s24, 2
    %s26 = scalar_select %p25, 0, %s24
    %s27 = sadd.s32 1, %s16
    %s28 = scalar_select %p25, %s27, %s16
    %p29 = scmp.ge.s32.totalorder %s28, 1
    %s30 = scalar_select %p29, 0, %s28
    %s31 = sadd.s32 1, %s15
    %s32 = scalar_select %p29, %s31, %s15
    %p33 = scmp.ge.s32.totalorder %s32, 2
    %s34 = scalar_select %p33, 0, %s32
    %s35 = ssub.s32 %s17, %s26
    %s36 = ssub.s32 %s15, %s34
    %s37 = sor.u32 %s35, %s36
    %s38 = ssub.s32 %s16, %s30
    %s39 = sor.u32 %s37, %s38
    %p40 = scmp.eq.s32.totalorder %s39, 0
    %s42 = sadd.s32 %s41, 1
    %s43 = scalar_select %p40, %s41, %s42
    %p46 = pneg %p40
    %p47 = scmp.eq.s32.totalorder %s8, 3
    %p48 = por %p46, %p47
    %p49 = scmp.ne.s32.totalorder %s41, %s44
    %p50 = scmp.eq.s32.totalorder %s8, 0
    %p51 = por %p49, %p50
    %p52 = scmp.ne.s32.totalorder %s41, %s44
    %p53 = scmp.eq.s32.totalorder %s13, 3
    %p54 = por %p52, %p53
    %p55 = scmp.ne.s32.totalorder %s44, %s45
    %p56 = scmp.eq.s32.totalorder %s13, 0
    %p57 = por %p55, %p56
    %p58 = scmp.ne.s32.totalorder %s44, %s45
    %p59 = scmp.eq.s32.totalorder %s14, 3
    %p60 = por %p58, %p59
    %p62 = scmp.ne.s32.totalorder %s45, %s61
    %p63 = scmp.eq.s32.totalorder %s14, 0
    %p64 = por %p62, %p63
    %s65 = smul.u32 %s16, 4
    %s66 = ssub.s32 %s65, 1
    %p67 = scmp.gt.s32.totalorder %s66, 0
    %s68 = scalar_select %p67, %s66, 0
    %s69 = smul.u32 %s30, 4
    %s70 = ssub.s32 %s69, 1
    %p71 = scmp.gt.s32.totalorder %s70, 0
    %s72 = scalar_select %p71, %s70, 0
    %s73 = ssub.s32 %s17, %s26
    %s74 = ssub.s32 %s15, %s34
    %s75 = sor.u32 %s73, %s74
    %s76 = ssub.s32 %s68, %s72
    %s77 = sor.u32 %s75, %s76
    %p78 = scmp.eq.s32.totalorder %s77, 0
    %s80 = sadd.s32 %s79, 1
    %s81 = scalar_select %p78, %s79, %s80
    %p84 = pneg %p78
    %p85 = scmp.eq.s32.totalorder %s8, 3
    %p86 = por %p84, %p85
    %p87 = scmp.ne.s32.totalorder %s79, %s82
    %p88 = scmp.eq.s32.totalorder %s8, 0
    %p89 = por %p87, %p88
    %p90 = scmp.ne.s32.totalorder %s79, %s82
    %p91 = scmp.eq.s32.totalorder %s13, 3
    %p92 = por %p90, %p91
    %p93 = scmp.ne.s32.totalorder %s82, %s83
    %p94 = scmp.eq.s32.totalorder %s13, 0
    %p95 = por %p93, %p94
    %p96 = scmp.ne.s32.totalorder %s82, %s83
    %p97 = scmp.eq.s32.totalorder %s14, 3
    %p98 = por %p96, %p97
    %p100 = scmp.ne.s32.totalorder %s83, %s99
    %p101 = scmp.eq.s32.totalorder %s14, 0
    %p102 = por %p100, %p101
    %s103 = ssub.s32 %s17, %s26
    %s104 = ssub.s32 %s15, %s34
    %s105 = sor.u32 %s103, %s104
    %s106 = ssub.s32 %s16, %s30
    %s107 = sor.u32 %s105, %s106
    %p108 = scmp.eq.s32.totalorder %s107, 0
    %s110 = sadd.s32 %s109, 1
    %s111 = scalar_select %p108, %s109, %s110
    %p114 = pneg %p108
    %p115 = scmp.eq.s32.totalorder %s8, 3
    %p116 = por %p114, %p115
    %p117 = scmp.ne.s32.totalorder %s109, %s112
    %p118 = scmp.eq.s32.totalorder %s8, 0
    %p119 = por %p117, %p118
    %p120 = scmp.ne.s32.totalorder %s109, %s112
    %p121 = scmp.eq.s32.totalorder %s13, 3
    %p122 = por %p120, %p121
    %p123 = scmp.ne.s32.totalorder %s112, %s113
    %p124 = scmp.eq.s32.totalorder %s13, 0
    %p125 = por %p123, %p124
    %p126 = scmp.ne.s32.totalorder %s112, %s113
    %p127 = scmp.eq.s32.totalorder %s14, 3
    %p128 = por %p126, %p127
    %p130 = scmp.ne.s32.totalorder %s113, %s129
    %p131 = scmp.eq.s32.totalorder %s14, 0
    %p132 = por %p130, %p131
    %p133 = scmp.le.s32.totalorder 1, %s8
    %p134 = scmp.lt.s32.totalorder %s8, 5
    %p135 = pnand %p133, %p134
    %p136 = pneg %p135
    // Predicated region
    $region9: #{spiking_tokenizer.14} parent=5 // pred_check
      _
    $region10: #{spiking_tokenizer.14} parent=5 // pred_check_branch
      %138 = sbr.rel (%p135) target = $region12
    $region11: #{spiking_tokenizer.14} parent=5 // pred_region
      %s139 = ssub.s32 %s8, 1
    $region12: #{spiking_tokenizer.14} parent=5 // pred_fallthru
      _
    %p140 = scmp.lt.s32.totalorder %s8, 4
    // Predicated region
    $region13: #{spiking_tokenizer.14} parent=5 // pred_check
      %p141 = pneg %p140
    $region14: #{spiking_tokenizer.14} parent=5 // pred_check_branch
      %143 = sbr.rel (%p141) target = $region16
    $region15: #{spiking_tokenizer.14} parent=5 // pred_region
      // Predicated region
      $region17: #{spiking_tokenizer.14} parent=15 // pred_check
        %p144 = pneg %p51
      $region18: #{spiking_tokenizer.14} parent=15 // pred_check_branch
        %146 = sbr.rel (%p144) target = $region20
      $region19: #{spiking_tokenizer.14} parent=15 // pred_region
        %s147 = smul.u32 4, %s16
        %p148 = scmp.lt.s32.totalorder %s17, 1
        %s149 = scalar_select %p148, %s17, 1
        %p150 = scmp.lt.s32.totalorder %s15, 1
        %s151 = scalar_select %p150, %s15, 1
        %p152 = scmp.lt.s32.totalorder %s147, 3
        %s153 = scalar_select %p152, %s147, 3
        %s154 = smul.addr %s151, 4
        %s155 = sadd.s32 %s153, %s154
        %s156 = smul.addr %s149, 8
        %s157 = sadd.s32 %s155, %s156
        %s158 = smul.addr %s157, 2
        %s159 = scalar_lea.vmem %s0, %s158
        %s160 = smul.u32 4, %s16
      $region20: #{spiking_tokenizer.14} parent=15 // pred_fallthru
        _
      // Predicated region
      $region21: #{spiking_tokenizer.14} parent=15 // pred_check
        %p161 = pneg %p89
      $region22: #{spiking_tokenizer.14} parent=15 // pred_check_branch
        %163 = sbr.rel (%p161) target = $region24
      $region23: #{spiking_tokenizer.14} parent=15 // pred_region
        %s164 = smul.u32 %s16, 4
        %s165 = ssub.s32 %s164, 1
        %p166 = scmp.gt.s32.totalorder %s165, 0
        %s167 = scalar_select %p166, %s165, 0
        %p168 = scmp.lt.s32.totalorder %s17, 1
        %s169 = scalar_select %p168, %s17, 1
        %p170 = scmp.lt.s32.totalorder %s15, 1
        %s171 = scalar_select %p170, %s15, 1
        %p172 = scmp.lt.s32.totalorder %s167, 3
        %s173 = scalar_select %p172, %s167, 3
        %s174 = smul.addr %s171, 4
        %s175 = sadd.s32 %s173, %s174
        %s176 = smul.addr %s169, 8
        %s177 = sadd.s32 %s175, %s176
        %s178 = smul.addr %s177, 2
        %s179 = scalar_lea.vmem %s1, %s178
        %s180 = smul.u32 %s16, 4
        %s181 = ssub.s32 %s180, 1
        %p182 = scmp.gt.s32.totalorder %s181, 0
        %s183 = scalar_select %p182, %s181, 0
      $region24: #{spiking_tokenizer.14} parent=15 // pred_fallthru
        _
    $region16: #{spiking_tokenizer.14} parent=5 // pred_fallthru
      _
    %p184 = scmp.le.s32.totalorder 1, %s8
    %p185 = scmp.lt.s32.totalorder %s8, 5
    %p186 = pnand %p184, %p185
    %p187 = pneg %p186
    // Predicated region
    $region25: #{spiking_tokenizer.14} parent=5 // pred_check
      _
    $region26: #{spiking_tokenizer.14} parent=5 // pred_check_branch
      %189 = sbr.rel (%p186) target = $region28
    $region27: #{spiking_tokenizer.14} parent=5 // pred_region
      %s190 = ssub.s32 %s8, 1
      %s191 = smul.u32 4, %s19
      %p192 = scmp.lt.s32.totalorder %s20, 1
      %s193 = scalar_select %p192, %s20, 1
      %p194 = scmp.lt.s32.totalorder %s18, 1
      %s195 = scalar_select %p194, %s18, 1
      %p196 = scmp.lt.s32.totalorder %s191, 3
      %s197 = scalar_select %p196, %s191, 3
      %s198 = smul.addr %s195, 4
      %s199 = sadd.s32 %s197, %s198
      %s200 = smul.addr %s193, 8
      %s201 = sadd.s32 %s199, %s200
      %s202 = smul.addr %s201, 2
      %s203 = scalar_lea.vmem %s0, %s202
      %p204 = pneg %p57
      %p205 = pneg %p54
      %s206 = smul.u32 %s19, 4
      %s207 = ssub.s32 %s206, 1
      %p208 = scmp.gt.s32.totalorder %s207, 0
      %s209 = scalar_select %p208, %s207, 0
      %p210 = scmp.lt.s32.totalorder %s20, 1
      %s211 = scalar_select %p210, %s20, 1
      %p212 = scmp.lt.s32.totalorder %s18, 1
      %s213 = scalar_select %p212, %s18, 1
      %p214 = scmp.lt.s32.totalorder %s209, 3
      %s215 = scalar_select %p214, %s209, 3
      %s216 = smul.addr %s213, 4
      %s217 = sadd.s32 %s215, %s216
      %s218 = smul.addr %s211, 8
      %s219 = sadd.s32 %s217, %s218
      %s220 = smul.addr %s219, 2
      %s221 = scalar_lea.vmem %s1, %s220
      %p222 = pneg %p95
      %p223 = pneg %p92
      %p224 = pneg %p125
      %p225 = pneg %p122
      %s226 = smul.u32 2, %s19
      %p227 = scmp.lt.s32.totalorder %s20, 1
      %s228 = scalar_select %p227, %s20, 1
      %p229 = scmp.lt.s32.totalorder %s18, 1
      %s230 = scalar_select %p229, %s18, 1
      %p231 = scmp.lt.s32.totalorder %s226, 1
      %s232 = scalar_select %p231, %s226, 1
      %s233 = smul.addr %s230, 2
      %s234 = sadd.s32 %s232, %s233
      %s235 = smul.addr %s228, 4
      %s236 = sadd.s32 %s234, %s235
      %s237 = scalar_lea.vmem %s2, %s236
      %s238 = smul.u32 4, %s19
      %p239 = scmp.lt.s32.totalorder %s20, 1
      %s240 = scalar_select %p239, %s20, 1
      %p241 = scmp.lt.s32.totalorder %s18, 1
      %s242 = scalar_select %p241, %s18, 1
      %p243 = scmp.lt.s32.totalorder %s238, 3
      %s244 = scalar_select %p243, %s238, 3
      %s245 = smul.addr %s242, 4
      %s246 = sadd.s32 %s244, %s245
      %s247 = smul.addr %s240, 8
      %s248 = sadd.s32 %s246, %s247
      %s249 = smul.addr %s248, 2
      %s250 = scalar_lea.vmem %s0, %s249
      %s251 = smul.u32 4, %s19
      %s252 = smul.u32 %s19, 4
      %s253 = ssub.s32 %s252, 1
      %p254 = scmp.gt.s32.totalorder %s253, 0
      %s255 = scalar_select %p254, %s253, 0
      %p256 = scmp.lt.s32.totalorder %s20, 1
      %s257 = scalar_select %p256, %s20, 1
      %p258 = scmp.lt.s32.totalorder %s18, 1
      %s259 = scalar_select %p258, %s18, 1
      %p260 = scmp.lt.s32.totalorder %s255, 3
      %s261 = scalar_select %p260, %s255, 3
      %s262 = smul.addr %s259, 4
      %s263 = sadd.s32 %s261, %s262
      %s264 = smul.addr %s257, 8
      %s265 = sadd.s32 %s263, %s264
      %s266 = smul.addr %s265, 2
      %s267 = scalar_lea.vmem %s1, %s266
      %s268 = smul.u32 %s19, 4
      %s269 = ssub.s32 %s268, 1
      %p270 = scmp.gt.s32.totalorder %s269, 0
      %s271 = scalar_select %p270, %s269, 0
      %s272 = smul.u32 2, %s19
      %p273 = scmp.lt.s32.totalorder %s20, 1
      %s274 = scalar_select %p273, %s20, 1
      %p275 = scmp.lt.s32.totalorder %s18, 1
      %s276 = scalar_select %p275, %s18, 1
      %p277 = scmp.lt.s32.totalorder %s272, 1
      %s278 = scalar_select %p277, %s272, 1
      %s279 = smul.addr %s276, 2
      %s280 = sadd.s32 %s278, %s279
      %s281 = smul.addr %s274, 4
      %s282 = sadd.s32 %s280, %s281
      %s283 = scalar_lea.vmem %s2, %s282
      %s284 = smul.u32 2, %s19
      %p285 = scmp.eq.s32.totalorder %s20, 0
      // Predicated region
      $region29: #{spiking_tokenizer.14} parent=27 // pred_check
        %p286 = pneg %p285
      $region30: #{spiking_tokenizer.14} parent=27 // pred_check_branch
        %288 = sbr.rel (%p286) target = $region32
      $region31: #{spiking_tokenizer.14} parent=27 // pred_region
        %vm289 = vcmask 125952
        %290 = vst.msk [vmem:[#allocation2] sm:$0xf] %vm289, 0.0
        %291 = vst.msk [vmem:[#allocation2 + $0x4] sm:$0xf] %vm289, 0.0
        %292 = vst.msk [vmem:[#allocation2 + $0x8] sm:$0xf] %vm289, 0.0
        %293 = vst.msk [vmem:[#allocation2 + $0xc] sm:$0xf] %vm289, 0.0
        %294 = vst.msk [vmem:[#allocation2 + $0x10] sm:$0xf] %vm289, 0.0
      $region32: #{spiking_tokenizer.14} parent=27 // pred_fallthru
        _
      %v295 = vld [vmem:[%s267] sm:$0x3]
      %v296 = vunpack.c.l.bf16 %v295
      %v297 = vld [vmem:[%s250] sm:$0x3]
      %v298 = vld [vmem:[%s250 + $0x2] sm:$0x3]
      %v299 = vld [vmem:[%s250 + $0x4] sm:$0x3]
      %v300 = vld [vmem:[%s250 + $0x6] sm:$0x3]
      %v301 = vunpack.c.l.bf16 %v297
      %v302 = vunpack.c.l.bf16 %v298
      %v303 = vunpack.c.l.bf16 %v299
      %v304 = vunpack.c.l.bf16 %v300
      %v305 = vld [vmem:[#allocation2] sm:$0xf]
      %v306 = vld [vmem:[#allocation2 + $0x4] sm:$0xf]
      %v307 = vld [vmem:[#allocation2 + $0x8] sm:$0xf]
      %v308 = vld [vmem:[#allocation2 + $0xc] sm:$0xf]
      %v309 = vld [vmem:[#allocation2 + $0x10] sm:$0xf]
      %v310 = vsub.f32 %v296, %v305
      %v311 = vsub.f32 %v301, %v306
      %v312 = vsub.f32 %v302, %v307
      %v313 = vsub.f32 %v303, %v308
      %v314 = vsub.f32 %v304, %v309
      %v315 = vmul.f32 %v310, 0.6666667
      %v316 = vmul.f32 %v311, 0.6666667
      %v317 = vmul.f32 %v312, 0.6666667
      %v318 = vmul.f32 %v313, 0.6666667
      %v319 = vmul.f32 %v314, 0.6666667
      %v320 = vadd.f32 %v305, %v315
      %v321 = vadd.f32 %v306, %v316
      %v322 = vadd.f32 %v307, %v317
      %v323 = vadd.f32 %v308, %v318
      %v324 = vadd.f32 %v309, %v319
      %vm325 = vcmp.ge.f32.partialorder %v320, 1.0
      %vm326 = vcmp.ge.f32.partialorder %v321, 1.0
      %vm327 = vcmp.ge.f32.partialorder %v322, 1.0
      %vm328 = vcmp.ge.f32.partialorder %v323, 1.0
      %vm329 = vcmp.ge.f32.partialorder %v324, 1.0
      %v330 = vsel %vm325, 0.0, %v320
      %v331 = vsel %vm326, 0.0, %v321
      %v332 = vsel %vm327, 0.0, %v322
      %v333 = vsel %vm328, 0.0, %v323
      %v334 = vsel %vm329, 0.0, %v324
      %vm335 = vcmask 125952
      %336 = vst.msk [vmem:[#allocation2] sm:$0xf] %vm335, %v330
      %337 = vst.msk [vmem:[#allocation2 + $0x4] sm:$0xf] %vm335, %v331
      %338 = vst.msk [vmem:[#allocation2 + $0x8] sm:$0xf] %vm335, %v332
      %339 = vst.msk [vmem:[#allocation2 + $0xc] sm:$0xf] %vm335, %v333
      %340 = vst.msk [vmem:[#allocation2 + $0x10] sm:$0xf] %vm335, %v334
      %v341 = vsel %vm325, 1, 0
      %v342 = vsel %vm326, 1, 0
      %v343 = vsel %vm327, 1, 0
      %v344 = vsel %vm328, 1, 0
      %v345 = vsel %vm329, 1, 0
      %v346 = vcvt.s32.f32 %v341
      %v347 = vcvt.s32.f32 %v342
      %v348 = vcvt.s32.f32 %v343
      %v349 = vcvt.s32.f32 %v344
      %v350 = vcvt.s32.f32 %v345
      %v356 = vrot.slane %v346, 7
      %v357 = vrot.slane %v347, 7
      %v358 = vrot.slane %v348, 7
      %v359 = vrot.slane %v349, 7
      %v360 = vrot.slane %v350, 7
      %vm366 = vcmask 1040384
      %v367 = vsel %vm366, 0.0, %v356
      %v368 = vsel %vm366, 0.0, %v357
      %v369 = vsel %vm366, 0.0, %v358
      %v370 = vsel %vm366, 0.0, %v359
      %v371 = vsel %vm366, 0.0, %v360
      %v372 = vrot.slane %v346, 1
      %v373 = vrot.slane %v347, 1
      %v374 = vrot.slane %v348, 1
      %v375 = vrot.slane %v349, 1
      %v376 = vrot.slane %v350, 1
      %vm382 = vcmask 1042432
      %v383 = vsel %vm382, %v372, 0.0
      %v384 = vsel %vm382, %v373, 0.0
      %v385 = vsel %vm382, %v374, 0.0
      %v386 = vsel %vm382, %v375, 0.0
      %v387 = vsel %vm382, %v376, 0.0
      %v388 = vmax.f32 %v367, %v346
      %v389 = vmax.f32 %v368, %v347
      %v390 = vmax.f32 %v369, %v348
      %v391 = vmax.f32 %v370, %v349
      %v392 = vmax.f32 %v371, %v350
      %v393 = vmax.f32 %v388, %v383
      %v394 = vmax.f32 %v389, %v384
      %v395 = vmax.f32 %v390, %v385
      %v396 = vmax.f32 %v391, %v386
      %v397 = vmax.f32 %v392, %v387
      %v398 = vsel %vm335, %v393, -inf
      %v399 = vsel %vm335, %v394, -inf
      %v400 = vmax.f32 %v398, %v399
      %v401 = vsel %vm335, %v395, -inf
      %v402 = vsel %vm335, %v396, -inf
      %v403 = vmax.f32 %v401, %v402
      %v404 = vmax.f32 %v400, %v395
      %v405 = vmax.f32 %v403, %v397
      %406 = vst.msk [vmem:[#allocation3] sm:$0xf] %vm335, %v404
      %407 = vst.msk [vmem:[#allocation3 + $0x4] sm:$0xf] %vm335, %v405
      %v408 = vld [vmem:[#allocation3] ss:$2 sm:$0x3]
      %s409 = scalar_lea.vmem [#allocation3], 4
      %v410 = vld [vmem:[%s409] ss:$2 sm:$0x3]
      %v411 = vpack.c.bf16 %v408, %v408
      %v412 = vpack.c.bf16 %v410, %v410
      %vm413 = vcmask 122880
      %414 = vst.msk [vmem:[%s283] sm:$0x1] %vm413, %v411
      %415 = vst.msk [vmem:[%s283 + $0x1] sm:$0x1] %vm413, %v412
      %s416 = smul.u32 2, %s19
      %p417 = scmp.lt.s32.totalorder %s20, 1
      %s418 = scalar_select %p417, %s20, 1
      %p419 = scmp.lt.s32.totalorder %s18, 1
      %s420 = scalar_select %p419, %s18, 1
      %p421 = scmp.lt.s32.totalorder %s416, 1
      %s422 = scalar_select %p421, %s416, 1
      %s423 = smul.addr %s420, 2
      %s424 = sadd.s32 %s422, %s423
      %s425 = smul.addr %s418, 4
      %s426 = sadd.s32 %s424, %s425
      %s427 = scalar_lea.vmem %s2, %s426
      // Predicated region
      $region33: #{spiking_tokenizer.14} parent=27 // pred_check
        %p428 = pneg %p122
      $region34: #{spiking_tokenizer.14} parent=27 // pred_check_branch
        %430 = sbr.rel (%p428) target = $region36
      $region35: #{spiking_tokenizer.14} parent=27 // pred_region
        %s431 = smul.u32 2, %s19
      $region36: #{spiking_tokenizer.14} parent=27 // pred_fallthru
        _
    $region28: #{spiking_tokenizer.14} parent=5 // pred_fallthru
      _
    %p432 = scmp.le.s32.totalorder 2, %s8
    // Predicated region
    $region37: #{spiking_tokenizer.14} parent=5 // pred_check
      %p433 = pneg %p432
    $region38: #{spiking_tokenizer.14} parent=5 // pred_check_branch
      %435 = sbr.rel (%p433) target = $region40
    $region39: #{spiking_tokenizer.14} parent=5 // pred_region
      %s436 = ssub.s32 %s8, 2
      // Predicated region
      $region41: #{spiking_tokenizer.14} parent=39 // pred_check
        %p437 = pneg %p128
      $region42: #{spiking_tokenizer.14} parent=39 // pred_check_branch
        %439 = sbr.rel (%p437) target = $region44
      $region43: #{spiking_tokenizer.14} parent=39 // pred_region
        %s440 = smul.u32 2, %s22
        %p441 = scmp.lt.s32.totalorder %s23, 1
        %s442 = scalar_select %p441, %s23, 1
        %p443 = scmp.lt.s32.totalorder %s21, 1
        %s444 = scalar_select %p443, %s21, 1
        %p445 = scmp.lt.s32.totalorder %s440, 1
        %s446 = scalar_select %p445, %s440, 1
        %s447 = smul.addr %s444, 2
        %s448 = sadd.s32 %s446, %s447
        %s449 = smul.addr %s442, 4
        %s450 = sadd.s32 %s448, %s449
        %s451 = scalar_lea.vmem %s2, %s450
      $region44: #{spiking_tokenizer.14} parent=39 // pred_fallthru
        _
    $region40: #{spiking_tokenizer.14} parent=5 // pred_fallthru
      _
  $region6: #{spiking_tokenizer.14} parent=0 // loop_footer
    %s12 = sadd.s32 1, %s8
  $region7: #{spiking_tokenizer.14} parent=0 // loop_footer_branch
    %7 = sbr.rel target = $region3
  $region8: #{spiking_tokenizer.14} parent=0 // loop_exit
    _

// kernel: spiking_tokenizer.16
$region0: #{spiking_tokenizer.16}
  #allocation0 [shape = 'u32[]', space=smem, size = 0x4, offset = 0x4, fixed_abs, tag = 'smem constant byte address 0x4 - core index']
  #allocation1 [shape = 'u32[144,128]{1,0:T(1,128)}', space=vmem, size = 0x12000, scoped, tag = 'internal scratch']
  #allocation2 [shape = 'f32[3,2,32]{2,1,0:T(2,128)}', space=vmem, size = 0xc00, scoped, tag = 'scratch operand']
  #allocation3 [shape = 'f32[1,2,32]{2,1,0:T(2,128)}', space=vmem, size = 0x400, scoped, tag = 'scratch operand']
  %s0 = inlined_call_operand.vmem [shape: bf16[2,2,2,2,32], index: 0, kind: input, shape index: {}, may-alias: {0,1}]
  %s1 = inlined_call_operand.vmem [shape: bf16[2,2,2,2,32], index: 1, kind: input, shape index: {}, may-alias: {0,1}]
  %s2 = inlined_call_operand.vmem [shape: bf16[2,2,1,1,32], index: 2, kind: output, shape index: {}]
  %s3 = sld [smem:[#allocation0]]
  $region45: #{spiking_tokenizer.16} parent=0
    _
  %s5 = ssub.s32 1, %s3
  %s6 = scalar_select 0, %s5, %s3
  loop: start=0, step=1, limit=6
  $region2: #{spiking_tokenizer.16} parent=0 // loop_pre_header
    _
  $region3: #{spiking_tokenizer.16} parent=0 // loop_header
    %s8 = sphi 0, %s12
    %p9 = scmp.ge.s32.totalorder %s8, 6
    %s15 = sphi 0, %s34
    %s16 = sphi 0, %s30
    %s17 = sphi 0, %s26
    %s18 = sphi 0, %s15
    %s19 = sphi 0, %s16
    %s20 = sphi 0, %s17
    %s21 = sphi 0, %s18
    %s22 = sphi 0, %s19
    %s23 = sphi 0, %s20
    %s41 = sphi 0, %s43
    %s44 = sphi 0, %s41
    %s45 = sphi 0, %s44
    %s61 = sphi 0, %s45
    %s79 = sphi 0, %s81
    %s82 = sphi 0, %s79
    %s83 = sphi 0, %s82
    %s99 = sphi 0, %s83
    %s109 = sphi 0, %s111
    %s112 = sphi 0, %s109
    %s113 = sphi 0, %s112
    %s129 = sphi 0, %s113
  $region4: #{spiking_tokenizer.16} parent=0 // loop_header_branch
    %11 = sbr.rel (%p9) target = $region8
  $region5: #{spiking_tokenizer.16} parent=0 // loop_body
    %s13 = ssub.s32 %s8, 1
    %s14 = ssub.s32 %s8, 2
    %s24 = sadd.s32 1, %s17
    %p25 = scmp.ge.s32.totalorder %s24, 2
    %s26 = scalar_select %p25, 0, %s24
    %s27 = sadd.s32 1, %s16
    %s28 = scalar_select %p25, %s27, %s16
    %p29 = scmp.ge.s32.totalorder %s28, 1
    %s30 = scalar_select %p29, 0, %s28
    %s31 = sadd.s32 1, %s15
    %s32 = scalar_select %p29, %s31, %s15
    %p33 = scmp.ge.s32.totalorder %s32, 2
    %s34 = scalar_select %p33, 0, %s32
    %s35 = ssub.s32 %s17, %s26
    %s36 = ssub.s32 %s15, %s34
    %s37 = sor.u32 %s35, %s36
    %s38 = ssub.s32 %s16, %s30
    %s39 = sor.u32 %s37, %s38
    %p40 = scmp.eq.s32.totalorder %s39, 0
    %s42 = sadd.s32 %s41, 1
    %s43 = scalar_select %p40, %s41, %s42
    %p46 = pneg %p40
    %p47 = scmp.eq.s32.totalorder %s8, 3
    %p48 = por %p46, %p47
    %p49 = scmp.ne.s32.totalorder %s41, %s44
    %p50 = scmp.eq.s32.totalorder %s8, 0
    %p51 = por %p49, %p50
    %p52 = scmp.ne.s32.totalorder %s41, %s44
    %p53 = scmp.eq.s32.totalorder %s13, 3
    %p54 = por %p52, %p53
    %p55 = scmp.ne.s32.totalorder %s44, %s45
    %p56 = scmp.eq.s32.totalorder %s13, 0
    %p57 = por %p55, %p56
    %p58 = scmp.ne.s32.totalorder %s44, %s45
    %p59 = scmp.eq.s32.totalorder %s14, 3
    %p60 = por %p58, %p59
    %p62 = scmp.ne.s32.totalorder %s45, %s61
    %p63 = scmp.eq.s32.totalorder %s14, 0
    %p64 = por %p62, %p63
    %s65 = smul.u32 %s16, 2
    %s66 = ssub.s32 %s65, 1
    %p67 = scmp.gt.s32.totalorder %s66, 0
    %s68 = scalar_select %p67, %s66, 0
    %s69 = smul.u32 %s30, 2
    %s70 = ssub.s32 %s69, 1
    %p71 = scmp.gt.s32.totalorder %s70, 0
    %s72 = scalar_select %p71, %s70, 0
    %s73 = ssub.s32 %s17, %s26
    %s74 = ssub.s32 %s15, %s34
    %s75 = sor.u32 %s73, %s74
    %s76 = ssub.s32 %s68, %s72
    %s77 = sor.u32 %s75, %s76
    %p78 = scmp.eq.s32.totalorder %s77, 0
    %s80 = sadd.s32 %s79, 1
    %s81 = scalar_select %p78, %s79, %s80
    %p84 = pneg %p78
    %p85 = scmp.eq.s32.totalorder %s8, 3
    %p86 = por %p84, %p85
    %p87 = scmp.ne.s32.totalorder %s79, %s82
    %p88 = scmp.eq.s32.totalorder %s8, 0
    %p89 = por %p87, %p88
    %p90 = scmp.ne.s32.totalorder %s79, %s82
    %p91 = scmp.eq.s32.totalorder %s13, 3
    %p92 = por %p90, %p91
    %p93 = scmp.ne.s32.totalorder %s82, %s83
    %p94 = scmp.eq.s32.totalorder %s13, 0
    %p95 = por %p93, %p94
    %p96 = scmp.ne.s32.totalorder %s82, %s83
    %p97 = scmp.eq.s32.totalorder %s14, 3
    %p98 = por %p96, %p97
    %p100 = scmp.ne.s32.totalorder %s83, %s99
    %p101 = scmp.eq.s32.totalorder %s14, 0
    %p102 = por %p100, %p101
    %s103 = ssub.s32 %s17, %s26
    %s104 = ssub.s32 %s15, %s34
    %s105 = sor.u32 %s103, %s104
    %s106 = ssub.s32 %s16, %s30
    %s107 = sor.u32 %s105, %s106
    %p108 = scmp.eq.s32.totalorder %s107, 0
    %s110 = sadd.s32 %s109, 1
    %s111 = scalar_select %p108, %s109, %s110
    %p114 = pneg %p108
    %p115 = scmp.eq.s32.totalorder %s8, 3
    %p116 = por %p114, %p115
    %p117 = scmp.ne.s32.totalorder %s109, %s112
    %p118 = scmp.eq.s32.totalorder %s8, 0
    %p119 = por %p117, %p118
    %p120 = scmp.ne.s32.totalorder %s109, %s112
    %p121 = scmp.eq.s32.totalorder %s13, 3
    %p122 = por %p120, %p121
    %p123 = scmp.ne.s32.totalorder %s112, %s113
    %p124 = scmp.eq.s32.totalorder %s13, 0
    %p125 = por %p123, %p124
    %p126 = scmp.ne.s32.totalorder %s112, %s113
    %p127 = scmp.eq.s32.totalorder %s14, 3
    %p128 = por %p126, %p127
    %p130 = scmp.ne.s32.totalorder %s113, %s129
    %p131 = scmp.eq.s32.totalorder %s14, 0
    %p132 = por %p130, %p131
    %p133 = scmp.le.s32.totalorder 1, %s8
    %p134 = scmp.lt.s32.totalorder %s8, 5
    %p135 = pnand %p133, %p134
    %p136 = pneg %p135
    // Predicated region
    $region9: #{spiking_tokenizer.16} parent=5 // pred_check
      _
    $region10: #{spiking_tokenizer.16} parent=5 // pred_check_branch
      %138 = sbr.rel (%p135) target = $region12
    $region11: #{spiking_tokenizer.16} parent=5 // pred_region
      %s139 = ssub.s32 %s8, 1
    $region12: #{spiking_tokenizer.16} parent=5 // pred_fallthru
      _
    %p140 = scmp.lt.s32.totalorder %s8, 4
    // Predicated region
    $region13: #{spiking_tokenizer.16} parent=5 // pred_check
      %p141 = pneg %p140
    $region14: #{spiking_tokenizer.16} parent=5 // pred_check_branch
      %143 = sbr.rel (%p141) target = $region16
    $region15: #{spiking_tokenizer.16} parent=5 // pred_region
      // Predicated region
      $region17: #{spiking_tokenizer.16} parent=15 // pred_check
        %p144 = pneg %p51
      $region18: #{spiking_tokenizer.16} parent=15 // pred_check_branch
        %146 = sbr.rel (%p144) target = $region20
      $region19: #{spiking_tokenizer.16} parent=15 // pred_region
        %s147 = smul.u32 2, %s16
        %p148 = scmp.lt.s32.totalorder %s17, 1
        %s149 = scalar_select %p148, %s17, 1
        %p150 = scmp.lt.s32.totalorder %s15, 1
        %s151 = scalar_select %p150, %s15, 1
        %p152 = scmp.lt.s32.totalorder %s147, 1
        %s153 = scalar_select %p152, %s147, 1
        %s154 = smul.addr %s151, 2
        %s155 = sadd.s32 %s153, %s154
        %s156 = smul.addr %s149, 4
        %s157 = sadd.s32 %s155, %s156
        %s158 = scalar_lea.vmem %s0, %s157
        %s159 = smul.u32 2, %s16
      $region20: #{spiking_tokenizer.16} parent=15 // pred_fallthru
        _
      // Predicated region
      $region21: #{spiking_tokenizer.16} parent=15 // pred_check
        %p160 = pneg %p89
      $region22: #{spiking_tokenizer.16} parent=15 // pred_check_branch
        %162 = sbr.rel (%p160) target = $region24
      $region23: #{spiking_tokenizer.16} parent=15 // pred_region
        %s163 = smul.u32 %s16, 2
        %s164 = ssub.s32 %s163, 1
        %p165 = scmp.gt.s32.totalorder %s164, 0
        %s166 = scalar_select %p165, %s164, 0
        %p167 = scmp.lt.s32.totalorder %s17, 1
        %s168 = scalar_select %p167, %s17, 1
        %p169 = scmp.lt.s32.totalorder %s15, 1
        %s170 = scalar_select %p169, %s15, 1
        %p171 = scmp.lt.s32.totalorder %s166, 1
        %s172 = scalar_select %p171, %s166, 1
        %s173 = smul.addr %s170, 2
        %s174 = sadd.s32 %s172, %s173
        %s175 = smul.addr %s168, 4
        %s176 = sadd.s32 %s174, %s175
        %s177 = scalar_lea.vmem %s1, %s176
        %s178 = smul.u32 %s16, 2
        %s179 = ssub.s32 %s178, 1
        %p180 = scmp.gt.s32.totalorder %s179, 0
        %s181 = scalar_select %p180, %s179, 0
      $region24: #{spiking_tokenizer.16} parent=15 // pred_fallthru
        _
    $region16: #{spiking_tokenizer.16} parent=5 // pred_fallthru
      _
    %p182 = scmp.le.s32.totalorder 1, %s8
    %p183 = scmp.lt.s32.totalorder %s8, 5
    %p184 = pnand %p182, %p183
    %p185 = pneg %p184
    // Predicated region
    $region25: #{spiking_tokenizer.16} parent=5 // pred_check
      _
    $region26: #{spiking_tokenizer.16} parent=5 // pred_check_branch
      %187 = sbr.rel (%p184) target = $region28
    $region27: #{spiking_tokenizer.16} parent=5 // pred_region
      %s188 = ssub.s32 %s8, 1
      %s189 = smul.u32 2, %s19
      %p190 = scmp.lt.s32.totalorder %s20, 1
      %s191 = scalar_select %p190, %s20, 1
      %p192 = scmp.lt.s32.totalorder %s18, 1
      %s193 = scalar_select %p192, %s18, 1
      %p194 = scmp.lt.s32.totalorder %s189, 1
      %s195 = scalar_select %p194, %s189, 1
      %s196 = smul.addr %s193, 2
      %s197 = sadd.s32 %s195, %s196
      %s198 = smul.addr %s191, 4
      %s199 = sadd.s32 %s197, %s198
      %s200 = scalar_lea.vmem %s0, %s199
      %p201 = pneg %p57
      %p202 = pneg %p54
      %s203 = smul.u32 %s19, 2
      %s204 = ssub.s32 %s203, 1
      %p205 = scmp.gt.s32.totalorder %s204, 0
      %s206 = scalar_select %p205, %s204, 0
      %p207 = scmp.lt.s32.totalorder %s20, 1
      %s208 = scalar_select %p207, %s20, 1
      %p209 = scmp.lt.s32.totalorder %s18, 1
      %s210 = scalar_select %p209, %s18, 1
      %p211 = scmp.lt.s32.totalorder %s206, 1
      %s212 = scalar_select %p211, %s206, 1
      %s213 = smul.addr %s210, 2
      %s214 = sadd.s32 %s212, %s213
      %s215 = smul.addr %s208, 4
      %s216 = sadd.s32 %s214, %s215
      %s217 = scalar_lea.vmem %s1, %s216
      %p218 = pneg %p95
      %p219 = pneg %p92
      %p220 = pneg %p125
      %p221 = pneg %p122
      %p222 = scmp.lt.s32.totalorder %s20, 1
      %s223 = scalar_select %p222, %s20, 1
      %p224 = scmp.lt.s32.totalorder %s18, 1
      %s225 = scalar_select %p224, %s18, 1
      %p226 = scmp.lt.s32.totalorder %s19, 0
      %s227 = scalar_select %p226, %s19, 0
      %s228 = sadd.s32 %s227, %s225
      %s229 = smul.addr %s223, 2
      %s230 = sadd.s32 %s228, %s229
      %s231 = scalar_lea.vmem %s2, %s230
      %s232 = smul.u32 2, %s19
      %p233 = scmp.lt.s32.totalorder %s20, 1
      %s234 = scalar_select %p233, %s20, 1
      %p235 = scmp.lt.s32.totalorder %s18, 1
      %s236 = scalar_select %p235, %s18, 1
      %p237 = scmp.lt.s32.totalorder %s232, 1
      %s238 = scalar_select %p237, %s232, 1
      %s239 = smul.addr %s236, 2
      %s240 = sadd.s32 %s238, %s239
      %s241 = smul.addr %s234, 4
      %s242 = sadd.s32 %s240, %s241
      %s243 = scalar_lea.vmem %s0, %s242
      %s244 = smul.u32 2, %s19
      %s245 = smul.u32 %s19, 2
      %s246 = ssub.s32 %s245, 1
      %p247 = scmp.gt.s32.totalorder %s246, 0
      %s248 = scalar_select %p247, %s246, 0
      %p249 = scmp.lt.s32.totalorder %s20, 1
      %s250 = scalar_select %p249, %s20, 1
      %p251 = scmp.lt.s32.totalorder %s18, 1
      %s252 = scalar_select %p251, %s18, 1
      %p253 = scmp.lt.s32.totalorder %s248, 1
      %s254 = scalar_select %p253, %s248, 1
      %s255 = smul.addr %s252, 2
      %s256 = sadd.s32 %s254, %s255
      %s257 = smul.addr %s250, 4
      %s258 = sadd.s32 %s256, %s257
      %s259 = scalar_lea.vmem %s1, %s258
      %s260 = smul.u32 %s19, 2
      %s261 = ssub.s32 %s260, 1
      %p262 = scmp.gt.s32.totalorder %s261, 0
      %s263 = scalar_select %p262, %s261, 0
      %p264 = scmp.lt.s32.totalorder %s20, 1
      %s265 = scalar_select %p264, %s20, 1
      %p266 = scmp.lt.s32.totalorder %s18, 1
      %s267 = scalar_select %p266, %s18, 1
      %p268 = scmp.lt.s32.totalorder %s19, 0
      %s269 = scalar_select %p268, %s19, 0
      %s270 = sadd.s32 %s269, %s267
      %s271 = smul.addr %s265, 2
      %s272 = sadd.s32 %s270, %s271
      %s273 = scalar_lea.vmem %s2, %s272
      %p274 = scmp.eq.s32.totalorder %s20, 0
      // Predicated region
      $region29: #{spiking_tokenizer.16} parent=27 // pred_check
        %p275 = pneg %p274
      $region30: #{spiking_tokenizer.16} parent=27 // pred_check_branch
        %277 = sbr.rel (%p275) target = $region32
      $region31: #{spiking_tokenizer.16} parent=27 // pred_region
        %vm278 = vcmask 254976
        %279 = vst.msk [vmem:[#allocation2] sm:$0x3] %vm278, 0.0
        %280 = vst.msk [vmem:[#allocation2 + $0x2] sm:$0x3] %vm278, 0.0
        %281 = vst.msk [vmem:[#allocation2 + $0x4] sm:$0x3] %vm278, 0.0
      $region32: #{spiking_tokenizer.16} parent=27 // pred_fallthru
        _
      %v282 = vld [vmem:[%s259] sm:$0x1]
      %v283 = vunpack.c.l.bf16 %v282
      %v284 = vld [vmem:[%s243] sm:$0x1]
      %v285 = vld [vmem:[%s243 + $0x1] sm:$0x1]
      %v286 = vunpack.c.l.bf16 %v284
      %v287 = vunpack.c.l.bf16 %v285
      %v288 = vld [vmem:[#allocation2] sm:$0x3]
      %v289 = vld [vmem:[#allocation2 + $0x2] sm:$0x3]
      %v290 = vld [vmem:[#allocation2 + $0x4] sm:$0x3]
      %v291 = vsub.f32 %v283, %v288
      %v292 = vsub.f32 %v286, %v289
      %v293 = vsub.f32 %v287, %v290
      %v294 = vmul.f32 %v291, 0.6666667
      %v295 = vmul.f32 %v292, 0.6666667
      %v296 = vmul.f32 %v293, 0.6666667
      %v297 = vadd.f32 %v288, %v294
      %v298 = vadd.f32 %v289, %v295
      %v299 = vadd.f32 %v290, %v296
      %vm300 = vcmp.ge.f32.partialorder %v297, 1.0
      %vm301 = vcmp.ge.f32.partialorder %v298, 1.0
      %vm302 = vcmp.ge.f32.partialorder %v299, 1.0
      %v303 = vsel %vm300, 0.0, %v297
      %v304 = vsel %vm301, 0.0, %v298
      %v305 = vsel %vm302, 0.0, %v299
      %vm306 = vcmask 254976
      %307 = vst.msk [vmem:[#allocation2] sm:$0x3] %vm306, %v303
      %308 = vst.msk [vmem:[#allocation2 + $0x2] sm:$0x3] %vm306, %v304
      %309 = vst.msk [vmem:[#allocation2 + $0x4] sm:$0x3] %vm306, %v305
      %v310 = vsel %vm300, 1, 0
      %v311 = vsel %vm301, 1, 0
      %v312 = vsel %vm302, 1, 0
      %v313 = vcvt.s32.f32 %v310
      %v314 = vcvt.s32.f32 %v311
      %v315 = vcvt.s32.f32 %v312
      %v319 = vrot.slane %v313, 7
      %v320 = vrot.slane %v314, 7
      %v321 = vrot.slane %v315, 7
      %vm325 = vcmask 1040384
      %v326 = vsel %vm325, 0.0, %v319
      %v327 = vsel %vm325, 0.0, %v320
      %v328 = vsel %vm325, 0.0, %v321
      %v329 = vrot.slane %v313, 1
      %v330 = vrot.slane %v314, 1
      %v331 = vrot.slane %v315, 1
      %v335 = vsel %vm325, %v329, 0.0
      %v336 = vsel %vm325, %v330, 0.0
      %v337 = vsel %vm325, %v331, 0.0
      %v338 = vmax.f32 %v326, %v313
      %v339 = vmax.f32 %v327, %v314
      %v340 = vmax.f32 %v328, %v315
      %v341 = vmax.f32 %v338, %v335
      %v342 = vmax.f32 %v339, %v336
      %v343 = vmax.f32 %v340, %v337
      %v344 = vsel %vm306, %v341, -inf
      %v345 = vsel %vm306, %v342, -inf
      %v346 = vmax.f32 %v344, %v345
      %v347 = vmax.f32 %v346, %v343
      %348 = vst.msk [vmem:[#allocation3] sm:$0x3] %vm306, %v347
      %v349 = vld [vmem:[#allocation3] ss:$2 sm:$0x1]
      %v350 = vpack.c.bf16 %v349, %v349
      %vm351 = vcmask 253952
      %vm352 = vsmask.f32 256
      %vm353 = vmand %vm351, %vm352
      %v354 = vld [vmem:[%s273] sm:$0x1]
      %v355 = vsel %vm353, %v350, %v354
      %356 = vst [vmem:[%s273] sm:$0x1] %v355
      %p357 = scmp.lt.s32.totalorder %s20, 1
      %s358 = scalar_select %p357, %s20, 1
      %p359 = scmp.lt.s32.totalorder %s18, 1
      %s360 = scalar_select %p359, %s18, 1
      %p361 = scmp.lt.s32.totalorder %s19, 0
      %s362 = scalar_select %p361, %s19, 0
      %s363 = sadd.s32 %s362, %s360
      %s364 = smul.addr %s358, 2
      %s365 = sadd.s32 %s363, %s364
      %s366 = scalar_lea.vmem %s2, %s365
      // Predicated region
      $region33: #{spiking_tokenizer.16} parent=27 // pred_check
        %p367 = pneg %p122
      $region34: #{spiking_tokenizer.16} parent=27 // pred_check_branch
        %369 = sbr.rel (%p367) target = $region36
      $region35: #{spiking_tokenizer.16} parent=27 // pred_region
        _
      $region36: #{spiking_tokenizer.16} parent=27 // pred_fallthru
        _
    $region28: #{spiking_tokenizer.16} parent=5 // pred_fallthru
      _
    %p370 = scmp.le.s32.totalorder 2, %s8
    // Predicated region
    $region37: #{spiking_tokenizer.16} parent=5 // pred_check
      %p371 = pneg %p370
    $region38: #{spiking_tokenizer.16} parent=5 // pred_check_branch
      %373 = sbr.rel (%p371) target = $region40
    $region39: #{spiking_tokenizer.16} parent=5 // pred_region
      %s374 = ssub.s32 %s8, 2
      // Predicated region
      $region41: #{spiking_tokenizer.16} parent=39 // pred_check
        %p375 = pneg %p128
      $region42: #{spiking_tokenizer.16} parent=39 // pred_check_branch
        %377 = sbr.rel (%p375) target = $region44
      $region43: #{spiking_tokenizer.16} parent=39 // pred_region
        %p378 = scmp.lt.s32.totalorder %s23, 1
        %s379 = scalar_select %p378, %s23, 1
        %p380 = scmp.lt.s32.totalorder %s21, 1
        %s381 = scalar_select %p380, %s21, 1
        %p382 = scmp.lt.s32.totalorder %s22, 0
        %s383 = scalar_select %p382, %s22, 0
        %s384 = sadd.s32 %s383, %s381
        %s385 = smul.addr %s379, 2
        %s386 = sadd.s32 %s384, %s385
        %s387 = scalar_lea.vmem %s2, %s386
      $region44: #{spiking_tokenizer.16} parent=39 // pred_fallthru
        _
    $region40: #{spiking_tokenizer.16} parent=5 // pred_fallthru
      _
  $region6: #{spiking_tokenizer.16} parent=0 // loop_footer
    %s12 = sadd.s32 1, %s8
  $region7: #{spiking_tokenizer.16} parent=0 // loop_footer_branch
    %7 = sbr.rel target = $region3
  $region8: #{spiking_tokenizer.16} parent=0 // loop_exit
    _

// kernel: spiking_tokenizer.15
$region0: #{spiking_tokenizer.15}
  #allocation0 [shape = 'u32[]', space=smem, size = 0x4, offset = 0x4, fixed_abs, tag = 'smem constant byte address 0x4 - core index']
  #allocation1 [shape = 'u32[144,128]{1,0:T(1,128)}', space=vmem, size = 0x12000, scoped, tag = 'internal scratch']
  %s0 = inlined_call_operand.vmem [shape: bf16[4,2,2,16], index: 0, kind: input, shape index: {}]
  %s1 = inlined_call_operand.vmem [shape: bf16[144,32], index: 1, kind: input, shape index: {}]
  %s2 = inlined_call_operand.vmem [shape: f32[1,32], index: 2, kind: input, shape index: {}]
  %s3 = inlined_call_operand.vmem [shape: bf16[4,2,2,32], index: 3, kind: output, shape index: {}]
  %s4 = sld [smem:[#allocation0]]
  $region22: #{spiking_tokenizer.15} parent=0
    _
  %s6 = ssub.s32 1, %s4
  %s7 = scalar_select 0, %s6, %s4
  // Predicated region
  $region2: #{spiking_tokenizer.15} parent=0 // pred_check
    _
  $region3: #{spiking_tokenizer.15} parent=0 // pred_check_branch
    %9 = sbr.rel (0) target = $region5
  $region4: #{spiking_tokenizer.15} parent=0 // pred_region
    _
  $region5: #{spiking_tokenizer.15} parent=0 // pred_fallthru
    _
  // Predicated region
  $region6: #{spiking_tokenizer.15} parent=0 // pred_check
    _
  $region7: #{spiking_tokenizer.15} parent=0 // pred_check_branch
    %11 = sbr.rel (0) target = $region9
  $region8: #{spiking_tokenizer.15} parent=0 // pred_region
    _
  $region9: #{spiking_tokenizer.15} parent=0 // pred_fallthru
    _
  // Predicated region
  $region10: #{spiking_tokenizer.15} parent=0 // pred_check
    _
  $region11: #{spiking_tokenizer.15} parent=0 // pred_check_branch
    %13 = sbr.rel (0) target = $region13
  $region12: #{spiking_tokenizer.15} parent=0 // pred_region
    _
  $region13: #{spiking_tokenizer.15} parent=0 // pred_fallthru
    _
  %v15 = vld [vmem:[%s0] sm:$0x1]
  %v16 = vld [vmem:[%s0 + $0x1] sm:$0x1]
  %v17 = vld [vmem:[%s0 + $0x2] sm:$0x1]
  %v18 = vld [vmem:[%s0 + $0x3] sm:$0x1]
  %v19 = vld [vmem:[%s0 + $0x4] sm:$0x1]
  %v20 = vld [vmem:[%s0 + $0x5] sm:$0x1]
  %v21 = vld [vmem:[%s0 + $0x6] sm:$0x1]
  %v22 = vld [vmem:[%s0 + $0x7] sm:$0x1]
  %v23 = vld [vmem:[%s1] sm:$0xf]
  %v24 = vld [vmem:[%s1 + $0x4] sm:$0xf]
  %v25 = vld [vmem:[%s1 + $0x8] sm:$0xf]
  %v26 = vld [vmem:[%s1 + $0xc] sm:$0xf]
  %v27 = vld [vmem:[%s1 + $0x10] sm:$0xf]
  %v28 = vld [vmem:[%s1 + $0x14] sm:$0xf]
  %v29 = vld [vmem:[%s1 + $0x18] sm:$0xf]
  %v30 = vld [vmem:[%s1 + $0x1c] sm:$0xf]
  %v31 = vld [vmem:[%s1 + $0x20] sm:$0xf]
  %v32 = vld [vmem:[%s1 + $0x24] sm:$0xf]
  %v33 = vld [vmem:[%s1 + $0x28] sm:$0xf]
  %v34 = vld [vmem:[%s1 + $0x2c] sm:$0xf]
  %v35 = vld [vmem:[%s1 + $0x30] sm:$0xf]
  %v36 = vld [vmem:[%s1 + $0x34] sm:$0xf]
  %v37 = vld [vmem:[%s1 + $0x38] sm:$0xf]
  %v38 = vld [vmem:[%s1 + $0x3c] sm:$0xf]
  %v39 = vld [vmem:[%s1 + $0x40] sm:$0xf]
  %v40 = vld [vmem:[%s1 + $0x44] sm:$0xf]
  %v41 = vld [vmem:[%s2] sm:$0x1]
  %v43 = vshrl.u32 0, 16
  %v45 = vrot.slane %v43, 7
  %v46 = vshll.u32 0, 16
  %v48 = vor.u32 %v45, %v46
  %v50 = vshrl.u32 %v15, 16
  %v52 = vrot.slane %v50, 7
  %v53 = vshll.u32 %v15, 16
  %v55 = vor.u32 %v52, %v53
  %v57 = vshrl.u32 %v16, 16
  %v59 = vrot.slane %v57, 7
  %v60 = vshll.u32 %v16, 16
  %v62 = vor.u32 %v59, %v60
  %v64 = vshrl.u32 %v17, 16
  %v66 = vrot.slane %v64, 7
  %v67 = vshll.u32 %v17, 16
  %v69 = vor.u32 %v66, %v67
  %v71 = vshrl.u32 %v18, 16
  %v73 = vrot.slane %v71, 7
  %v74 = vshll.u32 %v18, 16
  %v76 = vor.u32 %v73, %v74
  %v78 = vshrl.u32 %v19, 16
  %v80 = vrot.slane %v78, 7
  %v81 = vshll.u32 %v19, 16
  %v83 = vor.u32 %v80, %v81
  %v85 = vshrl.u32 %v20, 16
  %v87 = vrot.slane %v85, 7
  %v88 = vshll.u32 %v20, 16
  %v90 = vor.u32 %v87, %v88
  %v92 = vshrl.u32 %v21, 16
  %v94 = vrot.slane %v92, 7
  %v95 = vshll.u32 %v21, 16
  %v97 = vor.u32 %v94, %v95
  %v99 = vshrl.u32 %v22, 16
  %v101 = vrot.slane %v99, 7
  %v102 = vshll.u32 %v22, 16
  %v104 = vor.u32 %v101, %v102
  %vm114 = vcmask 1040384
  %vm115 = vsmask.f32 256
  %vm116 = vmand %vm114, %vm115
  %v117 = vsel %vm116, 0, %v48
  %v118 = vsel %vm116, 0, %v55
  %v119 = vsel %vm116, 0, %v62
  %v120 = vsel %vm116, 0, %v69
  %v121 = vsel %vm116, 0, %v76
  %v122 = vsel %vm116, 0, %v83
  %v123 = vsel %vm116, 0, %v90
  %v124 = vsel %vm116, 0, %v97
  %v125 = vsel %vm116, 0, %v104
  %vm126 = vcmask 1041408
  %vm127 = vsmask.f32 1280
  %vm128 = vmand %vm126, %vm127
  %v129 = vsel %vm128, %v117, 0
  %v130 = vsel %vm128, %v118, 0
  %v131 = vsel %vm128, %v119, 0
  %v132 = vsel %vm128, %v120, 0
  %v133 = vsel %vm128, %v121, 0
  %v134 = vsel %vm128, %v122, 0
  %v135 = vsel %vm128, %v123, 0
  %v136 = vsel %vm128, %v124, 0
  %v137 = vsel %vm128, %v125, 0
  %v139 = vshrl.u32 %v129, 16
  %v141 = vshll.u32 %v129, 16
  %v143 = vrot.slane %v141, 1
  %v144 = vor.u32 %v139, %v143
  %v146 = vshrl.u32 %v130, 16
  %v148 = vshll.u32 %v130, 16
  %v150 = vrot.slane %v148, 1
  %v151 = vor.u32 %v146, %v150
  %v153 = vshrl.u32 %v132, 16
  %v155 = vshll.u32 %v132, 16
  %v157 = vrot.slane %v155, 1
  %v158 = vor.u32 %v153, %v157
  %v160 = vshrl.u32 %v134, 16
  %v162 = vshll.u32 %v134, 16
  %v164 = vrot.slane %v162, 1
  %v165 = vor.u32 %v160, %v164
  %v167 = vshrl.u32 %v136, 16
  %v169 = vshll.u32 %v136, 16
  %v171 = vrot.slane %v169, 1
  %v172 = vor.u32 %v167, %v171
  %173 = vrot.lane.b32.xlu0 %v144, 16
  %v174 = vpop.permute.xlu0 %173
  %175 = vrot.lane.b32.xlu0 %v151, 16
  %v176 = vpop.permute.xlu0 %175
  %177 = vrot.lane.b32.xlu0 %v158, 16
  %v178 = vpop.permute.xlu0 %177
  %179 = vrot.lane.b32.xlu0 %v165, 16
  %v180 = vpop.permute.xlu0 %179
  %181 = vrot.lane.b32.xlu0 %v172, 16
  %v182 = vpop.permute.xlu0 %181
  %v188 = vrot.slane %v129, 1
  %v189 = vrot.slane %v130, 1
  %v190 = vrot.slane %v132, 1
  %v191 = vrot.slane %v134, 1
  %v192 = vrot.slane %v136, 1
  %193 = vrot.lane.b32.xlu0 %v188, 32
  %v194 = vpop.permute.xlu0 %193
  %195 = vrot.lane.b32.xlu0 %v189, 32
  %v196 = vpop.permute.xlu0 %195
  %197 = vrot.lane.b32.xlu0 %v190, 32
  %v198 = vpop.permute.xlu0 %197
  %199 = vrot.lane.b32.xlu0 %v191, 32
  %v200 = vpop.permute.xlu0 %199
  %201 = vrot.lane.b32.xlu0 %v192, 32
  %v202 = vpop.permute.xlu0 %201
  %207 = vrot.lane.b32.xlu0 %v130, 48
  %v208 = vpop.permute.xlu0 %207
  %209 = vrot.lane.b32.xlu0 %v131, 48
  %v210 = vpop.permute.xlu0 %209
  %211 = vrot.lane.b32.xlu0 %v132, 48
  %v212 = vpop.permute.xlu0 %211
  %213 = vrot.lane.b32.xlu0 %v133, 48
  %v214 = vpop.permute.xlu0 %213
  %215 = vrot.lane.b32.xlu0 %v134, 48
  %v216 = vpop.permute.xlu0 %215
  %217 = vrot.lane.b32.xlu0 %v135, 48
  %v218 = vpop.permute.xlu0 %217
  %219 = vrot.lane.b32.xlu0 %v136, 48
  %v220 = vpop.permute.xlu0 %219
  %221 = vrot.lane.b32.xlu0 %v137, 48
  %v222 = vpop.permute.xlu0 %221
  %v224 = vshrl.u32 %v131, 16
  %v226 = vshll.u32 %v131, 16
  %v228 = vrot.slane %v226, 1
  %v229 = vor.u32 %v224, %v228
  %v231 = vshrl.u32 %v133, 16
  %v233 = vshll.u32 %v133, 16
  %v235 = vrot.slane %v233, 1
  %v236 = vor.u32 %v231, %v235
  %v238 = vshrl.u32 %v135, 16
  %v240 = vshll.u32 %v135, 16
  %v242 = vrot.slane %v240, 1
  %v243 = vor.u32 %v238, %v242
  %v245 = vshrl.u32 %v137, 16
  %v247 = vshll.u32 %v137, 16
  %v249 = vrot.slane %v247, 1
  %v250 = vor.u32 %v245, %v249
  %251 = vrot.lane.b32.xlu0 %v151, 64
  %v252 = vpop.permute.xlu0 %251
  %253 = vrot.lane.b32.xlu0 %v229, 64
  %v254 = vpop.permute.xlu0 %253
  %255 = vrot.lane.b32.xlu0 %v158, 64
  %v256 = vpop.permute.xlu0 %255
  %257 = vrot.lane.b32.xlu0 %v236, 64
  %v258 = vpop.permute.xlu0 %257
  %259 = vrot.lane.b32.xlu0 %v165, 64
  %v260 = vpop.permute.xlu0 %259
  %261 = vrot.lane.b32.xlu0 %v243, 64
  %v262 = vpop.permute.xlu0 %261
  %263 = vrot.lane.b32.xlu0 %v172, 64
  %v264 = vpop.permute.xlu0 %263
  %265 = vrot.lane.b32.xlu0 %v250, 64
  %v266 = vpop.permute.xlu0 %265
  %v267 = vrot.slane %v131, 1
  %v268 = vrot.slane %v133, 1
  %v269 = vrot.slane %v135, 1
  %v270 = vrot.slane %v137, 1
  %271 = vrot.lane.b32.xlu0 %v189, 80
  %v272 = vpop.permute.xlu0 %271
  %273 = vrot.lane.b32.xlu0 %v267, 80
  %v274 = vpop.permute.xlu0 %273
  %275 = vrot.lane.b32.xlu0 %v190, 80
  %v276 = vpop.permute.xlu0 %275
  %277 = vrot.lane.b32.xlu0 %v268, 80
  %v278 = vpop.permute.xlu0 %277
  %279 = vrot.lane.b32.xlu0 %v191, 80
  %v280 = vpop.permute.xlu0 %279
  %281 = vrot.lane.b32.xlu0 %v269, 80
  %v282 = vpop.permute.xlu0 %281
  %283 = vrot.lane.b32.xlu0 %v192, 80
  %v284 = vpop.permute.xlu0 %283
  %285 = vrot.lane.b32.xlu0 %v270, 80
  %v286 = vpop.permute.xlu0 %285
  %287 = vrot.lane.b32.xlu0 %v131, 96
  %v288 = vpop.permute.xlu0 %287
  %289 = vrot.lane.b32.xlu0 %v129, 96
  %v290 = vpop.permute.xlu0 %289
  %291 = vrot.lane.b32.xlu0 %v133, 96
  %v292 = vpop.permute.xlu0 %291
  %293 = vrot.lane.b32.xlu0 %v135, 96
  %v294 = vpop.permute.xlu0 %293
  %295 = vrot.lane.b32.xlu0 %v137, 96
  %v296 = vpop.permute.xlu0 %295
  %297 = vrot.lane.b32.xlu0 %v229, 112
  %v298 = vpop.permute.xlu0 %297
  %299 = vrot.lane.b32.xlu0 %v144, 112
  %v300 = vpop.permute.xlu0 %299
  %301 = vrot.lane.b32.xlu0 %v236, 112
  %v302 = vpop.permute.xlu0 %301
  %303 = vrot.lane.b32.xlu0 %v243, 112
  %v304 = vpop.permute.xlu0 %303
  %305 = vrot.lane.b32.xlu0 %v250, 112
  %v306 = vpop.permute.xlu0 %305
  %vm307 = vcmask 130048
  %v309 = vsel %vm307, %v129, %v174
  %v311 = vsel %vm307, %v130, %v176
  %v313 = vsel %vm307, %v132, %v178
  %v315 = vsel %vm307, %v134, %v180
  %v317 = vsel %vm307, %v136, %v182
  %vm318 = vcmask 261120
  %v320 = vsel %vm318, %v309, %v194
  %v322 = vsel %vm318, %v311, %v196
  %v324 = vsel %vm318, %v313, %v198
  %v326 = vsel %vm318, %v315, %v200
  %v328 = vsel %vm318, %v317, %v202
  %vm329 = vcmask 392192
  %v331 = vsel %vm329, %v320, %v208
  %v333 = vsel %vm329, %v322, %v210
  %v335 = vsel %vm329, %v320, %v212
  %v337 = vsel %vm329, %v324, %v214
  %v339 = vsel %vm329, %v320, %v216
  %v341 = vsel %vm329, %v326, %v218
  %v343 = vsel %vm329, %v320, %v220
  %v345 = vsel %vm329, %v328, %v222
  %vm346 = vcmask 523264
  %v348 = vsel %vm346, %v331, %v252
  %v350 = vsel %vm346, %v333, %v254
  %v352 = vsel %vm346, %v335, %v256
  %v354 = vsel %vm346, %v337, %v258
  %v356 = vsel %vm346, %v339, %v260
  %v358 = vsel %vm346, %v341, %v262
  %v360 = vsel %vm346, %v343, %v264
  %v362 = vsel %vm346, %v345, %v266
  %vm363 = vcmask 654336
  %v365 = vsel %vm363, %v348, %v272
  %v367 = vsel %vm363, %v350, %v274
  %v369 = vsel %vm363, %v352, %v276
  %v371 = vsel %vm363, %v354, %v278
  %v373 = vsel %vm363, %v356, %v280
  %v375 = vsel %vm363, %v358, %v282
  %v377 = vsel %vm363, %v360, %v284
  %v379 = vsel %vm363, %v362, %v286
  %vm380 = vcmask 785408
  %v382 = vsel %vm380, %v365, %v288
  %v384 = vsel %vm380, %v367, %v290
  %v386 = vsel %vm380, %v369, %v292
  %v387 = vsel %vm380, %v371, %v290
  %v389 = vsel %vm380, %v373, %v294
  %v390 = vsel %vm380, %v375, %v290
  %v392 = vsel %vm380, %v377, %v296
  %v393 = vsel %vm380, %v379, %v290
  %vm394 = vcmask 916480
  %v396 = vsel %vm394, %v382, %v298
  %v399 = vsel %vm394, %v384, %v300
  %v402 = vsel %vm394, %v386, %v302
  %v404 = vsel %vm394, %v387, %v300
  %v407 = vsel %vm394, %v389, %v304
  %v409 = vsel %vm394, %v390, %v300
  %v412 = vsel %vm394, %v392, %v306
  %v414 = vsel %vm394, %v393, %v300
  %v417 = vlaneseq
  %v418 = vshrl.u32 %v417, 7
  %v419 = vsub.s32 0, %v418
  %v420 = vrot.slane %v41, %v419
  %v440 = vunpack.c.l.b16 %v23
  %v441 = vunpack.c.l.b16 %v24
  %v442 = vunpack.c.l.b16 %v25
  %v443 = vunpack.c.l.b16 %v26
  %v444 = vunpack.c.l.b16 %v27
  %v445 = vunpack.c.l.b16 %v28
  %v446 = vunpack.c.l.b16 %v29
  %v447 = vunpack.c.l.b16 %v30
  %v448 = vunpack.c.l.b16 %v31
  %v449 = vunpack.c.l.b16 %v32
  %v450 = vunpack.c.l.b16 %v33
  %v451 = vunpack.c.l.b16 %v34
  %v452 = vunpack.c.l.b16 %v35
  %v453 = vunpack.c.l.b16 %v36
  %v454 = vunpack.c.l.b16 %v37
  %v455 = vunpack.c.l.b16 %v38
  %v456 = vunpack.c.l.b16 %v39
  %v457 = vunpack.c.l.b16 %v40
  %v458 = vpack.c.b16 %v441, %v440
  %v459 = vpack.c.b16 %v443, %v442
  %v460 = vpack.c.b16 %v445, %v444
  %v461 = vpack.c.b16 %v447, %v446
  %v462 = vpack.c.b16 %v449, %v448
  %v463 = vpack.c.b16 %v451, %v450
  %v464 = vpack.c.b16 %v453, %v452
  %v465 = vpack.c.b16 %v455, %v454
  %v466 = vpack.c.b16 %v457, %v456
  %v477 = vsel %vm307, %v267, 0
  %479 = vmatprep.subr.bf16.mxu0 0
  %480 = vmatpush1.bf16.msra.mxu0 %v465
  %481 = vmatprep.subr.bf16.mxu0 0
  %482 = vmatpush1.bf16.msra.mxu0 %v464
  %483 = vmatprep.subr.bf16.mxu0 0
  %484 = vmatpush1.bf16.msra.mxu0 %v463
  %485 = vmatprep.subr.bf16.mxu0 0
  %486 = vmatpush1.bf16.msra.mxu0 %v462
  %487 = vmatprep.subr.bf16.mxu0 0
  %488 = vmatpush1.bf16.msra.mxu0 %v461
  %489 = vmatprep.subr.bf16.mxu0 0
  %490 = vmatpush1.bf16.msra.mxu0 %v460
  %491 = vmatprep.subr.bf16.mxu0 0
  %492 = vmatpush1.bf16.msra.mxu0 %v459
  %493 = vmatprep.subr.bf16.mxu0 0
  %494 = vmatpush1.bf16.msra.mxu0 %v458
  %495 = vmatprep.subr.bf16.mxu0 0
  %496 = vmatpush2.bf16.msra.mxu0 0
  %497 = vmatprep.subr.bf16.mxu0 0
  %498 = vmatpush2.bf16.msra.mxu0 0
  %499 = vmatprep.subr.bf16.mxu0 0
  %500 = vmatpush2.bf16.msra.mxu0 0
  %501 = vmatprep.subr.bf16.mxu0 0
  %502 = vmatpush2.bf16.msra.mxu0 0
  %503 = vmatprep.subr.bf16.mxu0 0
  %504 = vmatpush2.bf16.msra.mxu0 0
  %505 = vmatprep.subr.bf16.mxu0 0
  %506 = vmatpush2.bf16.msra.mxu0 0
  %507 = vmatprep.subr.bf16.mxu0 0
  %508 = vmatpush2.bf16.msra.mxu0 0
  %509 = vmatprep.subr.bf16.mxu0 0
  %510 = vmatpush2.bf16.msra.mxu0 %v466
  %511 = vmatprep.mubr.bf16.mxu0 %v477
  %512 = vmatmul.mubr.bf16.gmra.mxu0 %v396
  %v513 = vpop.f32.mrf.mxu0
  %v514 = vadd.f32 %v420, %v513
  %v515 = vpop.f32.mrf.mxu0
  %v516 = vpop.f32.mrf.mxu0
  %v517 = vpop.f32.mrf.mxu0
  %518 = vdwg.mxu0
  %v520 = vsel %vm307, %v188, 0
  %522 = vmatprep.subr.bf16.mxu0 0
  %523 = vmatpush1.bf16.msra.mxu0 %v465
  %524 = vmatprep.subr.bf16.mxu0 0
  %525 = vmatpush1.bf16.msra.mxu0 %v464
  %526 = vmatprep.subr.bf16.mxu0 0
  %527 = vmatpush1.bf16.msra.mxu0 %v463
  %528 = vmatprep.subr.bf16.mxu0 0
  %529 = vmatpush1.bf16.msra.mxu0 %v462
  %530 = vmatprep.subr.bf16.mxu0 0
  %531 = vmatpush1.bf16.msra.mxu0 %v461
  %532 = vmatprep.subr.bf16.mxu0 0
  %533 = vmatpush1.bf16.msra.mxu0 %v460
  %534 = vmatprep.subr.bf16.mxu0 0
  %535 = vmatpush1.bf16.msra.mxu0 %v459
  %536 = vmatprep.subr.bf16.mxu0 0
  %537 = vmatpush1.bf16.msra.mxu0 %v458
  %538 = vmatprep.subr.bf16.mxu0 0
  %539 = vmatpush2.bf16.msra.mxu0 0
  %540 = vmatprep.subr.bf16.mxu0 0
  %541 = vmatpush2.bf16.msra.mxu0 0
  %542 = vmatprep.subr.bf16.mxu0 0
  %543 = vmatpush2.bf16.msra.mxu0 0
  %544 = vmatprep.subr.bf16.mxu0 0
  %545 = vmatpush2.bf16.msra.mxu0 0
  %546 = vmatprep.subr.bf16.mxu0 0
  %547 = vmatpush2.bf16.msra.mxu0 0
  %548 = vmatprep.subr.bf16.mxu0 0
  %549 = vmatpush2.bf16.msra.mxu0 0
  %550 = vmatprep.subr.bf16.mxu0 0
  %551 = vmatpush2.bf16.msra.mxu0 0
  %552 = vmatprep.subr.bf16.mxu0 0
  %553 = vmatpush2.bf16.msra.mxu0 %v466
  %554 = vmatprep.mubr.bf16.mxu0 %v520
  %555 = vmatmul.mubr.bf16.gmra.mxu0 %v399
  %v556 = vpop.f32.mrf.mxu0
  %v557 = vadd.f32 %v420, %v556
  %v558 = vpop.f32.mrf.mxu0
  %v559 = vpop.f32.mrf.mxu0
  %v560 = vpop.f32.mrf.mxu0
  %561 = vdwg.mxu0
  %v563 = vsel %vm307, %v268, 0
  %565 = vmatprep.subr.bf16.mxu0 0
  %566 = vmatpush1.bf16.msra.mxu0 %v465
  %567 = vmatprep.subr.bf16.mxu0 0
  %568 = vmatpush1.bf16.msra.mxu0 %v464
  %569 = vmatprep.subr.bf16.mxu0 0
  %570 = vmatpush1.bf16.msra.mxu0 %v463
  %571 = vmatprep.subr.bf16.mxu0 0
  %572 = vmatpush1.bf16.msra.mxu0 %v462
  %573 = vmatprep.subr.bf16.mxu0 0
  %574 = vmatpush1.bf16.msra.mxu0 %v461
  %575 = vmatprep.subr.bf16.mxu0 0
  %576 = vmatpush1.bf16.msra.mxu0 %v460
  %577 = vmatprep.subr.bf16.mxu0 0
  %578 = vmatpush1.bf16.msra.mxu0 %v459
  %579 = vmatprep.subr.bf16.mxu0 0
  %580 = vmatpush1.bf16.msra.mxu0 %v458
  %581 = vmatprep.subr.bf16.mxu0 0
  %582 = vmatpush2.bf16.msra.mxu0 0
  %583 = vmatprep.subr.bf16.mxu0 0
  %584 = vmatpush2.bf16.msra.mxu0 0
  %585 = vmatprep.subr.bf16.mxu0 0
  %586 = vmatpush2.bf16.msra.mxu0 0
  %587 = vmatprep.subr.bf16.mxu0 0
  %588 = vmatpush2.bf16.msra.mxu0 0
  %589 = vmatprep.subr.bf16.mxu0 0
  %590 = vmatpush2.bf16.msra.mxu0 0
  %591 = vmatprep.subr.bf16.mxu0 0
  %592 = vmatpush2.bf16.msra.mxu0 0
  %593 = vmatprep.subr.bf16.mxu0 0
  %594 = vmatpush2.bf16.msra.mxu0 0
  %595 = vmatprep.subr.bf16.mxu0 0
  %596 = vmatpush2.bf16.msra.mxu0 %v466
  %597 = vmatprep.mubr.bf16.mxu0 %v563
  %598 = vmatmul.mubr.bf16.gmra.mxu0 %v402
  %v599 = vpop.f32.mrf.mxu0
  %v600 = vadd.f32 %v420, %v599
  %v601 = vpop.f32.mrf.mxu0
  %v602 = vpop.f32.mrf.mxu0
  %v603 = vpop.f32.mrf.mxu0
  %604 = vdwg.mxu0
  %605 = vmatprep.subr.bf16.mxu0 0
  %606 = vmatpush1.bf16.msra.mxu0 %v465
  %607 = vmatprep.subr.bf16.mxu0 0
  %608 = vmatpush1.bf16.msra.mxu0 %v464
  %609 = vmatprep.subr.bf16.mxu0 0
  %610 = vmatpush1.bf16.msra.mxu0 %v463
  %611 = vmatprep.subr.bf16.mxu0 0
  %612 = vmatpush1.bf16.msra.mxu0 %v462
  %613 = vmatprep.subr.bf16.mxu0 0
  %614 = vmatpush1.bf16.msra.mxu0 %v461
  %615 = vmatprep.subr.bf16.mxu0 0
  %616 = vmatpush1.bf16.msra.mxu0 %v460
  %617 = vmatprep.subr.bf16.mxu0 0
  %618 = vmatpush1.bf16.msra.mxu0 %v459
  %619 = vmatprep.subr.bf16.mxu0 0
  %620 = vmatpush1.bf16.msra.mxu0 %v458
  %621 = vmatprep.subr.bf16.mxu0 0
  %622 = vmatpush2.bf16.msra.mxu0 0
  %623 = vmatprep.subr.bf16.mxu0 0
  %624 = vmatpush2.bf16.msra.mxu0 0
  %625 = vmatprep.subr.bf16.mxu0 0
  %626 = vmatpush2.bf16.msra.mxu0 0
  %627 = vmatprep.subr.bf16.mxu0 0
  %628 = vmatpush2.bf16.msra.mxu0 0
  %629 = vmatprep.subr.bf16.mxu0 0
  %630 = vmatpush2.bf16.msra.mxu0 0
  %631 = vmatprep.subr.bf16.mxu0 0
  %632 = vmatpush2.bf16.msra.mxu0 0
  %633 = vmatprep.subr.bf16.mxu0 0
  %634 = vmatpush2.bf16.msra.mxu0 0
  %635 = vmatprep.subr.bf16.mxu0 0
  %636 = vmatpush2.bf16.msra.mxu0 %v466
  %637 = vmatprep.mubr.bf16.mxu0 %v520
  %638 = vmatmul.mubr.bf16.gmra.mxu0 %v404
  %v639 = vpop.f32.mrf.mxu0
  %v640 = vadd.f32 %v420, %v639
  %v641 = vpop.f32.mrf.mxu0
  %v642 = vpop.f32.mrf.mxu0
  %v643 = vpop.f32.mrf.mxu0
  %644 = vdwg.mxu0
  %v646 = vsel %vm307, %v269, 0
  %648 = vmatprep.subr.bf16.mxu0 0
  %649 = vmatpush1.bf16.msra.mxu0 %v465
  %650 = vmatprep.subr.bf16.mxu0 0
  %651 = vmatpush1.bf16.msra.mxu0 %v464
  %652 = vmatprep.subr.bf16.mxu0 0
  %653 = vmatpush1.bf16.msra.mxu0 %v463
  %654 = vmatprep.subr.bf16.mxu0 0
  %655 = vmatpush1.bf16.msra.mxu0 %v462
  %656 = vmatprep.subr.bf16.mxu0 0
  %657 = vmatpush1.bf16.msra.mxu0 %v461
  %658 = vmatprep.subr.bf16.mxu0 0
  %659 = vmatpush1.bf16.msra.mxu0 %v460
  %660 = vmatprep.subr.bf16.mxu0 0
  %661 = vmatpush1.bf16.msra.mxu0 %v459
  %662 = vmatprep.subr.bf16.mxu0 0
  %663 = vmatpush1.bf16.msra.mxu0 %v458
  %664 = vmatprep.subr.bf16.mxu0 0
  %665 = vmatpush2.bf16.msra.mxu0 0
  %666 = vmatprep.subr.bf16.mxu0 0
  %667 = vmatpush2.bf16.msra.mxu0 0
  %668 = vmatprep.subr.bf16.mxu0 0
  %669 = vmatpush2.bf16.msra.mxu0 0
  %670 = vmatprep.subr.bf16.mxu0 0
  %671 = vmatpush2.bf16.msra.mxu0 0
  %672 = vmatprep.subr.bf16.mxu0 0
  %673 = vmatpush2.bf16.msra.mxu0 0
  %674 = vmatprep.subr.bf16.mxu0 0
  %675 = vmatpush2.bf16.msra.mxu0 0
  %676 = vmatprep.subr.bf16.mxu0 0
  %677 = vmatpush2.bf16.msra.mxu0 0
  %678 = vmatprep.subr.bf16.mxu0 0
  %679 = vmatpush2.bf16.msra.mxu0 %v466
  %680 = vmatprep.mubr.bf16.mxu0 %v646
  %681 = vmatmul.mubr.bf16.gmra.mxu0 %v407
  %v682 = vpop.f32.mrf.mxu0
  %v683 = vadd.f32 %v420, %v682
  %v684 = vpop.f32.mrf.mxu0
  %v685 = vpop.f32.mrf.mxu0
  %v686 = vpop.f32.mrf.mxu0
  %687 = vdwg.mxu0
  %688 = vmatprep.subr.bf16.mxu0 0
  %689 = vmatpush1.bf16.msra.mxu0 %v465
  %690 = vmatprep.subr.bf16.mxu0 0
  %691 = vmatpush1.bf16.msra.mxu0 %v464
  %692 = vmatprep.subr.bf16.mxu0 0
  %693 = vmatpush1.bf16.msra.mxu0 %v463
  %694 = vmatprep.subr.bf16.mxu0 0
  %695 = vmatpush1.bf16.msra.mxu0 %v462
  %696 = vmatprep.subr.bf16.mxu0 0
  %697 = vmatpush1.bf16.msra.mxu0 %v461
  %698 = vmatprep.subr.bf16.mxu0 0
  %699 = vmatpush1.bf16.msra.mxu0 %v460
  %700 = vmatprep.subr.bf16.mxu0 0
  %701 = vmatpush1.bf16.msra.mxu0 %v459
  %702 = vmatprep.subr.bf16.mxu0 0
  %703 = vmatpush1.bf16.msra.mxu0 %v458
  %704 = vmatprep.subr.bf16.mxu0 0
  %705 = vmatpush2.bf16.msra.mxu0 0
  %706 = vmatprep.subr.bf16.mxu0 0
  %707 = vmatpush2.bf16.msra.mxu0 0
  %708 = vmatprep.subr.bf16.mxu0 0
  %709 = vmatpush2.bf16.msra.mxu0 0
  %710 = vmatprep.subr.bf16.mxu0 0
  %711 = vmatpush2.bf16.msra.mxu0 0
  %712 = vmatprep.subr.bf16.mxu0 0
  %713 = vmatpush2.bf16.msra.mxu0 0
  %714 = vmatprep.subr.bf16.mxu0 0
  %715 = vmatpush2.bf16.msra.mxu0 0
  %716 = vmatprep.subr.bf16.mxu0 0
  %717 = vmatpush2.bf16.msra.mxu0 0
  %718 = vmatprep.subr.bf16.mxu0 0
  %719 = vmatpush2.bf16.msra.mxu0 %v466
  %720 = vmatprep.mubr.bf16.mxu0 %v520
  %721 = vmatmul.mubr.bf16.gmra.mxu0 %v409
  %v722 = vpop.f32.mrf.mxu0
  %v723 = vadd.f32 %v420, %v722
  %v724 = vpop.f32.mrf.mxu0
  %v725 = vpop.f32.mrf.mxu0
  %v726 = vpop.f32.mrf.mxu0
  %727 = vdwg.mxu0
  %v729 = vsel %vm307, %v270, 0
  %731 = vmatprep.subr.bf16.mxu0 0
  %732 = vmatpush1.bf16.msra.mxu0 %v465
  %733 = vmatprep.subr.bf16.mxu0 0
  %734 = vmatpush1.bf16.msra.mxu0 %v464
  %735 = vmatprep.subr.bf16.mxu0 0
  %736 = vmatpush1.bf16.msra.mxu0 %v463
  %737 = vmatprep.subr.bf16.mxu0 0
  %738 = vmatpush1.bf16.msra.mxu0 %v462
  %739 = vmatprep.subr.bf16.mxu0 0
  %740 = vmatpush1.bf16.msra.mxu0 %v461
  %741 = vmatprep.subr.bf16.mxu0 0
  %742 = vmatpush1.bf16.msra.mxu0 %v460
  %743 = vmatprep.subr.bf16.mxu0 0
  %744 = vmatpush1.bf16.msra.mxu0 %v459
  %745 = vmatprep.subr.bf16.mxu0 0
  %746 = vmatpush1.bf16.msra.mxu0 %v458
  %747 = vmatprep.subr.bf16.mxu0 0
  %748 = vmatpush2.bf16.msra.mxu0 0
  %749 = vmatprep.subr.bf16.mxu0 0
  %750 = vmatpush2.bf16.msra.mxu0 0
  %751 = vmatprep.subr.bf16.mxu0 0
  %752 = vmatpush2.bf16.msra.mxu0 0
  %753 = vmatprep.subr.bf16.mxu0 0
  %754 = vmatpush2.bf16.msra.mxu0 0
  %755 = vmatprep.subr.bf16.mxu0 0
  %756 = vmatpush2.bf16.msra.mxu0 0
  %757 = vmatprep.subr.bf16.mxu0 0
  %758 = vmatpush2.bf16.msra.mxu0 0
  %759 = vmatprep.subr.bf16.mxu0 0
  %760 = vmatpush2.bf16.msra.mxu0 0
  %761 = vmatprep.subr.bf16.mxu0 0
  %762 = vmatpush2.bf16.msra.mxu0 %v466
  %763 = vmatprep.mubr.bf16.mxu0 %v729
  %764 = vmatmul.mubr.bf16.gmra.mxu0 %v412
  %v765 = vpop.f32.mrf.mxu0
  %v766 = vadd.f32 %v420, %v765
  %v767 = vpop.f32.mrf.mxu0
  %v768 = vpop.f32.mrf.mxu0
  %v769 = vpop.f32.mrf.mxu0
  %770 = vdwg.mxu0
  %771 = vmatprep.subr.bf16.mxu0 0
  %772 = vmatpush1.bf16.msra.mxu0 %v465
  %773 = vmatprep.subr.bf16.mxu0 0
  %774 = vmatpush1.bf16.msra.mxu0 %v464
  %775 = vmatprep.subr.bf16.mxu0 0
  %776 = vmatpush1.bf16.msra.mxu0 %v463
  %777 = vmatprep.subr.bf16.mxu0 0
  %778 = vmatpush1.bf16.msra.mxu0 %v462
  %779 = vmatprep.subr.bf16.mxu0 0
  %780 = vmatpush1.bf16.msra.mxu0 %v461
  %781 = vmatprep.subr.bf16.mxu0 0
  %782 = vmatpush1.bf16.msra.mxu0 %v460
  %783 = vmatprep.subr.bf16.mxu0 0
  %784 = vmatpush1.bf16.msra.mxu0 %v459
  %785 = vmatprep.subr.bf16.mxu0 0
  %786 = vmatpush1.bf16.msra.mxu0 %v458
  %787 = vmatprep.subr.bf16.mxu0 0
  %788 = vmatpush2.bf16.msra.mxu0 0
  %789 = vmatprep.subr.bf16.mxu0 0
  %790 = vmatpush2.bf16.msra.mxu0 0
  %791 = vmatprep.subr.bf16.mxu0 0
  %792 = vmatpush2.bf16.msra.mxu0 0
  %793 = vmatprep.subr.bf16.mxu0 0
  %794 = vmatpush2.bf16.msra.mxu0 0
  %795 = vmatprep.subr.bf16.mxu0 0
  %796 = vmatpush2.bf16.msra.mxu0 0
  %797 = vmatprep.subr.bf16.mxu0 0
  %798 = vmatpush2.bf16.msra.mxu0 0
  %799 = vmatprep.subr.bf16.mxu0 0
  %800 = vmatpush2.bf16.msra.mxu0 0
  %801 = vmatprep.subr.bf16.mxu0 0
  %802 = vmatpush2.bf16.msra.mxu0 %v466
  %803 = vmatprep.mubr.bf16.mxu0 %v520
  %804 = vmatmul.mubr.bf16.gmra.mxu0 %v414
  %v805 = vpop.f32.mrf.mxu0
  %v806 = vadd.f32 %v420, %v805
  %v807 = vpop.f32.mrf.mxu0
  %v808 = vpop.f32.mrf.mxu0
  %v809 = vpop.f32.mrf.mxu0
  %810 = vdwg.mxu0
  %v811 = vpack.c.bf16 %v514, %v514
  %v812 = vpack.c.bf16 %v557, %v557
  %v813 = vpack.c.bf16 %v600, %v600
  %v814 = vpack.c.bf16 %v640, %v640
  %v815 = vpack.c.bf16 %v683, %v683
  %v816 = vpack.c.bf16 %v723, %v723
  %v817 = vpack.c.bf16 %v766, %v766
  %v818 = vpack.c.bf16 %v806, %v806
  %vm819 = vcmask 253952
  %820 = vst.msk [vmem:[%s3] sm:$0x1] %vm819, %v811
  %821 = vst.msk [vmem:[%s3 + $0x1] sm:$0x1] %vm819, %v812
  %822 = vst.msk [vmem:[%s3 + $0x2] sm:$0x1] %vm819, %v813
  %823 = vst.msk [vmem:[%s3 + $0x3] sm:$0x1] %vm819, %v814
  %824 = vst.msk [vmem:[%s3 + $0x4] sm:$0x1] %vm819, %v815
  %825 = vst.msk [vmem:[%s3 + $0x5] sm:$0x1] %vm819, %v816
  %826 = vst.msk [vmem:[%s3 + $0x6] sm:$0x1] %vm819, %v817
  %827 = vst.msk [vmem:[%s3 + $0x7] sm:$0x1] %vm819, %v818
  // Predicated region
  $region14: #{spiking_tokenizer.15} parent=0 // pred_check
    _
  $region15: #{spiking_tokenizer.15} parent=0 // pred_check_branch
    %829 = sbr.rel (0) target = $region17
  $region16: #{spiking_tokenizer.15} parent=0 // pred_region
    _
  $region17: #{spiking_tokenizer.15} parent=0 // pred_fallthru
    _
  // Predicated region
  $region18: #{spiking_tokenizer.15} parent=0 // pred_check
    _
  $region19: #{spiking_tokenizer.15} parent=0 // pred_check_branch
    %831 = sbr.rel (0) target = $region21
  $region20: #{spiking_tokenizer.15} parent=0 // pred_region
    _
  $region21: #{spiking_tokenizer.15} parent=0 // pred_fallthru
    _

// kernel: spiking_tokenizer.13
$region0: #{spiking_tokenizer.13}
  #allocation0 [shape = 'u32[]', space=smem, size = 0x4, offset = 0x4, fixed_abs, tag = 'smem constant byte address 0x4 - core index']
  #allocation1 [shape = 'u32[144,128]{1,0:T(1,128)}', space=vmem, size = 0x12000, scoped, tag = 'internal scratch']
  %s0 = inlined_call_operand.vmem [shape: bf16[4,4,4,8], index: 0, kind: input, shape index: {}]
  %s1 = inlined_call_operand.vmem [shape: bf16[72,16], index: 1, kind: input, shape index: {}]
  %s2 = inlined_call_operand.vmem [shape: f32[1,16], index: 2, kind: input, shape index: {}]
  %s3 = inlined_call_operand.vmem [shape: bf16[4,4,4,16], index: 3, kind: output, shape index: {}]
  %s4 = sld [smem:[#allocation0]]
  $region22: #{spiking_tokenizer.13} parent=0
    _
  %s6 = ssub.s32 1, %s4
  %s7 = scalar_select 0, %s6, %s4
  // Predicated region
  $region2: #{spiking_tokenizer.13} parent=0 // pred_check
    _
  $region3: #{spiking_tokenizer.13} parent=0 // pred_check_branch
    %9 = sbr.rel (0) target = $region5
  $region4: #{spiking_tokenizer.13} parent=0 // pred_region
    _
  $region5: #{spiking_tokenizer.13} parent=0 // pred_fallthru
    _
  // Predicated region
  $region6: #{spiking_tokenizer.13} parent=0 // pred_check
    _
  $region7: #{spiking_tokenizer.13} parent=0 // pred_check_branch
    %11 = sbr.rel (0) target = $region9
  $region8: #{spiking_tokenizer.13} parent=0 // pred_region
    _
  $region9: #{spiking_tokenizer.13} parent=0 // pred_fallthru
    _
  // Predicated region
  $region10: #{spiking_tokenizer.13} parent=0 // pred_check
    _
  $region11: #{spiking_tokenizer.13} parent=0 // pred_check_branch
    %13 = sbr.rel (0) target = $region13
  $region12: #{spiking_tokenizer.13} parent=0 // pred_region
    _
  $region13: #{spiking_tokenizer.13} parent=0 // pred_fallthru
    _
  %v15 = vld [vmem:[%s0] sm:$0x3]
  %v16 = vld [vmem:[%s0 + $0x2] sm:$0x3]
  %v17 = vld [vmem:[%s0 + $0x4] sm:$0x3]
  %v18 = vld [vmem:[%s0 + $0x6] sm:$0x3]
  %v19 = vld [vmem:[%s0 + $0x8] sm:$0x3]
  %v20 = vld [vmem:[%s0 + $0xa] sm:$0x3]
  %v21 = vld [vmem:[%s0 + $0xc] sm:$0x3]
  %v22 = vld [vmem:[%s0 + $0xe] sm:$0x3]
  %v23 = vld [vmem:[%s0 + $0x10] sm:$0x3]
  %v24 = vld [vmem:[%s0 + $0x12] sm:$0x3]
  %v25 = vld [vmem:[%s0 + $0x14] sm:$0x3]
  %v26 = vld [vmem:[%s0 + $0x16] sm:$0x3]
  %v27 = vld [vmem:[%s0 + $0x18] sm:$0x3]
  %v28 = vld [vmem:[%s0 + $0x1a] sm:$0x3]
  %v29 = vld [vmem:[%s0 + $0x1c] sm:$0x3]
  %v30 = vld [vmem:[%s0 + $0x1e] sm:$0x3]
  %v31 = vld [vmem:[%s1] sm:$0xf]
  %v32 = vld [vmem:[%s1 + $0x4] sm:$0xf]
  %v33 = vld [vmem:[%s1 + $0x8] sm:$0xf]
  %v34 = vld [vmem:[%s1 + $0xc] sm:$0xf]
  %v35 = vld [vmem:[%s1 + $0x10] sm:$0xf]
  %v36 = vld [vmem:[%s1 + $0x14] sm:$0xf]
  %v37 = vld [vmem:[%s1 + $0x18] sm:$0xf]
  %v38 = vld [vmem:[%s1 + $0x1c] sm:$0xf]
  %v39 = vld [vmem:[%s1 + $0x20] sm:$0xf]
  %v40 = vld [vmem:[%s2] sm:$0x1]
  %v42 = vshrl.u32 0, 16
  %v44 = vrot.slane %v42, 7
  %v45 = vshll.u32 0, 16
  %v47 = vor.u32 %v44, %v45
  %v49 = vshrl.u32 %v15, 16
  %v51 = vrot.slane %v49, 7
  %v52 = vshll.u32 %v15, 16
  %v54 = vor.u32 %v51, %v52
  %v56 = vshrl.u32 %v16, 16
  %v58 = vrot.slane %v56, 7
  %v59 = vshll.u32 %v16, 16
  %v61 = vor.u32 %v58, %v59
  %v63 = vshrl.u32 %v17, 16
  %v65 = vrot.slane %v63, 7
  %v66 = vshll.u32 %v17, 16
  %v68 = vor.u32 %v65, %v66
  %v70 = vshrl.u32 %v18, 16
  %v72 = vrot.slane %v70, 7
  %v73 = vshll.u32 %v18, 16
  %v75 = vor.u32 %v72, %v73
  %v77 = vshrl.u32 %v19, 16
  %v79 = vrot.slane %v77, 7
  %v80 = vshll.u32 %v19, 16
  %v82 = vor.u32 %v79, %v80
  %v84 = vshrl.u32 %v20, 16
  %v86 = vrot.slane %v84, 7
  %v87 = vshll.u32 %v20, 16
  %v89 = vor.u32 %v86, %v87
  %v91 = vshrl.u32 %v21, 16
  %v93 = vrot.slane %v91, 7
  %v94 = vshll.u32 %v21, 16
  %v96 = vor.u32 %v93, %v94
  %v98 = vshrl.u32 %v22, 16
  %v100 = vrot.slane %v98, 7
  %v101 = vshll.u32 %v22, 16
  %v103 = vor.u32 %v100, %v101
  %v105 = vshrl.u32 %v23, 16
  %v107 = vrot.slane %v105, 7
  %v108 = vshll.u32 %v23, 16
  %v110 = vor.u32 %v107, %v108
  %v112 = vshrl.u32 %v24, 16
  %v114 = vrot.slane %v112, 7
  %v115 = vshll.u32 %v24, 16
  %v117 = vor.u32 %v114, %v115
  %v119 = vshrl.u32 %v25, 16
  %v121 = vrot.slane %v119, 7
  %v122 = vshll.u32 %v25, 16
  %v124 = vor.u32 %v121, %v122
  %v126 = vshrl.u32 %v26, 16
  %v128 = vrot.slane %v126, 7
  %v129 = vshll.u32 %v26, 16
  %v131 = vor.u32 %v128, %v129
  %v133 = vshrl.u32 %v27, 16
  %v135 = vrot.slane %v133, 7
  %v136 = vshll.u32 %v27, 16
  %v138 = vor.u32 %v135, %v136
  %v140 = vshrl.u32 %v28, 16
  %v142 = vrot.slane %v140, 7
  %v143 = vshll.u32 %v28, 16
  %v145 = vor.u32 %v142, %v143
  %v147 = vshrl.u32 %v29, 16
  %v149 = vrot.slane %v147, 7
  %v150 = vshll.u32 %v29, 16
  %v152 = vor.u32 %v149, %v150
  %v154 = vshrl.u32 %v30, 16
  %v156 = vrot.slane %v154, 7
  %v157 = vshll.u32 %v30, 16
  %v159 = vor.u32 %v156, %v157
  %vm177 = vcmask 1040384
  %vm178 = vsmask.f32 256
  %vm179 = vmand %vm177, %vm178
  %v180 = vsel %vm179, 0, %v47
  %v181 = vsel %vm179, 0, %v54
  %v182 = vsel %vm179, 0, %v61
  %v183 = vsel %vm179, 0, %v68
  %v184 = vsel %vm179, 0, %v75
  %v185 = vsel %vm179, 0, %v82
  %v186 = vsel %vm179, 0, %v89
  %v187 = vsel %vm179, 0, %v96
  %v188 = vsel %vm179, 0, %v103
  %v189 = vsel %vm179, 0, %v110
  %v190 = vsel %vm179, 0, %v117
  %v191 = vsel %vm179, 0, %v124
  %v192 = vsel %vm179, 0, %v131
  %v193 = vsel %vm179, 0, %v138
  %v194 = vsel %vm179, 0, %v145
  %v195 = vsel %vm179, 0, %v152
  %v196 = vsel %vm179, 0, %v159
  %vm197 = vcmask 1042432
  %vm198 = vsmask.f32 2304
  %vm199 = vmand %vm197, %vm198
  %v200 = vsel %vm199, %v180, 0
  %v201 = vsel %vm199, %v181, 0
  %v202 = vsel %vm199, %v182, 0
  %v203 = vsel %vm199, %v183, 0
  %v204 = vsel %vm199, %v184, 0
  %v205 = vsel %vm199, %v185, 0
  %v206 = vsel %vm199, %v186, 0
  %v207 = vsel %vm199, %v187, 0
  %v208 = vsel %vm199, %v188, 0
  %v209 = vsel %vm199, %v189, 0
  %v210 = vsel %vm199, %v190, 0
  %v211 = vsel %vm199, %v191, 0
  %v212 = vsel %vm199, %v192, 0
  %v213 = vsel %vm199, %v193, 0
  %v214 = vsel %vm199, %v194, 0
  %v215 = vsel %vm199, %v195, 0
  %v216 = vsel %vm199, %v196, 0
  %v218 = vshrl.u32 %v200, 16
  %v220 = vshll.u32 %v200, 16
  %v222 = vrot.slane %v220, 1
  %v223 = vor.u32 %v218, %v222
  %v225 = vshrl.u32 %v201, 16
  %v227 = vshll.u32 %v201, 16
  %v229 = vrot.slane %v227, 1
  %v230 = vor.u32 %v225, %v229
  %v232 = vshrl.u32 %v202, 16
  %v234 = vshll.u32 %v202, 16
  %v236 = vrot.slane %v234, 1
  %v237 = vor.u32 %v232, %v236
  %v239 = vshrl.u32 %v203, 16
  %v241 = vshll.u32 %v203, 16
  %v243 = vrot.slane %v241, 1
  %v244 = vor.u32 %v239, %v243
  %v246 = vshrl.u32 %v205, 16
  %v248 = vshll.u32 %v205, 16
  %v250 = vrot.slane %v248, 1
  %v251 = vor.u32 %v246, %v250
  %v253 = vshrl.u32 %v206, 16
  %v255 = vshll.u32 %v206, 16
  %v257 = vrot.slane %v255, 1
  %v258 = vor.u32 %v253, %v257
  %v260 = vshrl.u32 %v207, 16
  %v262 = vshll.u32 %v207, 16
  %v264 = vrot.slane %v262, 1
  %v265 = vor.u32 %v260, %v264
  %v267 = vshrl.u32 %v209, 16
  %v269 = vshll.u32 %v209, 16
  %v271 = vrot.slane %v269, 1
  %v272 = vor.u32 %v267, %v271
  %v274 = vshrl.u32 %v210, 16
  %v276 = vshll.u32 %v210, 16
  %v278 = vrot.slane %v276, 1
  %v279 = vor.u32 %v274, %v278
  %v281 = vshrl.u32 %v211, 16
  %v283 = vshll.u32 %v211, 16
  %v285 = vrot.slane %v283, 1
  %v286 = vor.u32 %v281, %v285
  %v288 = vshrl.u32 %v213, 16
  %v290 = vshll.u32 %v213, 16
  %v292 = vrot.slane %v290, 1
  %v293 = vor.u32 %v288, %v292
  %v295 = vshrl.u32 %v214, 16
  %v297 = vshll.u32 %v214, 16
  %v299 = vrot.slane %v297, 1
  %v300 = vor.u32 %v295, %v299
  %v302 = vshrl.u32 %v215, 16
  %v304 = vshll.u32 %v215, 16
  %v306 = vrot.slane %v304, 1
  %v307 = vor.u32 %v302, %v306
  %308 = vrot.lane.b32.xlu0 %v223, 8
  %v309 = vpop.permute.xlu0 %308
  %310 = vrot.lane.b32.xlu0 %v230, 8
  %v311 = vpop.permute.xlu0 %310
  %312 = vrot.lane.b32.xlu0 %v237, 8
  %v313 = vpop.permute.xlu0 %312
  %314 = vrot.lane.b32.xlu0 %v244, 8
  %v315 = vpop.permute.xlu0 %314
  %316 = vrot.lane.b32.xlu0 %v251, 8
  %v317 = vpop.permute.xlu0 %316
  %318 = vrot.lane.b32.xlu0 %v258, 8
  %v319 = vpop.permute.xlu0 %318
  %320 = vrot.lane.b32.xlu0 %v265, 8
  %v321 = vpop.permute.xlu0 %320
  %322 = vrot.lane.b32.xlu0 %v272, 8
  %v323 = vpop.permute.xlu0 %322
  %324 = vrot.lane.b32.xlu0 %v279, 8
  %v325 = vpop.permute.xlu0 %324
  %326 = vrot.lane.b32.xlu0 %v286, 8
  %v327 = vpop.permute.xlu0 %326
  %328 = vrot.lane.b32.xlu0 %v293, 8
  %v329 = vpop.permute.xlu0 %328
  %330 = vrot.lane.b32.xlu0 %v300, 8
  %v331 = vpop.permute.xlu0 %330
  %332 = vrot.lane.b32.xlu0 %v307, 8
  %v333 = vpop.permute.xlu0 %332
  %v347 = vrot.slane %v200, 1
  %v348 = vrot.slane %v201, 1
  %v349 = vrot.slane %v202, 1
  %v350 = vrot.slane %v203, 1
  %v351 = vrot.slane %v205, 1
  %v352 = vrot.slane %v206, 1
  %v353 = vrot.slane %v207, 1
  %v354 = vrot.slane %v209, 1
  %v355 = vrot.slane %v210, 1
  %v356 = vrot.slane %v211, 1
  %v357 = vrot.slane %v213, 1
  %v358 = vrot.slane %v214, 1
  %v359 = vrot.slane %v215, 1
  %360 = vrot.lane.b32.xlu0 %v347, 16
  %v361 = vpop.permute.xlu0 %360
  %362 = vrot.lane.b32.xlu0 %v348, 16
  %v363 = vpop.permute.xlu0 %362
  %364 = vrot.lane.b32.xlu0 %v349, 16
  %v365 = vpop.permute.xlu0 %364
  %366 = vrot.lane.b32.xlu0 %v350, 16
  %v367 = vpop.permute.xlu0 %366
  %368 = vrot.lane.b32.xlu0 %v351, 16
  %v369 = vpop.permute.xlu0 %368
  %370 = vrot.lane.b32.xlu0 %v352, 16
  %v371 = vpop.permute.xlu0 %370
  %372 = vrot.lane.b32.xlu0 %v353, 16
  %v373 = vpop.permute.xlu0 %372
  %374 = vrot.lane.b32.xlu0 %v354, 16
  %v375 = vpop.permute.xlu0 %374
  %376 = vrot.lane.b32.xlu0 %v355, 16
  %v377 = vpop.permute.xlu0 %376
  %378 = vrot.lane.b32.xlu0 %v356, 16
  %v379 = vpop.permute.xlu0 %378
  %380 = vrot.lane.b32.xlu0 %v357, 16
  %v381 = vpop.permute.xlu0 %380
  %382 = vrot.lane.b32.xlu0 %v358, 16
  %v383 = vpop.permute.xlu0 %382
  %384 = vrot.lane.b32.xlu0 %v359, 16
  %v385 = vpop.permute.xlu0 %384
  %390 = vrot.lane.b32.xlu0 %v201, 24
  %v391 = vpop.permute.xlu0 %390
  %392 = vrot.lane.b32.xlu0 %v202, 24
  %v393 = vpop.permute.xlu0 %392
  %394 = vrot.lane.b32.xlu0 %v203, 24
  %v395 = vpop.permute.xlu0 %394
  %396 = vrot.lane.b32.xlu0 %v204, 24
  %v397 = vpop.permute.xlu0 %396
  %398 = vrot.lane.b32.xlu0 %v205, 24
  %v399 = vpop.permute.xlu0 %398
  %400 = vrot.lane.b32.xlu0 %v206, 24
  %v401 = vpop.permute.xlu0 %400
  %402 = vrot.lane.b32.xlu0 %v207, 24
  %v403 = vpop.permute.xlu0 %402
  %404 = vrot.lane.b32.xlu0 %v208, 24
  %v405 = vpop.permute.xlu0 %404
  %406 = vrot.lane.b32.xlu0 %v209, 24
  %v407 = vpop.permute.xlu0 %406
  %408 = vrot.lane.b32.xlu0 %v210, 24
  %v409 = vpop.permute.xlu0 %408
  %410 = vrot.lane.b32.xlu0 %v211, 24
  %v411 = vpop.permute.xlu0 %410
  %412 = vrot.lane.b32.xlu0 %v212, 24
  %v413 = vpop.permute.xlu0 %412
  %414 = vrot.lane.b32.xlu0 %v213, 24
  %v415 = vpop.permute.xlu0 %414
  %416 = vrot.lane.b32.xlu0 %v214, 24
  %v417 = vpop.permute.xlu0 %416
  %418 = vrot.lane.b32.xlu0 %v215, 24
  %v419 = vpop.permute.xlu0 %418
  %420 = vrot.lane.b32.xlu0 %v216, 24
  %v421 = vpop.permute.xlu0 %420
  %v423 = vshrl.u32 %v204, 16
  %v425 = vshll.u32 %v204, 16
  %v427 = vrot.slane %v425, 1
  %v428 = vor.u32 %v423, %v427
  %v430 = vshrl.u32 %v208, 16
  %v432 = vshll.u32 %v208, 16
  %v434 = vrot.slane %v432, 1
  %v435 = vor.u32 %v430, %v434
  %v437 = vshrl.u32 %v212, 16
  %v439 = vshll.u32 %v212, 16
  %v441 = vrot.slane %v439, 1
  %v442 = vor.u32 %v437, %v441
  %v444 = vshrl.u32 %v216, 16
  %v446 = vshll.u32 %v216, 16
  %v448 = vrot.slane %v446, 1
  %v449 = vor.u32 %v444, %v448
  %450 = vrot.lane.b32.xlu0 %v230, 32
  %v451 = vpop.permute.xlu0 %450
  %452 = vrot.lane.b32.xlu0 %v237, 32
  %v453 = vpop.permute.xlu0 %452
  %454 = vrot.lane.b32.xlu0 %v244, 32
  %v455 = vpop.permute.xlu0 %454
  %456 = vrot.lane.b32.xlu0 %v428, 32
  %v457 = vpop.permute.xlu0 %456
  %458 = vrot.lane.b32.xlu0 %v251, 32
  %v459 = vpop.permute.xlu0 %458
  %460 = vrot.lane.b32.xlu0 %v258, 32
  %v461 = vpop.permute.xlu0 %460
  %462 = vrot.lane.b32.xlu0 %v265, 32
  %v463 = vpop.permute.xlu0 %462
  %464 = vrot.lane.b32.xlu0 %v435, 32
  %v465 = vpop.permute.xlu0 %464
  %466 = vrot.lane.b32.xlu0 %v272, 32
  %v467 = vpop.permute.xlu0 %466
  %468 = vrot.lane.b32.xlu0 %v279, 32
  %v469 = vpop.permute.xlu0 %468
  %470 = vrot.lane.b32.xlu0 %v286, 32
  %v471 = vpop.permute.xlu0 %470
  %472 = vrot.lane.b32.xlu0 %v442, 32
  %v473 = vpop.permute.xlu0 %472
  %474 = vrot.lane.b32.xlu0 %v293, 32
  %v475 = vpop.permute.xlu0 %474
  %476 = vrot.lane.b32.xlu0 %v300, 32
  %v477 = vpop.permute.xlu0 %476
  %478 = vrot.lane.b32.xlu0 %v307, 32
  %v479 = vpop.permute.xlu0 %478
  %480 = vrot.lane.b32.xlu0 %v449, 32
  %v481 = vpop.permute.xlu0 %480
  %v482 = vrot.slane %v204, 1
  %v483 = vrot.slane %v208, 1
  %v484 = vrot.slane %v212, 1
  %v485 = vrot.slane %v216, 1
  %486 = vrot.lane.b32.xlu0 %v348, 40
  %v487 = vpop.permute.xlu0 %486
  %488 = vrot.lane.b32.xlu0 %v349, 40
  %v489 = vpop.permute.xlu0 %488
  %490 = vrot.lane.b32.xlu0 %v350, 40
  %v491 = vpop.permute.xlu0 %490
  %492 = vrot.lane.b32.xlu0 %v482, 40
  %v493 = vpop.permute.xlu0 %492
  %494 = vrot.lane.b32.xlu0 %v351, 40
  %v495 = vpop.permute.xlu0 %494
  %496 = vrot.lane.b32.xlu0 %v352, 40
  %v497 = vpop.permute.xlu0 %496
  %498 = vrot.lane.b32.xlu0 %v353, 40
  %v499 = vpop.permute.xlu0 %498
  %500 = vrot.lane.b32.xlu0 %v483, 40
  %v501 = vpop.permute.xlu0 %500
  %502 = vrot.lane.b32.xlu0 %v354, 40
  %v503 = vpop.permute.xlu0 %502
  %504 = vrot.lane.b32.xlu0 %v355, 40
  %v505 = vpop.permute.xlu0 %504
  %506 = vrot.lane.b32.xlu0 %v356, 40
  %v507 = vpop.permute.xlu0 %506
  %508 = vrot.lane.b32.xlu0 %v484, 40
  %v509 = vpop.permute.xlu0 %508
  %510 = vrot.lane.b32.xlu0 %v357, 40
  %v511 = vpop.permute.xlu0 %510
  %512 = vrot.lane.b32.xlu0 %v358, 40
  %v513 = vpop.permute.xlu0 %512
  %514 = vrot.lane.b32.xlu0 %v359, 40
  %v515 = vpop.permute.xlu0 %514
  %516 = vrot.lane.b32.xlu0 %v485, 40
  %v517 = vpop.permute.xlu0 %516
  %518 = vrot.lane.b32.xlu0 %v202, 48
  %v519 = vpop.permute.xlu0 %518
  %520 = vrot.lane.b32.xlu0 %v203, 48
  %v521 = vpop.permute.xlu0 %520
  %522 = vrot.lane.b32.xlu0 %v204, 48
  %v523 = vpop.permute.xlu0 %522
  %524 = vrot.lane.b32.xlu0 %v200, 48
  %v525 = vpop.permute.xlu0 %524
  %526 = vrot.lane.b32.xlu0 %v206, 48
  %v527 = vpop.permute.xlu0 %526
  %528 = vrot.lane.b32.xlu0 %v207, 48
  %v529 = vpop.permute.xlu0 %528
  %530 = vrot.lane.b32.xlu0 %v208, 48
  %v531 = vpop.permute.xlu0 %530
  %532 = vrot.lane.b32.xlu0 %v210, 48
  %v533 = vpop.permute.xlu0 %532
  %534 = vrot.lane.b32.xlu0 %v211, 48
  %v535 = vpop.permute.xlu0 %534
  %536 = vrot.lane.b32.xlu0 %v212, 48
  %v537 = vpop.permute.xlu0 %536
  %538 = vrot.lane.b32.xlu0 %v214, 48
  %v539 = vpop.permute.xlu0 %538
  %540 = vrot.lane.b32.xlu0 %v215, 48
  %v541 = vpop.permute.xlu0 %540
  %542 = vrot.lane.b32.xlu0 %v216, 48
  %v543 = vpop.permute.xlu0 %542
  %544 = vrot.lane.b32.xlu0 %v237, 56
  %v545 = vpop.permute.xlu0 %544
  %546 = vrot.lane.b32.xlu0 %v244, 56
  %v547 = vpop.permute.xlu0 %546
  %548 = vrot.lane.b32.xlu0 %v428, 56
  %v549 = vpop.permute.xlu0 %548
  %550 = vrot.lane.b32.xlu0 %v223, 56
  %v551 = vpop.permute.xlu0 %550
  %552 = vrot.lane.b32.xlu0 %v258, 56
  %v553 = vpop.permute.xlu0 %552
  %554 = vrot.lane.b32.xlu0 %v265, 56
  %v555 = vpop.permute.xlu0 %554
  %556 = vrot.lane.b32.xlu0 %v435, 56
  %v557 = vpop.permute.xlu0 %556
  %558 = vrot.lane.b32.xlu0 %v279, 56
  %v559 = vpop.permute.xlu0 %558
  %560 = vrot.lane.b32.xlu0 %v286, 56
  %v561 = vpop.permute.xlu0 %560
  %562 = vrot.lane.b32.xlu0 %v442, 56
  %v563 = vpop.permute.xlu0 %562
  %564 = vrot.lane.b32.xlu0 %v300, 56
  %v565 = vpop.permute.xlu0 %564
  %566 = vrot.lane.b32.xlu0 %v307, 56
  %v567 = vpop.permute.xlu0 %566
  %568 = vrot.lane.b32.xlu0 %v449, 56
  %v569 = vpop.permute.xlu0 %568
  %570 = vrot.lane.b32.xlu0 %v349, 64
  %v571 = vpop.permute.xlu0 %570
  %572 = vrot.lane.b32.xlu0 %v350, 64
  %v573 = vpop.permute.xlu0 %572
  %574 = vrot.lane.b32.xlu0 %v482, 64
  %v575 = vpop.permute.xlu0 %574
  %576 = vrot.lane.b32.xlu0 %v347, 64
  %v577 = vpop.permute.xlu0 %576
  %578 = vrot.lane.b32.xlu0 %v352, 64
  %v579 = vpop.permute.xlu0 %578
  %580 = vrot.lane.b32.xlu0 %v353, 64
  %v581 = vpop.permute.xlu0 %580
  %582 = vrot.lane.b32.xlu0 %v483, 64
  %v583 = vpop.permute.xlu0 %582
  %584 = vrot.lane.b32.xlu0 %v355, 64
  %v585 = vpop.permute.xlu0 %584
  %586 = vrot.lane.b32.xlu0 %v356, 64
  %v587 = vpop.permute.xlu0 %586
  %588 = vrot.lane.b32.xlu0 %v484, 64
  %v589 = vpop.permute.xlu0 %588
  %590 = vrot.lane.b32.xlu0 %v358, 64
  %v591 = vpop.permute.xlu0 %590
  %592 = vrot.lane.b32.xlu0 %v359, 64
  %v593 = vpop.permute.xlu0 %592
  %594 = vrot.lane.b32.xlu0 %v485, 64
  %v595 = vpop.permute.xlu0 %594
  %vm596 = vcmask 64512
  %v598 = vsel %vm596, %v200, %v309
  %v600 = vsel %vm596, %v201, %v311
  %v602 = vsel %vm596, %v202, %v313
  %v604 = vsel %vm596, %v203, %v315
  %v606 = vsel %vm596, %v205, %v317
  %v608 = vsel %vm596, %v206, %v319
  %v610 = vsel %vm596, %v207, %v321
  %v612 = vsel %vm596, %v209, %v323
  %v614 = vsel %vm596, %v210, %v325
  %v616 = vsel %vm596, %v211, %v327
  %v618 = vsel %vm596, %v213, %v329
  %v620 = vsel %vm596, %v214, %v331
  %v622 = vsel %vm596, %v215, %v333
  %vm623 = vcmask 130048
  %v625 = vsel %vm623, %v598, %v361
  %v627 = vsel %vm623, %v600, %v363
  %v629 = vsel %vm623, %v602, %v365
  %v631 = vsel %vm623, %v604, %v367
  %v633 = vsel %vm623, %v606, %v369
  %v635 = vsel %vm623, %v608, %v371
  %v637 = vsel %vm623, %v610, %v373
  %v639 = vsel %vm623, %v612, %v375
  %v641 = vsel %vm623, %v614, %v377
  %v643 = vsel %vm623, %v616, %v379
  %v645 = vsel %vm623, %v618, %v381
  %v647 = vsel %vm623, %v620, %v383
  %v649 = vsel %vm623, %v622, %v385
  %vm650 = vcmask 195584
  %v652 = vsel %vm650, %v625, %v391
  %v654 = vsel %vm650, %v627, %v393
  %v656 = vsel %vm650, %v629, %v395
  %v658 = vsel %vm650, %v631, %v397
  %v660 = vsel %vm650, %v625, %v399
  %v662 = vsel %vm650, %v633, %v401
  %v664 = vsel %vm650, %v635, %v403
  %v666 = vsel %vm650, %v637, %v405
  %v668 = vsel %vm650, %v625, %v407
  %v670 = vsel %vm650, %v639, %v409
  %v672 = vsel %vm650, %v641, %v411
  %v674 = vsel %vm650, %v643, %v413
  %v676 = vsel %vm650, %v625, %v415
  %v678 = vsel %vm650, %v645, %v417
  %v680 = vsel %vm650, %v647, %v419
  %v682 = vsel %vm650, %v649, %v421
  %vm683 = vcmask 261120
  %v685 = vsel %vm683, %v652, %v451
  %v687 = vsel %vm683, %v654, %v453
  %v689 = vsel %vm683, %v656, %v455
  %v691 = vsel %vm683, %v658, %v457
  %v693 = vsel %vm683, %v660, %v459
  %v695 = vsel %vm683, %v662, %v461
  %v697 = vsel %vm683, %v664, %v463
  %v699 = vsel %vm683, %v666, %v465
  %v701 = vsel %vm683, %v668, %v467
  %v703 = vsel %vm683, %v670, %v469
  %v705 = vsel %vm683, %v672, %v471
  %v707 = vsel %vm683, %v674, %v473
  %v709 = vsel %vm683, %v676, %v475
  %v711 = vsel %vm683, %v678, %v477
  %v713 = vsel %vm683, %v680, %v479
  %v715 = vsel %vm683, %v682, %v481
  %vm716 = vcmask 326656
  %v718 = vsel %vm716, %v685, %v487
  %v720 = vsel %vm716, %v687, %v489
  %v722 = vsel %vm716, %v689, %v491
  %v724 = vsel %vm716, %v691, %v493
  %v726 = vsel %vm716, %v693, %v495
  %v728 = vsel %vm716, %v695, %v497
  %v730 = vsel %vm716, %v697, %v499
  %v732 = vsel %vm716, %v699, %v501
  %v734 = vsel %vm716, %v701, %v503
  %v736 = vsel %vm716, %v703, %v505
  %v738 = vsel %vm716, %v705, %v507
  %v740 = vsel %vm716, %v707, %v509
  %v742 = vsel %vm716, %v709, %v511
  %v744 = vsel %vm716, %v711, %v513
  %v746 = vsel %vm716, %v713, %v515
  %v748 = vsel %vm716, %v715, %v517
  %vm749 = vcmask 392192
  %v751 = vsel %vm749, %v718, %v519
  %v753 = vsel %vm749, %v720, %v521
  %v755 = vsel %vm749, %v722, %v523
  %v757 = vsel %vm749, %v724, %v525
  %v759 = vsel %vm749, %v726, %v527
  %v761 = vsel %vm749, %v728, %v529
  %v763 = vsel %vm749, %v730, %v531
  %v764 = vsel %vm749, %v732, %v525
  %v766 = vsel %vm749, %v734, %v533
  %v768 = vsel %vm749, %v736, %v535
  %v770 = vsel %vm749, %v738, %v537
  %v771 = vsel %vm749, %v740, %v525
  %v773 = vsel %vm749, %v742, %v539
  %v775 = vsel %vm749, %v744, %v541
  %v777 = vsel %vm749, %v746, %v543
  %v778 = vsel %vm749, %v748, %v525
  %vm779 = vcmask 457728
  %v781 = vsel %vm779, %v751, %v545
  %v783 = vsel %vm779, %v753, %v547
  %v785 = vsel %vm779, %v755, %v549
  %v787 = vsel %vm779, %v757, %v551
  %v789 = vsel %vm779, %v759, %v553
  %v791 = vsel %vm779, %v761, %v555
  %v793 = vsel %vm779, %v763, %v557
  %v794 = vsel %vm779, %v764, %v551
  %v796 = vsel %vm779, %v766, %v559
  %v798 = vsel %vm779, %v768, %v561
  %v800 = vsel %vm779, %v770, %v563
  %v801 = vsel %vm779, %v771, %v551
  %v803 = vsel %vm779, %v773, %v565
  %v805 = vsel %vm779, %v775, %v567
  %v807 = vsel %vm779, %v777, %v569
  %v808 = vsel %vm779, %v778, %v551
  %vm809 = vcmask 523264
  %v811 = vsel %vm809, %v781, %v571
  %v813 = vsel %vm809, %v783, %v573
  %v815 = vsel %vm809, %v785, %v575
  %v817 = vsel %vm809, %v787, %v577
  %v819 = vsel %vm809, %v789, %v579
  %v821 = vsel %vm809, %v791, %v581
  %v823 = vsel %vm809, %v793, %v583
  %v824 = vsel %vm809, %v794, %v577
  %v826 = vsel %vm809, %v796, %v585
  %v828 = vsel %vm809, %v798, %v587
  %v830 = vsel %vm809, %v800, %v589
  %v831 = vsel %vm809, %v801, %v577
  %v833 = vsel %vm809, %v803, %v591
  %v835 = vsel %vm809, %v805, %v593
  %v837 = vsel %vm809, %v807, %v595
  %v838 = vsel %vm809, %v808, %v577
  %v840 = vlaneseq
  %v841 = vshrl.u32 %v840, 7
  %v842 = vsub.s32 0, %v841
  %v843 = vrot.slane %v40, %v842
  %v854 = vunpack.c.l.b16 %v31
  %v855 = vunpack.c.l.b16 %v32
  %v856 = vunpack.c.l.b16 %v33
  %v857 = vunpack.c.l.b16 %v34
  %v858 = vunpack.c.l.b16 %v35
  %v859 = vunpack.c.l.b16 %v36
  %v860 = vunpack.c.l.b16 %v37
  %v861 = vunpack.c.l.b16 %v38
  %v862 = vunpack.c.l.b16 %v39
  %v863 = vpack.c.b16 %v855, %v854
  %v864 = vpack.c.b16 %v857, %v856
  %v865 = vpack.c.b16 %v859, %v858
  %v866 = vpack.c.b16 %v861, %v860
  %v867 = vpack.c.b16 %v862, %v862
  %vm872 = vcmask 588800
  %v873 = vsel %vm872, %v811, 0
  %vm875 = vcmask 1043456
  %v877 = vsel %vm875, %v867, 0
  %879 = vmatprep.subr.bf16.mxu0 0
  %880 = vmatpush1.bf16.msra.mxu0 0
  %881 = vmatprep.subr.bf16.mxu0 0
  %882 = vmatpush1.bf16.msra.mxu0 0
  %883 = vmatprep.subr.bf16.mxu0 0
  %884 = vmatpush1.bf16.msra.mxu0 0
  %885 = vmatprep.subr.bf16.mxu0 0
  %886 = vmatpush1.bf16.msra.mxu0 %v877
  %887 = vmatprep.subr.bf16.mxu0 0
  %888 = vmatpush1.bf16.msra.mxu0 %v866
  %889 = vmatprep.subr.bf16.mxu0 0
  %890 = vmatpush1.bf16.msra.mxu0 %v865
  %891 = vmatprep.subr.bf16.mxu0 0
  %892 = vmatpush1.bf16.msra.mxu0 %v864
  %893 = vmatprep.subr.bf16.mxu0 0
  %894 = vmatpush1.bf16.msra.mxu0 %v863
  %895 = vmatprep.subr.bf16.mxu0 0
  %896 = vmatpush2.bf16.msra.mxu0 0
  %897 = vmatprep.subr.bf16.mxu0 0
  %898 = vmatpush2.bf16.msra.mxu0 0
  %899 = vmatprep.subr.bf16.mxu0 0
  %900 = vmatpush2.bf16.msra.mxu0 0
  %901 = vmatprep.subr.bf16.mxu0 0
  %902 = vmatpush2.bf16.msra.mxu0 0
  %903 = vmatprep.subr.bf16.mxu0 0
  %904 = vmatpush2.bf16.msra.mxu0 0
  %905 = vmatprep.subr.bf16.mxu0 0
  %906 = vmatpush2.bf16.msra.mxu0 0
  %907 = vmatprep.subr.bf16.mxu0 0
  %908 = vmatpush2.bf16.msra.mxu0 0
  %909 = vmatprep.subr.bf16.mxu0 0
  %910 = vmatpush2.bf16.msra.mxu0 0
  %911 = vmatprep.mubr.bf16.mxu0 0
  %912 = vmatmul.mubr.bf16.gmra.mxu0 %v873
  %v913 = vpop.f32.mrf.mxu0
  %v914 = vadd.f32 %v843, %v913
  %v915 = vpop.f32.mrf.mxu0
  %v916 = vpop.f32.mrf.mxu0
  %v917 = vpop.f32.mrf.mxu0
  %918 = vdwg.mxu0
  %v919 = vsel %vm872, %v813, 0
  %921 = vmatprep.subr.bf16.mxu0 0
  %922 = vmatpush1.bf16.msra.mxu0 0
  %923 = vmatprep.subr.bf16.mxu0 0
  %924 = vmatpush1.bf16.msra.mxu0 0
  %925 = vmatprep.subr.bf16.mxu0 0
  %926 = vmatpush1.bf16.msra.mxu0 0
  %927 = vmatprep.subr.bf16.mxu0 0
  %928 = vmatpush1.bf16.msra.mxu0 %v877
  %929 = vmatprep.subr.bf16.mxu0 0
  %930 = vmatpush1.bf16.msra.mxu0 %v866
  %931 = vmatprep.subr.bf16.mxu0 0
  %932 = vmatpush1.bf16.msra.mxu0 %v865
  %933 = vmatprep.subr.bf16.mxu0 0
  %934 = vmatpush1.bf16.msra.mxu0 %v864
  %935 = vmatprep.subr.bf16.mxu0 0
  %936 = vmatpush1.bf16.msra.mxu0 %v863
  %937 = vmatprep.subr.bf16.mxu0 0
  %938 = vmatpush2.bf16.msra.mxu0 0
  %939 = vmatprep.subr.bf16.mxu0 0
  %940 = vmatpush2.bf16.msra.mxu0 0
  %941 = vmatprep.subr.bf16.mxu0 0
  %942 = vmatpush2.bf16.msra.mxu0 0
  %943 = vmatprep.subr.bf16.mxu0 0
  %944 = vmatpush2.bf16.msra.mxu0 0
  %945 = vmatprep.subr.bf16.mxu0 0
  %946 = vmatpush2.bf16.msra.mxu0 0
  %947 = vmatprep.subr.bf16.mxu0 0
  %948 = vmatpush2.bf16.msra.mxu0 0
  %949 = vmatprep.subr.bf16.mxu0 0
  %950 = vmatpush2.bf16.msra.mxu0 0
  %951 = vmatprep.subr.bf16.mxu0 0
  %952 = vmatpush2.bf16.msra.mxu0 0
  %953 = vmatprep.mubr.bf16.mxu0 0
  %954 = vmatmul.mubr.bf16.gmra.mxu0 %v919
  %v955 = vpop.f32.mrf.mxu0
  %v956 = vadd.f32 %v843, %v955
  %v957 = vpop.f32.mrf.mxu0
  %v958 = vpop.f32.mrf.mxu0
  %v959 = vpop.f32.mrf.mxu0
  %960 = vdwg.mxu0
  %v961 = vsel %vm872, %v815, 0
  %963 = vmatprep.subr.bf16.mxu0 0
  %964 = vmatpush1.bf16.msra.mxu0 0
  %965 = vmatprep.subr.bf16.mxu0 0
  %966 = vmatpush1.bf16.msra.mxu0 0
  %967 = vmatprep.subr.bf16.mxu0 0
  %968 = vmatpush1.bf16.msra.mxu0 0
  %969 = vmatprep.subr.bf16.mxu0 0
  %970 = vmatpush1.bf16.msra.mxu0 %v877
  %971 = vmatprep.subr.bf16.mxu0 0
  %972 = vmatpush1.bf16.msra.mxu0 %v866
  %973 = vmatprep.subr.bf16.mxu0 0
  %974 = vmatpush1.bf16.msra.mxu0 %v865
  %975 = vmatprep.subr.bf16.mxu0 0
  %976 = vmatpush1.bf16.msra.mxu0 %v864
  %977 = vmatprep.subr.bf16.mxu0 0
  %978 = vmatpush1.bf16.msra.mxu0 %v863
  %979 = vmatprep.subr.bf16.mxu0 0
  %980 = vmatpush2.bf16.msra.mxu0 0
  %981 = vmatprep.subr.bf16.mxu0 0
  %982 = vmatpush2.bf16.msra.mxu0 0
  %983 = vmatprep.subr.bf16.mxu0 0
  %984 = vmatpush2.bf16.msra.mxu0 0
  %985 = vmatprep.subr.bf16.mxu0 0
  %986 = vmatpush2.bf16.msra.mxu0 0
  %987 = vmatprep.subr.bf16.mxu0 0
  %988 = vmatpush2.bf16.msra.mxu0 0
  %989 = vmatprep.subr.bf16.mxu0 0
  %990 = vmatpush2.bf16.msra.mxu0 0
  %991 = vmatprep.subr.bf16.mxu0 0
  %992 = vmatpush2.bf16.msra.mxu0 0
  %993 = vmatprep.subr.bf16.mxu0 0
  %994 = vmatpush2.bf16.msra.mxu0 0
  %995 = vmatprep.mubr.bf16.mxu0 0
  %996 = vmatmul.mubr.bf16.gmra.mxu0 %v961
  %v997 = vpop.f32.mrf.mxu0
  %v998 = vadd.f32 %v843, %v997
  %v999 = vpop.f32.mrf.mxu0
  %v1000 = vpop.f32.mrf.mxu0
  %v1001 = vpop.f32.mrf.mxu0
  %1002 = vdwg.mxu0
  %v1003 = vsel %vm872, %v817, 0
  %1005 = vmatprep.subr.bf16.mxu0 0
  %1006 = vmatpush1.bf16.msra.mxu0 0
  %1007 = vmatprep.subr.bf16.mxu0 0
  %1008 = vmatpush1.bf16.msra.mxu0 0
  %1009 = vmatprep.subr.bf16.mxu0 0
  %1010 = vmatpush1.bf16.msra.mxu0 0
  %1011 = vmatprep.subr.bf16.mxu0 0
  %1012 = vmatpush1.bf16.msra.mxu0 %v877
  %1013 = vmatprep.subr.bf16.mxu0 0
  %1014 = vmatpush1.bf16.msra.mxu0 %v866
  %1015 = vmatprep.subr.bf16.mxu0 0
  %1016 = vmatpush1.bf16.msra.mxu0 %v865
  %1017 = vmatprep.subr.bf16.mxu0 0
  %1018 = vmatpush1.bf16.msra.mxu0 %v864
  %1019 = vmatprep.subr.bf16.mxu0 0
  %1020 = vmatpush1.bf16.msra.mxu0 %v863
  %1021 = vmatprep.subr.bf16.mxu0 0
  %1022 = vmatpush2.bf16.msra.mxu0 0
  %1023 = vmatprep.subr.bf16.mxu0 0
  %1024 = vmatpush2.bf16.msra.mxu0 0
  %1025 = vmatprep.subr.bf16.mxu0 0
  %1026 = vmatpush2.bf16.msra.mxu0 0
  %1027 = vmatprep.subr.bf16.mxu0 0
  %1028 = vmatpush2.bf16.msra.mxu0 0
  %1029 = vmatprep.subr.bf16.mxu0 0
  %1030 = vmatpush2.bf16.msra.mxu0 0
  %1031 = vmatprep.subr.bf16.mxu0 0
  %1032 = vmatpush2.bf16.msra.mxu0 0
  %1033 = vmatprep.subr.bf16.mxu0 0
  %1034 = vmatpush2.bf16.msra.mxu0 0
  %1035 = vmatprep.subr.bf16.mxu0 0
  %1036 = vmatpush2.bf16.msra.mxu0 0
  %1037 = vmatprep.mubr.bf16.mxu0 0
  %1038 = vmatmul.mubr.bf16.gmra.mxu0 %v1003
  %v1039 = vpop.f32.mrf.mxu0
  %v1040 = vadd.f32 %v843, %v1039
  %v1041 = vpop.f32.mrf.mxu0
  %v1042 = vpop.f32.mrf.mxu0
  %v1043 = vpop.f32.mrf.mxu0
  %1044 = vdwg.mxu0
  %v1045 = vsel %vm872, %v819, 0
  %1047 = vmatprep.subr.bf16.mxu0 0
  %1048 = vmatpush1.bf16.msra.mxu0 0
  %1049 = vmatprep.subr.bf16.mxu0 0
  %1050 = vmatpush1.bf16.msra.mxu0 0
  %1051 = vmatprep.subr.bf16.mxu0 0
  %1052 = vmatpush1.bf16.msra.mxu0 0
  %1053 = vmatprep.subr.bf16.mxu0 0
  %1054 = vmatpush1.bf16.msra.mxu0 %v877
  %1055 = vmatprep.subr.bf16.mxu0 0
  %1056 = vmatpush1.bf16.msra.mxu0 %v866
  %1057 = vmatprep.subr.bf16.mxu0 0
  %1058 = vmatpush1.bf16.msra.mxu0 %v865
  %1059 = vmatprep.subr.bf16.mxu0 0
  %1060 = vmatpush1.bf16.msra.mxu0 %v864
  %1061 = vmatprep.subr.bf16.mxu0 0
  %1062 = vmatpush1.bf16.msra.mxu0 %v863
  %1063 = vmatprep.subr.bf16.mxu0 0
  %1064 = vmatpush2.bf16.msra.mxu0 0
  %1065 = vmatprep.subr.bf16.mxu0 0
  %1066 = vmatpush2.bf16.msra.mxu0 0
  %1067 = vmatprep.subr.bf16.mxu0 0
  %1068 = vmatpush2.bf16.msra.mxu0 0
  %1069 = vmatprep.subr.bf16.mxu0 0
  %1070 = vmatpush2.bf16.msra.mxu0 0
  %1071 = vmatprep.subr.bf16.mxu0 0
  %1072 = vmatpush2.bf16.msra.mxu0 0
  %1073 = vmatprep.subr.bf16.mxu0 0
  %1074 = vmatpush2.bf16.msra.mxu0 0
  %1075 = vmatprep.subr.bf16.mxu0 0
  %1076 = vmatpush2.bf16.msra.mxu0 0
  %1077 = vmatprep.subr.bf16.mxu0 0
  %1078 = vmatpush2.bf16.msra.mxu0 0
  %1079 = vmatprep.mubr.bf16.mxu0 0
  %1080 = vmatmul.mubr.bf16.gmra.mxu0 %v1045
  %v1081 = vpop.f32.mrf.mxu0
  %v1082 = vadd.f32 %v843, %v1081
  %v1083 = vpop.f32.mrf.mxu0
  %v1084 = vpop.f32.mrf.mxu0
  %v1085 = vpop.f32.mrf.mxu0
  %1086 = vdwg.mxu0
  %v1087 = vsel %vm872, %v821, 0
  %1089 = vmatprep.subr.bf16.mxu0 0
  %1090 = vmatpush1.bf16.msra.mxu0 0
  %1091 = vmatprep.subr.bf16.mxu0 0
  %1092 = vmatpush1.bf16.msra.mxu0 0
  %1093 = vmatprep.subr.bf16.mxu0 0
  %1094 = vmatpush1.bf16.msra.mxu0 0
  %1095 = vmatprep.subr.bf16.mxu0 0
  %1096 = vmatpush1.bf16.msra.mxu0 %v877
  %1097 = vmatprep.subr.bf16.mxu0 0
  %1098 = vmatpush1.bf16.msra.mxu0 %v866
  %1099 = vmatprep.subr.bf16.mxu0 0
  %1100 = vmatpush1.bf16.msra.mxu0 %v865
  %1101 = vmatprep.subr.bf16.mxu0 0
  %1102 = vmatpush1.bf16.msra.mxu0 %v864
  %1103 = vmatprep.subr.bf16.mxu0 0
  %1104 = vmatpush1.bf16.msra.mxu0 %v863
  %1105 = vmatprep.subr.bf16.mxu0 0
  %1106 = vmatpush2.bf16.msra.mxu0 0
  %1107 = vmatprep.subr.bf16.mxu0 0
  %1108 = vmatpush2.bf16.msra.mxu0 0
  %1109 = vmatprep.subr.bf16.mxu0 0
  %1110 = vmatpush2.bf16.msra.mxu0 0
  %1111 = vmatprep.subr.bf16.mxu0 0
  %1112 = vmatpush2.bf16.msra.mxu0 0
  %1113 = vmatprep.subr.bf16.mxu0 0
  %1114 = vmatpush2.bf16.msra.mxu0 0
  %1115 = vmatprep.subr.bf16.mxu0 0
  %1116 = vmatpush2.bf16.msra.mxu0 0
  %1117 = vmatprep.subr.bf16.mxu0 0
  %1118 = vmatpush2.bf16.msra.mxu0 0
  %1119 = vmatprep.subr.bf16.mxu0 0
  %1120 = vmatpush2.bf16.msra.mxu0 0
  %1121 = vmatprep.mubr.bf16.mxu0 0
  %1122 = vmatmul.mubr.bf16.gmra.mxu0 %v1087
  %v1123 = vpop.f32.mrf.mxu0
  %v1124 = vadd.f32 %v843, %v1123
  %v1125 = vpop.f32.mrf.mxu0
  %v1126 = vpop.f32.mrf.mxu0
  %v1127 = vpop.f32.mrf.mxu0
  %1128 = vdwg.mxu0
  %v1129 = vsel %vm872, %v823, 0
  %1131 = vmatprep.subr.bf16.mxu0 0
  %1132 = vmatpush1.bf16.msra.mxu0 0
  %1133 = vmatprep.subr.bf16.mxu0 0
  %1134 = vmatpush1.bf16.msra.mxu0 0
  %1135 = vmatprep.subr.bf16.mxu0 0
  %1136 = vmatpush1.bf16.msra.mxu0 0
  %1137 = vmatprep.subr.bf16.mxu0 0
  %1138 = vmatpush1.bf16.msra.mxu0 %v877
  %1139 = vmatprep.subr.bf16.mxu0 0
  %1140 = vmatpush1.bf16.msra.mxu0 %v866
  %1141 = vmatprep.subr.bf16.mxu0 0
  %1142 = vmatpush1.bf16.msra.mxu0 %v865
  %1143 = vmatprep.subr.bf16.mxu0 0
  %1144 = vmatpush1.bf16.msra.mxu0 %v864
  %1145 = vmatprep.subr.bf16.mxu0 0
  %1146 = vmatpush1.bf16.msra.mxu0 %v863
  %1147 = vmatprep.subr.bf16.mxu0 0
  %1148 = vmatpush2.bf16.msra.mxu0 0
  %1149 = vmatprep.subr.bf16.mxu0 0
  %1150 = vmatpush2.bf16.msra.mxu0 0
  %1151 = vmatprep.subr.bf16.mxu0 0
  %1152 = vmatpush2.bf16.msra.mxu0 0
  %1153 = vmatprep.subr.bf16.mxu0 0
  %1154 = vmatpush2.bf16.msra.mxu0 0
  %1155 = vmatprep.subr.bf16.mxu0 0
  %1156 = vmatpush2.bf16.msra.mxu0 0
  %1157 = vmatprep.subr.bf16.mxu0 0
  %1158 = vmatpush2.bf16.msra.mxu0 0
  %1159 = vmatprep.subr.bf16.mxu0 0
  %1160 = vmatpush2.bf16.msra.mxu0 0
  %1161 = vmatprep.subr.bf16.mxu0 0
  %1162 = vmatpush2.bf16.msra.mxu0 0
  %1163 = vmatprep.mubr.bf16.mxu0 0
  %1164 = vmatmul.mubr.bf16.gmra.mxu0 %v1129
  %v1165 = vpop.f32.mrf.mxu0
  %v1166 = vadd.f32 %v843, %v1165
  %v1167 = vpop.f32.mrf.mxu0
  %v1168 = vpop.f32.mrf.mxu0
  %v1169 = vpop.f32.mrf.mxu0
  %1170 = vdwg.mxu0
  %v1171 = vsel %vm872, %v824, 0
  %1173 = vmatprep.subr.bf16.mxu0 0
  %1174 = vmatpush1.bf16.msra.mxu0 0
  %1175 = vmatprep.subr.bf16.mxu0 0
  %1176 = vmatpush1.bf16.msra.mxu0 0
  %1177 = vmatprep.subr.bf16.mxu0 0
  %1178 = vmatpush1.bf16.msra.mxu0 0
  %1179 = vmatprep.subr.bf16.mxu0 0
  %1180 = vmatpush1.bf16.msra.mxu0 %v877
  %1181 = vmatprep.subr.bf16.mxu0 0
  %1182 = vmatpush1.bf16.msra.mxu0 %v866
  %1183 = vmatprep.subr.bf16.mxu0 0
  %1184 = vmatpush1.bf16.msra.mxu0 %v865
  %1185 = vmatprep.subr.bf16.mxu0 0
  %1186 = vmatpush1.bf16.msra.mxu0 %v864
  %1187 = vmatprep.subr.bf16.mxu0 0
  %1188 = vmatpush1.bf16.msra.mxu0 %v863
  %1189 = vmatprep.subr.bf16.mxu0 0
  %1190 = vmatpush2.bf16.msra.mxu0 0
  %1191 = vmatprep.subr.bf16.mxu0 0
  %1192 = vmatpush2.bf16.msra.mxu0 0
  %1193 = vmatprep.subr.bf16.mxu0 0
  %1194 = vmatpush2.bf16.msra.mxu0 0
  %1195 = vmatprep.subr.bf16.mxu0 0
  %1196 = vmatpush2.bf16.msra.mxu0 0
  %1197 = vmatprep.subr.bf16.mxu0 0
  %1198 = vmatpush2.bf16.msra.mxu0 0
  %1199 = vmatprep.subr.bf16.mxu0 0
  %1200 = vmatpush2.bf16.msra.mxu0 0
  %1201 = vmatprep.subr.bf16.mxu0 0
  %1202 = vmatpush2.bf16.msra.mxu0 0
  %1203 = vmatprep.subr.bf16.mxu0 0
  %1204 = vmatpush2.bf16.msra.mxu0 0
  %1205 = vmatprep.mubr.bf16.mxu0 0
  %1206 = vmatmul.mubr.bf16.gmra.mxu0 %v1171
  %v1207 = vpop.f32.mrf.mxu0
  %v1208 = vadd.f32 %v843, %v1207
  %v1209 = vpop.f32.mrf.mxu0
  %v1210 = vpop.f32.mrf.mxu0
  %v1211 = vpop.f32.mrf.mxu0
  %1212 = vdwg.mxu0
  %v1213 = vsel %vm872, %v826, 0
  %1215 = vmatprep.subr.bf16.mxu0 0
  %1216 = vmatpush1.bf16.msra.mxu0 0
  %1217 = vmatprep.subr.bf16.mxu0 0
  %1218 = vmatpush1.bf16.msra.mxu0 0
  %1219 = vmatprep.subr.bf16.mxu0 0
  %1220 = vmatpush1.bf16.msra.mxu0 0
  %1221 = vmatprep.subr.bf16.mxu0 0
  %1222 = vmatpush1.bf16.msra.mxu0 %v877
  %1223 = vmatprep.subr.bf16.mxu0 0
  %1224 = vmatpush1.bf16.msra.mxu0 %v866
  %1225 = vmatprep.subr.bf16.mxu0 0
  %1226 = vmatpush1.bf16.msra.mxu0 %v865
  %1227 = vmatprep.subr.bf16.mxu0 0
  %1228 = vmatpush1.bf16.msra.mxu0 %v864
  %1229 = vmatprep.subr.bf16.mxu0 0
  %1230 = vmatpush1.bf16.msra.mxu0 %v863
  %1231 = vmatprep.subr.bf16.mxu0 0
  %1232 = vmatpush2.bf16.msra.mxu0 0
  %1233 = vmatprep.subr.bf16.mxu0 0
  %1234 = vmatpush2.bf16.msra.mxu0 0
  %1235 = vmatprep.subr.bf16.mxu0 0
  %1236 = vmatpush2.bf16.msra.mxu0 0
  %1237 = vmatprep.subr.bf16.mxu0 0
  %1238 = vmatpush2.bf16.msra.mxu0 0
  %1239 = vmatprep.subr.bf16.mxu0 0
  %1240 = vmatpush2.bf16.msra.mxu0 0
  %1241 = vmatprep.subr.bf16.mxu0 0
  %1242 = vmatpush2.bf16.msra.mxu0 0
  %1243 = vmatprep.subr.bf16.mxu0 0
  %1244 = vmatpush2.bf16.msra.mxu0 0
  %1245 = vmatprep.subr.bf16.mxu0 0
  %1246 = vmatpush2.bf16.msra.mxu0 0
  %1247 = vmatprep.mubr.bf16.mxu0 0
  %1248 = vmatmul.mubr.bf16.gmra.mxu0 %v1213
  %v1249 = vpop.f32.mrf.mxu0
  %v1250 = vadd.f32 %v843, %v1249
  %v1251 = vpop.f32.mrf.mxu0
  %v1252 = vpop.f32.mrf.mxu0
  %v1253 = vpop.f32.mrf.mxu0
  %1254 = vdwg.mxu0
  %v1255 = vsel %vm872, %v828, 0
  %1257 = vmatprep.subr.bf16.mxu0 0
  %1258 = vmatpush1.bf16.msra.mxu0 0
  %1259 = vmatprep.subr.bf16.mxu0 0
  %1260 = vmatpush1.bf16.msra.mxu0 0
  %1261 = vmatprep.subr.bf16.mxu0 0
  %1262 = vmatpush1.bf16.msra.mxu0 0
  %1263 = vmatprep.subr.bf16.mxu0 0
  %1264 = vmatpush1.bf16.msra.mxu0 %v877
  %1265 = vmatprep.subr.bf16.mxu0 0
  %1266 = vmatpush1.bf16.msra.mxu0 %v866
  %1267 = vmatprep.subr.bf16.mxu0 0
  %1268 = vmatpush1.bf16.msra.mxu0 %v865
  %1269 = vmatprep.subr.bf16.mxu0 0
  %1270 = vmatpush1.bf16.msra.mxu0 %v864
  %1271 = vmatprep.subr.bf16.mxu0 0
  %1272 = vmatpush1.bf16.msra.mxu0 %v863
  %1273 = vmatprep.subr.bf16.mxu0 0
  %1274 = vmatpush2.bf16.msra.mxu0 0
  %1275 = vmatprep.subr.bf16.mxu0 0
  %1276 = vmatpush2.bf16.msra.mxu0 0
  %1277 = vmatprep.subr.bf16.mxu0 0
  %1278 = vmatpush2.bf16.msra.mxu0 0
  %1279 = vmatprep.subr.bf16.mxu0 0
  %1280 = vmatpush2.bf16.msra.mxu0 0
  %1281 = vmatprep.subr.bf16.mxu0 0
  %1282 = vmatpush2.bf16.msra.mxu0 0
  %1283 = vmatprep.subr.bf16.mxu0 0
  %1284 = vmatpush2.bf16.msra.mxu0 0
  %1285 = vmatprep.subr.bf16.mxu0 0
  %1286 = vmatpush2.bf16.msra.mxu0 0
  %1287 = vmatprep.subr.bf16.mxu0 0
  %1288 = vmatpush2.bf16.msra.mxu0 0
  %1289 = vmatprep.mubr.bf16.mxu0 0
  %1290 = vmatmul.mubr.bf16.gmra.mxu0 %v1255
  %v1291 = vpop.f32.mrf.mxu0
  %v1292 = vadd.f32 %v843, %v1291
  %v1293 = vpop.f32.mrf.mxu0
  %v1294 = vpop.f32.mrf.mxu0
  %v1295 = vpop.f32.mrf.mxu0
  %1296 = vdwg.mxu0
  %v1297 = vsel %vm872, %v830, 0
  %1299 = vmatprep.subr.bf16.mxu0 0
  %1300 = vmatpush1.bf16.msra.mxu0 0
  %1301 = vmatprep.subr.bf16.mxu0 0
  %1302 = vmatpush1.bf16.msra.mxu0 0
  %1303 = vmatprep.subr.bf16.mxu0 0
  %1304 = vmatpush1.bf16.msra.mxu0 0
  %1305 = vmatprep.subr.bf16.mxu0 0
  %1306 = vmatpush1.bf16.msra.mxu0 %v877
  %1307 = vmatprep.subr.bf16.mxu0 0
  %1308 = vmatpush1.bf16.msra.mxu0 %v866
  %1309 = vmatprep.subr.bf16.mxu0 0
  %1310 = vmatpush1.bf16.msra.mxu0 %v865
  %1311 = vmatprep.subr.bf16.mxu0 0
  %1312 = vmatpush1.bf16.msra.mxu0 %v864
  %1313 = vmatprep.subr.bf16.mxu0 0
  %1314 = vmatpush1.bf16.msra.mxu0 %v863
  %1315 = vmatprep.subr.bf16.mxu0 0
  %1316 = vmatpush2.bf16.msra.mxu0 0
  %1317 = vmatprep.subr.bf16.mxu0 0
  %1318 = vmatpush2.bf16.msra.mxu0 0
  %1319 = vmatprep.subr.bf16.mxu0 0
  %1320 = vmatpush2.bf16.msra.mxu0 0
  %1321 = vmatprep.subr.bf16.mxu0 0
  %1322 = vmatpush2.bf16.msra.mxu0 0
  %1323 = vmatprep.subr.bf16.mxu0 0
  %1324 = vmatpush2.bf16.msra.mxu0 0
  %1325 = vmatprep.subr.bf16.mxu0 0
  %1326 = vmatpush2.bf16.msra.mxu0 0
  %1327 = vmatprep.subr.bf16.mxu0 0
  %1328 = vmatpush2.bf16.msra.mxu0 0
  %1329 = vmatprep.subr.bf16.mxu0 0
  %1330 = vmatpush2.bf16.msra.mxu0 0
  %1331 = vmatprep.mubr.bf16.mxu0 0
  %1332 = vmatmul.mubr.bf16.gmra.mxu0 %v1297
  %v1333 = vpop.f32.mrf.mxu0
  %v1334 = vadd.f32 %v843, %v1333
  %v1335 = vpop.f32.mrf.mxu0
  %v1336 = vpop.f32.mrf.mxu0
  %v1337 = vpop.f32.mrf.mxu0
  %1338 = vdwg.mxu0
  %v1339 = vsel %vm872, %v831, 0
  %1341 = vmatprep.subr.bf16.mxu0 0
  %1342 = vmatpush1.bf16.msra.mxu0 0
  %1343 = vmatprep.subr.bf16.mxu0 0
  %1344 = vmatpush1.bf16.msra.mxu0 0
  %1345 = vmatprep.subr.bf16.mxu0 0
  %1346 = vmatpush1.bf16.msra.mxu0 0
  %1347 = vmatprep.subr.bf16.mxu0 0
  %1348 = vmatpush1.bf16.msra.mxu0 %v877
  %1349 = vmatprep.subr.bf16.mxu0 0
  %1350 = vmatpush1.bf16.msra.mxu0 %v866
  %1351 = vmatprep.subr.bf16.mxu0 0
  %1352 = vmatpush1.bf16.msra.mxu0 %v865
  %1353 = vmatprep.subr.bf16.mxu0 0
  %1354 = vmatpush1.bf16.msra.mxu0 %v864
  %1355 = vmatprep.subr.bf16.mxu0 0
  %1356 = vmatpush1.bf16.msra.mxu0 %v863
  %1357 = vmatprep.subr.bf16.mxu0 0
  %1358 = vmatpush2.bf16.msra.mxu0 0
  %1359 = vmatprep.subr.bf16.mxu0 0
  %1360 = vmatpush2.bf16.msra.mxu0 0
  %1361 = vmatprep.subr.bf16.mxu0 0
  %1362 = vmatpush2.bf16.msra.mxu0 0
  %1363 = vmatprep.subr.bf16.mxu0 0
  %1364 = vmatpush2.bf16.msra.mxu0 0
  %1365 = vmatprep.subr.bf16.mxu0 0
  %1366 = vmatpush2.bf16.msra.mxu0 0
  %1367 = vmatprep.subr.bf16.mxu0 0
  %1368 = vmatpush2.bf16.msra.mxu0 0
  %1369 = vmatprep.subr.bf16.mxu0 0
  %1370 = vmatpush2.bf16.msra.mxu0 0
  %1371 = vmatprep.subr.bf16.mxu0 0
  %1372 = vmatpush2.bf16.msra.mxu0 0
  %1373 = vmatprep.mubr.bf16.mxu0 0
  %1374 = vmatmul.mubr.bf16.gmra.mxu0 %v1339
  %v1375 = vpop.f32.mrf.mxu0
  %v1376 = vadd.f32 %v843, %v1375
  %v1377 = vpop.f32.mrf.mxu0
  %v1378 = vpop.f32.mrf.mxu0
  %v1379 = vpop.f32.mrf.mxu0
  %1380 = vdwg.mxu0
  %v1381 = vsel %vm872, %v833, 0
  %1383 = vmatprep.subr.bf16.mxu0 0
  %1384 = vmatpush1.bf16.msra.mxu0 0
  %1385 = vmatprep.subr.bf16.mxu0 0
  %1386 = vmatpush1.bf16.msra.mxu0 0
  %1387 = vmatprep.subr.bf16.mxu0 0
  %1388 = vmatpush1.bf16.msra.mxu0 0
  %1389 = vmatprep.subr.bf16.mxu0 0
  %1390 = vmatpush1.bf16.msra.mxu0 %v877
  %1391 = vmatprep.subr.bf16.mxu0 0
  %1392 = vmatpush1.bf16.msra.mxu0 %v866
  %1393 = vmatprep.subr.bf16.mxu0 0
  %1394 = vmatpush1.bf16.msra.mxu0 %v865
  %1395 = vmatprep.subr.bf16.mxu0 0
  %1396 = vmatpush1.bf16.msra.mxu0 %v864
  %1397 = vmatprep.subr.bf16.mxu0 0
  %1398 = vmatpush1.bf16.msra.mxu0 %v863
  %1399 = vmatprep.subr.bf16.mxu0 0
  %1400 = vmatpush2.bf16.msra.mxu0 0
  %1401 = vmatprep.subr.bf16.mxu0 0
  %1402 = vmatpush2.bf16.msra.mxu0 0
  %1403 = vmatprep.subr.bf16.mxu0 0
  %1404 = vmatpush2.bf16.msra.mxu0 0
  %1405 = vmatprep.subr.bf16.mxu0 0
  %1406 = vmatpush2.bf16.msra.mxu0 0
  %1407 = vmatprep.subr.bf16.mxu0 0
  %1408 = vmatpush2.bf16.msra.mxu0 0
  %1409 = vmatprep.subr.bf16.mxu0 0
  %1410 = vmatpush2.bf16.msra.mxu0 0
  %1411 = vmatprep.subr.bf16.mxu0 0
  %1412 = vmatpush2.bf16.msra.mxu0 0
  %1413 = vmatprep.subr.bf16.mxu0 0
  %1414 = vmatpush2.bf16.msra.mxu0 0
  %1415 = vmatprep.mubr.bf16.mxu0 0
  %1416 = vmatmul.mubr.bf16.gmra.mxu0 %v1381
  %v1417 = vpop.f32.mrf.mxu0
  %v1418 = vadd.f32 %v843, %v1417
  %v1419 = vpop.f32.mrf.mxu0
  %v1420 = vpop.f32.mrf.mxu0
  %v1421 = vpop.f32.mrf.mxu0
  %1422 = vdwg.mxu0
  %v1423 = vsel %vm872, %v835, 0
  %1425 = vmatprep.subr.bf16.mxu0 0
  %1426 = vmatpush1.bf16.msra.mxu0 0
  %1427 = vmatprep.subr.bf16.mxu0 0
  %1428 = vmatpush1.bf16.msra.mxu0 0
  %1429 = vmatprep.subr.bf16.mxu0 0
  %1430 = vmatpush1.bf16.msra.mxu0 0
  %1431 = vmatprep.subr.bf16.mxu0 0
  %1432 = vmatpush1.bf16.msra.mxu0 %v877
  %1433 = vmatprep.subr.bf16.mxu0 0
  %1434 = vmatpush1.bf16.msra.mxu0 %v866
  %1435 = vmatprep.subr.bf16.mxu0 0
  %1436 = vmatpush1.bf16.msra.mxu0 %v865
  %1437 = vmatprep.subr.bf16.mxu0 0
  %1438 = vmatpush1.bf16.msra.mxu0 %v864
  %1439 = vmatprep.subr.bf16.mxu0 0
  %1440 = vmatpush1.bf16.msra.mxu0 %v863
  %1441 = vmatprep.subr.bf16.mxu0 0
  %1442 = vmatpush2.bf16.msra.mxu0 0
  %1443 = vmatprep.subr.bf16.mxu0 0
  %1444 = vmatpush2.bf16.msra.mxu0 0
  %1445 = vmatprep.subr.bf16.mxu0 0
  %1446 = vmatpush2.bf16.msra.mxu0 0
  %1447 = vmatprep.subr.bf16.mxu0 0
  %1448 = vmatpush2.bf16.msra.mxu0 0
  %1449 = vmatprep.subr.bf16.mxu0 0
  %1450 = vmatpush2.bf16.msra.mxu0 0
  %1451 = vmatprep.subr.bf16.mxu0 0
  %1452 = vmatpush2.bf16.msra.mxu0 0
  %1453 = vmatprep.subr.bf16.mxu0 0
  %1454 = vmatpush2.bf16.msra.mxu0 0
  %1455 = vmatprep.subr.bf16.mxu0 0
  %1456 = vmatpush2.bf16.msra.mxu0 0
  %1457 = vmatprep.mubr.bf16.mxu0 0
  %1458 = vmatmul.mubr.bf16.gmra.mxu0 %v1423
  %v1459 = vpop.f32.mrf.mxu0
  %v1460 = vadd.f32 %v843, %v1459
  %v1461 = vpop.f32.mrf.mxu0
  %v1462 = vpop.f32.mrf.mxu0
  %v1463 = vpop.f32.mrf.mxu0
  %1464 = vdwg.mxu0
  %v1465 = vsel %vm872, %v837, 0
  %1467 = vmatprep.subr.bf16.mxu0 0
  %1468 = vmatpush1.bf16.msra.mxu0 0
  %1469 = vmatprep.subr.bf16.mxu0 0
  %1470 = vmatpush1.bf16.msra.mxu0 0
  %1471 = vmatprep.subr.bf16.mxu0 0
  %1472 = vmatpush1.bf16.msra.mxu0 0
  %1473 = vmatprep.subr.bf16.mxu0 0
  %1474 = vmatpush1.bf16.msra.mxu0 %v877
  %1475 = vmatprep.subr.bf16.mxu0 0
  %1476 = vmatpush1.bf16.msra.mxu0 %v866
  %1477 = vmatprep.subr.bf16.mxu0 0
  %1478 = vmatpush1.bf16.msra.mxu0 %v865
  %1479 = vmatprep.subr.bf16.mxu0 0
  %1480 = vmatpush1.bf16.msra.mxu0 %v864
  %1481 = vmatprep.subr.bf16.mxu0 0
  %1482 = vmatpush1.bf16.msra.mxu0 %v863
  %1483 = vmatprep.subr.bf16.mxu0 0
  %1484 = vmatpush2.bf16.msra.mxu0 0
  %1485 = vmatprep.subr.bf16.mxu0 0
  %1486 = vmatpush2.bf16.msra.mxu0 0
  %1487 = vmatprep.subr.bf16.mxu0 0
  %1488 = vmatpush2.bf16.msra.mxu0 0
  %1489 = vmatprep.subr.bf16.mxu0 0
  %1490 = vmatpush2.bf16.msra.mxu0 0
  %1491 = vmatprep.subr.bf16.mxu0 0
  %1492 = vmatpush2.bf16.msra.mxu0 0
  %1493 = vmatprep.subr.bf16.mxu0 0
  %1494 = vmatpush2.bf16.msra.mxu0 0
  %1495 = vmatprep.subr.bf16.mxu0 0
  %1496 = vmatpush2.bf16.msra.mxu0 0
  %1497 = vmatprep.subr.bf16.mxu0 0
  %1498 = vmatpush2.bf16.msra.mxu0 0
  %1499 = vmatprep.mubr.bf16.mxu0 0
  %1500 = vmatmul.mubr.bf16.gmra.mxu0 %v1465
  %v1501 = vpop.f32.mrf.mxu0
  %v1502 = vadd.f32 %v843, %v1501
  %v1503 = vpop.f32.mrf.mxu0
  %v1504 = vpop.f32.mrf.mxu0
  %v1505 = vpop.f32.mrf.mxu0
  %1506 = vdwg.mxu0
  %v1507 = vsel %vm872, %v838, 0
  %1509 = vmatprep.subr.bf16.mxu0 0
  %1510 = vmatpush1.bf16.msra.mxu0 0
  %1511 = vmatprep.subr.bf16.mxu0 0
  %1512 = vmatpush1.bf16.msra.mxu0 0
  %1513 = vmatprep.subr.bf16.mxu0 0
  %1514 = vmatpush1.bf16.msra.mxu0 0
  %1515 = vmatprep.subr.bf16.mxu0 0
  %1516 = vmatpush1.bf16.msra.mxu0 %v877
  %1517 = vmatprep.subr.bf16.mxu0 0
  %1518 = vmatpush1.bf16.msra.mxu0 %v866
  %1519 = vmatprep.subr.bf16.mxu0 0
  %1520 = vmatpush1.bf16.msra.mxu0 %v865
  %1521 = vmatprep.subr.bf16.mxu0 0
  %1522 = vmatpush1.bf16.msra.mxu0 %v864
  %1523 = vmatprep.subr.bf16.mxu0 0
  %1524 = vmatpush1.bf16.msra.mxu0 %v863
  %1525 = vmatprep.subr.bf16.mxu0 0
  %1526 = vmatpush2.bf16.msra.mxu0 0
  %1527 = vmatprep.subr.bf16.mxu0 0
  %1528 = vmatpush2.bf16.msra.mxu0 0
  %1529 = vmatprep.subr.bf16.mxu0 0
  %1530 = vmatpush2.bf16.msra.mxu0 0
  %1531 = vmatprep.subr.bf16.mxu0 0
  %1532 = vmatpush2.bf16.msra.mxu0 0
  %1533 = vmatprep.subr.bf16.mxu0 0
  %1534 = vmatpush2.bf16.msra.mxu0 0
  %1535 = vmatprep.subr.bf16.mxu0 0
  %1536 = vmatpush2.bf16.msra.mxu0 0
  %1537 = vmatprep.subr.bf16.mxu0 0
  %1538 = vmatpush2.bf16.msra.mxu0 0
  %1539 = vmatprep.subr.bf16.mxu0 0
  %1540 = vmatpush2.bf16.msra.mxu0 0
  %1541 = vmatprep.mubr.bf16.mxu0 0
  %1542 = vmatmul.mubr.bf16.gmra.mxu0 %v1507
  %v1543 = vpop.f32.mrf.mxu0
  %v1544 = vadd.f32 %v843, %v1543
  %v1545 = vpop.f32.mrf.mxu0
  %v1546 = vpop.f32.mrf.mxu0
  %v1547 = vpop.f32.mrf.mxu0
  %1548 = vdwg.mxu0
  %v1549 = vpack.c.bf16 %v914, %v914
  %v1550 = vpack.c.bf16 %v956, %v956
  %v1551 = vpack.c.bf16 %v998, %v998
  %v1552 = vpack.c.bf16 %v1040, %v1040
  %v1553 = vpack.c.bf16 %v1082, %v1082
  %v1554 = vpack.c.bf16 %v1124, %v1124
  %v1555 = vpack.c.bf16 %v1166, %v1166
  %v1556 = vpack.c.bf16 %v1208, %v1208
  %v1557 = vpack.c.bf16 %v1250, %v1250
  %v1558 = vpack.c.bf16 %v1292, %v1292
  %v1559 = vpack.c.bf16 %v1334, %v1334
  %v1560 = vpack.c.bf16 %v1376, %v1376
  %v1561 = vpack.c.bf16 %v1418, %v1418
  %v1562 = vpack.c.bf16 %v1460, %v1460
  %v1563 = vpack.c.bf16 %v1502, %v1502
  %v1564 = vpack.c.bf16 %v1544, %v1544
  %vm1565 = vcmask 123904
  %1566 = vst.msk [vmem:[%s3] sm:$0x3] %vm1565, %v1549
  %1567 = vst.msk [vmem:[%s3 + $0x2] sm:$0x3] %vm1565, %v1550
  %1568 = vst.msk [vmem:[%s3 + $0x4] sm:$0x3] %vm1565, %v1551
  %1569 = vst.msk [vmem:[%s3 + $0x6] sm:$0x3] %vm1565, %v1552
  %1570 = vst.msk [vmem:[%s3 + $0x8] sm:$0x3] %vm1565, %v1553
  %1571 = vst.msk [vmem:[%s3 + $0xa] sm:$0x3] %vm1565, %v1554
  %1572 = vst.msk [vmem:[%s3 + $0xc] sm:$0x3] %vm1565, %v1555
  %1573 = vst.msk [vmem:[%s3 + $0xe] sm:$0x3] %vm1565, %v1556
  %1574 = vst.msk [vmem:[%s3 + $0x10] sm:$0x3] %vm1565, %v1557
  %1575 = vst.msk [vmem:[%s3 + $0x12] sm:$0x3] %vm1565, %v1558
  %1576 = vst.msk [vmem:[%s3 + $0x14] sm:$0x3] %vm1565, %v1559
  %1577 = vst.msk [vmem:[%s3 + $0x16] sm:$0x3] %vm1565, %v1560
  %1578 = vst.msk [vmem:[%s3 + $0x18] sm:$0x3] %vm1565, %v1561
  %1579 = vst.msk [vmem:[%s3 + $0x1a] sm:$0x3] %vm1565, %v1562
  %1580 = vst.msk [vmem:[%s3 + $0x1c] sm:$0x3] %vm1565, %v1563
  %1581 = vst.msk [vmem:[%s3 + $0x1e] sm:$0x3] %vm1565, %v1564
  // Predicated region
  $region14: #{spiking_tokenizer.13} parent=0 // pred_check
    _
  $region15: #{spiking_tokenizer.13} parent=0 // pred_check_branch
    %1583 = sbr.rel (0) target = $region17
  $region16: #{spiking_tokenizer.13} parent=0 // pred_region
    _
  $region17: #{spiking_tokenizer.13} parent=0 // pred_fallthru
    _
  // Predicated region
  $region18: #{spiking_tokenizer.13} parent=0 // pred_check
    _
  $region19: #{spiking_tokenizer.13} parent=0 // pred_check_branch
    %1585 = sbr.rel (0) target = $region21
  $region20: #{spiking_tokenizer.13} parent=0 // pred_region
    _
  $region21: #{spiking_tokenizer.13} parent=0 // pred_fallthru
    _

// kernel: spiking_tokenizer.17
$region0: #{spiking_tokenizer.17}
  #allocation0 [shape = 'u32[]', space=smem, size = 0x4, offset = 0x4, fixed_abs, tag = 'smem constant byte address 0x4 - core index']
  #allocation1 [shape = 'u32[144,128]{1,0:T(1,128)}', space=vmem, size = 0x12000, scoped, tag = 'internal scratch']
  %s0 = inlined_call_operand.vmem [shape: bf16[4,1,1,32], index: 0, kind: input, shape index: {}]
  %s1 = inlined_call_operand.vmem [shape: bf16[288,32], index: 1, kind: input, shape index: {}]
  %s2 = inlined_call_operand.vmem [shape: f32[1,32], index: 2, kind: input, shape index: {}]
  %s3 = inlined_call_operand.hbm [shape: f32[4,1,1,32], index: 3, kind: output, shape index: {}]
  %s4 = sld [smem:[#allocation0]]
  $region22: #{spiking_tokenizer.17} parent=0
    _
  %s6 = ssub.s32 1, %s4
  %s7 = scalar_select 0, %s6, %s4
  $region1: #{spiking_tokenizer.17} parent=0
    #allocation2 [shape = 'u8[2048]{0}', space=vmem, size = 0x800, scoped, tag = 'output window, operand 0, single buffered']
    #allocation3 [shape = 's32[1]{0}', space=sflag, size = 0x4, scoped, tag = 'scoped memory for spiking_tokenizer.17']
    %8 = vsyncpa [#allocation3], 0
    // Predicated region
    $region2: #{spiking_tokenizer.17} parent=1 // pred_check
      _
    $region3: #{spiking_tokenizer.17} parent=1 // pred_check_branch
      %10 = sbr.rel (0) target = $region5
    $region4: #{spiking_tokenizer.17} parent=1 // pred_region
      _
    $region5: #{spiking_tokenizer.17} parent=1 // pred_fallthru
      _
    // Predicated region
    $region6: #{spiking_tokenizer.17} parent=1 // pred_check
      _
    $region7: #{spiking_tokenizer.17} parent=1 // pred_check_branch
      %12 = sbr.rel (0) target = $region9
    $region8: #{spiking_tokenizer.17} parent=1 // pred_region
      _
    $region9: #{spiking_tokenizer.17} parent=1 // pred_fallthru
      _
    // Predicated region
    $region10: #{spiking_tokenizer.17} parent=1 // pred_check
      _
    $region11: #{spiking_tokenizer.17} parent=1 // pred_check_branch
      %14 = sbr.rel (0) target = $region13
    $region12: #{spiking_tokenizer.17} parent=1 // pred_region
      _
    $region13: #{spiking_tokenizer.17} parent=1 // pred_fallthru
      _
    %v16 = vld [vmem:[%s0] sm:$0x1]
    %v17 = vld [vmem:[%s0 + $0x1] sm:$0x1]
    %v18 = vld [vmem:[%s0 + $0x2] sm:$0x1]
    %v19 = vld [vmem:[%s0 + $0x3] sm:$0x1]
    %v20 = vld [vmem:[%s1] sm:$0xf]
    %v21 = vld [vmem:[%s1 + $0x4] sm:$0xf]
    %v22 = vld [vmem:[%s1 + $0x8] sm:$0xf]
    %v23 = vld [vmem:[%s1 + $0xc] sm:$0xf]
    %v24 = vld [vmem:[%s1 + $0x10] sm:$0xf]
    %v25 = vld [vmem:[%s1 + $0x14] sm:$0xf]
    %v26 = vld [vmem:[%s1 + $0x18] sm:$0xf]
    %v27 = vld [vmem:[%s1 + $0x1c] sm:$0xf]
    %v28 = vld [vmem:[%s1 + $0x20] sm:$0xf]
    %v29 = vld [vmem:[%s1 + $0x24] sm:$0xf]
    %v30 = vld [vmem:[%s1 + $0x28] sm:$0xf]
    %v31 = vld [vmem:[%s1 + $0x2c] sm:$0xf]
    %v32 = vld [vmem:[%s1 + $0x30] sm:$0xf]
    %v33 = vld [vmem:[%s1 + $0x34] sm:$0xf]
    %v34 = vld [vmem:[%s1 + $0x38] sm:$0xf]
    %v35 = vld [vmem:[%s1 + $0x3c] sm:$0xf]
    %v36 = vld [vmem:[%s1 + $0x40] sm:$0xf]
    %v37 = vld [vmem:[%s1 + $0x44] sm:$0xf]
    %v38 = vld [vmem:[%s1 + $0x48] sm:$0xf]
    %v39 = vld [vmem:[%s1 + $0x4c] sm:$0xf]
    %v40 = vld [vmem:[%s1 + $0x50] sm:$0xf]
    %v41 = vld [vmem:[%s1 + $0x54] sm:$0xf]
    %v42 = vld [vmem:[%s1 + $0x58] sm:$0xf]
    %v43 = vld [vmem:[%s1 + $0x5c] sm:$0xf]
    %v44 = vld [vmem:[%s1 + $0x60] sm:$0xf]
    %v45 = vld [vmem:[%s1 + $0x64] sm:$0xf]
    %v46 = vld [vmem:[%s1 + $0x68] sm:$0xf]
    %v47 = vld [vmem:[%s1 + $0x6c] sm:$0xf]
    %v48 = vld [vmem:[%s1 + $0x70] sm:$0xf]
    %v49 = vld [vmem:[%s1 + $0x74] sm:$0xf]
    %v50 = vld [vmem:[%s1 + $0x78] sm:$0xf]
    %v51 = vld [vmem:[%s1 + $0x7c] sm:$0xf]
    %v52 = vld [vmem:[%s1 + $0x80] sm:$0xf]
    %v53 = vld [vmem:[%s1 + $0x84] sm:$0xf]
    %v54 = vld [vmem:[%s1 + $0x88] sm:$0xf]
    %v55 = vld [vmem:[%s1 + $0x8c] sm:$0xf]
    %v56 = vld [vmem:[%s2] sm:$0x1]
    %v58 = vshll.u32 0, 16
    %v61 = vshll.u32 %v16, 16
    %v64 = vshll.u32 %v17, 16
    %v67 = vshll.u32 %v18, 16
    %v70 = vshll.u32 %v19, 16
    %vm77 = vcmask 1040384
    %vm78 = vsmask.f32 256
    %vm79 = vmand %vm77, %vm78
    %v80 = vsel %vm79, 0, %v58
    %v81 = vsel %vm79, 0, %v61
    %v82 = vsel %vm79, 0, %v64
    %v83 = vsel %vm79, 0, %v67
    %v84 = vsel %vm79, 0, %v70
    %vm85 = vcmask 1040384
    %v87 = vsel %vm85, %v80, 0
    %v89 = vsel %vm85, %v81, 0
    %v91 = vsel %vm85, %v82, 0
    %v93 = vsel %vm85, %v83, 0
    %v95 = vsel %vm85, %v84, 0
    %v96 = vshrl.u32 %v87, 16
    %98 = vrot.lane.b32.xlu0 %v96, 32
    %v99 = vpop.permute.xlu0 %98
    %v101 = vrot.slane %v87, 1
    %102 = vrot.lane.b32.xlu0 %v101, 64
    %v103 = vpop.permute.xlu0 %102
    %108 = vrot.lane.b32.xlu0 %v89, 96
    %v109 = vpop.permute.xlu0 %108
    %110 = vrot.lane.b32.xlu0 %v91, 96
    %v111 = vpop.permute.xlu0 %110
    %112 = vrot.lane.b32.xlu0 %v93, 96
    %v113 = vpop.permute.xlu0 %112
    %114 = vrot.lane.b32.xlu0 %v95, 96
    %v115 = vpop.permute.xlu0 %114
    %v116 = vshrl.u32 %v89, 16
    %v118 = vshrl.u32 %v91, 16
    %v120 = vshrl.u32 %v93, 16
    %v122 = vshrl.u32 %v95, 16
    %v124 = vrot.slane %v89, 1
    %v125 = vrot.slane %v91, 1
    %v126 = vrot.slane %v93, 1
    %v127 = vrot.slane %v95, 1
    %128 = vrot.lane.b32.xlu0 %v124, 32
    %v129 = vpop.permute.xlu0 %128
    %130 = vrot.lane.b32.xlu0 %v125, 32
    %v131 = vpop.permute.xlu0 %130
    %132 = vrot.lane.b32.xlu0 %v126, 32
    %v133 = vpop.permute.xlu0 %132
    %134 = vrot.lane.b32.xlu0 %v127, 32
    %v135 = vpop.permute.xlu0 %134
    %136 = vrot.lane.b32.xlu0 %v87, 64
    %v137 = vpop.permute.xlu0 %136
    %138 = vrot.lane.b32.xlu0 %v96, 96
    %v139 = vpop.permute.xlu0 %138
    %vm140 = vcmask 261120
    %v142 = vsel %vm140, %v87, %v99
    %vm143 = vcmask 523264
    %v145 = vsel %vm143, %v142, %v103
    %vm146 = vcmask 785408
    %v148 = vsel %vm146, %v145, %v109
    %v151 = vsel %vm146, %v145, %v111
    %v154 = vsel %vm146, %v145, %v113
    %v157 = vsel %vm146, %v145, %v115
    %v161 = vsel %vm140, %v116, %v129
    %v164 = vsel %vm140, %v118, %v131
    %v167 = vsel %vm140, %v120, %v133
    %v170 = vsel %vm140, %v122, %v135
    %v172 = vsel %vm143, %v161, %v137
    %v173 = vsel %vm143, %v164, %v137
    %v174 = vsel %vm143, %v167, %v137
    %v175 = vsel %vm143, %v170, %v137
    %v177 = vsel %vm146, %v172, %v139
    %v179 = vsel %vm146, %v173, %v139
    %v181 = vsel %vm146, %v174, %v139
    %v183 = vsel %vm146, %v175, %v139
    %v221 = vunpack.c.l.b16 %v20
    %v222 = vunpack.c.l.b16 %v21
    %v223 = vunpack.c.l.b16 %v22
    %v224 = vunpack.c.l.b16 %v23
    %v225 = vunpack.c.l.b16 %v24
    %v226 = vunpack.c.l.b16 %v25
    %v227 = vunpack.c.l.b16 %v26
    %v228 = vunpack.c.l.b16 %v27
    %v229 = vunpack.c.l.b16 %v28
    %v230 = vunpack.c.l.b16 %v29
    %v231 = vunpack.c.l.b16 %v30
    %v232 = vunpack.c.l.b16 %v31
    %v233 = vunpack.c.l.b16 %v32
    %v234 = vunpack.c.l.b16 %v33
    %v235 = vunpack.c.l.b16 %v34
    %v236 = vunpack.c.l.b16 %v35
    %v237 = vunpack.c.l.b16 %v36
    %v238 = vunpack.c.l.b16 %v37
    %v239 = vunpack.c.l.b16 %v38
    %v240 = vunpack.c.l.b16 %v39
    %v241 = vunpack.c.l.b16 %v40
    %v242 = vunpack.c.l.b16 %v41
    %v243 = vunpack.c.l.b16 %v42
    %v244 = vunpack.c.l.b16 %v43
    %v245 = vunpack.c.l.b16 %v44
    %v246 = vunpack.c.l.b16 %v45
    %v247 = vunpack.c.l.b16 %v46
    %v248 = vunpack.c.l.b16 %v47
    %v249 = vunpack.c.l.b16 %v48
    %v250 = vunpack.c.l.b16 %v49
    %v251 = vunpack.c.l.b16 %v50
    %v252 = vunpack.c.l.b16 %v51
    %v253 = vunpack.c.l.b16 %v52
    %v254 = vunpack.c.l.b16 %v53
    %v255 = vunpack.c.l.b16 %v54
    %v256 = vunpack.c.l.b16 %v55
    %v257 = vpack.c.b16 %v222, %v221
    %v258 = vpack.c.b16 %v224, %v223
    %v259 = vpack.c.b16 %v226, %v225
    %v260 = vpack.c.b16 %v228, %v227
    %v261 = vpack.c.b16 %v230, %v229
    %v262 = vpack.c.b16 %v232, %v231
    %v263 = vpack.c.b16 %v234, %v233
    %v264 = vpack.c.b16 %v236, %v235
    %v265 = vpack.c.b16 %v238, %v237
    %v266 = vpack.c.b16 %v240, %v239
    %v267 = vpack.c.b16 %v242, %v241
    %v268 = vpack.c.b16 %v244, %v243
    %v269 = vpack.c.b16 %v246, %v245
    %v270 = vpack.c.b16 %v248, %v247
    %v271 = vpack.c.b16 %v250, %v249
    %v272 = vpack.c.b16 %v252, %v251
    %v273 = vpack.c.b16 %v254, %v253
    %v274 = vpack.c.b16 %v256, %v255
    %v294 = vsel %vm140, %v101, 0
    %296 = vmatprep.subr.bf16.mxu0 0
    %297 = vmatpush1.bf16.msra.mxu0 %v264
    %298 = vmatprep.subr.bf16.mxu0 0
    %299 = vmatpush1.bf16.msra.mxu0 %v263
    %300 = vmatprep.subr.bf16.mxu0 0
    %301 = vmatpush1.bf16.msra.mxu0 %v262
    %302 = vmatprep.subr.bf16.mxu0 0
    %303 = vmatpush1.bf16.msra.mxu0 %v261
    %304 = vmatprep.subr.bf16.mxu0 0
    %305 = vmatpush1.bf16.msra.mxu0 %v260
    %306 = vmatprep.subr.bf16.mxu0 0
    %307 = vmatpush1.bf16.msra.mxu0 %v259
    %308 = vmatprep.subr.bf16.mxu0 0
    %309 = vmatpush1.bf16.msra.mxu0 %v258
    %310 = vmatprep.subr.bf16.mxu0 0
    %311 = vmatpush1.bf16.msra.mxu0 %v257
    %312 = vmatprep.subr.bf16.mxu0 0
    %313 = vmatpush2.bf16.msra.mxu0 %v272
    %314 = vmatprep.subr.bf16.mxu0 0
    %315 = vmatpush2.bf16.msra.mxu0 %v271
    %316 = vmatprep.subr.bf16.mxu0 0
    %317 = vmatpush2.bf16.msra.mxu0 %v270
    %318 = vmatprep.subr.bf16.mxu0 0
    %319 = vmatpush2.bf16.msra.mxu0 %v269
    %320 = vmatprep.subr.bf16.mxu0 0
    %321 = vmatpush2.bf16.msra.mxu0 %v268
    %322 = vmatprep.subr.bf16.mxu0 0
    %323 = vmatpush2.bf16.msra.mxu0 %v267
    %324 = vmatprep.subr.bf16.mxu0 0
    %325 = vmatpush2.bf16.msra.mxu0 %v266
    %326 = vmatprep.subr.bf16.mxu0 0
    %327 = vmatpush2.bf16.msra.mxu0 %v265
    %328 = vmatprep.mubr.bf16.mxu0 %v177
    %329 = vmatmul.mubr.bf16.gmra.mxu0 %v148
    %v330 = vpop.f32.mrf.mxu0
    %v331 = vadd.f32 %v56, %v330
    %v332 = vpop.f32.mrf.mxu0
    %v333 = vpop.f32.mrf.mxu0
    %v334 = vpop.f32.mrf.mxu0
    %335 = vdwg.mxu0
    %336 = vmatprep.subr.bf16.mxu0 0
    %337 = vmatpush1.bf16.msra.mxu0 0
    %338 = vmatprep.subr.bf16.mxu0 0
    %339 = vmatpush1.bf16.msra.mxu0 0
    %340 = vmatprep.subr.bf16.mxu0 0
    %341 = vmatpush1.bf16.msra.mxu0 0
    %342 = vmatprep.subr.bf16.mxu0 0
    %343 = vmatpush1.bf16.msra.mxu0 0
    %344 = vmatprep.subr.bf16.mxu0 0
    %345 = vmatpush1.bf16.msra.mxu0 0
    %346 = vmatprep.subr.bf16.mxu0 0
    %347 = vmatpush1.bf16.msra.mxu0 0
    %348 = vmatprep.subr.bf16.mxu0 0
    %349 = vmatpush1.bf16.msra.mxu0 %v274
    %350 = vmatprep.subr.bf16.mxu0 0
    %351 = vmatpush1.bf16.msra.mxu0 %v273
    %352 = vmatprep.subr.bf16.mxu0 0
    %353 = vmatpush2.bf16.msra.mxu0 0
    %354 = vmatprep.subr.bf16.mxu0 0
    %355 = vmatpush2.bf16.msra.mxu0 0
    %356 = vmatprep.subr.bf16.mxu0 0
    %357 = vmatpush2.bf16.msra.mxu0 0
    %358 = vmatprep.subr.bf16.mxu0 0
    %359 = vmatpush2.bf16.msra.mxu0 0
    %360 = vmatprep.subr.bf16.mxu0 0
    %361 = vmatpush2.bf16.msra.mxu0 0
    %362 = vmatprep.subr.bf16.mxu0 0
    %363 = vmatpush2.bf16.msra.mxu0 0
    %364 = vmatprep.subr.bf16.mxu0 0
    %365 = vmatpush2.bf16.msra.mxu0 0
    %366 = vmatprep.subr.bf16.mxu0 0
    %367 = vmatpush2.bf16.msra.mxu0 0
    %368 = vmatprep.mubr.bf16.mxu0 0
    %369 = vmatmul.mubr.bf16.gmra.mxu0 %v294
    %v370 = vpop.f32.mrf.mxu0
    %v371 = vadd.f32 %v331, %v370
    %v372 = vpop.f32.mrf.mxu0
    %v373 = vpop.f32.mrf.mxu0
    %v374 = vpop.f32.mrf.mxu0
    %375 = vdwg.mxu0
    %376 = vmatprep.subr.bf16.mxu0 0
    %377 = vmatpush1.bf16.msra.mxu0 %v264
    %378 = vmatprep.subr.bf16.mxu0 0
    %379 = vmatpush1.bf16.msra.mxu0 %v263
    %380 = vmatprep.subr.bf16.mxu0 0
    %381 = vmatpush1.bf16.msra.mxu0 %v262
    %382 = vmatprep.subr.bf16.mxu0 0
    %383 = vmatpush1.bf16.msra.mxu0 %v261
    %384 = vmatprep.subr.bf16.mxu0 0
    %385 = vmatpush1.bf16.msra.mxu0 %v260
    %386 = vmatprep.subr.bf16.mxu0 0
    %387 = vmatpush1.bf16.msra.mxu0 %v259
    %388 = vmatprep.subr.bf16.mxu0 0
    %389 = vmatpush1.bf16.msra.mxu0 %v258
    %390 = vmatprep.subr.bf16.mxu0 0
    %391 = vmatpush1.bf16.msra.mxu0 %v257
    %392 = vmatprep.subr.bf16.mxu0 0
    %393 = vmatpush2.bf16.msra.mxu0 %v272
    %394 = vmatprep.subr.bf16.mxu0 0
    %395 = vmatpush2.bf16.msra.mxu0 %v271
    %396 = vmatprep.subr.bf16.mxu0 0
    %397 = vmatpush2.bf16.msra.mxu0 %v270
    %398 = vmatprep.subr.bf16.mxu0 0
    %399 = vmatpush2.bf16.msra.mxu0 %v269
    %400 = vmatprep.subr.bf16.mxu0 0
    %401 = vmatpush2.bf16.msra.mxu0 %v268
    %402 = vmatprep.subr.bf16.mxu0 0
    %403 = vmatpush2.bf16.msra.mxu0 %v267
    %404 = vmatprep.subr.bf16.mxu0 0
    %405 = vmatpush2.bf16.msra.mxu0 %v266
    %406 = vmatprep.subr.bf16.mxu0 0
    %407 = vmatpush2.bf16.msra.mxu0 %v265
    %408 = vmatprep.mubr.bf16.mxu0 %v179
    %409 = vmatmul.mubr.bf16.gmra.mxu0 %v151
    %v410 = vpop.f32.mrf.mxu0
    %v411 = vadd.f32 %v56, %v410
    %v412 = vpop.f32.mrf.mxu0
    %v413 = vpop.f32.mrf.mxu0
    %v414 = vpop.f32.mrf.mxu0
    %415 = vdwg.mxu0
    %416 = vmatprep.subr.bf16.mxu0 0
    %417 = vmatpush1.bf16.msra.mxu0 0
    %418 = vmatprep.subr.bf16.mxu0 0
    %419 = vmatpush1.bf16.msra.mxu0 0
    %420 = vmatprep.subr.bf16.mxu0 0
    %421 = vmatpush1.bf16.msra.mxu0 0
    %422 = vmatprep.subr.bf16.mxu0 0
    %423 = vmatpush1.bf16.msra.mxu0 0
    %424 = vmatprep.subr.bf16.mxu0 0
    %425 = vmatpush1.bf16.msra.mxu0 0
    %426 = vmatprep.subr.bf16.mxu0 0
    %427 = vmatpush1.bf16.msra.mxu0 0
    %428 = vmatprep.subr.bf16.mxu0 0
    %429 = vmatpush1.bf16.msra.mxu0 %v274
    %430 = vmatprep.subr.bf16.mxu0 0
    %431 = vmatpush1.bf16.msra.mxu0 %v273
    %432 = vmatprep.subr.bf16.mxu0 0
    %433 = vmatpush2.bf16.msra.mxu0 0
    %434 = vmatprep.subr.bf16.mxu0 0
    %435 = vmatpush2.bf16.msra.mxu0 0
    %436 = vmatprep.subr.bf16.mxu0 0
    %437 = vmatpush2.bf16.msra.mxu0 0
    %438 = vmatprep.subr.bf16.mxu0 0
    %439 = vmatpush2.bf16.msra.mxu0 0
    %440 = vmatprep.subr.bf16.mxu0 0
    %441 = vmatpush2.bf16.msra.mxu0 0
    %442 = vmatprep.subr.bf16.mxu0 0
    %443 = vmatpush2.bf16.msra.mxu0 0
    %444 = vmatprep.subr.bf16.mxu0 0
    %445 = vmatpush2.bf16.msra.mxu0 0
    %446 = vmatprep.subr.bf16.mxu0 0
    %447 = vmatpush2.bf16.msra.mxu0 0
    %448 = vmatprep.mubr.bf16.mxu0 0
    %449 = vmatmul.mubr.bf16.gmra.mxu0 %v294
    %v450 = vpop.f32.mrf.mxu0
    %v451 = vadd.f32 %v411, %v450
    %v452 = vpop.f32.mrf.mxu0
    %v453 = vpop.f32.mrf.mxu0
    %v454 = vpop.f32.mrf.mxu0
    %455 = vdwg.mxu0
    %456 = vmatprep.subr.bf16.mxu0 0
    %457 = vmatpush1.bf16.msra.mxu0 %v264
    %458 = vmatprep.subr.bf16.mxu0 0
    %459 = vmatpush1.bf16.msra.mxu0 %v263
    %460 = vmatprep.subr.bf16.mxu0 0
    %461 = vmatpush1.bf16.msra.mxu0 %v262
    %462 = vmatprep.subr.bf16.mxu0 0
    %463 = vmatpush1.bf16.msra.mxu0 %v261
    %464 = vmatprep.subr.bf16.mxu0 0
    %465 = vmatpush1.bf16.msra.mxu0 %v260
    %466 = vmatprep.subr.bf16.mxu0 0
    %467 = vmatpush1.bf16.msra.mxu0 %v259
    %468 = vmatprep.subr.bf16.mxu0 0
    %469 = vmatpush1.bf16.msra.mxu0 %v258
    %470 = vmatprep.subr.bf16.mxu0 0
    %471 = vmatpush1.bf16.msra.mxu0 %v257
    %472 = vmatprep.subr.bf16.mxu0 0
    %473 = vmatpush2.bf16.msra.mxu0 %v272
    %474 = vmatprep.subr.bf16.mxu0 0
    %475 = vmatpush2.bf16.msra.mxu0 %v271
    %476 = vmatprep.subr.bf16.mxu0 0
    %477 = vmatpush2.bf16.msra.mxu0 %v270
    %478 = vmatprep.subr.bf16.mxu0 0
    %479 = vmatpush2.bf16.msra.mxu0 %v269
    %480 = vmatprep.subr.bf16.mxu0 0
    %481 = vmatpush2.bf16.msra.mxu0 %v268
    %482 = vmatprep.subr.bf16.mxu0 0
    %483 = vmatpush2.bf16.msra.mxu0 %v267
    %484 = vmatprep.subr.bf16.mxu0 0
    %485 = vmatpush2.bf16.msra.mxu0 %v266
    %486 = vmatprep.subr.bf16.mxu0 0
    %487 = vmatpush2.bf16.msra.mxu0 %v265
    %488 = vmatprep.mubr.bf16.mxu0 %v181
    %489 = vmatmul.mubr.bf16.gmra.mxu0 %v154
    %v490 = vpop.f32.mrf.mxu0
    %v491 = vadd.f32 %v56, %v490
    %v492 = vpop.f32.mrf.mxu0
    %v493 = vpop.f32.mrf.mxu0
    %v494 = vpop.f32.mrf.mxu0
    %495 = vdwg.mxu0
    %496 = vmatprep.subr.bf16.mxu0 0
    %497 = vmatpush1.bf16.msra.mxu0 0
    %498 = vmatprep.subr.bf16.mxu0 0
    %499 = vmatpush1.bf16.msra.mxu0 0
    %500 = vmatprep.subr.bf16.mxu0 0
    %501 = vmatpush1.bf16.msra.mxu0 0
    %502 = vmatprep.subr.bf16.mxu0 0
    %503 = vmatpush1.bf16.msra.mxu0 0
    %504 = vmatprep.subr.bf16.mxu0 0
    %505 = vmatpush1.bf16.msra.mxu0 0
    %506 = vmatprep.subr.bf16.mxu0 0
    %507 = vmatpush1.bf16.msra.mxu0 0
    %508 = vmatprep.subr.bf16.mxu0 0
    %509 = vmatpush1.bf16.msra.mxu0 %v274
    %510 = vmatprep.subr.bf16.mxu0 0
    %511 = vmatpush1.bf16.msra.mxu0 %v273
    %512 = vmatprep.subr.bf16.mxu0 0
    %513 = vmatpush2.bf16.msra.mxu0 0
    %514 = vmatprep.subr.bf16.mxu0 0
    %515 = vmatpush2.bf16.msra.mxu0 0
    %516 = vmatprep.subr.bf16.mxu0 0
    %517 = vmatpush2.bf16.msra.mxu0 0
    %518 = vmatprep.subr.bf16.mxu0 0
    %519 = vmatpush2.bf16.msra.mxu0 0
    %520 = vmatprep.subr.bf16.mxu0 0
    %521 = vmatpush2.bf16.msra.mxu0 0
    %522 = vmatprep.subr.bf16.mxu0 0
    %523 = vmatpush2.bf16.msra.mxu0 0
    %524 = vmatprep.subr.bf16.mxu0 0
    %525 = vmatpush2.bf16.msra.mxu0 0
    %526 = vmatprep.subr.bf16.mxu0 0
    %527 = vmatpush2.bf16.msra.mxu0 0
    %528 = vmatprep.mubr.bf16.mxu0 0
    %529 = vmatmul.mubr.bf16.gmra.mxu0 %v294
    %v530 = vpop.f32.mrf.mxu0
    %v531 = vadd.f32 %v491, %v530
    %v532 = vpop.f32.mrf.mxu0
    %v533 = vpop.f32.mrf.mxu0
    %v534 = vpop.f32.mrf.mxu0
    %535 = vdwg.mxu0
    %536 = vmatprep.subr.bf16.mxu0 0
    %537 = vmatpush1.bf16.msra.mxu0 %v264
    %538 = vmatprep.subr.bf16.mxu0 0
    %539 = vmatpush1.bf16.msra.mxu0 %v263
    %540 = vmatprep.subr.bf16.mxu0 0
    %541 = vmatpush1.bf16.msra.mxu0 %v262
    %542 = vmatprep.subr.bf16.mxu0 0
    %543 = vmatpush1.bf16.msra.mxu0 %v261
    %544 = vmatprep.subr.bf16.mxu0 0
    %545 = vmatpush1.bf16.msra.mxu0 %v260
    %546 = vmatprep.subr.bf16.mxu0 0
    %547 = vmatpush1.bf16.msra.mxu0 %v259
    %548 = vmatprep.subr.bf16.mxu0 0
    %549 = vmatpush1.bf16.msra.mxu0 %v258
    %550 = vmatprep.subr.bf16.mxu0 0
    %551 = vmatpush1.bf16.msra.mxu0 %v257
    %552 = vmatprep.subr.bf16.mxu0 0
    %553 = vmatpush2.bf16.msra.mxu0 %v272
    %554 = vmatprep.subr.bf16.mxu0 0
    %555 = vmatpush2.bf16.msra.mxu0 %v271
    %556 = vmatprep.subr.bf16.mxu0 0
    %557 = vmatpush2.bf16.msra.mxu0 %v270
    %558 = vmatprep.subr.bf16.mxu0 0
    %559 = vmatpush2.bf16.msra.mxu0 %v269
    %560 = vmatprep.subr.bf16.mxu0 0
    %561 = vmatpush2.bf16.msra.mxu0 %v268
    %562 = vmatprep.subr.bf16.mxu0 0
    %563 = vmatpush2.bf16.msra.mxu0 %v267
    %564 = vmatprep.subr.bf16.mxu0 0
    %565 = vmatpush2.bf16.msra.mxu0 %v266
    %566 = vmatprep.subr.bf16.mxu0 0
    %567 = vmatpush2.bf16.msra.mxu0 %v265
    %568 = vmatprep.mubr.bf16.mxu0 %v183
    %569 = vmatmul.mubr.bf16.gmra.mxu0 %v157
    %v570 = vpop.f32.mrf.mxu0
    %v571 = vadd.f32 %v56, %v570
    %v572 = vpop.f32.mrf.mxu0
    %v573 = vpop.f32.mrf.mxu0
    %v574 = vpop.f32.mrf.mxu0
    %575 = vdwg.mxu0
    %576 = vmatprep.subr.bf16.mxu0 0
    %577 = vmatpush1.bf16.msra.mxu0 0
    %578 = vmatprep.subr.bf16.mxu0 0
    %579 = vmatpush1.bf16.msra.mxu0 0
    %580 = vmatprep.subr.bf16.mxu0 0
    %581 = vmatpush1.bf16.msra.mxu0 0
    %582 = vmatprep.subr.bf16.mxu0 0
    %583 = vmatpush1.bf16.msra.mxu0 0
    %584 = vmatprep.subr.bf16.mxu0 0
    %585 = vmatpush1.bf16.msra.mxu0 0
    %586 = vmatprep.subr.bf16.mxu0 0
    %587 = vmatpush1.bf16.msra.mxu0 0
    %588 = vmatprep.subr.bf16.mxu0 0
    %589 = vmatpush1.bf16.msra.mxu0 %v274
    %590 = vmatprep.subr.bf16.mxu0 0
    %591 = vmatpush1.bf16.msra.mxu0 %v273
    %592 = vmatprep.subr.bf16.mxu0 0
    %593 = vmatpush2.bf16.msra.mxu0 0
    %594 = vmatprep.subr.bf16.mxu0 0
    %595 = vmatpush2.bf16.msra.mxu0 0
    %596 = vmatprep.subr.bf16.mxu0 0
    %597 = vmatpush2.bf16.msra.mxu0 0
    %598 = vmatprep.subr.bf16.mxu0 0
    %599 = vmatpush2.bf16.msra.mxu0 0
    %600 = vmatprep.subr.bf16.mxu0 0
    %601 = vmatpush2.bf16.msra.mxu0 0
    %602 = vmatprep.subr.bf16.mxu0 0
    %603 = vmatpush2.bf16.msra.mxu0 0
    %604 = vmatprep.subr.bf16.mxu0 0
    %605 = vmatpush2.bf16.msra.mxu0 0
    %606 = vmatprep.subr.bf16.mxu0 0
    %607 = vmatpush2.bf16.msra.mxu0 0
    %608 = vmatprep.mubr.bf16.mxu0 0
    %609 = vmatmul.mubr.bf16.gmra.mxu0 %v294
    %v610 = vpop.f32.mrf.mxu0
    %v611 = vadd.f32 %v571, %v610
    %v612 = vpop.f32.mrf.mxu0
    %v613 = vpop.f32.mrf.mxu0
    %v614 = vpop.f32.mrf.mxu0
    %615 = vdwg.mxu0
    %vm616 = vcmask 253952
    %617 = vst.msk [vmem:[#allocation2] sm:$0x1] %vm616, %v371
    %618 = vst.msk [vmem:[#allocation2 + $0x1] sm:$0x1] %vm616, %v451
    %619 = vst.msk [vmem:[#allocation2 + $0x2] sm:$0x1] %vm616, %v531
    %620 = vst.msk [vmem:[#allocation2 + $0x3] sm:$0x1] %vm616, %v611
    // Predicated region
    $region14: #{spiking_tokenizer.17} parent=1 // pred_check
      _
    $region15: #{spiking_tokenizer.17} parent=1 // pred_check_branch
      %622 = sbr.rel (0) target = $region17
    $region16: #{spiking_tokenizer.17} parent=1 // pred_region
      %s624 = ssub.s32 64, 64
      %625 = vsyncadd [#allocation3], %s624
      %s626 = sshll.u32 [#allocation2], 4
      %s627 = int_to_ptr.vmem [resolvable:$true] %s626
      %632 = dma.vmem_to_hbm [thread:$0]  %s627, 64, %s3, [#allocation3], 16, 16, 1
    $region17: #{spiking_tokenizer.17} parent=1 // pred_fallthru
      _
    // Predicated region
    $region18: #{spiking_tokenizer.17} parent=1 // pred_check
      _
    $region19: #{spiking_tokenizer.17} parent=1 // pred_check_branch
      %634 = sbr.rel (0) target = $region21
    $region20: #{spiking_tokenizer.17} parent=1 // pred_region
      %635 = dma.done [#allocation3], 64
    $region21: #{spiking_tokenizer.17} parent=1 // pred_fallthru
      _
    %636 = vsyncpa [#allocation3], 1

</llo_original>
